<compile_context>
chip_gen: v7x
topology: tpu7x:2x2x1
jax: 0.10.0
libtpu: 0.0.40
codegen_flags: <defaults>
</compile_context>

<pallas_src>
import functools
import math

import jax
import jax.numpy as jnp
from jax import lax
from jax.experimental import pallas as pl
from jax.experimental.pallas import tpu as pltpu

LN_EPS = 1e-5


# ----------------------------- math helpers (kernel + reference) --------------------------

def _softplus(x):
    return jnp.log(1.0 + jnp.exp(-jnp.abs(x))) + jnp.maximum(x, 0.0)


def _erf(x):
    # Abramowitz & Stegun 7.1.26 (|err| < 1.5e-7); reference-path only.
    p = 0.3275911
    a1, a2, a3, a4, a5 = 0.254829592, -0.284496736, 1.421413741, -1.453152027, 1.061405429
    s = jnp.where(x >= 0, 1.0, -1.0)
    ax = jnp.abs(x)
    t = 1.0 / (1.0 + p * ax)
    poly = ((((a5 * t + a4) * t + a3) * t + a2) * t + a1) * t
    return s * (1.0 - poly * jnp.exp(-ax * ax))


def _gelu_exact(x):
    # matches torch.nn.GELU(approximate='none') to ~1e-7 (reference path)
    return 0.5 * x * (1.0 + _erf(x * 0.7071067811865476))


def _gelu_tanh(x):
    # tanh-form GELU: transcendental lands on the EUP slot; |diff| vs exact erf GELU < 1e-3,
    # covered by the mixed-precision tolerance of the self-check.
    c = 0.7978845608028654  # sqrt(2/pi)
    return 0.5 * x * (1.0 + jnp.tanh(c * (x + 0.044715 * x * x * x)))


def _silu(x):
    return x * jax.nn.sigmoid(x)


def _round_up(a, b):
    return -(-a // b) * b


# ------------------------- sublane-shift helper (XLU roll with fallback) --------------------

_SHIFT_MODE = None  # +1: pltpu.roll == jnp.roll ; -1: opposite direction ; 0: concat fallback


def _probe_shift_mode():
    """One-time eager probe: use pltpu.roll on the sublane axis if it lowers and its
    direction is verified against jnp.roll, otherwise fall back to a concatenate shift."""
    global _SHIFT_MODE
    if _SHIFT_MODE is not None:
        return _SHIFT_MODE
    try:
        def k(x_ref, o_ref):
            o_ref[...] = pltpu.roll(x_ref[...], shift=8, axis=0)

        x = jnp.arange(512 * 32, dtype=jnp.float32).reshape(512, 32)
        y = pl.pallas_call(k, out_shape=jax.ShapeDtypeStruct((512, 32), jnp.float32))(x)
        if bool(jnp.array_equal(y, jnp.roll(x, 8, axis=0))):
            _SHIFT_MODE = 1
        elif bool(jnp.array_equal(y, jnp.roll(x, -8, axis=0))):
            _SHIFT_MODE = -1
        else:
            _SHIFT_MODE = 0
    except Exception:
        _SHIFT_MODE = 0
    return _SHIFT_MODE


def _shift_rows_down(v, s, fill, row, mode):
    """rows [s:] <- v[:-s]; rows [:s] <- fill.  v: (N, D) f32, s static int multiple of 8."""
    n, c = v.shape
    if s >= n:
        return jnp.full((n, c), fill, v.dtype)
    if mode != 0:
        t = s if mode == 1 else n - s           # positive rotate amount in [1, n)
        shifted = pltpu.roll(v, shift=t, axis=0)
        return jnp.where(row < s, fill, shifted)
    return jnp.concatenate([jnp.full((s, c), fill, v.dtype), v[: n - s, :]], axis=0)


# ------------------------------------ Pallas kernels ---------------------------------------

def _mlp_kernel(s_ref, y_ref, w1_ref, b1_ref, w2_ref, b2_ref, o_ref):
    # fused: (shortcut + mamba_branch) -> LayerNorm(no affine) -> fc1 -> tanh-GELU -> fc2 -> +res
    f32 = jnp.float32
    x = s_ref[...].astype(f32) + y_ref[...].astype(f32)
    mu = jnp.mean(x, axis=-1, keepdims=True)
    xc = x - mu
    var = jnp.mean(xc * xc, axis=-1, keepdims=True)
    xn = xc * lax.rsqrt(var + LN_EPS)
    h = jnp.dot(xn.astype(jnp.bfloat16), w1_ref[...], preferred_element_type=f32) + b1_ref[...]
    h = _gelu_tanh(h)
    y2 = jnp.dot(h.astype(jnp.bfloat16), w2_ref[...], preferred_element_type=f32) + b2_ref[...]
    o_ref[...] = (x + y2).astype(o_ref.dtype)


def _mamba_kernel(x_ref, w_in_ref, cw_ref, cb_ref, w_xp_ref, b_dt_ref,
                  alog_ref, dpar_ref, wout_ref, o_ref,
                  *, d_inner, d_state, d_conv, wb, seq_len, shift_mode):
    f32 = jnp.float32
    bf16 = jnp.bfloat16
    N = x_ref.shape[0]                      # = wb * seq_len, rows ordered row = t*wb + w

    # row index hoisted once (reused by conv taps and every scan pass)
    row = lax.broadcasted_iota(jnp.int32, (N, 1), 0)

    # ---- fused norm1 (LayerNorm, elementwise_affine=False) ----
    x = x_ref[...].astype(f32)
    mu = jnp.mean(x, axis=-1, keepdims=True)
    xc0 = x - mu
    var = jnp.mean(xc0 * xc0, axis=-1, keepdims=True)
    xn = xc0 * lax.rsqrt(var + LN_EPS)

    # ---- in_proj: one fused (C, 2*d_inner) matmul, split into x / z halves ----
    xz = jnp.dot(xn.astype(bf16), w_in_ref[...], preferred_element_type=f32)   # (N, 2*d_inner)
    xp = xz[:, :d_inner]
    z = xz[:, d_inner:]

    # ---- causal depthwise conv1d over time + SiLU ----
    # time-major layout: a shift of s timesteps == a shift of s*wb rows (sublane aligned).
    cw = cw_ref[...].astype(f32)                                               # (d_conv, d_inner)
    acc = xp * cw[d_conv - 1:d_conv, :]
    for k in range(d_conv - 1):
        s = (d_conv - 1 - k) * wb
        acc = acc + _shift_rows_down(xp, s, 0.0, row, shift_mode) * cw[k:k + 1, :]
    xc = acc + cb_ref[...]
    xc = xc * jax.nn.sigmoid(xc)                                               # (N, d_inner)

    # ---- x_proj with dt_proj folded in: one matmul -> [delta_pre | B | C] ----
    xproj = jnp.dot(xc.astype(bf16), w_xp_ref[...], preferred_element_type=f32)
    delta = _softplus(xproj[:, :d_inner] + b_dt_ref[...])                      # (N, d_inner)
    B_ssm = xproj[:, d_inner:d_inner + d_state]
    C_ssm = xproj[:, d_inner + d_state:]

    # ---- discretize ----
    A = -jnp.exp(alog_ref[...].astype(f32))                                    # (d_state, d_inner)
    dx = delta * xc
    da_cols = [jnp.exp(delta * A[n:n + 1, :]) for n in range(d_state)]
    db_cols = [dx * B_ssm[:, n:n + 1] for n in range(d_state)]
    a = da_cols[0] if d_state == 1 else jnp.concatenate(da_cols, axis=1)
    b = db_cols[0] if d_state == 1 else jnp.concatenate(db_cols, axis=1)

    # ---- selective scan: h_t = a_t * h_{t-1} + b_t, vectorized Hillis-Steele ----
    # windows occupy distinct rows modulo wb, so shifting by multiples of wb never mixes
    # them; rows < s receive the scan identity (a=1, b=0).
    d = 1
    while d < seq_len:
        s = d * wb
        b_prev = _shift_rows_down(b, s, 0.0, row, shift_mode)
        b = a * b_prev + b
        if d * 2 < seq_len:                       # a is not needed after the last pass
            a_prev = _shift_rows_down(a, s, 1.0, row, shift_mode)
            a = a * a_prev
        d *= 2
    h = b                                                                      # (N, d_state*d_inner)

    # ---- y = sum_n h_n * C_n + D*x ; SiLU(z) gate ; out_proj ----
    y = xc * dpar_ref[...]
    for n in range(d_state):
        y = y + h[:, n * d_inner:(n + 1) * d_inner] * C_ssm[:, n:n + 1]
    y = y * (z * jax.nn.sigmoid(z))
    o_ref[...] = jnp.dot(y.astype(bf16), wout_ref[...],
                         preferred_element_type=f32).astype(o_ref.dtype)


# ------------------------------------ Pallas wrappers ---------------------------------------

def _pad_rows(x, tm):
    n = x.shape[0]
    n_pad = _round_up(n, tm)
    if n_pad != n:
        x = jnp.pad(x, ((0, n_pad - n), (0, 0)))
    return x, n


def mlp_pallas(shortcut, y, p):
    # shortcut, y: (N_tokens, C); computes x = shortcut + y; returns x + Mlp(LayerNorm(x))
    n_tokens = shortcut.shape[0]
    tm = min(512, _round_up(n_tokens, 8))
    sp, n = _pad_rows(shortcut, tm)
    yp, _ = _pad_rows(y, tm)
    Np, C = sp.shape
    Hd = p["w1"].shape[1]
    w1 = p["w1"].astype(jnp.bfloat16)        # bf16 MXU operands (f32 accumulate)
    w2 = p["w2"].astype(jnp.bfloat16)
    full = lambda i: (0, 0)
    cost = pl.CostEstimate(flops=4 * Np * C * Hd,
                           transcendentals=Np * Hd,
                           bytes_accessed=4 * (3 * Np * C + 2 * C * Hd))
    out = pl.pallas_call(
        _mlp_kernel,
        out_shape=jax.ShapeDtypeStruct((Np, C), shortcut.dtype),
        grid=(Np // tm,),
        in_specs=[
            pl.BlockSpec((tm, C), lambda i: (i, 0)),
            pl.BlockSpec((tm, C), lambda i: (i, 0)),
            pl.BlockSpec((C, Hd), full),
            pl.BlockSpec((1, Hd), full),
            pl.BlockSpec((Hd, C), full),
            pl.BlockSpec((1, C), full),
        ],
        out_specs=pl.BlockSpec((tm, C), lambda i: (i, 0)),
        compiler_params=pltpu.CompilerParams(dimension_semantics=("parallel",)),
        cost_estimate=cost,
        input_output_aliases={0: 0},
    )(sp, yp, w1, p["b1"], w2, p["b2"])
    return out[:n]


def _mamba_call(xb, p, wb, seq_len):
    # xb: (NB, wb*seq_len, C) time-major window batches (row = t*wb + w_local)
    NB, N, C = xb.shape
    d_conv, d_inner = p["conv_w"].shape
    d_state = p["w_x_b"].shape[1]
    assert wb % 8 == 0, "window batch must be sublane-aligned (conv taps / scan shifts)"

    bf16 = jnp.bfloat16
    # fuse the small projection weights; fold dt_proj into x_proj (w_dtc = w_x_dt @ w_dt)
    w_in = jnp.concatenate([p["w_in_x"], p["w_in_z"]], axis=1).astype(bf16)    # (C, 2*d_inner)
    w_dtc = p["w_x_dt"] @ p["w_dt"]                                            # (d_inner, d_inner)
    w_xp = jnp.concatenate([w_dtc, p["w_x_b"], p["w_x_c"]], axis=1).astype(bf16)
    w_out = p["w_out"].astype(bf16)

    kernel = functools.partial(_mamba_kernel, d_inner=d_inner, d_state=d_state,
                               d_conv=d_conv, wb=wb, seq_len=seq_len,
                               shift_mode=_probe_shift_mode())
    full = lambda i: (0, 0)
    win = lambda i: (i, 0, 0)
    ntok = NB * N
    flops = 2 * ntok * (C * 2 * d_inner + d_inner * (d_inner + 2 * d_state) + d_inner * C)
    cost = pl.CostEstimate(flops=flops,
                           transcendentals=6 * ntok * d_inner,
                           bytes_accessed=8 * ntok * C)
    out = pl.pallas_call(
        kernel,
        out_shape=jax.ShapeDtypeStruct((NB, N, C), xb.dtype),
        grid=(NB,),
        in_specs=[
            pl.BlockSpec((None, N, C), win),
            pl.BlockSpec(w_in.shape, full),
            pl.BlockSpec(p["conv_w"].shape, full),
            pl.BlockSpec(p["conv_b"].shape, full),
            pl.BlockSpec(w_xp.shape, full),
            pl.BlockSpec(p["b_dt"].shape, full),
            pl.BlockSpec(p["a_log"].shape, full),
            pl.BlockSpec(p["d"].shape, full),
            pl.BlockSpec(w_out.shape, full),
        ],
        out_specs=pl.BlockSpec((None, N, C), win),
        compiler_params=pltpu.CompilerParams(dimension_semantics=("parallel",)),
        cost_estimate=cost,
    )(xb, w_in, p["conv_w"], p["conv_b"], w_xp, p["b_dt"], p["a_log"], p["d"], w_out)
    return out


def mamba_branch_pallas(xsh, ws, p):
    # xsh: (B, Dp, Hp, Wp, C) already padded/shifted; returns the same shape.
    B, Dp, Hp, Wp, C = xsh.shape
    nD, nH, nW = Dp // ws[0], Hp // ws[1], Wp // ws[2]
    L = ws[0] * ws[1] * ws[2]
    wpb = nD * nH * nW                      # windows per batch element

    if wpb % 8 == 0 and wpb <= 64 and wpb * L <= 8192:
        # fast path: ONE transpose per direction; window_partition and the time-major
        # interleave are composed.  grid=(B,) "parallel" -> megacore work split on v7x.
        xr = xsh.reshape(B, nD, ws[0], nH, ws[1], nW, ws[2], C)
        xb = xr.transpose(0, 2, 4, 6, 1, 3, 5, 7).reshape(B, L * wpb, C)
        out = _mamba_call(xb, p, wb=wpb, seq_len=L)
        yr = out.reshape(B, ws[0], ws[1], ws[2], nD, nH, nW, C)
        return yr.transpose(0, 4, 1, 5, 2, 6, 3, 7).reshape(B, Dp, Hp, Wp, C)

    # generic fallback: explicit window partition + batched time-major interleave (+ padding)
    xw = window_partition(xsh, ws)          # (num_windows, L, C)
    NW = xw.shape[0]
    wb = min(_round_up(NW, 8), 16)
    NW_pad = _round_up(NW, wb)
    NB = NW_pad // wb
    if NW_pad != NW:
        xw = jnp.pad(xw, ((0, NW_pad - NW), (0, 0), (0, 0)))
    xb = xw.reshape(NB, wb, L, C).transpose(0, 2, 1, 3).reshape(NB, wb * L, C)
    out = _mamba_call(xb, p, wb=wb, seq_len=L)
    yw = out.reshape(NB, L, wb, C).transpose(0, 2, 1, 3).reshape(NW_pad, L, C)[:NW]
    return window_reverse(yw, ws, B, Dp, Hp, Wp)


# ------------------------------ pure-JAX reference (verification) ---------------------------

def layernorm_ref(x):
    mu = jnp.mean(x, axis=-1, keepdims=True)
    var = jnp.mean((x - mu) ** 2, axis=-1, keepdims=True)
    return (x - mu) / jnp.sqrt(var + LN_EPS)


def mlp_ref(shortcut, y, p):
    x = shortcut + y
    xn = layernorm_ref(x)
    h = _gelu_exact(xn @ p["w1"] + p["b1"])
    return x + (h @ p["w2"] + p["b2"])


def mamba_ref(xw, p):
    NW, L, C = xw.shape
    d_conv, d_inner = p["conv_w"].shape
    d_state = p["w_x_b"].shape[1]
    xw = layernorm_ref(xw)                                            # fused norm1 equivalent
    xp = xw @ p["w_in_x"]
    z = xw @ p["w_in_z"]
    xpad = jnp.pad(xp, ((0, 0), (d_conv - 1, 0), (0, 0)))
    xc = sum(xpad[:, k:k + L, :] * p["conv_w"][k] for k in range(d_conv)) + p["conv_b"]
    xc = _silu(xc)
    delta = _softplus(xc @ p["w_x_dt"] @ p["w_dt"] + p["b_dt"])       # (NW, L, di)
    Bs = xc @ p["w_x_b"]                                              # (NW, L, d_state)
    Cs = xc @ p["w_x_c"]
    A = -jnp.exp(p["a_log"])                                          # (d_state, di)
    dA = jnp.exp(delta[..., None, :] * A)                             # (NW, L, n, di)
    dBu = (delta * xc)[..., None, :] * Bs[..., :, None]

    def step(h, inp):
        dA_t, dBu_t, C_t = inp
        h = dA_t * h + dBu_t
        y = jnp.sum(h * C_t[..., None], axis=1)
        return h, y

    h0 = jnp.zeros((NW, d_state, d_inner), jnp.float32)
    _, ys = lax.scan(step, h0, (jnp.moveaxis(dA, 1, 0),
                                jnp.moveaxis(dBu, 1, 0),
                                jnp.moveaxis(Cs, 1, 0)))
    y = jnp.moveaxis(ys, 0, 1) + xc * p["d"]
    y = y * _silu(z)
    return y @ p["w_out"]


def mamba_branch_ref(xsh, ws, p):
    B, Dp, Hp, Wp, C = xsh.shape
    xw = window_partition(xsh, ws)
    yw = mamba_ref(xw, p)
    return window_reverse(yw, ws, B, Dp, Hp, Wp)


# ----------------------------------------- model glue ---------------------------------------

def get_window_size(x_size, window_size, shift_size=None):
    use_ws = list(window_size)
    use_ss = list(shift_size) if shift_size is not None else None
    for i in range(len(x_size)):
        if x_size[i] <= window_size[i]:
            use_ws[i] = x_size[i]
            if use_ss is not None:
                use_ss[i] = 0
    if shift_size is None:
        return tuple(use_ws)
    return tuple(use_ws), tuple(use_ss)


def window_partition(x, ws):
    B, D, H, W, C = x.shape
    x = x.reshape(B, D // ws[0], ws[0], H // ws[1], ws[1], W // ws[2], ws[2], C)
    x = jnp.transpose(x, (0, 1, 3, 5, 2, 4, 6, 7))
    return x.reshape(-1, ws[0] * ws[1] * ws[2], C)


def window_reverse(windows, ws, B, D, H, W):
    x = windows.reshape(B, D // ws[0], H // ws[1], W // ws[2], ws[0], ws[1], ws[2], -1)
    x = jnp.transpose(x, (0, 1, 4, 2, 5, 3, 6, 7))
    return x.reshape(B, D, H, W, -1)


def mamba_block_forward(x, window_size, shift_size, mamba_branch_fn, mlp_fn):
    # x: (B, D, H, W, C).  norm1 / norm2 / both residual adds are fused inside the kernels.
    B, D, H, W, C = x.shape
    ws, ss = get_window_size((D, H, W), window_size, shift_size)
    shortcut = x

    # --- forward_part1 (norm1 fused into the Mamba kernel; LN(0)=0 keeps zero padding) ---
    pad_d1 = (ws[0] - D % ws[0]) % ws[0]
    pad_b = (ws[1] - H % ws[1]) % ws[1]
    pad_r = (ws[2] - W % ws[2]) % ws[2]
    xpd = jnp.pad(x, ((0, 0), (0, pad_d1), (0, pad_b), (0, pad_r), (0, 0)))
    if any(i > 0 for i in ss):
        xsh = jnp.roll(xpd, shift=(-ss[0], -ss[1], -ss[2]), axis=(1, 2, 3))
    else:
        xsh = xpd
    ysh = mamba_branch_fn(xsh, ws)
    if any(i > 0 for i in ss):
        y = jnp.roll(ysh, shift=ss, axis=(1, 2, 3))
    else:
        y = ysh
    y = y[:, :D, :H, :W, :]

    # --- residual add (shortcut + mamba branch) is fused into the MLP kernel prologue ---
    n_tok = B * D * H * W
    out = mlp_fn(shortcut.reshape(n_tok, C), y.reshape(n_tok, C))
    return out.reshape(B, D, H, W, C)


def basic_layer_forward(x, params, window_size, use_pallas=True):
    # x: (B, C, D, H, W)  (downsample is None: in_dim == dim, patch_size == (1,1,1))
    B, C, D, H, W = x.shape
    shift_full = tuple(i // 2 for i in window_size)
    x = jnp.transpose(x, (0, 2, 3, 4, 1))      # b c d h w -> b d h w c
    for i, p in enumerate(params["blocks"]):
        ss = (0, 0, 0) if i % 2 == 0 else shift_full
        if use_pallas:
            mamba_fn = functools.partial(mamba_branch_pallas, p=p["ssm"])
            mlp_fn = functools.partial(mlp_pallas, p=p["mlp"])
        else:
            mamba_fn = functools.partial(mamba_branch_ref, p=p["ssm"])
            mlp_fn = functools.partial(mlp_ref, p=p["mlp"])
        x = mamba_block_forward(x, window_size, ss, mamba_fn, mlp_fn)
    x = x.reshape(B, D, H, W, -1)
    x = jnp.transpose(x, (0, 4, 1, 2, 3))      # b d h w c -> b c d h w
    return x


# ------------------------------------- parameter init ---------------------------------------

def init_mamba_params(key, dim, d_state, expand, d_conv, dt_min, dt_max):
    d_inner = int(expand * dim)
    dt_rank = math.ceil(dim / 16)
    ks = jax.random.split(key, 9)
    f = jnp.float32
    u = jax.random.uniform(ks[7], (d_inner,), dtype=f)
    dt = jnp.exp(u * (math.log(dt_max) - math.log(dt_min)) + math.log(dt_min))
    dt = jnp.maximum(dt, 1e-4)
    b_dt = jnp.log(jnp.expm1(dt))[None, :]            # inverse softplus
    a_log = jnp.broadcast_to(
        jnp.log(jnp.arange(1, d_state + 1, dtype=f))[:, None], (d_state, d_inner))
    return {
        "w_in_x": jax.random.normal(ks[0], (dim, d_inner), f) * 0.05,
        "w_in_z": jax.random.normal(ks[1], (dim, d_inner), f) * 0.05,
        "conv_w": jax.random.normal(ks[2], (d_conv, d_inner), f) * 0.2,
        "conv_b": jnp.zeros((1, d_inner), f),
        "w_x_dt": jax.random.normal(ks[3], (d_inner, dt_rank), f) * 0.05,
        "w_x_b": jax.random.normal(ks[4], (d_inner, d_state), f) * 0.05,
        "w_x_c": jax.random.normal(ks[5], (d_inner, d_state), f) * 0.05,
        "w_dt": jax.random.normal(ks[6], (dt_rank, d_inner), f) * (dt_rank ** -0.5),
        "b_dt": b_dt.astype(f),
        "a_log": a_log.astype(f),
        "d": jnp.ones((1, d_inner), f),
        "w_out": jax.random.normal(ks[8], (d_inner, dim), f) * 0.05,
    }


def init_mlp_params(key, dim, mlp_ratio):
    hidden = int(dim * mlp_ratio)
    k1, k2 = jax.random.split(key)
    f = jnp.float32
    return {
        "w1": jax.random.normal(k1, (dim, hidden), f) * 0.05,
        "b1": jnp.zeros((1, hidden), f),
        "w2": jax.random.normal(k2, (hidden, dim), f) * 0.05,
        "b2": jnp.zeros((1, dim), f),
    }


def init_basic_layer_params(key, dim, depth, d_state, expand, d_conv, dt_min, dt_max, mlp_ratio):
    blocks = []
    for i in range(depth):
        k_ssm, k_mlp, key = jax.random.split(key, 3)
        blocks.append({
            "ssm": init_mamba_params(k_ssm, dim, d_state, expand, d_conv, dt_min, dt_max),
            "mlp": init_mlp_params(k_mlp, dim, mlp_ratio),
        })
    return {"blocks": blocks}


# ---------------------------------------------- main ----------------------------------------

if __name__ == "__main__":
    _probe_shift_mode()                      # eager (outside jit): choose roll vs concat shifts

    key = jax.random.PRNGKey(0)
    B, C, D, H, W = 2, 32, 8, 8, 8           # BasicLayer input: (B, C, D, H, W), dim = C = 32
    depth = 2
    window_size = (4, 4, 4)                  # block 0: no shift, block 1: shift (2, 2, 2)

    kx, kp = jax.random.split(key)
    x = jax.random.normal(kx, (B, C, D, H, W), dtype=jnp.float32)
    params = init_basic_layer_params(kp, dim=C, depth=depth, d_state=1, expand=1,
                                     d_conv=3, dt_min=0.01, dt_max=0.1, mlp_ratio=4.0)

    fwd_pallas = jax.jit(lambda xx, pp: basic_layer_forward(xx, pp, window_size, True))
    fwd_ref = jax.jit(lambda xx, pp: basic_layer_forward(xx, pp, window_size, False))

    out = jax.block_until_ready(fwd_pallas(x, params))
    assert out.shape == (B, C, D, H, W)
    assert bool(jnp.all(jnp.isfinite(out)))

    ref = jax.block_until_ready(fwd_ref(x, params))
    err = float(jnp.max(jnp.abs(out - ref)))
    # tolerance covers bf16 MXU operands + tanh-GELU vs the f32 / exact-erf reference
    assert err < 2e-2, f"Pallas vs reference mismatch: max abs diff = {err}"

    print("KERNEL_OK")
</pallas_src>

<mosaic_0001>
module attributes {stable_mosaic.version = 11 : i64} {
  func.func @k(%arg0: memref<512x32xf32, #tpu.memory_space<vmem>>, %arg1: memref<512x32xf32, #tpu.memory_space<vmem>>) attributes {dimension_semantics = [], scalar_prefetch = 0 : i64, scratch_operands = 0 : i64, tpu.core_type = #tpu.core_type<tc>} {
    %c0 = arith.constant 0 : index
    %c0_0 = arith.constant 0 : index
    %0 = vector.load %arg0[%c0, %c0_0] : memref<512x32xf32, #tpu.memory_space<vmem>>, vector<512x32xf32>
    %c8_i32 = arith.constant 8 : i32
    %1 = tpu.dynamic_rotate %0 by %c8_i32 dim 0 : vector<512x32xf32>, i32 -> vector<512x32xf32>
    %c0_1 = arith.constant 0 : index
    %c0_2 = arith.constant 0 : index
    %2 = vector.load %arg1[%c0_1, %c0_2] : memref<512x32xf32, #tpu.memory_space<vmem>>, vector<512x32xf32>
    tpu.vector_store %arg1[%c0_1, %c0_2], %1 {strides = array<i32>} : memref<512x32xf32, #tpu.memory_space<vmem>>, vector<512x32xf32>,
    return
  }
}

module attributes {stable_mosaic.version = 11 : i64} {
  func.func @_mlp_kernel(%arg0: i32, %arg1: memref<512x32xf32, #tpu.memory_space<vmem>>, %arg2: memref<512x32xf32, #tpu.memory_space<vmem>>, %arg3: memref<32x128xbf16, #tpu.memory_space<vmem>>, %arg4: memref<1x128xf32, #tpu.memory_space<vmem>>, %arg5: memref<128x32xbf16, #tpu.memory_space<vmem>>, %arg6: memref<1x32xf32, #tpu.memory_space<vmem>>, %arg7: memref<512x32xf32, #tpu.memory_space<vmem>>) attributes {dimension_semantics = [#tpu.dimension_semantics<parallel>], iteration_bounds = array<i64: 2>, scalar_prefetch = 0 : i64, scratch_operands = 0 : i64, tpu.core_type = #tpu.core_type<tc>, window_params = [{transform_indices = @transform_0, window_bounds = array<i64: 512, 32>}, {transform_indices = @transform_1, window_bounds = array<i64: 512, 32>}, {pipeline_mode = #tpu.pipeline_mode<synchronous>, transform_indices = @transform_2, window_bounds = array<i64: 32, 128>}, {pipeline_mode = #tpu.pipeline_mode<synchronous>, transform_indices = @transform_3, window_bounds = array<i64: 1, 128>}, {pipeline_mode = #tpu.pipeline_mode<synchronous>, transform_indices = @transform_4, window_bounds = array<i64: 128, 32>}, {pipeline_mode = #tpu.pipeline_mode<synchronous>, transform_indices = @transform_5, window_bounds = array<i64: 1, 32>}, {transform_indices = @transform_6, window_bounds = array<i64: 512, 32>}]} {
    %c0 = arith.constant 0 : index
    %c0_0 = arith.constant 0 : index
    %0 = vector.load %arg1[%c0, %c0_0] : memref<512x32xf32, #tpu.memory_space<vmem>>, vector<512x32xf32>
    %c0_1 = arith.constant 0 : index
    %c0_2 = arith.constant 0 : index
    %1 = vector.load %arg2[%c0_1, %c0_2] : memref<512x32xf32, #tpu.memory_space<vmem>>, vector<512x32xf32>
    %2 = arith.addf %0, %1 : vector<512x32xf32>
    %cst = arith.constant dense<0.000000e+00> : vector<512xf32>
    %3 = vector.multi_reduction <add>, %2, %cst [1] : vector<512x32xf32> to vector<512xf32>
    %4 = vector.shape_cast %3 : vector<512xf32> to vector<512x1xf32>
    %cst_3 = arith.constant 3.200000e+01 : f32
    %5 = vector.broadcast %cst_3 : f32 to vector<512x1xf32>
    %6 = arith.divf %4, %5 : vector<512x1xf32>
    %7 = vector.broadcast %6 : vector<512x1xf32> to vector<512x32xf32>
    %8 = arith.subf %2, %7 : vector<512x32xf32>
    %9 = arith.mulf %8, %8 : vector<512x32xf32>
    %cst_4 = arith.constant dense<0.000000e+00> : vector<512xf32>
    %10 = vector.multi_reduction <add>, %9, %cst_4 [1] : vector<512x32xf32> to vector<512xf32>
    %11 = vector.shape_cast %10 : vector<512xf32> to vector<512x1xf32>
    %cst_5 = arith.constant 3.200000e+01 : f32
    %12 = vector.broadcast %cst_5 : f32 to vector<512x1xf32>
    %13 = arith.divf %11, %12 : vector<512x1xf32>
    %cst_6 = arith.constant 9.99999974E-6 : f32
    %14 = vector.broadcast %cst_6 : f32 to vector<512x1xf32>
    %15 = arith.addf %13, %14 : vector<512x1xf32>
    %16 = math.rsqrt %15 : vector<512x1xf32>
    %17 = vector.broadcast %16 : vector<512x1xf32> to vector<512x32xf32>
    %18 = arith.mulf %8, %17 : vector<512x32xf32>
    %19 = arith.truncf %18 : vector<512x32xf32> to vector<512x32xbf16>
    %c0_7 = arith.constant 0 : index
    %c0_8 = arith.constant 0 : index
    %20 = vector.load %arg3[%c0_7, %c0_8] : memref<32x128xbf16, #tpu.memory_space<vmem>>, vector<32x128xbf16>
    %cst_9 = arith.constant dense<0.000000e+00> : vector<512x128xf32>
    %21 = tpu.matmul %19, %20, %cst_9 {dimension_numbers = #tpu.dot_dimension_numbers<[1], [0], [0], [1], [0, 0, 1, 1], [], []>} : vector<512x32xbf16>, vector<32x128xbf16>, vector<512x128xf32> -> vector<512x128xf32>
    %c0_10 = arith.constant 0 : index
    %c0_11 = arith.constant 0 : index
    %22 = vector.load %arg4[%c0_10, %c0_11] : memref<1x128xf32, #tpu.memory_space<vmem>>, vector<1x128xf32>
    %23 = vector.broadcast %22 : vector<1x128xf32> to vector<512x128xf32>
    %24 = arith.addf %21, %23 : vector<512x128xf32>
    %cst_12 = arith.constant 5.000000e-01 : f32
    %25 = vector.broadcast %cst_12 : f32 to vector<512x128xf32>
    %26 = arith.mulf %25, %24 : vector<512x128xf32>
    %cst_13 = arith.constant 4.471500e-02 : f32
    %27 = vector.broadcast %cst_13 : f32 to vector<512x128xf32>
    %28 = arith.mulf %27, %24 : vector<512x128xf32>
    %29 = arith.mulf %28, %24 : vector<512x128xf32>
    %30 = arith.mulf %29, %24 : vector<512x128xf32>
    %31 = arith.addf %24, %30 : vector<512x128xf32>
    %cst_14 = arith.constant 0.797884583 : f32
    %32 = vector.broadcast %cst_14 : f32 to vector<512x128xf32>
    %33 = arith.mulf %32, %31 : vector<512x128xf32>
    %34 = math.tanh %33 : vector<512x128xf32>
    %cst_15 = arith.constant 1.000000e+00 : f32
    %35 = vector.broadcast %cst_15 : f32 to vector<512x128xf32>
    %36 = arith.addf %35, %34 : vector<512x128xf32>
    %37 = arith.mulf %26, %36 : vector<512x128xf32>
    %38 = arith.truncf %37 : vector<512x128xf32> to vector<512x128xbf16>
    %c0_16 = arith.constant 0 : index
    %c0_17 = arith.constant 0 : index
    %39 = vector.load %arg5[%c0_16, %c0_17] : memref<128x32xbf16, #tpu.memory_space<vmem>>, vector<128x32xbf16>
    %cst_18 = arith.constant dense<0.000000e+00> : vector<512x32xf32>
    %40 = tpu.matmul %38, %39, %cst_18 {dimension_numbers = #tpu.dot_dimension_numbers<[1], [0], [0], [1], [0, 0, 1, 1], [], []>} : vector<512x128xbf16>, vector<128x32xbf16>, vector<512x32xf32> -> vector<512x32xf32>
    %c0_19 = arith.constant 0 : index
    %c0_20 = arith.constant 0 : index
    %41 = vector.load %arg6[%c0_19, %c0_20] : memref<1x32xf32, #tpu.memory_space<vmem>>, vector<1x32xf32>
    %42 = vector.broadcast %41 : vector<1x32xf32> to vector<512x32xf32>
    %43 = arith.addf %40, %42 : vector<512x32xf32>
    %44 = arith.addf %2, %43 : vector<512x32xf32>
    %c0_21 = arith.constant 0 : index
    %c0_22 = arith.constant 0 : index
    %45 = vector.load %arg7[%c0_21, %c0_22] : memref<512x32xf32, #tpu.memory_space<vmem>>, vector<512x32xf32>
    tpu.vector_store %arg7[%c0_21, %c0_22], %44 {strides = array<i32>} : memref<512x32xf32, #tpu.memory_space<vmem>>, vector<512x32xf32>,
    return
  }
  func.func @transform_0(%arg0: i32) -> (i32, i32) {
    %c0_i32 = arith.constant 0 : i32
    %c0_i32_0 = arith.constant 0 : i32
    return %arg0, %c0_i32 : i32, i32
  }
  func.func @transform_1(%arg0: i32) -> (i32, i32) {
    %c0_i32 = arith.constant 0 : i32
    %c0_i32_0 = arith.constant 0 : i32
    return %arg0, %c0_i32 : i32, i32
  }
  func.func @transform_2(%arg0: i32) -> (i32, i32) {
    %c0_i32 = arith.constant 0 : i32
    %c0_i32_0 = arith.constant 0 : i32
    %c0_i32_1 = arith.constant 0 : i32
    return %c0_i32, %c0_i32_0 : i32, i32
  }
  func.func @transform_3(%arg0: i32) -> (i32, i32) {
    %c0_i32 = arith.constant 0 : i32
    %c0_i32_0 = arith.constant 0 : i32
    %c0_i32_1 = arith.constant 0 : i32
    return %c0_i32, %c0_i32_0 : i32, i32
  }
  func.func @transform_4(%arg0: i32) -> (i32, i32) {
    %c0_i32 = arith.constant 0 : i32
    %c0_i32_0 = arith.constant 0 : i32
    %c0_i32_1 = arith.constant 0 : i32
    return %c0_i32, %c0_i32_0 : i32, i32
  }
  func.func @transform_5(%arg0: i32) -> (i32, i32) {
    %c0_i32 = arith.constant 0 : i32
    %c0_i32_0 = arith.constant 0 : i32
    %c0_i32_1 = arith.constant 0 : i32
    return %c0_i32, %c0_i32_0 : i32, i32
  }
  func.func @transform_6(%arg0: i32) -> (i32, i32) {
    %c0_i32 = arith.constant 0 : i32
    %c0_i32_0 = arith.constant 0 : i32
    return %arg0, %c0_i32 : i32, i32
  }
}

module attributes {stable_mosaic.version = 11 : i64} {
  func.func @_mamba_kernel(%arg0: i32, %arg1: memref<1x512x32xf32, #tpu.memory_space<vmem>>, %arg2: memref<32x64xbf16, #tpu.memory_space<vmem>>, %arg3: memref<3x32xf32, #tpu.memory_space<vmem>>, %arg4: memref<1x32xf32, #tpu.memory_space<vmem>>, %arg5: memref<32x34xbf16, #tpu.memory_space<vmem>>, %arg6: memref<1x32xf32, #tpu.memory_space<vmem>>, %arg7: memref<1x32xf32, #tpu.memory_space<vmem>>, %arg8: memref<1x32xf32, #tpu.memory_space<vmem>>, %arg9: memref<32x32xbf16, #tpu.memory_space<vmem>>, %arg10: memref<1x512x32xf32, #tpu.memory_space<vmem>>) attributes {dimension_semantics = [#tpu.dimension_semantics<parallel>], iteration_bounds = array<i64: 2>, scalar_prefetch = 0 : i64, scratch_operands = 0 : i64, tpu.core_type = #tpu.core_type<tc>, window_params = [{transform_indices = @transform_0, window_bounds = array<i64: 1, 512, 32>}, {pipeline_mode = #tpu.pipeline_mode<synchronous>, transform_indices = @transform_1, window_bounds = array<i64: 32, 64>}, {pipeline_mode = #tpu.pipeline_mode<synchronous>, transform_indices = @transform_2, window_bounds = array<i64: 3, 32>}, {pipeline_mode = #tpu.pipeline_mode<synchronous>, transform_indices = @transform_3, window_bounds = array<i64: 1, 32>}, {pipeline_mode = #tpu.pipeline_mode<synchronous>, transform_indices = @transform_4, window_bounds = array<i64: 32, 34>}, {pipeline_mode = #tpu.pipeline_mode<synchronous>, transform_indices = @transform_5, window_bounds = array<i64: 1, 32>}, {pipeline_mode = #tpu.pipeline_mode<synchronous>, transform_indices = @transform_6, window_bounds = array<i64: 1, 32>}, {pipeline_mode = #tpu.pipeline_mode<synchronous>, transform_indices = @transform_7, window_bounds = array<i64: 1, 32>}, {pipeline_mode = #tpu.pipeline_mode<synchronous>, transform_indices = @transform_8, window_bounds = array<i64: 32, 32>}, {transform_indices = @transform_9, window_bounds = array<i64: 1, 512, 32>}]} {
    %c0 = arith.constant 0 : index
    %c0_0 = arith.constant 0 : index
    %c0_1 = arith.constant 0 : index
    %0 = vector.load %arg1[%c0, %c0_0, %c0_1] : memref<1x512x32xf32, #tpu.memory_space<vmem>>, vector<1x512x32xf32>
    %1 = vector.shape_cast %0 : vector<1x512x32xf32> to vector<512x32xf32>
    %cst = arith.constant dense<0.000000e+00> : vector<512xf32>
    %2 = vector.multi_reduction <add>, %1, %cst [1] : vector<512x32xf32> to vector<512xf32>
    %3 = vector.shape_cast %2 : vector<512xf32> to vector<512x1xf32>
    %cst_2 = arith.constant 3.200000e+01 : f32
    %4 = vector.broadcast %cst_2 : f32 to vector<512x1xf32>
    %5 = arith.divf %3, %4 : vector<512x1xf32>
    %6 = vector.broadcast %5 : vector<512x1xf32> to vector<512x32xf32>
    %7 = arith.subf %1, %6 : vector<512x32xf32>
    %8 = arith.mulf %7, %7 : vector<512x32xf32>
    %cst_3 = arith.constant dense<0.000000e+00> : vector<512xf32>
    %9 = vector.multi_reduction <add>, %8, %cst_3 [1] : vector<512x32xf32> to vector<512xf32>
    %10 = vector.shape_cast %9 : vector<512xf32> to vector<512x1xf32>
    %cst_4 = arith.constant 3.200000e+01 : f32
    %11 = vector.broadcast %cst_4 : f32 to vector<512x1xf32>
    %12 = arith.divf %10, %11 : vector<512x1xf32>
    %cst_5 = arith.constant 9.99999974E-6 : f32
    %13 = vector.broadcast %cst_5 : f32 to vector<512x1xf32>
    %14 = arith.addf %12, %13 : vector<512x1xf32>
    %15 = math.rsqrt %14 : vector<512x1xf32>
    %16 = vector.broadcast %15 : vector<512x1xf32> to vector<512x32xf32>
    %17 = arith.mulf %7, %16 : vector<512x32xf32>
    %18 = arith.truncf %17 : vector<512x32xf32> to vector<512x32xbf16>
    %c0_6 = arith.constant 0 : index
    %c0_7 = arith.constant 0 : index
    %19 = vector.load %arg2[%c0_6, %c0_7] : memref<32x64xbf16, #tpu.memory_space<vmem>>, vector<32x64xbf16>
    %cst_8 = arith.constant dense<0.000000e+00> : vector<512x64xf32>
    %20 = tpu.matmul %18, %19, %cst_8 {dimension_numbers = #tpu.dot_dimension_numbers<[1], [0], [0], [1], [0, 0, 1, 1], [], []>} : vector<512x32xbf16>, vector<32x64xbf16>, vector<512x64xf32> -> vector<512x64xf32>
    %21 = vector.extract_strided_slice %20 {offsets = [0, 0], sizes = [512, 32], strides = [1, 1]} : vector<512x64xf32> to vector<512x32xf32>
    %22 = vector.extract_strided_slice %20 {offsets = [0, 32], sizes = [512, 32], strides = [1, 1]} : vector<512x64xf32> to vector<512x32xf32>
    %c0_9 = arith.constant 0 : index
    %c0_10 = arith.constant 0 : index
    %23 = vector.load %arg3[%c0_9, %c0_10] : memref<3x32xf32, #tpu.memory_space<vmem>>, vector<3x32xf32>
    %24 = vector.extract_strided_slice %23 {offsets = [2, 0], sizes = [1, 32], strides = [1, 1]} : vector<3x32xf32> to vector<1x32xf32>
    %25 = vector.broadcast %24 : vector<1x32xf32> to vector<512x32xf32>
    %26 = arith.mulf %21, %25 : vector<512x32xf32>
    %cst_11 = arith.constant 0.000000e+00 : f32
    %27 = vector.broadcast %cst_11 : f32 to vector<16x32xf32>
    %28 = vector.extract_strided_slice %21 {offsets = [0, 0], sizes = [496, 32], strides = [1, 1]} : vector<512x32xf32> to vector<496x32xf32>
    %29 = tpu.concatenate %27, %28 in 0 : vector<16x32xf32>, vector<496x32xf32> -> vector<512x32xf32>
    %30 = vector.extract_strided_slice %23 {offsets = [0, 0], sizes = [1, 32], strides = [1, 1]} : vector<3x32xf32> to vector<1x32xf32>
    %31 = vector.broadcast %30 : vector<1x32xf32> to vector<512x32xf32>
    %32 = arith.mulf %29, %31 : vector<512x32xf32>
    %33 = arith.addf %26, %32 : vector<512x32xf32>
    %cst_12 = arith.constant 0.000000e+00 : f32
    %34 = vector.broadcast %cst_12 : f32 to vector<8x32xf32>
    %35 = vector.extract_strided_slice %21 {offsets = [0, 0], sizes = [504, 32], strides = [1, 1]} : vector<512x32xf32> to vector<504x32xf32>
    %36 = tpu.concatenate %34, %35 in 0 : vector<8x32xf32>, vector<504x32xf32> -> vector<512x32xf32>
    %37 = vector.extract_strided_slice %23 {offsets = [1, 0], sizes = [1, 32], strides = [1, 1]} : vector<3x32xf32> to vector<1x32xf32>
    %38 = vector.broadcast %37 : vector<1x32xf32> to vector<512x32xf32>
    %39 = arith.mulf %36, %38 : vector<512x32xf32>
    %40 = arith.addf %33, %39 : vector<512x32xf32>
    %c0_13 = arith.constant 0 : index
    %c0_14 = arith.constant 0 : index
    %41 = vector.load %arg4[%c0_13, %c0_14] : memref<1x32xf32, #tpu.memory_space<vmem>>, vector<1x32xf32>
    %42 = vector.broadcast %41 : vector<1x32xf32> to vector<512x32xf32>
    %43 = arith.addf %40, %42 : vector<512x32xf32>
    %44 = arith.negf %43 : vector<512x32xf32>
    %45 = math.exp %44 : vector<512x32xf32>
    %cst_15 = arith.constant 1.000000e+00 : f32
    %46 = vector.broadcast %cst_15 : f32 to vector<512x32xf32>
    %47 = arith.addf %46, %45 : vector<512x32xf32>
    %48 = arith.divf %46, %47 : vector<512x32xf32>
    %49 = arith.mulf %43, %48 : vector<512x32xf32>
    %50 = arith.truncf %49 : vector<512x32xf32> to vector<512x32xbf16>
    %c0_16 = arith.constant 0 : index
    %c0_17 = arith.constant 0 : index
    %51 = vector.load %arg5[%c0_16, %c0_17] : memref<32x34xbf16, #tpu.memory_space<vmem>>, vector<32x34xbf16>
    %cst_18 = arith.constant dense<0.000000e+00> : vector<512x34xf32>
    %52 = tpu.matmul %50, %51, %cst_18 {dimension_numbers = #tpu.dot_dimension_numbers<[1], [0], [0], [1], [0, 0, 1, 1], [], []>} : vector<512x32xbf16>, vector<32x34xbf16>, vector<512x34xf32> -> vector<512x34xf32>
    %53 = vector.extract_strided_slice %52 {offsets = [0, 0], sizes = [512, 32], strides = [1, 1]} : vector<512x34xf32> to vector<512x32xf32>
    %c0_19 = arith.constant 0 : index
    %c0_20 = arith.constant 0 : index
    %54 = vector.load %arg6[%c0_19, %c0_20] : memref<1x32xf32, #tpu.memory_space<vmem>>, vector<1x32xf32>
    %55 = vector.broadcast %54 : vector<1x32xf32> to vector<512x32xf32>
    %56 = arith.addf %53, %55 : vector<512x32xf32>
    %57 = math.absf %56 : vector<512x32xf32>
    %cst_21 = arith.constant 0.000000e+00 : f32
    %58 = vector.broadcast %cst_21 : f32 to vector<512x32xf32>
    %59 = arith.subf %58, %57 : vector<512x32xf32>
    %60 = math.exp %59 : vector<512x32xf32>
    %cst_22 = arith.constant 1.000000e+00 : f32
    %61 = vector.broadcast %cst_22 : f32 to vector<512x32xf32>
    %62 = arith.addf %61, %60 : vector<512x32xf32>
    %63 = math.log %62 : vector<512x32xf32>
    %cst_23 = arith.constant 0.000000e+00 : f32
    %64 = vector.broadcast %cst_23 : f32 to vector<512x32xf32>
    %65 = arith.maximumf %56, %64 : vector<512x32xf32>
    %66 = arith.addf %63, %65 : vector<512x32xf32>
    %67 = vector.extract_strided_slice %52 {offsets = [0, 32], sizes = [512, 1], strides = [1, 1]} : vector<512x34xf32> to vector<512x1xf32>
    %68 = vector.extract_strided_slice %52 {offsets = [0, 33], sizes = [512, 1], strides = [1, 1]} : vector<512x34xf32> to vector<512x1xf32>
    %c0_24 = arith.constant 0 : index
    %c0_25 = arith.constant 0 : index
    %69 = vector.load %arg7[%c0_24, %c0_25] : memref<1x32xf32, #tpu.memory_space<vmem>>, vector<1x32xf32>
    %70 = math.exp %69 : vector<1x32xf32>
    %cst_26 = arith.constant 0.000000e+00 : f32
    %71 = vector.broadcast %cst_26 : f32 to vector<1x32xf32>
    %72 = arith.subf %71, %70 : vector<1x32xf32>
    %73 = arith.mulf %66, %49 : vector<512x32xf32>
    %74 = vector.broadcast %72 : vector<1x32xf32> to vector<512x32xf32>
    %75 = arith.mulf %66, %74 : vector<512x32xf32>
    %76 = math.exp %75 : vector<512x32xf32>
    %77 = vector.broadcast %67 : vector<512x1xf32> to vector<512x32xf32>
    %78 = arith.mulf %73, %77 : vector<512x32xf32>
    %cst_27 = arith.constant 0.000000e+00 : f32
    %79 = vector.broadcast %cst_27 : f32 to vector<8x32xf32>
    %80 = vector.extract_strided_slice %78 {offsets = [0, 0], sizes = [504, 32], strides = [1, 1]} : vector<512x32xf32> to vector<504x32xf32>
    %81 = tpu.concatenate %79, %80 in 0 : vector<8x32xf32>, vector<504x32xf32> -> vector<512x32xf32>
    %82 = arith.mulf %76, %81 : vector<512x32xf32>
    %83 = arith.addf %82, %78 : vector<512x32xf32>
    %cst_28 = arith.constant 1.000000e+00 : f32
    %84 = vector.broadcast %cst_28 : f32 to vector<8x32xf32>
    %85 = vector.extract_strided_slice %76 {offsets = [0, 0], sizes = [504, 32], strides = [1, 1]} : vector<512x32xf32> to vector<504x32xf32>
    %86 = tpu.concatenate %84, %85 in 0 : vector<8x32xf32>, vector<504x32xf32> -> vector<512x32xf32>
    %87 = arith.mulf %76, %86 : vector<512x32xf32>
    %cst_29 = arith.constant 0.000000e+00 : f32
    %88 = vector.broadcast %cst_29 : f32 to vector<16x32xf32>
    %89 = vector.extract_strided_slice %83 {offsets = [0, 0], sizes = [496, 32], strides = [1, 1]} : vector<512x32xf32> to vector<496x32xf32>
    %90 = tpu.concatenate %88, %89 in 0 : vector<16x32xf32>, vector<496x32xf32> -> vector<512x32xf32>
    %91 = arith.mulf %87, %90 : vector<512x32xf32>
    %92 = arith.addf %91, %83 : vector<512x32xf32>
    %cst_30 = arith.constant 1.000000e+00 : f32
    %93 = vector.broadcast %cst_30 : f32 to vector<16x32xf32>
    %94 = vector.extract_strided_slice %87 {offsets = [0, 0], sizes = [496, 32], strides = [1, 1]} : vector<512x32xf32> to vector<496x32xf32>
    %95 = tpu.concatenate %93, %94 in 0 : vector<16x32xf32>, vector<496x32xf32> -> vector<512x32xf32>
    %96 = arith.mulf %87, %95 : vector<512x32xf32>
    %cst_31 = arith.constant 0.000000e+00 : f32
    %97 = vector.broadcast %cst_31 : f32 to vector<32x32xf32>
    %98 = vector.extract_strided_slice %92 {offsets = [0, 0], sizes = [480, 32], strides = [1, 1]} : vector<512x32xf32> to vector<480x32xf32>
    %99 = tpu.concatenate %97, %98 in 0 : vector<32x32xf32>, vector<480x32xf32> -> vector<512x32xf32>
    %100 = arith.mulf %96, %99 : vector<512x32xf32>
    %101 = arith.addf %100, %92 : vector<512x32xf32>
    %cst_32 = arith.constant 1.000000e+00 : f32
    %102 = vector.broadcast %cst_32 : f32 to vector<32x32xf32>
    %103 = vector.extract_strided_slice %96 {offsets = [0, 0], sizes = [480, 32], strides = [1, 1]} : vector<512x32xf32> to vector<480x32xf32>
    %104 = tpu.concatenate %102, %103 in 0 : vector<32x32xf32>, vector<480x32xf32> -> vector<512x32xf32>
    %105 = arith.mulf %96, %104 : vector<512x32xf32>
    %cst_33 = arith.constant 0.000000e+00 : f32
    %106 = vector.broadcast %cst_33 : f32 to vector<64x32xf32>
    %107 = vector.extract_strided_slice %101 {offsets = [0, 0], sizes = [448, 32], strides = [1, 1]} : vector<512x32xf32> to vector<448x32xf32>
    %108 = tpu.concatenate %106, %107 in 0 : vector<64x32xf32>, vector<448x32xf32> -> vector<512x32xf32>
    %109 = arith.mulf %105, %108 : vector<512x32xf32>
    %110 = arith.addf %109, %101 : vector<512x32xf32>
    %cst_34 = arith.constant 1.000000e+00 : f32
    %111 = vector.broadcast %cst_34 : f32 to vector<64x32xf32>
    %112 = vector.extract_strided_slice %105 {offsets = [0, 0], sizes = [448, 32], strides = [1, 1]} : vector<512x32xf32> to vector<448x32xf32>
    %113 = tpu.concatenate %111, %112 in 0 : vector<64x32xf32>, vector<448x32xf32> -> vector<512x32xf32>
    %114 = arith.mulf %105, %113 : vector<512x32xf32>
    %cst_35 = arith.constant 0.000000e+00 : f32
    %115 = vector.broadcast %cst_35 : f32 to vector<128x32xf32>
    %116 = vector.extract_strided_slice %110 {offsets = [0, 0], sizes = [384, 32], strides = [1, 1]} : vector<512x32xf32> to vector<384x32xf32>
    %117 = tpu.concatenate %115, %116 in 0 : vector<128x32xf32>, vector<384x32xf32> -> vector<512x32xf32>
    %118 = arith.mulf %114, %117 : vector<512x32xf32>
    %119 = arith.addf %118, %110 : vector<512x32xf32>
    %cst_36 = arith.constant 1.000000e+00 : f32
    %120 = vector.broadcast %cst_36 : f32 to vector<128x32xf32>
    %121 = vector.extract_strided_slice %114 {offsets = [0, 0], sizes = [384, 32], strides = [1, 1]} : vector<512x32xf32> to vector<384x32xf32>
    %122 = tpu.concatenate %120, %121 in 0 : vector<128x32xf32>, vector<384x32xf32> -> vector<512x32xf32>
    %123 = arith.mulf %114, %122 : vector<512x32xf32>
    %cst_37 = arith.constant 0.000000e+00 : f32
    %124 = vector.broadcast %cst_37 : f32 to vector<256x32xf32>
    %125 = vector.extract_strided_slice %119 {offsets = [0, 0], sizes = [256, 32], strides = [1, 1]} : vector<512x32xf32> to vector<256x32xf32>
    %126 = tpu.concatenate %124, %125 in 0 : vector<256x32xf32>, vector<256x32xf32> -> vector<512x32xf32>
    %127 = arith.mulf %123, %126 : vector<512x32xf32>
    %128 = arith.addf %127, %119 : vector<512x32xf32>
    %c0_38 = arith.constant 0 : index
    %c0_39 = arith.constant 0 : index
    %129 = vector.load %arg8[%c0_38, %c0_39] : memref<1x32xf32, #tpu.memory_space<vmem>>, vector<1x32xf32>
    %130 = vector.broadcast %129 : vector<1x32xf32> to vector<512x32xf32>
    %131 = arith.mulf %49, %130 : vector<512x32xf32>
    %132 = vector.broadcast %68 : vector<512x1xf32> to vector<512x32xf32>
    %133 = arith.mulf %128, %132 : vector<512x32xf32>
    %134 = arith.addf %131, %133 : vector<512x32xf32>
    %135 = arith.negf %22 : vector<512x32xf32>
    %136 = math.exp %135 : vector<512x32xf32>
    %cst_40 = arith.constant 1.000000e+00 : f32
    %137 = vector.broadcast %cst_40 : f32 to vector<512x32xf32>
    %138 = arith.addf %137, %136 : vector<512x32xf32>
    %139 = arith.divf %137, %138 : vector<512x32xf32>
    %140 = arith.mulf %22, %139 : vector<512x32xf32>
    %141 = arith.mulf %134, %140 : vector<512x32xf32>
    %142 = arith.truncf %141 : vector<512x32xf32> to vector<512x32xbf16>
    %c0_41 = arith.constant 0 : index
    %c0_42 = arith.constant 0 : index
    %143 = vector.load %arg9[%c0_41, %c0_42] : memref<32x32xbf16, #tpu.memory_space<vmem>>, vector<32x32xbf16>
    %cst_43 = arith.constant dense<0.000000e+00> : vector<512x32xf32>
    %144 = tpu.matmul %142, %143, %cst_43 {dimension_numbers = #tpu.dot_dimension_numbers<[1], [0], [0], [1], [0, 0, 1, 1], [], []>} : vector<512x32xbf16>, vector<32x32xbf16>, vector<512x32xf32> -> vector<512x32xf32>
    %c0_44 = arith.constant 0 : index
    %c0_45 = arith.constant 0 : index
    %c0_46 = arith.constant 0 : index
    %145 = vector.load %arg10[%c0_44, %c0_45, %c0_46] : memref<1x512x32xf32, #tpu.memory_space<vmem>>, vector<1x512x32xf32>
    %146 = vector.shape_cast %145 : vector<1x512x32xf32> to vector<512x32xf32>
    %147 = vector.shape_cast %144 : vector<512x32xf32> to vector<1x512x32xf32>
    tpu.vector_store %arg10[%c0_44, %c0_45, %c0_46], %147 {strides = array<i32>} : memref<1x512x32xf32, #tpu.memory_space<vmem>>, vector<1x512x32xf32>,
    return
  }
  func.func @transform_0(%arg0: i32) -> (i32, i32, i32) {
    %c0_i32 = arith.constant 0 : i32
    %c0_i32_0 = arith.constant 0 : i32
    %c0_i32_1 = arith.constant 0 : i32
    return %arg0, %c0_i32, %c0_i32_0 : i32, i32, i32
  }
  func.func @transform_1(%arg0: i32) -> (i32, i32) {
    %c0_i32 = arith.constant 0 : i32
    %c0_i32_0 = arith.constant 0 : i32
    %c0_i32_1 = arith.constant 0 : i32
    return %c0_i32, %c0_i32_0 : i32, i32
  }
  func.func @transform_2(%arg0: i32) -> (i32, i32) {
    %c0_i32 = arith.constant 0 : i32
    %c0_i32_0 = arith.constant 0 : i32
    %c0_i32_1 = arith.constant 0 : i32
    return %c0_i32, %c0_i32_0 : i32, i32
  }
  func.func @transform_3(%arg0: i32) -> (i32, i32) {
    %c0_i32 = arith.constant 0 : i32
    %c0_i32_0 = arith.constant 0 : i32
    %c0_i32_1 = arith.constant 0 : i32
    return %c0_i32, %c0_i32_0 : i32, i32
  }
  func.func @transform_4(%arg0: i32) -> (i32, i32) {
    %c0_i32 = arith.constant 0 : i32
    %c0_i32_0 = arith.constant 0 : i32
    %c0_i32_1 = arith.constant 0 : i32
    return %c0_i32, %c0_i32_0 : i32, i32
  }
  func.func @transform_5(%arg0: i32) -> (i32, i32) {
    %c0_i32 = arith.constant 0 : i32
    %c0_i32_0 = arith.constant 0 : i32
    %c0_i32_1 = arith.constant 0 : i32
    return %c0_i32, %c0_i32_0 : i32, i32
  }
  func.func @transform_6(%arg0: i32) -> (i32, i32) {
    %c0_i32 = arith.constant 0 : i32
    %c0_i32_0 = arith.constant 0 : i32
    %c0_i32_1 = arith.constant 0 : i32
    return %c0_i32, %c0_i32_0 : i32, i32
  }
  func.func @transform_7(%arg0: i32) -> (i32, i32) {
    %c0_i32 = arith.constant 0 : i32
    %c0_i32_0 = arith.constant 0 : i32
    %c0_i32_1 = arith.constant 0 : i32
    return %c0_i32, %c0_i32_0 : i32, i32
  }
  func.func @transform_8(%arg0: i32) -> (i32, i32) {
    %c0_i32 = arith.constant 0 : i32
    %c0_i32_0 = arith.constant 0 : i32
    %c0_i32_1 = arith.constant 0 : i32
    return %c0_i32, %c0_i32_0 : i32, i32
  }
  func.func @transform_9(%arg0: i32) -> (i32, i32, i32) {
    %c0_i32 = arith.constant 0 : i32
    %c0_i32_0 = arith.constant 0 : i32
    %c0_i32_1 = arith.constant 0 : i32
    return %arg0, %c0_i32, %c0_i32_0 : i32, i32, i32
  }
}

</mosaic_0001>

<llo_original>
// kernel: tpu_custom_call.1
$region0: #{tpu_custom_call.1}
  #allocation0 [shape = 'u32[]', space=smem, size = 0x4, offset = 0x4, fixed_abs, tag = 'smem constant byte address 0x4 - core index']
  #allocation1 [shape = 'u32[144,128]{1,0:T(1,128)}', space=vmem, size = 0x12000, scoped, tag = 'internal scratch']
  %s0 = inlined_call_operand.vmem [shape: f32[512,32], index: 0, kind: input, shape index: {}]
  %s1 = inlined_call_operand.vmem [shape: f32[512,32], index: 1, kind: output, shape index: {}]
  %s2 = sld [smem:[#allocation0]]
  $region14: #{tpu_custom_call.1} parent=0
    _
  %s4 = ssub.s32 1, %s2
  %s5 = scalar_select 0, %s4, %s2
  // Predicated region
  $region2: #{tpu_custom_call.1} parent=0 // pred_check
    _
  $region3: #{tpu_custom_call.1} parent=0 // pred_check_branch
    %7 = sbr.rel (0) target = $region5
  $region4: #{tpu_custom_call.1} parent=0 // pred_region
    _
  $region5: #{tpu_custom_call.1} parent=0 // pred_fallthru
    _
  %v8 = vld [vmem:[%s0] sm:$0xff]
  %v9 = vld [vmem:[%s0 + $0x8] sm:$0xff]
  %v10 = vld [vmem:[%s0 + $0x10] sm:$0xff]
  %v11 = vld [vmem:[%s0 + $0x18] sm:$0xff]
  %v12 = vld [vmem:[%s0 + $0x20] sm:$0xff]
  %v13 = vld [vmem:[%s0 + $0x28] sm:$0xff]
  %v14 = vld [vmem:[%s0 + $0x30] sm:$0xff]
  %v15 = vld [vmem:[%s0 + $0x38] sm:$0xff]
  %v16 = vld [vmem:[%s0 + $0x40] sm:$0xff]
  %v17 = vld [vmem:[%s0 + $0x48] sm:$0xff]
  %v18 = vld [vmem:[%s0 + $0x50] sm:$0xff]
  %v19 = vld [vmem:[%s0 + $0x58] sm:$0xff]
  %v20 = vld [vmem:[%s0 + $0x60] sm:$0xff]
  %v21 = vld [vmem:[%s0 + $0x68] sm:$0xff]
  %v22 = vld [vmem:[%s0 + $0x70] sm:$0xff]
  %v23 = vld [vmem:[%s0 + $0x78] sm:$0xff]
  %v24 = vld [vmem:[%s0 + $0x80] sm:$0xff]
  %v25 = vld [vmem:[%s0 + $0x88] sm:$0xff]
  %v26 = vld [vmem:[%s0 + $0x90] sm:$0xff]
  %v27 = vld [vmem:[%s0 + $0x98] sm:$0xff]
  %v28 = vld [vmem:[%s0 + $0xa0] sm:$0xff]
  %v29 = vld [vmem:[%s0 + $0xa8] sm:$0xff]
  %v30 = vld [vmem:[%s0 + $0xb0] sm:$0xff]
  %v31 = vld [vmem:[%s0 + $0xb8] sm:$0xff]
  %v32 = vld [vmem:[%s0 + $0xc0] sm:$0xff]
  %v33 = vld [vmem:[%s0 + $0xc8] sm:$0xff]
  %v34 = vld [vmem:[%s0 + $0xd0] sm:$0xff]
  %v35 = vld [vmem:[%s0 + $0xd8] sm:$0xff]
  %v36 = vld [vmem:[%s0 + $0xe0] sm:$0xff]
  %v37 = vld [vmem:[%s0 + $0xe8] sm:$0xff]
  %v38 = vld [vmem:[%s0 + $0xf0] sm:$0xff]
  %v39 = vld [vmem:[%s0 + $0xf8] sm:$0xff]
  %v40 = vld [vmem:[%s0 + $0x100] sm:$0xff]
  %v41 = vld [vmem:[%s0 + $0x108] sm:$0xff]
  %v42 = vld [vmem:[%s0 + $0x110] sm:$0xff]
  %v43 = vld [vmem:[%s0 + $0x118] sm:$0xff]
  %v44 = vld [vmem:[%s0 + $0x120] sm:$0xff]
  %v45 = vld [vmem:[%s0 + $0x128] sm:$0xff]
  %v46 = vld [vmem:[%s0 + $0x130] sm:$0xff]
  %v47 = vld [vmem:[%s0 + $0x138] sm:$0xff]
  %v48 = vld [vmem:[%s0 + $0x140] sm:$0xff]
  %v49 = vld [vmem:[%s0 + $0x148] sm:$0xff]
  %v50 = vld [vmem:[%s0 + $0x150] sm:$0xff]
  %v51 = vld [vmem:[%s0 + $0x158] sm:$0xff]
  %v52 = vld [vmem:[%s0 + $0x160] sm:$0xff]
  %v53 = vld [vmem:[%s0 + $0x168] sm:$0xff]
  %v54 = vld [vmem:[%s0 + $0x170] sm:$0xff]
  %v55 = vld [vmem:[%s0 + $0x178] sm:$0xff]
  %v56 = vld [vmem:[%s0 + $0x180] sm:$0xff]
  %v57 = vld [vmem:[%s0 + $0x188] sm:$0xff]
  %v58 = vld [vmem:[%s0 + $0x190] sm:$0xff]
  %v59 = vld [vmem:[%s0 + $0x198] sm:$0xff]
  %v60 = vld [vmem:[%s0 + $0x1a0] sm:$0xff]
  %v61 = vld [vmem:[%s0 + $0x1a8] sm:$0xff]
  %v62 = vld [vmem:[%s0 + $0x1b0] sm:$0xff]
  %v63 = vld [vmem:[%s0 + $0x1b8] sm:$0xff]
  %v64 = vld [vmem:[%s0 + $0x1c0] sm:$0xff]
  %v65 = vld [vmem:[%s0 + $0x1c8] sm:$0xff]
  %v66 = vld [vmem:[%s0 + $0x1d0] sm:$0xff]
  %v67 = vld [vmem:[%s0 + $0x1d8] sm:$0xff]
  %v68 = vld [vmem:[%s0 + $0x1e0] sm:$0xff]
  %v69 = vld [vmem:[%s0 + $0x1e8] sm:$0xff]
  %v70 = vld [vmem:[%s0 + $0x1f0] sm:$0xff]
  %v71 = vld [vmem:[%s0 + $0x1f8] sm:$0xff]
  %vm72 = vcmask 261120
  %73 = vst.msk [vmem:[%s1] sm:$0xff] %vm72, %v71
  %74 = vst.msk [vmem:[%s1 + $0x8] sm:$0xff] %vm72, %v8
  %75 = vst.msk [vmem:[%s1 + $0x10] sm:$0xff] %vm72, %v9
  %76 = vst.msk [vmem:[%s1 + $0x18] sm:$0xff] %vm72, %v10
  %77 = vst.msk [vmem:[%s1 + $0x20] sm:$0xff] %vm72, %v11
  %78 = vst.msk [vmem:[%s1 + $0x28] sm:$0xff] %vm72, %v12
  %79 = vst.msk [vmem:[%s1 + $0x30] sm:$0xff] %vm72, %v13
  %80 = vst.msk [vmem:[%s1 + $0x38] sm:$0xff] %vm72, %v14
  %81 = vst.msk [vmem:[%s1 + $0x40] sm:$0xff] %vm72, %v15
  %82 = vst.msk [vmem:[%s1 + $0x48] sm:$0xff] %vm72, %v16
  %83 = vst.msk [vmem:[%s1 + $0x50] sm:$0xff] %vm72, %v17
  %84 = vst.msk [vmem:[%s1 + $0x58] sm:$0xff] %vm72, %v18
  %85 = vst.msk [vmem:[%s1 + $0x60] sm:$0xff] %vm72, %v19
  %86 = vst.msk [vmem:[%s1 + $0x68] sm:$0xff] %vm72, %v20
  %87 = vst.msk [vmem:[%s1 + $0x70] sm:$0xff] %vm72, %v21
  %88 = vst.msk [vmem:[%s1 + $0x78] sm:$0xff] %vm72, %v22
  %89 = vst.msk [vmem:[%s1 + $0x80] sm:$0xff] %vm72, %v23
  %90 = vst.msk [vmem:[%s1 + $0x88] sm:$0xff] %vm72, %v24
  %91 = vst.msk [vmem:[%s1 + $0x90] sm:$0xff] %vm72, %v25
  %92 = vst.msk [vmem:[%s1 + $0x98] sm:$0xff] %vm72, %v26
  %93 = vst.msk [vmem:[%s1 + $0xa0] sm:$0xff] %vm72, %v27
  %94 = vst.msk [vmem:[%s1 + $0xa8] sm:$0xff] %vm72, %v28
  %95 = vst.msk [vmem:[%s1 + $0xb0] sm:$0xff] %vm72, %v29
  %96 = vst.msk [vmem:[%s1 + $0xb8] sm:$0xff] %vm72, %v30
  %97 = vst.msk [vmem:[%s1 + $0xc0] sm:$0xff] %vm72, %v31
  %98 = vst.msk [vmem:[%s1 + $0xc8] sm:$0xff] %vm72, %v32
  %99 = vst.msk [vmem:[%s1 + $0xd0] sm:$0xff] %vm72, %v33
  %100 = vst.msk [vmem:[%s1 + $0xd8] sm:$0xff] %vm72, %v34
  %101 = vst.msk [vmem:[%s1 + $0xe0] sm:$0xff] %vm72, %v35
  %102 = vst.msk [vmem:[%s1 + $0xe8] sm:$0xff] %vm72, %v36
  %103 = vst.msk [vmem:[%s1 + $0xf0] sm:$0xff] %vm72, %v37
  %104 = vst.msk [vmem:[%s1 + $0xf8] sm:$0xff] %vm72, %v38
  %105 = vst.msk [vmem:[%s1 + $0x100] sm:$0xff] %vm72, %v39
  %106 = vst.msk [vmem:[%s1 + $0x108] sm:$0xff] %vm72, %v40
  %107 = vst.msk [vmem:[%s1 + $0x110] sm:$0xff] %vm72, %v41
  %108 = vst.msk [vmem:[%s1 + $0x118] sm:$0xff] %vm72, %v42
  %109 = vst.msk [vmem:[%s1 + $0x120] sm:$0xff] %vm72, %v43
  %110 = vst.msk [vmem:[%s1 + $0x128] sm:$0xff] %vm72, %v44
  %111 = vst.msk [vmem:[%s1 + $0x130] sm:$0xff] %vm72, %v45
  %112 = vst.msk [vmem:[%s1 + $0x138] sm:$0xff] %vm72, %v46
  %113 = vst.msk [vmem:[%s1 + $0x140] sm:$0xff] %vm72, %v47
  %114 = vst.msk [vmem:[%s1 + $0x148] sm:$0xff] %vm72, %v48
  %115 = vst.msk [vmem:[%s1 + $0x150] sm:$0xff] %vm72, %v49
  %116 = vst.msk [vmem:[%s1 + $0x158] sm:$0xff] %vm72, %v50
  %117 = vst.msk [vmem:[%s1 + $0x160] sm:$0xff] %vm72, %v51
  %118 = vst.msk [vmem:[%s1 + $0x168] sm:$0xff] %vm72, %v52
  %119 = vst.msk [vmem:[%s1 + $0x170] sm:$0xff] %vm72, %v53
  %120 = vst.msk [vmem:[%s1 + $0x178] sm:$0xff] %vm72, %v54
  %121 = vst.msk [vmem:[%s1 + $0x180] sm:$0xff] %vm72, %v55
  %122 = vst.msk [vmem:[%s1 + $0x188] sm:$0xff] %vm72, %v56
  %123 = vst.msk [vmem:[%s1 + $0x190] sm:$0xff] %vm72, %v57
  %124 = vst.msk [vmem:[%s1 + $0x198] sm:$0xff] %vm72, %v58
  %125 = vst.msk [vmem:[%s1 + $0x1a0] sm:$0xff] %vm72, %v59
  %126 = vst.msk [vmem:[%s1 + $0x1a8] sm:$0xff] %vm72, %v60
  %127 = vst.msk [vmem:[%s1 + $0x1b0] sm:$0xff] %vm72, %v61
  %128 = vst.msk [vmem:[%s1 + $0x1b8] sm:$0xff] %vm72, %v62
  %129 = vst.msk [vmem:[%s1 + $0x1c0] sm:$0xff] %vm72, %v63
  %130 = vst.msk [vmem:[%s1 + $0x1c8] sm:$0xff] %vm72, %v64
  %131 = vst.msk [vmem:[%s1 + $0x1d0] sm:$0xff] %vm72, %v65
  %132 = vst.msk [vmem:[%s1 + $0x1d8] sm:$0xff] %vm72, %v66
  %133 = vst.msk [vmem:[%s1 + $0x1e0] sm:$0xff] %vm72, %v67
  %134 = vst.msk [vmem:[%s1 + $0x1e8] sm:$0xff] %vm72, %v68
  %135 = vst.msk [vmem:[%s1 + $0x1f0] sm:$0xff] %vm72, %v69
  %136 = vst.msk [vmem:[%s1 + $0x1f8] sm:$0xff] %vm72, %v70
  // Predicated region
  $region6: #{tpu_custom_call.1} parent=0 // pred_check
    _
  $region7: #{tpu_custom_call.1} parent=0 // pred_check_branch
    %138 = sbr.rel (0) target = $region9
  $region8: #{tpu_custom_call.1} parent=0 // pred_region
    _
  $region9: #{tpu_custom_call.1} parent=0 // pred_fallthru
    _
  // Predicated region
  $region10: #{tpu_custom_call.1} parent=0 // pred_check
    _
  $region11: #{tpu_custom_call.1} parent=0 // pred_check_branch
    %140 = sbr.rel (0) target = $region13
  $region12: #{tpu_custom_call.1} parent=0 // pred_region
    _
  $region13: #{tpu_custom_call.1} parent=0 // pred_fallthru
    _

// kernel: _lambda_.5
$region0: #{_lambda_.5}
  #allocation0 [shape = 'u32[]', space=smem, size = 0x4, offset = 0x4, fixed_abs, tag = 'smem constant byte address 0x4 - core index']
  #allocation1 [shape = 'u32[144,128]{1,0:T(1,128)}', space=vmem, size = 0x12000, scoped, tag = 'internal scratch']
  %s0 = inlined_call_operand.vmem [shape: f32[1024,32], index: 0, kind: input, shape index: {}, may-alias: {0,6}]
  %s1 = inlined_call_operand.vmem [shape: f32[1024,32], index: 1, kind: input, shape index: {}]
  %s2 = inlined_call_operand.vmem [shape: bf16[32,128], index: 2, kind: input, shape index: {}]
  %s3 = inlined_call_operand.vmem [shape: f32[1,128], index: 3, kind: input, shape index: {}]
  %s4 = inlined_call_operand.vmem [shape: bf16[128,32], index: 4, kind: input, shape index: {}]
  %s5 = inlined_call_operand.vmem [shape: f32[1,32], index: 5, kind: input, shape index: {}]
  %s6 = inlined_call_operand.vmem [shape: f32[1024,32], index: 6, kind: output, shape index: {}, may-alias: {0,6}]
  %s7 = sld [smem:[#allocation0]]
  $region57: #{_lambda_.5} parent=0
    _
  %s9 = ssub.s32 1, %s7
  %s10 = scalar_select 0, %s9, %s7
  loop: start=0, step=1, limit=4
  $region2: #{_lambda_.5} parent=0 // loop_pre_header
    _
  $region3: #{_lambda_.5} parent=0 // loop_header
    %s12 = sphi 0, %s16
    %p13 = scmp.ge.s32.totalorder %s12, 4
    %s22 = sphi 0, %s24
    %s25 = sphi 0, %s22
    %s26 = sphi 0, %s25
    %s42 = sphi 0, %s26
    %s48 = sphi 0, %s50
    %s51 = sphi 0, %s48
    %s52 = sphi 0, %s51
    %s68 = sphi 0, %s52
    %s72 = sphi 0, %s72
    %s74 = sphi 0, %s72
    %s75 = sphi 0, %s74
    %s89 = sphi 0, %s75
    %s93 = sphi 0, %s93
    %s95 = sphi 0, %s93
    %s96 = sphi 0, %s95
    %s110 = sphi 0, %s96
    %s114 = sphi 0, %s114
    %s116 = sphi 0, %s114
    %s117 = sphi 0, %s116
    %s131 = sphi 0, %s117
    %s135 = sphi 0, %s135
    %s137 = sphi 0, %s135
    %s138 = sphi 0, %s137
    %s152 = sphi 0, %s138
    %s158 = sphi 0, %s160
    %s161 = sphi 0, %s158
    %s162 = sphi 0, %s161
    %s178 = sphi 0, %s162
  $region4: #{_lambda_.5} parent=0 // loop_header_branch
    %15 = sbr.rel (%p13) target = $region8
  $region5: #{_lambda_.5} parent=0 // loop_body
    %s17 = ssub.s32 %s12, 1
    %s18 = ssub.s32 %s12, 2
    %s19 = sadd.s32 %s12, 1
    %s20 = ssub.s32 %s12, %s19
    %p21 = scmp.eq.s32.totalorder %s20, 0
    %s23 = sadd.s32 %s22, 1
    %s24 = scalar_select %p21, %s22, %s23
    %p27 = pneg %p21
    %p28 = scmp.eq.s32.totalorder %s12, 1
    %p29 = por %p27, %p28
    %p30 = scmp.ne.s32.totalorder %s22, %s25
    %p31 = scmp.eq.s32.totalorder %s12, 0
    %p32 = por %p30, %p31
    %p33 = scmp.ne.s32.totalorder %s22, %s25
    %p34 = scmp.eq.s32.totalorder %s17, 1
    %p35 = por %p33, %p34
    %p36 = scmp.ne.s32.totalorder %s25, %s26
    %p37 = scmp.eq.s32.totalorder %s17, 0
    %p38 = por %p36, %p37
    %p39 = scmp.ne.s32.totalorder %s25, %s26
    %p40 = scmp.eq.s32.totalorder %s18, 1
    %p41 = por %p39, %p40
    %p43 = scmp.ne.s32.totalorder %s26, %s42
    %p44 = scmp.eq.s32.totalorder %s18, 0
    %p45 = por %p43, %p44
    %s46 = ssub.s32 %s12, %s19
    %p47 = scmp.eq.s32.totalorder %s46, 0
    %s49 = sadd.s32 %s48, 1
    %s50 = scalar_select %p47, %s48, %s49
    %p53 = pneg %p47
    %p54 = scmp.eq.s32.totalorder %s12, 1
    %p55 = por %p53, %p54
    %p56 = scmp.ne.s32.totalorder %s48, %s51
    %p57 = scmp.eq.s32.totalorder %s12, 0
    %p58 = por %p56, %p57
    %p59 = scmp.ne.s32.totalorder %s48, %s51
    %p60 = scmp.eq.s32.totalorder %s17, 1
    %p61 = por %p59, %p60
    %p62 = scmp.ne.s32.totalorder %s51, %s52
    %p63 = scmp.eq.s32.totalorder %s17, 0
    %p64 = por %p62, %p63
    %p65 = scmp.ne.s32.totalorder %s51, %s52
    %p66 = scmp.eq.s32.totalorder %s18, 1
    %p67 = por %p65, %p66
    %p69 = scmp.ne.s32.totalorder %s52, %s68
    %p70 = scmp.eq.s32.totalorder %s18, 0
    %p71 = por %p69, %p70
    %s73 = sadd.s32 %s72, 1
    %p76 = scmp.eq.s32.totalorder %s12, 1
    %p77 = scmp.ne.s32.totalorder %s72, %s74
    %p78 = scmp.eq.s32.totalorder %s12, 0
    %p79 = por %p77, %p78
    %p80 = scmp.ne.s32.totalorder %s72, %s74
    %p81 = scmp.eq.s32.totalorder %s17, 1
    %p82 = por %p80, %p81
    %p83 = scmp.ne.s32.totalorder %s74, %s75
    %p84 = scmp.eq.s32.totalorder %s17, 0
    %p85 = por %p83, %p84
    %p86 = scmp.ne.s32.totalorder %s74, %s75
    %p87 = scmp.eq.s32.totalorder %s18, 1
    %p88 = por %p86, %p87
    %p90 = scmp.ne.s32.totalorder %s75, %s89
    %p91 = scmp.eq.s32.totalorder %s18, 0
    %p92 = por %p90, %p91
    %s94 = sadd.s32 %s93, 1
    %p97 = scmp.eq.s32.totalorder %s12, 1
    %p98 = scmp.ne.s32.totalorder %s93, %s95
    %p99 = scmp.eq.s32.totalorder %s12, 0
    %p100 = por %p98, %p99
    %p101 = scmp.ne.s32.totalorder %s93, %s95
    %p102 = scmp.eq.s32.totalorder %s17, 1
    %p103 = por %p101, %p102
    %p104 = scmp.ne.s32.totalorder %s95, %s96
    %p105 = scmp.eq.s32.totalorder %s17, 0
    %p106 = por %p104, %p105
    %p107 = scmp.ne.s32.totalorder %s95, %s96
    %p108 = scmp.eq.s32.totalorder %s18, 1
    %p109 = por %p107, %p108
    %p111 = scmp.ne.s32.totalorder %s96, %s110
    %p112 = scmp.eq.s32.totalorder %s18, 0
    %p113 = por %p111, %p112
    %s115 = sadd.s32 %s114, 1
    %p118 = scmp.eq.s32.totalorder %s12, 1
    %p119 = scmp.ne.s32.totalorder %s114, %s116
    %p120 = scmp.eq.s32.totalorder %s12, 0
    %p121 = por %p119, %p120
    %p122 = scmp.ne.s32.totalorder %s114, %s116
    %p123 = scmp.eq.s32.totalorder %s17, 1
    %p124 = por %p122, %p123
    %p125 = scmp.ne.s32.totalorder %s116, %s117
    %p126 = scmp.eq.s32.totalorder %s17, 0
    %p127 = por %p125, %p126
    %p128 = scmp.ne.s32.totalorder %s116, %s117
    %p129 = scmp.eq.s32.totalorder %s18, 1
    %p130 = por %p128, %p129
    %p132 = scmp.ne.s32.totalorder %s117, %s131
    %p133 = scmp.eq.s32.totalorder %s18, 0
    %p134 = por %p132, %p133
    %s136 = sadd.s32 %s135, 1
    %p139 = scmp.eq.s32.totalorder %s12, 1
    %p140 = scmp.ne.s32.totalorder %s135, %s137
    %p141 = scmp.eq.s32.totalorder %s12, 0
    %p142 = por %p140, %p141
    %p143 = scmp.ne.s32.totalorder %s135, %s137
    %p144 = scmp.eq.s32.totalorder %s17, 1
    %p145 = por %p143, %p144
    %p146 = scmp.ne.s32.totalorder %s137, %s138
    %p147 = scmp.eq.s32.totalorder %s17, 0
    %p148 = por %p146, %p147
    %p149 = scmp.ne.s32.totalorder %s137, %s138
    %p150 = scmp.eq.s32.totalorder %s18, 1
    %p151 = por %p149, %p150
    %p153 = scmp.ne.s32.totalorder %s138, %s152
    %p154 = scmp.eq.s32.totalorder %s18, 0
    %p155 = por %p153, %p154
    %s156 = ssub.s32 %s12, %s19
    %p157 = scmp.eq.s32.totalorder %s156, 0
    %s159 = sadd.s32 %s158, 1
    %s160 = scalar_select %p157, %s158, %s159
    %p163 = pneg %p157
    %p164 = scmp.eq.s32.totalorder %s12, 1
    %p165 = por %p163, %p164
    %p166 = scmp.ne.s32.totalorder %s158, %s161
    %p167 = scmp.eq.s32.totalorder %s12, 0
    %p168 = por %p166, %p167
    %p169 = scmp.ne.s32.totalorder %s158, %s161
    %p170 = scmp.eq.s32.totalorder %s17, 1
    %p171 = por %p169, %p170
    %p172 = scmp.ne.s32.totalorder %s161, %s162
    %p173 = scmp.eq.s32.totalorder %s17, 0
    %p174 = por %p172, %p173
    %p175 = scmp.ne.s32.totalorder %s161, %s162
    %p176 = scmp.eq.s32.totalorder %s18, 1
    %p177 = por %p175, %p176
    %p179 = scmp.ne.s32.totalorder %s162, %s178
    %p180 = scmp.eq.s32.totalorder %s18, 0
    %p181 = por %p179, %p180
    %p182 = scmp.le.s32.totalorder 1, %s12
    %p183 = scmp.lt.s32.totalorder %s12, 3
    %p184 = pnand %p182, %p183
    %p185 = pneg %p184
    // Predicated region
    $region9: #{_lambda_.5} parent=5 // pred_check
      _
    $region10: #{_lambda_.5} parent=5 // pred_check_branch
      %187 = sbr.rel (%p184) target = $region12
    $region11: #{_lambda_.5} parent=5 // pred_region
      %s188 = ssub.s32 %s12, 1
      // Predicated region
      $region13: #{_lambda_.5} parent=11 // pred_check
        %p189 = pneg %p85
      $region14: #{_lambda_.5} parent=11 // pred_check_branch
        %191 = sbr.rel (%p189) target = $region16
      $region15: #{_lambda_.5} parent=11 // pred_region
        _
      $region16: #{_lambda_.5} parent=11 // pred_fallthru
        _
      // Predicated region
      $region17: #{_lambda_.5} parent=11 // pred_check
        %p192 = pneg %p106
      $region18: #{_lambda_.5} parent=11 // pred_check_branch
        %194 = sbr.rel (%p192) target = $region20
      $region19: #{_lambda_.5} parent=11 // pred_region
        _
      $region20: #{_lambda_.5} parent=11 // pred_fallthru
        _
      // Predicated region
      $region21: #{_lambda_.5} parent=11 // pred_check
        %p195 = pneg %p127
      $region22: #{_lambda_.5} parent=11 // pred_check_branch
        %197 = sbr.rel (%p195) target = $region24
      $region23: #{_lambda_.5} parent=11 // pred_region
        _
      $region24: #{_lambda_.5} parent=11 // pred_fallthru
        _
      // Predicated region
      $region25: #{_lambda_.5} parent=11 // pred_check
        %p198 = pneg %p148
      $region26: #{_lambda_.5} parent=11 // pred_check_branch
        %200 = sbr.rel (%p198) target = $region28
      $region27: #{_lambda_.5} parent=11 // pred_region
        _
      $region28: #{_lambda_.5} parent=11 // pred_fallthru
        _
    $region12: #{_lambda_.5} parent=5 // pred_fallthru
      _
    %p201 = scmp.lt.s32.totalorder %s12, 2
    // Predicated region
    $region29: #{_lambda_.5} parent=5 // pred_check
      %p202 = pneg %p201
    $region30: #{_lambda_.5} parent=5 // pred_check_branch
      %204 = sbr.rel (%p202) target = $region32
    $region31: #{_lambda_.5} parent=5 // pred_region
      // Predicated region
      $region33: #{_lambda_.5} parent=31 // pred_check
        %p205 = pneg %p32
      $region34: #{_lambda_.5} parent=31 // pred_check_branch
        %207 = sbr.rel (%p205) target = $region36
      $region35: #{_lambda_.5} parent=31 // pred_region
        %s208 = smul.u32 64, %s12
        %p209 = scmp.lt.s32.totalorder %s208, 127
        %s210 = scalar_select %p209, %s208, 127
        %s211 = smul.addr %s210, 8
        %s212 = scalar_lea.vmem %s0, %s211
        %s213 = smul.u32 64, %s12
      $region36: #{_lambda_.5} parent=31 // pred_fallthru
        _
      // Predicated region
      $region37: #{_lambda_.5} parent=31 // pred_check
        %p214 = pneg %p58
      $region38: #{_lambda_.5} parent=31 // pred_check_branch
        %216 = sbr.rel (%p214) target = $region40
      $region39: #{_lambda_.5} parent=31 // pred_region
        %s217 = smul.u32 64, %s12
        %p218 = scmp.lt.s32.totalorder %s217, 127
        %s219 = scalar_select %p218, %s217, 127
        %s220 = smul.addr %s219, 8
        %s221 = scalar_lea.vmem %s1, %s220
        %s222 = smul.u32 64, %s12
      $region40: #{_lambda_.5} parent=31 // pred_fallthru
        _
    $region32: #{_lambda_.5} parent=5 // pred_fallthru
      _
    %p223 = scmp.le.s32.totalorder 1, %s12
    %p224 = scmp.lt.s32.totalorder %s12, 3
    %p225 = pnand %p223, %p224
    %p226 = pneg %p225
    // Predicated region
    $region41: #{_lambda_.5} parent=5 // pred_check
      _
    $region42: #{_lambda_.5} parent=5 // pred_check_branch
      %228 = sbr.rel (%p225) target = $region44
    $region43: #{_lambda_.5} parent=5 // pred_region
      %s229 = ssub.s32 %s12, 1
      %s230 = smul.u32 64, %s17
      %p231 = scmp.lt.s32.totalorder %s230, 127
      %s232 = scalar_select %p231, %s230, 127
      %s233 = smul.addr %s232, 8
      %s234 = scalar_lea.vmem %s0, %s233
      %p235 = pneg %p38
      %p236 = pneg %p35
      %s237 = smul.u32 64, %s17
      %p238 = scmp.lt.s32.totalorder %s237, 127
      %s239 = scalar_select %p238, %s237, 127
      %s240 = smul.addr %s239, 8
      %s241 = scalar_lea.vmem %s1, %s240
      %p242 = pneg %p64
      %p243 = pneg %p61
      %p244 = pneg %p85
      %p245 = pneg %p82
      %p246 = pneg %p106
      %p247 = pneg %p103
      %p248 = pneg %p127
      %p249 = pneg %p124
      %p250 = pneg %p148
      %p251 = pneg %p145
      %p252 = pneg %p174
      %p253 = pneg %p171
      %s254 = smul.u32 64, %s17
      %p255 = scmp.lt.s32.totalorder %s254, 127
      %s256 = scalar_select %p255, %s254, 127
      %s257 = smul.addr %s256, 8
      %s258 = scalar_lea.vmem %s6, %s257
      %s259 = smul.u32 64, %s17
      %p260 = scmp.lt.s32.totalorder %s259, 127
      %s261 = scalar_select %p260, %s259, 127
      %s262 = smul.addr %s261, 8
      %s263 = scalar_lea.vmem %s0, %s262
      %s264 = smul.u32 64, %s17
      %s265 = smul.u32 64, %s17
      %p266 = scmp.lt.s32.totalorder %s265, 127
      %s267 = scalar_select %p266, %s265, 127
      %s268 = smul.addr %s267, 8
      %s269 = scalar_lea.vmem %s1, %s268
      %s270 = smul.u32 64, %s17
      %s271 = smul.u32 64, %s17
      %p272 = scmp.lt.s32.totalorder %s271, 127
      %s273 = scalar_select %p272, %s271, 127
      %s274 = smul.addr %s273, 8
      %s275 = scalar_lea.vmem %s6, %s274
      %s276 = smul.u32 64, %s17
      %v278 = vld [vmem:[%s263] sm:$0xff]
      %v279 = vld [vmem:[%s263 + $0x8] sm:$0xff]
      %v280 = vld [vmem:[%s263 + $0x10] sm:$0xff]
      %v281 = vld [vmem:[%s263 + $0x18] sm:$0xff]
      %v282 = vld [vmem:[%s263 + $0x20] sm:$0xff]
      %v283 = vld [vmem:[%s263 + $0x28] sm:$0xff]
      %v284 = vld [vmem:[%s263 + $0x30] sm:$0xff]
      %v285 = vld [vmem:[%s263 + $0x38] sm:$0xff]
      %v286 = vld [vmem:[%s263 + $0x40] sm:$0xff]
      %v287 = vld [vmem:[%s263 + $0x48] sm:$0xff]
      %v288 = vld [vmem:[%s263 + $0x50] sm:$0xff]
      %v289 = vld [vmem:[%s263 + $0x58] sm:$0xff]
      %v290 = vld [vmem:[%s263 + $0x60] sm:$0xff]
      %v291 = vld [vmem:[%s263 + $0x68] sm:$0xff]
      %v292 = vld [vmem:[%s263 + $0x70] sm:$0xff]
      %v293 = vld [vmem:[%s263 + $0x78] sm:$0xff]
      %v294 = vld [vmem:[%s263 + $0x80] sm:$0xff]
      %v295 = vld [vmem:[%s263 + $0x88] sm:$0xff]
      %v296 = vld [vmem:[%s263 + $0x90] sm:$0xff]
      %v297 = vld [vmem:[%s263 + $0x98] sm:$0xff]
      %v298 = vld [vmem:[%s263 + $0xa0] sm:$0xff]
      %v299 = vld [vmem:[%s263 + $0xa8] sm:$0xff]
      %v300 = vld [vmem:[%s263 + $0xb0] sm:$0xff]
      %v301 = vld [vmem:[%s263 + $0xb8] sm:$0xff]
      %v302 = vld [vmem:[%s263 + $0xc0] sm:$0xff]
      %v303 = vld [vmem:[%s263 + $0xc8] sm:$0xff]
      %v304 = vld [vmem:[%s263 + $0xd0] sm:$0xff]
      %v305 = vld [vmem:[%s263 + $0xd8] sm:$0xff]
      %v306 = vld [vmem:[%s263 + $0xe0] sm:$0xff]
      %v307 = vld [vmem:[%s263 + $0xe8] sm:$0xff]
      %v308 = vld [vmem:[%s263 + $0xf0] sm:$0xff]
      %v309 = vld [vmem:[%s263 + $0xf8] sm:$0xff]
      %v310 = vld [vmem:[%s263 + $0x100] sm:$0xff]
      %v311 = vld [vmem:[%s263 + $0x108] sm:$0xff]
      %v312 = vld [vmem:[%s263 + $0x110] sm:$0xff]
      %v313 = vld [vmem:[%s263 + $0x118] sm:$0xff]
      %v314 = vld [vmem:[%s263 + $0x120] sm:$0xff]
      %v315 = vld [vmem:[%s263 + $0x128] sm:$0xff]
      %v316 = vld [vmem:[%s263 + $0x130] sm:$0xff]
      %v317 = vld [vmem:[%s263 + $0x138] sm:$0xff]
      %v318 = vld [vmem:[%s263 + $0x140] sm:$0xff]
      %v319 = vld [vmem:[%s263 + $0x148] sm:$0xff]
      %v320 = vld [vmem:[%s263 + $0x150] sm:$0xff]
      %v321 = vld [vmem:[%s263 + $0x158] sm:$0xff]
      %v322 = vld [vmem:[%s263 + $0x160] sm:$0xff]
      %v323 = vld [vmem:[%s263 + $0x168] sm:$0xff]
      %v324 = vld [vmem:[%s263 + $0x170] sm:$0xff]
      %v325 = vld [vmem:[%s263 + $0x178] sm:$0xff]
      %v326 = vld [vmem:[%s263 + $0x180] sm:$0xff]
      %v327 = vld [vmem:[%s263 + $0x188] sm:$0xff]
      %v328 = vld [vmem:[%s263 + $0x190] sm:$0xff]
      %v329 = vld [vmem:[%s263 + $0x198] sm:$0xff]
      %v330 = vld [vmem:[%s263 + $0x1a0] sm:$0xff]
      %v331 = vld [vmem:[%s263 + $0x1a8] sm:$0xff]
      %v332 = vld [vmem:[%s263 + $0x1b0] sm:$0xff]
      %v333 = vld [vmem:[%s263 + $0x1b8] sm:$0xff]
      %v334 = vld [vmem:[%s263 + $0x1c0] sm:$0xff]
      %v335 = vld [vmem:[%s263 + $0x1c8] sm:$0xff]
      %v336 = vld [vmem:[%s263 + $0x1d0] sm:$0xff]
      %v337 = vld [vmem:[%s263 + $0x1d8] sm:$0xff]
      %v338 = vld [vmem:[%s263 + $0x1e0] sm:$0xff]
      %v339 = vld [vmem:[%s263 + $0x1e8] sm:$0xff]
      %v340 = vld [vmem:[%s263 + $0x1f0] sm:$0xff]
      %v341 = vld [vmem:[%s263 + $0x1f8] sm:$0xff]
      %v342 = vld [vmem:[%s269] sm:$0xff]
      %v343 = vld [vmem:[%s269 + $0x8] sm:$0xff]
      %v344 = vld [vmem:[%s269 + $0x10] sm:$0xff]
      %v345 = vld [vmem:[%s269 + $0x18] sm:$0xff]
      %v346 = vld [vmem:[%s269 + $0x20] sm:$0xff]
      %v347 = vld [vmem:[%s269 + $0x28] sm:$0xff]
      %v348 = vld [vmem:[%s269 + $0x30] sm:$0xff]
      %v349 = vld [vmem:[%s269 + $0x38] sm:$0xff]
      %v350 = vld [vmem:[%s269 + $0x40] sm:$0xff]
      %v351 = vld [vmem:[%s269 + $0x48] sm:$0xff]
      %v352 = vld [vmem:[%s269 + $0x50] sm:$0xff]
      %v353 = vld [vmem:[%s269 + $0x58] sm:$0xff]
      %v354 = vld [vmem:[%s269 + $0x60] sm:$0xff]
      %v355 = vld [vmem:[%s269 + $0x68] sm:$0xff]
      %v356 = vld [vmem:[%s269 + $0x70] sm:$0xff]
      %v357 = vld [vmem:[%s269 + $0x78] sm:$0xff]
      %v358 = vld [vmem:[%s269 + $0x80] sm:$0xff]
      %v359 = vld [vmem:[%s269 + $0x88] sm:$0xff]
      %v360 = vld [vmem:[%s269 + $0x90] sm:$0xff]
      %v361 = vld [vmem:[%s269 + $0x98] sm:$0xff]
      %v362 = vld [vmem:[%s269 + $0xa0] sm:$0xff]
      %v363 = vld [vmem:[%s269 + $0xa8] sm:$0xff]
      %v364 = vld [vmem:[%s269 + $0xb0] sm:$0xff]
      %v365 = vld [vmem:[%s269 + $0xb8] sm:$0xff]
      %v366 = vld [vmem:[%s269 + $0xc0] sm:$0xff]
      %v367 = vld [vmem:[%s269 + $0xc8] sm:$0xff]
      %v368 = vld [vmem:[%s269 + $0xd0] sm:$0xff]
      %v369 = vld [vmem:[%s269 + $0xd8] sm:$0xff]
      %v370 = vld [vmem:[%s269 + $0xe0] sm:$0xff]
      %v371 = vld [vmem:[%s269 + $0xe8] sm:$0xff]
      %v372 = vld [vmem:[%s269 + $0xf0] sm:$0xff]
      %v373 = vld [vmem:[%s269 + $0xf8] sm:$0xff]
      %v374 = vld [vmem:[%s269 + $0x100] sm:$0xff]
      %v375 = vld [vmem:[%s269 + $0x108] sm:$0xff]
      %v376 = vld [vmem:[%s269 + $0x110] sm:$0xff]
      %v377 = vld [vmem:[%s269 + $0x118] sm:$0xff]
      %v378 = vld [vmem:[%s269 + $0x120] sm:$0xff]
      %v379 = vld [vmem:[%s269 + $0x128] sm:$0xff]
      %v380 = vld [vmem:[%s269 + $0x130] sm:$0xff]
      %v381 = vld [vmem:[%s269 + $0x138] sm:$0xff]
      %v382 = vld [vmem:[%s269 + $0x140] sm:$0xff]
      %v383 = vld [vmem:[%s269 + $0x148] sm:$0xff]
      %v384 = vld [vmem:[%s269 + $0x150] sm:$0xff]
      %v385 = vld [vmem:[%s269 + $0x158] sm:$0xff]
      %v386 = vld [vmem:[%s269 + $0x160] sm:$0xff]
      %v387 = vld [vmem:[%s269 + $0x168] sm:$0xff]
      %v388 = vld [vmem:[%s269 + $0x170] sm:$0xff]
      %v389 = vld [vmem:[%s269 + $0x178] sm:$0xff]
      %v390 = vld [vmem:[%s269 + $0x180] sm:$0xff]
      %v391 = vld [vmem:[%s269 + $0x188] sm:$0xff]
      %v392 = vld [vmem:[%s269 + $0x190] sm:$0xff]
      %v393 = vld [vmem:[%s269 + $0x198] sm:$0xff]
      %v394 = vld [vmem:[%s269 + $0x1a0] sm:$0xff]
      %v395 = vld [vmem:[%s269 + $0x1a8] sm:$0xff]
      %v396 = vld [vmem:[%s269 + $0x1b0] sm:$0xff]
      %v397 = vld [vmem:[%s269 + $0x1b8] sm:$0xff]
      %v398 = vld [vmem:[%s269 + $0x1c0] sm:$0xff]
      %v399 = vld [vmem:[%s269 + $0x1c8] sm:$0xff]
      %v400 = vld [vmem:[%s269 + $0x1d0] sm:$0xff]
      %v401 = vld [vmem:[%s269 + $0x1d8] sm:$0xff]
      %v402 = vld [vmem:[%s269 + $0x1e0] sm:$0xff]
      %v403 = vld [vmem:[%s269 + $0x1e8] sm:$0xff]
      %v404 = vld [vmem:[%s269 + $0x1f0] sm:$0xff]
      %v405 = vld [vmem:[%s269 + $0x1f8] sm:$0xff]
      %v406 = vadd.f32 %v278, %v342
      %v407 = vadd.f32 %v279, %v343
      %v408 = vadd.f32 %v280, %v344
      %v409 = vadd.f32 %v281, %v345
      %v410 = vadd.f32 %v282, %v346
      %v411 = vadd.f32 %v283, %v347
      %v412 = vadd.f32 %v284, %v348
      %v413 = vadd.f32 %v285, %v349
      %v414 = vadd.f32 %v286, %v350
      %v415 = vadd.f32 %v287, %v351
      %v416 = vadd.f32 %v288, %v352
      %v417 = vadd.f32 %v289, %v353
      %v418 = vadd.f32 %v290, %v354
      %v419 = vadd.f32 %v291, %v355
      %v420 = vadd.f32 %v292, %v356
      %v421 = vadd.f32 %v293, %v357
      %v422 = vadd.f32 %v294, %v358
      %v423 = vadd.f32 %v295, %v359
      %v424 = vadd.f32 %v296, %v360
      %v425 = vadd.f32 %v297, %v361
      %v426 = vadd.f32 %v298, %v362
      %v427 = vadd.f32 %v299, %v363
      %v428 = vadd.f32 %v300, %v364
      %v429 = vadd.f32 %v301, %v365
      %v430 = vadd.f32 %v302, %v366
      %v431 = vadd.f32 %v303, %v367
      %v432 = vadd.f32 %v304, %v368
      %v433 = vadd.f32 %v305, %v369
      %v434 = vadd.f32 %v306, %v370
      %v435 = vadd.f32 %v307, %v371
      %v436 = vadd.f32 %v308, %v372
      %v437 = vadd.f32 %v309, %v373
      %v438 = vadd.f32 %v310, %v374
      %v439 = vadd.f32 %v311, %v375
      %v440 = vadd.f32 %v312, %v376
      %v441 = vadd.f32 %v313, %v377
      %v442 = vadd.f32 %v314, %v378
      %v443 = vadd.f32 %v315, %v379
      %v444 = vadd.f32 %v316, %v380
      %v445 = vadd.f32 %v317, %v381
      %v446 = vadd.f32 %v318, %v382
      %v447 = vadd.f32 %v319, %v383
      %v448 = vadd.f32 %v320, %v384
      %v449 = vadd.f32 %v321, %v385
      %v450 = vadd.f32 %v322, %v386
      %v451 = vadd.f32 %v323, %v387
      %v452 = vadd.f32 %v324, %v388
      %v453 = vadd.f32 %v325, %v389
      %v454 = vadd.f32 %v326, %v390
      %v455 = vadd.f32 %v327, %v391
      %v456 = vadd.f32 %v328, %v392
      %v457 = vadd.f32 %v329, %v393
      %v458 = vadd.f32 %v330, %v394
      %v459 = vadd.f32 %v331, %v395
      %v460 = vadd.f32 %v332, %v396
      %v461 = vadd.f32 %v333, %v397
      %v462 = vadd.f32 %v334, %v398
      %v463 = vadd.f32 %v335, %v399
      %v464 = vadd.f32 %v336, %v400
      %v465 = vadd.f32 %v337, %v401
      %v466 = vadd.f32 %v338, %v402
      %v467 = vadd.f32 %v339, %v403
      %v468 = vadd.f32 %v340, %v404
      %v469 = vadd.f32 %v341, %v405
      %vm470 = vcmask 261120
      %v471 = vsel %vm470, %v406, 0.0
      %472 = vadd.xlane.f32.xlu0 %v471
      %v473 = vpop.xlane.xlu0 %472
      %v474 = vsel %vm470, %v407, 0.0
      %475 = vadd.xlane.f32.xlu0 %v474
      %v476 = vpop.xlane.xlu0 %475
      %v477 = vsel %vm470, %v408, 0.0
      %478 = vadd.xlane.f32.xlu0 %v477
      %v479 = vpop.xlane.xlu0 %478
      %v480 = vsel %vm470, %v409, 0.0
      %481 = vadd.xlane.f32.xlu0 %v480
      %v482 = vpop.xlane.xlu0 %481
      %v483 = vsel %vm470, %v410, 0.0
      %484 = vadd.xlane.f32.xlu0 %v483
      %v485 = vpop.xlane.xlu0 %484
      %v486 = vsel %vm470, %v411, 0.0
      %487 = vadd.xlane.f32.xlu0 %v486
      %v488 = vpop.xlane.xlu0 %487
      %v489 = vsel %vm470, %v412, 0.0
      %490 = vadd.xlane.f32.xlu0 %v489
      %v491 = vpop.xlane.xlu0 %490
      %v492 = vsel %vm470, %v413, 0.0
      %493 = vadd.xlane.f32.xlu0 %v492
      %v494 = vpop.xlane.xlu0 %493
      %v495 = vsel %vm470, %v414, 0.0
      %496 = vadd.xlane.f32.xlu0 %v495
      %v497 = vpop.xlane.xlu0 %496
      %v498 = vsel %vm470, %v415, 0.0
      %499 = vadd.xlane.f32.xlu0 %v498
      %v500 = vpop.xlane.xlu0 %499
      %v501 = vsel %vm470, %v416, 0.0
      %502 = vadd.xlane.f32.xlu0 %v501
      %v503 = vpop.xlane.xlu0 %502
      %v504 = vsel %vm470, %v417, 0.0
      %505 = vadd.xlane.f32.xlu0 %v504
      %v506 = vpop.xlane.xlu0 %505
      %v507 = vsel %vm470, %v418, 0.0
      %508 = vadd.xlane.f32.xlu0 %v507
      %v509 = vpop.xlane.xlu0 %508
      %v510 = vsel %vm470, %v419, 0.0
      %511 = vadd.xlane.f32.xlu0 %v510
      %v512 = vpop.xlane.xlu0 %511
      %v513 = vsel %vm470, %v420, 0.0
      %514 = vadd.xlane.f32.xlu0 %v513
      %v515 = vpop.xlane.xlu0 %514
      %v516 = vsel %vm470, %v421, 0.0
      %517 = vadd.xlane.f32.xlu0 %v516
      %v518 = vpop.xlane.xlu0 %517
      %v519 = vsel %vm470, %v422, 0.0
      %520 = vadd.xlane.f32.xlu0 %v519
      %v521 = vpop.xlane.xlu0 %520
      %v522 = vsel %vm470, %v423, 0.0
      %523 = vadd.xlane.f32.xlu0 %v522
      %v524 = vpop.xlane.xlu0 %523
      %v525 = vsel %vm470, %v424, 0.0
      %526 = vadd.xlane.f32.xlu0 %v525
      %v527 = vpop.xlane.xlu0 %526
      %v528 = vsel %vm470, %v425, 0.0
      %529 = vadd.xlane.f32.xlu0 %v528
      %v530 = vpop.xlane.xlu0 %529
      %v531 = vsel %vm470, %v426, 0.0
      %532 = vadd.xlane.f32.xlu0 %v531
      %v533 = vpop.xlane.xlu0 %532
      %v534 = vsel %vm470, %v427, 0.0
      %535 = vadd.xlane.f32.xlu0 %v534
      %v536 = vpop.xlane.xlu0 %535
      %v537 = vsel %vm470, %v428, 0.0
      %538 = vadd.xlane.f32.xlu0 %v537
      %v539 = vpop.xlane.xlu0 %538
      %v540 = vsel %vm470, %v429, 0.0
      %541 = vadd.xlane.f32.xlu0 %v540
      %v542 = vpop.xlane.xlu0 %541
      %v543 = vsel %vm470, %v430, 0.0
      %544 = vadd.xlane.f32.xlu0 %v543
      %v545 = vpop.xlane.xlu0 %544
      %v546 = vsel %vm470, %v431, 0.0
      %547 = vadd.xlane.f32.xlu0 %v546
      %v548 = vpop.xlane.xlu0 %547
      %v549 = vsel %vm470, %v432, 0.0
      %550 = vadd.xlane.f32.xlu0 %v549
      %v551 = vpop.xlane.xlu0 %550
      %v552 = vsel %vm470, %v433, 0.0
      %553 = vadd.xlane.f32.xlu0 %v552
      %v554 = vpop.xlane.xlu0 %553
      %v555 = vsel %vm470, %v434, 0.0
      %556 = vadd.xlane.f32.xlu0 %v555
      %v557 = vpop.xlane.xlu0 %556
      %v558 = vsel %vm470, %v435, 0.0
      %559 = vadd.xlane.f32.xlu0 %v558
      %v560 = vpop.xlane.xlu0 %559
      %v561 = vsel %vm470, %v436, 0.0
      %562 = vadd.xlane.f32.xlu0 %v561
      %v563 = vpop.xlane.xlu0 %562
      %v564 = vsel %vm470, %v437, 0.0
      %565 = vadd.xlane.f32.xlu0 %v564
      %v566 = vpop.xlane.xlu0 %565
      %v567 = vsel %vm470, %v438, 0.0
      %568 = vadd.xlane.f32.xlu0 %v567
      %v569 = vpop.xlane.xlu0 %568
      %v570 = vsel %vm470, %v439, 0.0
      %571 = vadd.xlane.f32.xlu0 %v570
      %v572 = vpop.xlane.xlu0 %571
      %v573 = vsel %vm470, %v440, 0.0
      %574 = vadd.xlane.f32.xlu0 %v573
      %v575 = vpop.xlane.xlu0 %574
      %v576 = vsel %vm470, %v441, 0.0
      %577 = vadd.xlane.f32.xlu0 %v576
      %v578 = vpop.xlane.xlu0 %577
      %v579 = vsel %vm470, %v442, 0.0
      %580 = vadd.xlane.f32.xlu0 %v579
      %v581 = vpop.xlane.xlu0 %580
      %v582 = vsel %vm470, %v443, 0.0
      %583 = vadd.xlane.f32.xlu0 %v582
      %v584 = vpop.xlane.xlu0 %583
      %v585 = vsel %vm470, %v444, 0.0
      %586 = vadd.xlane.f32.xlu0 %v585
      %v587 = vpop.xlane.xlu0 %586
      %v588 = vsel %vm470, %v445, 0.0
      %589 = vadd.xlane.f32.xlu0 %v588
      %v590 = vpop.xlane.xlu0 %589
      %v591 = vsel %vm470, %v446, 0.0
      %592 = vadd.xlane.f32.xlu0 %v591
      %v593 = vpop.xlane.xlu0 %592
      %v594 = vsel %vm470, %v447, 0.0
      %595 = vadd.xlane.f32.xlu0 %v594
      %v596 = vpop.xlane.xlu0 %595
      %v597 = vsel %vm470, %v448, 0.0
      %598 = vadd.xlane.f32.xlu0 %v597
      %v599 = vpop.xlane.xlu0 %598
      %v600 = vsel %vm470, %v449, 0.0
      %601 = vadd.xlane.f32.xlu0 %v600
      %v602 = vpop.xlane.xlu0 %601
      %v603 = vsel %vm470, %v450, 0.0
      %604 = vadd.xlane.f32.xlu0 %v603
      %v605 = vpop.xlane.xlu0 %604
      %v606 = vsel %vm470, %v451, 0.0
      %607 = vadd.xlane.f32.xlu0 %v606
      %v608 = vpop.xlane.xlu0 %607
      %v609 = vsel %vm470, %v452, 0.0
      %610 = vadd.xlane.f32.xlu0 %v609
      %v611 = vpop.xlane.xlu0 %610
      %v612 = vsel %vm470, %v453, 0.0
      %613 = vadd.xlane.f32.xlu0 %v612
      %v614 = vpop.xlane.xlu0 %613
      %v615 = vsel %vm470, %v454, 0.0
      %616 = vadd.xlane.f32.xlu0 %v615
      %v617 = vpop.xlane.xlu0 %616
      %v618 = vsel %vm470, %v455, 0.0
      %619 = vadd.xlane.f32.xlu0 %v618
      %v620 = vpop.xlane.xlu0 %619
      %v621 = vsel %vm470, %v456, 0.0
      %622 = vadd.xlane.f32.xlu0 %v621
      %v623 = vpop.xlane.xlu0 %622
      %v624 = vsel %vm470, %v457, 0.0
      %625 = vadd.xlane.f32.xlu0 %v624
      %v626 = vpop.xlane.xlu0 %625
      %v627 = vsel %vm470, %v458, 0.0
      %628 = vadd.xlane.f32.xlu0 %v627
      %v629 = vpop.xlane.xlu0 %628
      %v630 = vsel %vm470, %v459, 0.0
      %631 = vadd.xlane.f32.xlu0 %v630
      %v632 = vpop.xlane.xlu0 %631
      %v633 = vsel %vm470, %v460, 0.0
      %634 = vadd.xlane.f32.xlu0 %v633
      %v635 = vpop.xlane.xlu0 %634
      %v636 = vsel %vm470, %v461, 0.0
      %637 = vadd.xlane.f32.xlu0 %v636
      %v638 = vpop.xlane.xlu0 %637
      %v639 = vsel %vm470, %v462, 0.0
      %640 = vadd.xlane.f32.xlu0 %v639
      %v641 = vpop.xlane.xlu0 %640
      %v642 = vsel %vm470, %v463, 0.0
      %643 = vadd.xlane.f32.xlu0 %v642
      %v644 = vpop.xlane.xlu0 %643
      %v645 = vsel %vm470, %v464, 0.0
      %646 = vadd.xlane.f32.xlu0 %v645
      %v647 = vpop.xlane.xlu0 %646
      %v648 = vsel %vm470, %v465, 0.0
      %649 = vadd.xlane.f32.xlu0 %v648
      %v650 = vpop.xlane.xlu0 %649
      %v651 = vsel %vm470, %v466, 0.0
      %652 = vadd.xlane.f32.xlu0 %v651
      %v653 = vpop.xlane.xlu0 %652
      %v654 = vsel %vm470, %v467, 0.0
      %655 = vadd.xlane.f32.xlu0 %v654
      %v656 = vpop.xlane.xlu0 %655
      %v657 = vsel %vm470, %v468, 0.0
      %658 = vadd.xlane.f32.xlu0 %v657
      %v659 = vpop.xlane.xlu0 %658
      %v660 = vsel %vm470, %v469, 0.0
      %661 = vadd.xlane.f32.xlu0 %v660
      %v662 = vpop.xlane.xlu0 %661
      %v663 = vrcp.pop 32.0
      %v664 = vmul.f32 %v473, %v663
      %v665 = vmul.f32 %v476, %v663
      %v666 = vmul.f32 %v479, %v663
      %v667 = vmul.f32 %v482, %v663
      %v668 = vmul.f32 %v485, %v663
      %v669 = vmul.f32 %v488, %v663
      %v670 = vmul.f32 %v491, %v663
      %v671 = vmul.f32 %v494, %v663
      %v672 = vmul.f32 %v497, %v663
      %v673 = vmul.f32 %v500, %v663
      %v674 = vmul.f32 %v503, %v663
      %v675 = vmul.f32 %v506, %v663
      %v676 = vmul.f32 %v509, %v663
      %v677 = vmul.f32 %v512, %v663
      %v678 = vmul.f32 %v515, %v663
      %v679 = vmul.f32 %v518, %v663
      %v680 = vmul.f32 %v521, %v663
      %v681 = vmul.f32 %v524, %v663
      %v682 = vmul.f32 %v527, %v663
      %v683 = vmul.f32 %v530, %v663
      %v684 = vmul.f32 %v533, %v663
      %v685 = vmul.f32 %v536, %v663
      %v686 = vmul.f32 %v539, %v663
      %v687 = vmul.f32 %v542, %v663
      %v688 = vmul.f32 %v545, %v663
      %v689 = vmul.f32 %v548, %v663
      %v690 = vmul.f32 %v551, %v663
      %v691 = vmul.f32 %v554, %v663
      %v692 = vmul.f32 %v557, %v663
      %v693 = vmul.f32 %v560, %v663
      %v694 = vmul.f32 %v563, %v663
      %v695 = vmul.f32 %v566, %v663
      %v696 = vmul.f32 %v569, %v663
      %v697 = vmul.f32 %v572, %v663
      %v698 = vmul.f32 %v575, %v663
      %v699 = vmul.f32 %v578, %v663
      %v700 = vmul.f32 %v581, %v663
      %v701 = vmul.f32 %v584, %v663
      %v702 = vmul.f32 %v587, %v663
      %v703 = vmul.f32 %v590, %v663
      %v704 = vmul.f32 %v593, %v663
      %v705 = vmul.f32 %v596, %v663
      %v706 = vmul.f32 %v599, %v663
      %v707 = vmul.f32 %v602, %v663
      %v708 = vmul.f32 %v605, %v663
      %v709 = vmul.f32 %v608, %v663
      %v710 = vmul.f32 %v611, %v663
      %v711 = vmul.f32 %v614, %v663
      %v712 = vmul.f32 %v617, %v663
      %v713 = vmul.f32 %v620, %v663
      %v714 = vmul.f32 %v623, %v663
      %v715 = vmul.f32 %v626, %v663
      %v716 = vmul.f32 %v629, %v663
      %v717 = vmul.f32 %v632, %v663
      %v718 = vmul.f32 %v635, %v663
      %v719 = vmul.f32 %v638, %v663
      %v720 = vmul.f32 %v641, %v663
      %v721 = vmul.f32 %v644, %v663
      %v722 = vmul.f32 %v647, %v663
      %v723 = vmul.f32 %v650, %v663
      %v724 = vmul.f32 %v653, %v663
      %v725 = vmul.f32 %v656, %v663
      %v726 = vmul.f32 %v659, %v663
      %v727 = vmul.f32 %v662, %v663
      %v728 = vsub.f32 %v406, %v664
      %v729 = vsub.f32 %v407, %v665
      %v730 = vsub.f32 %v408, %v666
      %v731 = vsub.f32 %v409, %v667
      %v732 = vsub.f32 %v410, %v668
      %v733 = vsub.f32 %v411, %v669
      %v734 = vsub.f32 %v412, %v670
      %v735 = vsub.f32 %v413, %v671
      %v736 = vsub.f32 %v414, %v672
      %v737 = vsub.f32 %v415, %v673
      %v738 = vsub.f32 %v416, %v674
      %v739 = vsub.f32 %v417, %v675
      %v740 = vsub.f32 %v418, %v676
      %v741 = vsub.f32 %v419, %v677
      %v742 = vsub.f32 %v420, %v678
      %v743 = vsub.f32 %v421, %v679
      %v744 = vsub.f32 %v422, %v680
      %v745 = vsub.f32 %v423, %v681
      %v746 = vsub.f32 %v424, %v682
      %v747 = vsub.f32 %v425, %v683
      %v748 = vsub.f32 %v426, %v684
      %v749 = vsub.f32 %v427, %v685
      %v750 = vsub.f32 %v428, %v686
      %v751 = vsub.f32 %v429, %v687
      %v752 = vsub.f32 %v430, %v688
      %v753 = vsub.f32 %v431, %v689
      %v754 = vsub.f32 %v432, %v690
      %v755 = vsub.f32 %v433, %v691
      %v756 = vsub.f32 %v434, %v692
      %v757 = vsub.f32 %v435, %v693
      %v758 = vsub.f32 %v436, %v694
      %v759 = vsub.f32 %v437, %v695
      %v760 = vsub.f32 %v438, %v696
      %v761 = vsub.f32 %v439, %v697
      %v762 = vsub.f32 %v440, %v698
      %v763 = vsub.f32 %v441, %v699
      %v764 = vsub.f32 %v442, %v700
      %v765 = vsub.f32 %v443, %v701
      %v766 = vsub.f32 %v444, %v702
      %v767 = vsub.f32 %v445, %v703
      %v768 = vsub.f32 %v446, %v704
      %v769 = vsub.f32 %v447, %v705
      %v770 = vsub.f32 %v448, %v706
      %v771 = vsub.f32 %v449, %v707
      %v772 = vsub.f32 %v450, %v708
      %v773 = vsub.f32 %v451, %v709
      %v774 = vsub.f32 %v452, %v710
      %v775 = vsub.f32 %v453, %v711
      %v776 = vsub.f32 %v454, %v712
      %v777 = vsub.f32 %v455, %v713
      %v778 = vsub.f32 %v456, %v714
      %v779 = vsub.f32 %v457, %v715
      %v780 = vsub.f32 %v458, %v716
      %v781 = vsub.f32 %v459, %v717
      %v782 = vsub.f32 %v460, %v718
      %v783 = vsub.f32 %v461, %v719
      %v784 = vsub.f32 %v462, %v720
      %v785 = vsub.f32 %v463, %v721
      %v786 = vsub.f32 %v464, %v722
      %v787 = vsub.f32 %v465, %v723
      %v788 = vsub.f32 %v466, %v724
      %v789 = vsub.f32 %v467, %v725
      %v790 = vsub.f32 %v468, %v726
      %v791 = vsub.f32 %v469, %v727
      %v792 = vmul.f32 %v728, %v728
      %v793 = vmul.f32 %v729, %v729
      %v794 = vmul.f32 %v730, %v730
      %v795 = vmul.f32 %v731, %v731
      %v796 = vmul.f32 %v732, %v732
      %v797 = vmul.f32 %v733, %v733
      %v798 = vmul.f32 %v734, %v734
      %v799 = vmul.f32 %v735, %v735
      %v800 = vmul.f32 %v736, %v736
      %v801 = vmul.f32 %v737, %v737
      %v802 = vmul.f32 %v738, %v738
      %v803 = vmul.f32 %v739, %v739
      %v804 = vmul.f32 %v740, %v740
      %v805 = vmul.f32 %v741, %v741
      %v806 = vmul.f32 %v742, %v742
      %v807 = vmul.f32 %v743, %v743
      %v808 = vmul.f32 %v744, %v744
      %v809 = vmul.f32 %v745, %v745
      %v810 = vmul.f32 %v746, %v746
      %v811 = vmul.f32 %v747, %v747
      %v812 = vmul.f32 %v748, %v748
      %v813 = vmul.f32 %v749, %v749
      %v814 = vmul.f32 %v750, %v750
      %v815 = vmul.f32 %v751, %v751
      %v816 = vmul.f32 %v752, %v752
      %v817 = vmul.f32 %v753, %v753
      %v818 = vmul.f32 %v754, %v754
      %v819 = vmul.f32 %v755, %v755
      %v820 = vmul.f32 %v756, %v756
      %v821 = vmul.f32 %v757, %v757
      %v822 = vmul.f32 %v758, %v758
      %v823 = vmul.f32 %v759, %v759
      %v824 = vmul.f32 %v760, %v760
      %v825 = vmul.f32 %v761, %v761
      %v826 = vmul.f32 %v762, %v762
      %v827 = vmul.f32 %v763, %v763
      %v828 = vmul.f32 %v764, %v764
      %v829 = vmul.f32 %v765, %v765
      %v830 = vmul.f32 %v766, %v766
      %v831 = vmul.f32 %v767, %v767
      %v832 = vmul.f32 %v768, %v768
      %v833 = vmul.f32 %v769, %v769
      %v834 = vmul.f32 %v770, %v770
      %v835 = vmul.f32 %v771, %v771
      %v836 = vmul.f32 %v772, %v772
      %v837 = vmul.f32 %v773, %v773
      %v838 = vmul.f32 %v774, %v774
      %v839 = vmul.f32 %v775, %v775
      %v840 = vmul.f32 %v776, %v776
      %v841 = vmul.f32 %v777, %v777
      %v842 = vmul.f32 %v778, %v778
      %v843 = vmul.f32 %v779, %v779
      %v844 = vmul.f32 %v780, %v780
      %v845 = vmul.f32 %v781, %v781
      %v846 = vmul.f32 %v782, %v782
      %v847 = vmul.f32 %v783, %v783
      %v848 = vmul.f32 %v784, %v784
      %v849 = vmul.f32 %v785, %v785
      %v850 = vmul.f32 %v786, %v786
      %v851 = vmul.f32 %v787, %v787
      %v852 = vmul.f32 %v788, %v788
      %v853 = vmul.f32 %v789, %v789
      %v854 = vmul.f32 %v790, %v790
      %v855 = vmul.f32 %v791, %v791
      %v856 = vsel %vm470, %v792, 0.0
      %857 = vadd.xlane.f32.xlu0 %v856
      %v858 = vpop.xlane.xlu0 %857
      %v859 = vsel %vm470, %v793, 0.0
      %860 = vadd.xlane.f32.xlu0 %v859
      %v861 = vpop.xlane.xlu0 %860
      %v862 = vsel %vm470, %v794, 0.0
      %863 = vadd.xlane.f32.xlu0 %v862
      %v864 = vpop.xlane.xlu0 %863
      %v865 = vsel %vm470, %v795, 0.0
      %866 = vadd.xlane.f32.xlu0 %v865
      %v867 = vpop.xlane.xlu0 %866
      %v868 = vsel %vm470, %v796, 0.0
      %869 = vadd.xlane.f32.xlu0 %v868
      %v870 = vpop.xlane.xlu0 %869
      %v871 = vsel %vm470, %v797, 0.0
      %872 = vadd.xlane.f32.xlu0 %v871
      %v873 = vpop.xlane.xlu0 %872
      %v874 = vsel %vm470, %v798, 0.0
      %875 = vadd.xlane.f32.xlu0 %v874
      %v876 = vpop.xlane.xlu0 %875
      %v877 = vsel %vm470, %v799, 0.0
      %878 = vadd.xlane.f32.xlu0 %v877
      %v879 = vpop.xlane.xlu0 %878
      %v880 = vsel %vm470, %v800, 0.0
      %881 = vadd.xlane.f32.xlu0 %v880
      %v882 = vpop.xlane.xlu0 %881
      %v883 = vsel %vm470, %v801, 0.0
      %884 = vadd.xlane.f32.xlu0 %v883
      %v885 = vpop.xlane.xlu0 %884
      %v886 = vsel %vm470, %v802, 0.0
      %887 = vadd.xlane.f32.xlu0 %v886
      %v888 = vpop.xlane.xlu0 %887
      %v889 = vsel %vm470, %v803, 0.0
      %890 = vadd.xlane.f32.xlu0 %v889
      %v891 = vpop.xlane.xlu0 %890
      %v892 = vsel %vm470, %v804, 0.0
      %893 = vadd.xlane.f32.xlu0 %v892
      %v894 = vpop.xlane.xlu0 %893
      %v895 = vsel %vm470, %v805, 0.0
      %896 = vadd.xlane.f32.xlu0 %v895
      %v897 = vpop.xlane.xlu0 %896
      %v898 = vsel %vm470, %v806, 0.0
      %899 = vadd.xlane.f32.xlu0 %v898
      %v900 = vpop.xlane.xlu0 %899
      %v901 = vsel %vm470, %v807, 0.0
      %902 = vadd.xlane.f32.xlu0 %v901
      %v903 = vpop.xlane.xlu0 %902
      %v904 = vsel %vm470, %v808, 0.0
      %905 = vadd.xlane.f32.xlu0 %v904
      %v906 = vpop.xlane.xlu0 %905
      %v907 = vsel %vm470, %v809, 0.0
      %908 = vadd.xlane.f32.xlu0 %v907
      %v909 = vpop.xlane.xlu0 %908
      %v910 = vsel %vm470, %v810, 0.0
      %911 = vadd.xlane.f32.xlu0 %v910
      %v912 = vpop.xlane.xlu0 %911
      %v913 = vsel %vm470, %v811, 0.0
      %914 = vadd.xlane.f32.xlu0 %v913
      %v915 = vpop.xlane.xlu0 %914
      %v916 = vsel %vm470, %v812, 0.0
      %917 = vadd.xlane.f32.xlu0 %v916
      %v918 = vpop.xlane.xlu0 %917
      %v919 = vsel %vm470, %v813, 0.0
      %920 = vadd.xlane.f32.xlu0 %v919
      %v921 = vpop.xlane.xlu0 %920
      %v922 = vsel %vm470, %v814, 0.0
      %923 = vadd.xlane.f32.xlu0 %v922
      %v924 = vpop.xlane.xlu0 %923
      %v925 = vsel %vm470, %v815, 0.0
      %926 = vadd.xlane.f32.xlu0 %v925
      %v927 = vpop.xlane.xlu0 %926
      %v928 = vsel %vm470, %v816, 0.0
      %929 = vadd.xlane.f32.xlu0 %v928
      %v930 = vpop.xlane.xlu0 %929
      %v931 = vsel %vm470, %v817, 0.0
      %932 = vadd.xlane.f32.xlu0 %v931
      %v933 = vpop.xlane.xlu0 %932
      %v934 = vsel %vm470, %v818, 0.0
      %935 = vadd.xlane.f32.xlu0 %v934
      %v936 = vpop.xlane.xlu0 %935
      %v937 = vsel %vm470, %v819, 0.0
      %938 = vadd.xlane.f32.xlu0 %v937
      %v939 = vpop.xlane.xlu0 %938
      %v940 = vsel %vm470, %v820, 0.0
      %941 = vadd.xlane.f32.xlu0 %v940
      %v942 = vpop.xlane.xlu0 %941
      %v943 = vsel %vm470, %v821, 0.0
      %944 = vadd.xlane.f32.xlu0 %v943
      %v945 = vpop.xlane.xlu0 %944
      %v946 = vsel %vm470, %v822, 0.0
      %947 = vadd.xlane.f32.xlu0 %v946
      %v948 = vpop.xlane.xlu0 %947
      %v949 = vsel %vm470, %v823, 0.0
      %950 = vadd.xlane.f32.xlu0 %v949
      %v951 = vpop.xlane.xlu0 %950
      %v952 = vsel %vm470, %v824, 0.0
      %953 = vadd.xlane.f32.xlu0 %v952
      %v954 = vpop.xlane.xlu0 %953
      %v955 = vsel %vm470, %v825, 0.0
      %956 = vadd.xlane.f32.xlu0 %v955
      %v957 = vpop.xlane.xlu0 %956
      %v958 = vsel %vm470, %v826, 0.0
      %959 = vadd.xlane.f32.xlu0 %v958
      %v960 = vpop.xlane.xlu0 %959
      %v961 = vsel %vm470, %v827, 0.0
      %962 = vadd.xlane.f32.xlu0 %v961
      %v963 = vpop.xlane.xlu0 %962
      %v964 = vsel %vm470, %v828, 0.0
      %965 = vadd.xlane.f32.xlu0 %v964
      %v966 = vpop.xlane.xlu0 %965
      %v967 = vsel %vm470, %v829, 0.0
      %968 = vadd.xlane.f32.xlu0 %v967
      %v969 = vpop.xlane.xlu0 %968
      %v970 = vsel %vm470, %v830, 0.0
      %971 = vadd.xlane.f32.xlu0 %v970
      %v972 = vpop.xlane.xlu0 %971
      %v973 = vsel %vm470, %v831, 0.0
      %974 = vadd.xlane.f32.xlu0 %v973
      %v975 = vpop.xlane.xlu0 %974
      %v976 = vsel %vm470, %v832, 0.0
      %977 = vadd.xlane.f32.xlu0 %v976
      %v978 = vpop.xlane.xlu0 %977
      %v979 = vsel %vm470, %v833, 0.0
      %980 = vadd.xlane.f32.xlu0 %v979
      %v981 = vpop.xlane.xlu0 %980
      %v982 = vsel %vm470, %v834, 0.0
      %983 = vadd.xlane.f32.xlu0 %v982
      %v984 = vpop.xlane.xlu0 %983
      %v985 = vsel %vm470, %v835, 0.0
      %986 = vadd.xlane.f32.xlu0 %v985
      %v987 = vpop.xlane.xlu0 %986
      %v988 = vsel %vm470, %v836, 0.0
      %989 = vadd.xlane.f32.xlu0 %v988
      %v990 = vpop.xlane.xlu0 %989
      %v991 = vsel %vm470, %v837, 0.0
      %992 = vadd.xlane.f32.xlu0 %v991
      %v993 = vpop.xlane.xlu0 %992
      %v994 = vsel %vm470, %v838, 0.0
      %995 = vadd.xlane.f32.xlu0 %v994
      %v996 = vpop.xlane.xlu0 %995
      %v997 = vsel %vm470, %v839, 0.0
      %998 = vadd.xlane.f32.xlu0 %v997
      %v999 = vpop.xlane.xlu0 %998
      %v1000 = vsel %vm470, %v840, 0.0
      %1001 = vadd.xlane.f32.xlu0 %v1000
      %v1002 = vpop.xlane.xlu0 %1001
      %v1003 = vsel %vm470, %v841, 0.0
      %1004 = vadd.xlane.f32.xlu0 %v1003
      %v1005 = vpop.xlane.xlu0 %1004
      %v1006 = vsel %vm470, %v842, 0.0
      %1007 = vadd.xlane.f32.xlu0 %v1006
      %v1008 = vpop.xlane.xlu0 %1007
      %v1009 = vsel %vm470, %v843, 0.0
      %1010 = vadd.xlane.f32.xlu0 %v1009
      %v1011 = vpop.xlane.xlu0 %1010
      %v1012 = vsel %vm470, %v844, 0.0
      %1013 = vadd.xlane.f32.xlu0 %v1012
      %v1014 = vpop.xlane.xlu0 %1013
      %v1015 = vsel %vm470, %v845, 0.0
      %1016 = vadd.xlane.f32.xlu0 %v1015
      %v1017 = vpop.xlane.xlu0 %1016
      %v1018 = vsel %vm470, %v846, 0.0
      %1019 = vadd.xlane.f32.xlu0 %v1018
      %v1020 = vpop.xlane.xlu0 %1019
      %v1021 = vsel %vm470, %v847, 0.0
      %1022 = vadd.xlane.f32.xlu0 %v1021
      %v1023 = vpop.xlane.xlu0 %1022
      %v1024 = vsel %vm470, %v848, 0.0
      %1025 = vadd.xlane.f32.xlu0 %v1024
      %v1026 = vpop.xlane.xlu0 %1025
      %v1027 = vsel %vm470, %v849, 0.0
      %1028 = vadd.xlane.f32.xlu0 %v1027
      %v1029 = vpop.xlane.xlu0 %1028
      %v1030 = vsel %vm470, %v850, 0.0
      %1031 = vadd.xlane.f32.xlu0 %v1030
      %v1032 = vpop.xlane.xlu0 %1031
      %v1033 = vsel %vm470, %v851, 0.0
      %1034 = vadd.xlane.f32.xlu0 %v1033
      %v1035 = vpop.xlane.xlu0 %1034
      %v1036 = vsel %vm470, %v852, 0.0
      %1037 = vadd.xlane.f32.xlu0 %v1036
      %v1038 = vpop.xlane.xlu0 %1037
      %v1039 = vsel %vm470, %v853, 0.0
      %1040 = vadd.xlane.f32.xlu0 %v1039
      %v1041 = vpop.xlane.xlu0 %1040
      %v1042 = vsel %vm470, %v854, 0.0
      %1043 = vadd.xlane.f32.xlu0 %v1042
      %v1044 = vpop.xlane.xlu0 %1043
      %v1045 = vsel %vm470, %v855, 0.0
      %1046 = vadd.xlane.f32.xlu0 %v1045
      %v1047 = vpop.xlane.xlu0 %1046
      %v1048 = vmul.f32 %v858, %v663
      %v1049 = vmul.f32 %v861, %v663
      %v1050 = vmul.f32 %v864, %v663
      %v1051 = vmul.f32 %v867, %v663
      %v1052 = vmul.f32 %v870, %v663
      %v1053 = vmul.f32 %v873, %v663
      %v1054 = vmul.f32 %v876, %v663
      %v1055 = vmul.f32 %v879, %v663
      %v1056 = vmul.f32 %v882, %v663
      %v1057 = vmul.f32 %v885, %v663
      %v1058 = vmul.f32 %v888, %v663
      %v1059 = vmul.f32 %v891, %v663
      %v1060 = vmul.f32 %v894, %v663
      %v1061 = vmul.f32 %v897, %v663
      %v1062 = vmul.f32 %v900, %v663
      %v1063 = vmul.f32 %v903, %v663
      %v1064 = vmul.f32 %v906, %v663
      %v1065 = vmul.f32 %v909, %v663
      %v1066 = vmul.f32 %v912, %v663
      %v1067 = vmul.f32 %v915, %v663
      %v1068 = vmul.f32 %v918, %v663
      %v1069 = vmul.f32 %v921, %v663
      %v1070 = vmul.f32 %v924, %v663
      %v1071 = vmul.f32 %v927, %v663
      %v1072 = vmul.f32 %v930, %v663
      %v1073 = vmul.f32 %v933, %v663
      %v1074 = vmul.f32 %v936, %v663
      %v1075 = vmul.f32 %v939, %v663
      %v1076 = vmul.f32 %v942, %v663
      %v1077 = vmul.f32 %v945, %v663
      %v1078 = vmul.f32 %v948, %v663
      %v1079 = vmul.f32 %v951, %v663
      %v1080 = vmul.f32 %v954, %v663
      %v1081 = vmul.f32 %v957, %v663
      %v1082 = vmul.f32 %v960, %v663
      %v1083 = vmul.f32 %v963, %v663
      %v1084 = vmul.f32 %v966, %v663
      %v1085 = vmul.f32 %v969, %v663
      %v1086 = vmul.f32 %v972, %v663
      %v1087 = vmul.f32 %v975, %v663
      %v1088 = vmul.f32 %v978, %v663
      %v1089 = vmul.f32 %v981, %v663
      %v1090 = vmul.f32 %v984, %v663
      %v1091 = vmul.f32 %v987, %v663
      %v1092 = vmul.f32 %v990, %v663
      %v1093 = vmul.f32 %v993, %v663
      %v1094 = vmul.f32 %v996, %v663
      %v1095 = vmul.f32 %v999, %v663
      %v1096 = vmul.f32 %v1002, %v663
      %v1097 = vmul.f32 %v1005, %v663
      %v1098 = vmul.f32 %v1008, %v663
      %v1099 = vmul.f32 %v1011, %v663
      %v1100 = vmul.f32 %v1014, %v663
      %v1101 = vmul.f32 %v1017, %v663
      %v1102 = vmul.f32 %v1020, %v663
      %v1103 = vmul.f32 %v1023, %v663
      %v1104 = vmul.f32 %v1026, %v663
      %v1105 = vmul.f32 %v1029, %v663
      %v1106 = vmul.f32 %v1032, %v663
      %v1107 = vmul.f32 %v1035, %v663
      %v1108 = vmul.f32 %v1038, %v663
      %v1109 = vmul.f32 %v1041, %v663
      %v1110 = vmul.f32 %v1044, %v663
      %v1111 = vmul.f32 %v1047, %v663
      %v1112 = vadd.f32 %v1048, 1e-05
      %v1113 = vadd.f32 %v1049, 1e-05
      %v1114 = vadd.f32 %v1050, 1e-05
      %v1115 = vadd.f32 %v1051, 1e-05
      %v1116 = vadd.f32 %v1052, 1e-05
      %v1117 = vadd.f32 %v1053, 1e-05
      %v1118 = vadd.f32 %v1054, 1e-05
      %v1119 = vadd.f32 %v1055, 1e-05
      %v1120 = vadd.f32 %v1056, 1e-05
      %v1121 = vadd.f32 %v1057, 1e-05
      %v1122 = vadd.f32 %v1058, 1e-05
      %v1123 = vadd.f32 %v1059, 1e-05
      %v1124 = vadd.f32 %v1060, 1e-05
      %v1125 = vadd.f32 %v1061, 1e-05
      %v1126 = vadd.f32 %v1062, 1e-05
      %v1127 = vadd.f32 %v1063, 1e-05
      %v1128 = vadd.f32 %v1064, 1e-05
      %v1129 = vadd.f32 %v1065, 1e-05
      %v1130 = vadd.f32 %v1066, 1e-05
      %v1131 = vadd.f32 %v1067, 1e-05
      %v1132 = vadd.f32 %v1068, 1e-05
      %v1133 = vadd.f32 %v1069, 1e-05
      %v1134 = vadd.f32 %v1070, 1e-05
      %v1135 = vadd.f32 %v1071, 1e-05
      %v1136 = vadd.f32 %v1072, 1e-05
      %v1137 = vadd.f32 %v1073, 1e-05
      %v1138 = vadd.f32 %v1074, 1e-05
      %v1139 = vadd.f32 %v1075, 1e-05
      %v1140 = vadd.f32 %v1076, 1e-05
      %v1141 = vadd.f32 %v1077, 1e-05
      %v1142 = vadd.f32 %v1078, 1e-05
      %v1143 = vadd.f32 %v1079, 1e-05
      %v1144 = vadd.f32 %v1080, 1e-05
      %v1145 = vadd.f32 %v1081, 1e-05
      %v1146 = vadd.f32 %v1082, 1e-05
      %v1147 = vadd.f32 %v1083, 1e-05
      %v1148 = vadd.f32 %v1084, 1e-05
      %v1149 = vadd.f32 %v1085, 1e-05
      %v1150 = vadd.f32 %v1086, 1e-05
      %v1151 = vadd.f32 %v1087, 1e-05
      %v1152 = vadd.f32 %v1088, 1e-05
      %v1153 = vadd.f32 %v1089, 1e-05
      %v1154 = vadd.f32 %v1090, 1e-05
      %v1155 = vadd.f32 %v1091, 1e-05
      %v1156 = vadd.f32 %v1092, 1e-05
      %v1157 = vadd.f32 %v1093, 1e-05
      %v1158 = vadd.f32 %v1094, 1e-05
      %v1159 = vadd.f32 %v1095, 1e-05
      %v1160 = vadd.f32 %v1096, 1e-05
      %v1161 = vadd.f32 %v1097, 1e-05
      %v1162 = vadd.f32 %v1098, 1e-05
      %v1163 = vadd.f32 %v1099, 1e-05
      %v1164 = vadd.f32 %v1100, 1e-05
      %v1165 = vadd.f32 %v1101, 1e-05
      %v1166 = vadd.f32 %v1102, 1e-05
      %v1167 = vadd.f32 %v1103, 1e-05
      %v1168 = vadd.f32 %v1104, 1e-05
      %v1169 = vadd.f32 %v1105, 1e-05
      %v1170 = vadd.f32 %v1106, 1e-05
      %v1171 = vadd.f32 %v1107, 1e-05
      %v1172 = vadd.f32 %v1108, 1e-05
      %v1173 = vadd.f32 %v1109, 1e-05
      %v1174 = vadd.f32 %v1110, 1e-05
      %v1175 = vadd.f32 %v1111, 1e-05
      %v1176 = vrsqrt.pop %v1112
      %v1177 = vrsqrt.pop %v1113
      %v1178 = vrsqrt.pop %v1114
      %v1179 = vrsqrt.pop %v1115
      %v1180 = vrsqrt.pop %v1116
      %v1181 = vrsqrt.pop %v1117
      %v1182 = vrsqrt.pop %v1118
      %v1183 = vrsqrt.pop %v1119
      %v1184 = vrsqrt.pop %v1120
      %v1185 = vrsqrt.pop %v1121
      %v1186 = vrsqrt.pop %v1122
      %v1187 = vrsqrt.pop %v1123
      %v1188 = vrsqrt.pop %v1124
      %v1189 = vrsqrt.pop %v1125
      %v1190 = vrsqrt.pop %v1126
      %v1191 = vrsqrt.pop %v1127
      %v1192 = vrsqrt.pop %v1128
      %v1193 = vrsqrt.pop %v1129
      %v1194 = vrsqrt.pop %v1130
      %v1195 = vrsqrt.pop %v1131
      %v1196 = vrsqrt.pop %v1132
      %v1197 = vrsqrt.pop %v1133
      %v1198 = vrsqrt.pop %v1134
      %v1199 = vrsqrt.pop %v1135
      %v1200 = vrsqrt.pop %v1136
      %v1201 = vrsqrt.pop %v1137
      %v1202 = vrsqrt.pop %v1138
      %v1203 = vrsqrt.pop %v1139
      %v1204 = vrsqrt.pop %v1140
      %v1205 = vrsqrt.pop %v1141
      %v1206 = vrsqrt.pop %v1142
      %v1207 = vrsqrt.pop %v1143
      %v1208 = vrsqrt.pop %v1144
      %v1209 = vrsqrt.pop %v1145
      %v1210 = vrsqrt.pop %v1146
      %v1211 = vrsqrt.pop %v1147
      %v1212 = vrsqrt.pop %v1148
      %v1213 = vrsqrt.pop %v1149
      %v1214 = vrsqrt.pop %v1150
      %v1215 = vrsqrt.pop %v1151
      %v1216 = vrsqrt.pop %v1152
      %v1217 = vrsqrt.pop %v1153
      %v1218 = vrsqrt.pop %v1154
      %v1219 = vrsqrt.pop %v1155
      %v1220 = vrsqrt.pop %v1156
      %v1221 = vrsqrt.pop %v1157
      %v1222 = vrsqrt.pop %v1158
      %v1223 = vrsqrt.pop %v1159
      %v1224 = vrsqrt.pop %v1160
      %v1225 = vrsqrt.pop %v1161
      %v1226 = vrsqrt.pop %v1162
      %v1227 = vrsqrt.pop %v1163
      %v1228 = vrsqrt.pop %v1164
      %v1229 = vrsqrt.pop %v1165
      %v1230 = vrsqrt.pop %v1166
      %v1231 = vrsqrt.pop %v1167
      %v1232 = vrsqrt.pop %v1168
      %v1233 = vrsqrt.pop %v1169
      %v1234 = vrsqrt.pop %v1170
      %v1235 = vrsqrt.pop %v1171
      %v1236 = vrsqrt.pop %v1172
      %v1237 = vrsqrt.pop %v1173
      %v1238 = vrsqrt.pop %v1174
      %v1239 = vrsqrt.pop %v1175
      %v1240 = vmul.f32 %v728, %v1176
      %v1241 = vmul.f32 %v729, %v1177
      %v1242 = vmul.f32 %v730, %v1178
      %v1243 = vmul.f32 %v731, %v1179
      %v1244 = vmul.f32 %v732, %v1180
      %v1245 = vmul.f32 %v733, %v1181
      %v1246 = vmul.f32 %v734, %v1182
      %v1247 = vmul.f32 %v735, %v1183
      %v1248 = vmul.f32 %v736, %v1184
      %v1249 = vmul.f32 %v737, %v1185
      %v1250 = vmul.f32 %v738, %v1186
      %v1251 = vmul.f32 %v739, %v1187
      %v1252 = vmul.f32 %v740, %v1188
      %v1253 = vmul.f32 %v741, %v1189
      %v1254 = vmul.f32 %v742, %v1190
      %v1255 = vmul.f32 %v743, %v1191
      %v1256 = vmul.f32 %v744, %v1192
      %v1257 = vmul.f32 %v745, %v1193
      %v1258 = vmul.f32 %v746, %v1194
      %v1259 = vmul.f32 %v747, %v1195
      %v1260 = vmul.f32 %v748, %v1196
      %v1261 = vmul.f32 %v749, %v1197
      %v1262 = vmul.f32 %v750, %v1198
      %v1263 = vmul.f32 %v751, %v1199
      %v1264 = vmul.f32 %v752, %v1200
      %v1265 = vmul.f32 %v753, %v1201
      %v1266 = vmul.f32 %v754, %v1202
      %v1267 = vmul.f32 %v755, %v1203
      %v1268 = vmul.f32 %v756, %v1204
      %v1269 = vmul.f32 %v757, %v1205
      %v1270 = vmul.f32 %v758, %v1206
      %v1271 = vmul.f32 %v759, %v1207
      %v1272 = vmul.f32 %v760, %v1208
      %v1273 = vmul.f32 %v761, %v1209
      %v1274 = vmul.f32 %v762, %v1210
      %v1275 = vmul.f32 %v763, %v1211
      %v1276 = vmul.f32 %v764, %v1212
      %v1277 = vmul.f32 %v765, %v1213
      %v1278 = vmul.f32 %v766, %v1214
      %v1279 = vmul.f32 %v767, %v1215
      %v1280 = vmul.f32 %v768, %v1216
      %v1281 = vmul.f32 %v769, %v1217
      %v1282 = vmul.f32 %v770, %v1218
      %v1283 = vmul.f32 %v771, %v1219
      %v1284 = vmul.f32 %v772, %v1220
      %v1285 = vmul.f32 %v773, %v1221
      %v1286 = vmul.f32 %v774, %v1222
      %v1287 = vmul.f32 %v775, %v1223
      %v1288 = vmul.f32 %v776, %v1224
      %v1289 = vmul.f32 %v777, %v1225
      %v1290 = vmul.f32 %v778, %v1226
      %v1291 = vmul.f32 %v779, %v1227
      %v1292 = vmul.f32 %v780, %v1228
      %v1293 = vmul.f32 %v781, %v1229
      %v1294 = vmul.f32 %v782, %v1230
      %v1295 = vmul.f32 %v783, %v1231
      %v1296 = vmul.f32 %v784, %v1232
      %v1297 = vmul.f32 %v785, %v1233
      %v1298 = vmul.f32 %v786, %v1234
      %v1299 = vmul.f32 %v787, %v1235
      %v1300 = vmul.f32 %v788, %v1236
      %v1301 = vmul.f32 %v789, %v1237
      %v1302 = vmul.f32 %v790, %v1238
      %v1303 = vmul.f32 %v791, %v1239
      %v1304 = vpack.c.bf16 %v1241, %v1240
      %v1305 = vpack.c.bf16 %v1243, %v1242
      %v1306 = vpack.c.bf16 %v1245, %v1244
      %v1307 = vpack.c.bf16 %v1247, %v1246
      %v1308 = vpack.c.bf16 %v1249, %v1248
      %v1309 = vpack.c.bf16 %v1251, %v1250
      %v1310 = vpack.c.bf16 %v1253, %v1252
      %v1311 = vpack.c.bf16 %v1255, %v1254
      %v1312 = vpack.c.bf16 %v1257, %v1256
      %v1313 = vpack.c.bf16 %v1259, %v1258
      %v1314 = vpack.c.bf16 %v1261, %v1260
      %v1315 = vpack.c.bf16 %v1263, %v1262
      %v1316 = vpack.c.bf16 %v1265, %v1264
      %v1317 = vpack.c.bf16 %v1267, %v1266
      %v1318 = vpack.c.bf16 %v1269, %v1268
      %v1319 = vpack.c.bf16 %v1271, %v1270
      %v1320 = vpack.c.bf16 %v1273, %v1272
      %v1321 = vpack.c.bf16 %v1275, %v1274
      %v1322 = vpack.c.bf16 %v1277, %v1276
      %v1323 = vpack.c.bf16 %v1279, %v1278
      %v1324 = vpack.c.bf16 %v1281, %v1280
      %v1325 = vpack.c.bf16 %v1283, %v1282
      %v1326 = vpack.c.bf16 %v1285, %v1284
      %v1327 = vpack.c.bf16 %v1287, %v1286
      %v1328 = vpack.c.bf16 %v1289, %v1288
      %v1329 = vpack.c.bf16 %v1291, %v1290
      %v1330 = vpack.c.bf16 %v1293, %v1292
      %v1331 = vpack.c.bf16 %v1295, %v1294
      %v1332 = vpack.c.bf16 %v1297, %v1296
      %v1333 = vpack.c.bf16 %v1299, %v1298
      %v1334 = vpack.c.bf16 %v1301, %v1300
      %v1335 = vpack.c.bf16 %v1303, %v1302
      %v1336 = vld [vmem:[%s2] sm:$0xf]
      %v1337 = vld [vmem:[%s2 + $0x4] sm:$0xf]
      %v1338 = vld [vmem:[%s2 + $0x8] sm:$0xf]
      %v1339 = vld [vmem:[%s2 + $0xc] sm:$0xf]
      %v1340 = vld [vmem:[%s3] sm:$0x1]
      %v1342 = vlaneseq
      %v1343 = vshrl.u32 %v1342, 7
      %v1344 = vsub.s32 0, %v1343
      %v1345 = vrot.slane %v1340, %v1344
      %v1351 = vunpack.c.l.b16 %v1336
      %v1352 = vunpack.c.l.b16 %v1337
      %v1353 = vunpack.c.l.b16 %v1338
      %v1354 = vunpack.c.l.b16 %v1339
      %v1355 = vpack.c.b16 %v1352, %v1351
      %v1356 = vpack.c.b16 %v1354, %v1353
      %v1360 = vsel %vm470, %v1304, 0
      %v1363 = vsel %vm470, %v1305, 0
      %v1366 = vsel %vm470, %v1306, 0
      %v1369 = vsel %vm470, %v1307, 0
      %v1372 = vsel %vm470, %v1308, 0
      %v1375 = vsel %vm470, %v1309, 0
      %v1378 = vsel %vm470, %v1310, 0
      %v1381 = vsel %vm470, %v1311, 0
      %v1384 = vsel %vm470, %v1312, 0
      %v1387 = vsel %vm470, %v1313, 0
      %v1390 = vsel %vm470, %v1314, 0
      %v1393 = vsel %vm470, %v1315, 0
      %v1396 = vsel %vm470, %v1316, 0
      %v1399 = vsel %vm470, %v1317, 0
      %v1402 = vsel %vm470, %v1318, 0
      %v1405 = vsel %vm470, %v1319, 0
      %v1408 = vsel %vm470, %v1320, 0
      %v1411 = vsel %vm470, %v1321, 0
      %v1414 = vsel %vm470, %v1322, 0
      %v1417 = vsel %vm470, %v1323, 0
      %v1420 = vsel %vm470, %v1324, 0
      %v1423 = vsel %vm470, %v1325, 0
      %v1426 = vsel %vm470, %v1326, 0
      %v1429 = vsel %vm470, %v1327, 0
      %v1432 = vsel %vm470, %v1328, 0
      %v1435 = vsel %vm470, %v1329, 0
      %v1438 = vsel %vm470, %v1330, 0
      %v1441 = vsel %vm470, %v1331, 0
      %v1444 = vsel %vm470, %v1332, 0
      %v1447 = vsel %vm470, %v1333, 0
      %v1450 = vsel %vm470, %v1334, 0
      %v1453 = vsel %vm470, %v1335, 0
      %1455 = vmatprep.subr.bf16.mxu0 0
      %1456 = vmatpush1.bf16.msra.mxu0 %v1355
      %1457 = vmatprep.subr.bf16.mxu0 0
      %1458 = vmatpush1.bf16.msra.mxu0 %v1356
      %1459 = vmatprep.subr.bf16.mxu0 0
      %1460 = vmatpush1.bf16.msra.mxu0 0
      %1461 = vmatprep.subr.bf16.mxu0 0
      %1462 = vmatpush1.bf16.msra.mxu0 0
      %1463 = vmatprep.subr.bf16.mxu0 0
      %1464 = vmatpush1.bf16.msra.mxu0 0
      %1465 = vmatprep.subr.bf16.mxu0 0
      %1466 = vmatpush1.bf16.msra.mxu0 0
      %1467 = vmatprep.subr.bf16.mxu0 0
      %1468 = vmatpush1.bf16.msra.mxu0 0
      %1469 = vmatprep.subr.bf16.mxu0 0
      %1470 = vmatpush1.bf16.msra.mxu0 0
      %1471 = vmatprep.subr.bf16.mxu0 0
      %1472 = vmatpush1.bf16.msra.mxu0 0
      %1473 = vmatprep.subr.bf16.mxu0 0
      %1474 = vmatpush1.bf16.msra.mxu0 0
      %1475 = vmatprep.subr.bf16.mxu0 0
      %1476 = vmatpush1.bf16.msra.mxu0 0
      %1477 = vmatprep.subr.bf16.mxu0 0
      %1478 = vmatpush1.bf16.msra.mxu0 0
      %1479 = vmatprep.subr.bf16.mxu0 0
      %1480 = vmatpush1.bf16.msra.mxu0 0
      %1481 = vmatprep.subr.bf16.mxu0 0
      %1482 = vmatpush1.bf16.msra.mxu0 0
      %1483 = vmatprep.subr.bf16.mxu0 0
      %1484 = vmatpush1.bf16.msra.mxu0 0
      %1485 = vmatprep.subr.bf16.mxu0 0
      %1486 = vmatpush1.bf16.msra.mxu0 0
      %1487 = vmatprep.mubr.bf16.mxu0 0
      %1488 = vmatmul.mubr.bf16.gmra.mrb[0].mxu0 %v1360
      %v1489 = vpop.f32.mrb[0].mxu0
      %v1490 = vadd.f32 %v1345, %v1489
      %v1491 = vpop.f32.mrb[0].mxu0
      %v1492 = vpop.f32.mrb[0].mxu0
      %v1493 = vadd.f32 %v1345, %v1492
      %v1494 = vpop.f32.mrb[0].mxu0
      %1495 = vmatprep.mubr.bf16.mxu0 0
      %1496 = vmatmul.mubr.bf16.gmra.mrb[0].mxu0 %v1363
      %v1497 = vpop.f32.mrb[0].mxu0
      %v1498 = vadd.f32 %v1345, %v1497
      %v1499 = vpop.f32.mrb[0].mxu0
      %v1500 = vpop.f32.mrb[0].mxu0
      %v1501 = vadd.f32 %v1345, %v1500
      %v1502 = vpop.f32.mrb[0].mxu0
      %1503 = vmatprep.mubr.bf16.mxu0 0
      %1504 = vmatmul.mubr.bf16.gmra.mrb[0].mxu0 %v1366
      %v1505 = vpop.f32.mrb[0].mxu0
      %v1506 = vadd.f32 %v1345, %v1505
      %v1507 = vpop.f32.mrb[0].mxu0
      %v1508 = vpop.f32.mrb[0].mxu0
      %v1509 = vadd.f32 %v1345, %v1508
      %v1510 = vpop.f32.mrb[0].mxu0
      %1511 = vmatprep.mubr.bf16.mxu0 0
      %1512 = vmatmul.mubr.bf16.gmra.mrb[0].mxu0 %v1369
      %v1513 = vpop.f32.mrb[0].mxu0
      %v1514 = vadd.f32 %v1345, %v1513
      %v1515 = vpop.f32.mrb[0].mxu0
      %v1516 = vpop.f32.mrb[0].mxu0
      %v1517 = vadd.f32 %v1345, %v1516
      %v1518 = vpop.f32.mrb[0].mxu0
      %1519 = vmatprep.mubr.bf16.mxu0 0
      %1520 = vmatmul.mubr.bf16.gmra.mrb[0].mxu0 %v1372
      %v1521 = vpop.f32.mrb[0].mxu0
      %v1522 = vadd.f32 %v1345, %v1521
      %v1523 = vpop.f32.mrb[0].mxu0
      %v1524 = vpop.f32.mrb[0].mxu0
      %v1525 = vadd.f32 %v1345, %v1524
      %v1526 = vpop.f32.mrb[0].mxu0
      %1527 = vmatprep.mubr.bf16.mxu0 0
      %1528 = vmatmul.mubr.bf16.gmra.mrb[0].mxu0 %v1375
      %v1529 = vpop.f32.mrb[0].mxu0
      %v1530 = vadd.f32 %v1345, %v1529
      %v1531 = vpop.f32.mrb[0].mxu0
      %v1532 = vpop.f32.mrb[0].mxu0
      %v1533 = vadd.f32 %v1345, %v1532
      %v1534 = vpop.f32.mrb[0].mxu0
      %1535 = vmatprep.mubr.bf16.mxu0 0
      %1536 = vmatmul.mubr.bf16.gmra.mrb[0].mxu0 %v1378
      %v1537 = vpop.f32.mrb[0].mxu0
      %v1538 = vadd.f32 %v1345, %v1537
      %v1539 = vpop.f32.mrb[0].mxu0
      %v1540 = vpop.f32.mrb[0].mxu0
      %v1541 = vadd.f32 %v1345, %v1540
      %v1542 = vpop.f32.mrb[0].mxu0
      %1543 = vmatprep.mubr.bf16.mxu0 0
      %1544 = vmatmul.mubr.bf16.gmra.mrb[0].mxu0 %v1381
      %v1545 = vpop.f32.mrb[0].mxu0
      %v1546 = vadd.f32 %v1345, %v1545
      %v1547 = vpop.f32.mrb[0].mxu0
      %v1548 = vpop.f32.mrb[0].mxu0
      %v1549 = vadd.f32 %v1345, %v1548
      %v1550 = vpop.f32.mrb[0].mxu0
      %1551 = vmatprep.mubr.bf16.mxu0 0
      %1552 = vmatmul.mubr.bf16.gmra.mrb[0].mxu0 %v1384
      %v1553 = vpop.f32.mrb[0].mxu0
      %v1554 = vadd.f32 %v1345, %v1553
      %v1555 = vpop.f32.mrb[0].mxu0
      %v1556 = vpop.f32.mrb[0].mxu0
      %v1557 = vadd.f32 %v1345, %v1556
      %v1558 = vpop.f32.mrb[0].mxu0
      %1559 = vmatprep.mubr.bf16.mxu0 0
      %1560 = vmatmul.mubr.bf16.gmra.mrb[0].mxu0 %v1387
      %v1561 = vpop.f32.mrb[0].mxu0
      %v1562 = vadd.f32 %v1345, %v1561
      %v1563 = vpop.f32.mrb[0].mxu0
      %v1564 = vpop.f32.mrb[0].mxu0
      %v1565 = vadd.f32 %v1345, %v1564
      %v1566 = vpop.f32.mrb[0].mxu0
      %1567 = vmatprep.mubr.bf16.mxu0 0
      %1568 = vmatmul.mubr.bf16.gmra.mrb[0].mxu0 %v1390
      %v1569 = vpop.f32.mrb[0].mxu0
      %v1570 = vadd.f32 %v1345, %v1569
      %v1571 = vpop.f32.mrb[0].mxu0
      %v1572 = vpop.f32.mrb[0].mxu0
      %v1573 = vadd.f32 %v1345, %v1572
      %v1574 = vpop.f32.mrb[0].mxu0
      %1575 = vmatprep.mubr.bf16.mxu0 0
      %1576 = vmatmul.mubr.bf16.gmra.mrb[0].mxu0 %v1393
      %v1577 = vpop.f32.mrb[0].mxu0
      %v1578 = vadd.f32 %v1345, %v1577
      %v1579 = vpop.f32.mrb[0].mxu0
      %v1580 = vpop.f32.mrb[0].mxu0
      %v1581 = vadd.f32 %v1345, %v1580
      %v1582 = vpop.f32.mrb[0].mxu0
      %1583 = vmatprep.mubr.bf16.mxu0 0
      %1584 = vmatmul.mubr.bf16.gmra.mrb[0].mxu0 %v1396
      %v1585 = vpop.f32.mrb[0].mxu0
      %v1586 = vadd.f32 %v1345, %v1585
      %v1587 = vpop.f32.mrb[0].mxu0
      %v1588 = vpop.f32.mrb[0].mxu0
      %v1589 = vadd.f32 %v1345, %v1588
      %v1590 = vpop.f32.mrb[0].mxu0
      %1591 = vmatprep.mubr.bf16.mxu0 0
      %1592 = vmatmul.mubr.bf16.gmra.mrb[0].mxu0 %v1399
      %v1593 = vpop.f32.mrb[0].mxu0
      %v1594 = vadd.f32 %v1345, %v1593
      %v1595 = vpop.f32.mrb[0].mxu0
      %v1596 = vpop.f32.mrb[0].mxu0
      %v1597 = vadd.f32 %v1345, %v1596
      %v1598 = vpop.f32.mrb[0].mxu0
      %1599 = vmatprep.mubr.bf16.mxu0 0
      %1600 = vmatmul.mubr.bf16.gmra.mrb[0].mxu0 %v1402
      %v1601 = vpop.f32.mrb[0].mxu0
      %v1602 = vadd.f32 %v1345, %v1601
      %v1603 = vpop.f32.mrb[0].mxu0
      %v1604 = vpop.f32.mrb[0].mxu0
      %v1605 = vadd.f32 %v1345, %v1604
      %v1606 = vpop.f32.mrb[0].mxu0
      %1607 = vmatprep.mubr.bf16.mxu0 0
      %1608 = vmatmul.mubr.bf16.gmra.mrb[0].mxu0 %v1405
      %v1609 = vpop.f32.mrb[0].mxu0
      %v1610 = vadd.f32 %v1345, %v1609
      %v1611 = vpop.f32.mrb[0].mxu0
      %v1612 = vpop.f32.mrb[0].mxu0
      %v1613 = vadd.f32 %v1345, %v1612
      %v1614 = vpop.f32.mrb[0].mxu0
      %1615 = vmatprep.mubr.bf16.mxu0 0
      %1616 = vmatmul.mubr.bf16.gmra.mrb[0].mxu0 %v1408
      %v1617 = vpop.f32.mrb[0].mxu0
      %v1618 = vadd.f32 %v1345, %v1617
      %v1619 = vpop.f32.mrb[0].mxu0
      %v1620 = vpop.f32.mrb[0].mxu0
      %v1621 = vadd.f32 %v1345, %v1620
      %v1622 = vpop.f32.mrb[0].mxu0
      %1623 = vmatprep.mubr.bf16.mxu0 0
      %1624 = vmatmul.mubr.bf16.gmra.mrb[0].mxu0 %v1411
      %v1625 = vpop.f32.mrb[0].mxu0
      %v1626 = vadd.f32 %v1345, %v1625
      %v1627 = vpop.f32.mrb[0].mxu0
      %v1628 = vpop.f32.mrb[0].mxu0
      %v1629 = vadd.f32 %v1345, %v1628
      %v1630 = vpop.f32.mrb[0].mxu0
      %1631 = vmatprep.mubr.bf16.mxu0 0
      %1632 = vmatmul.mubr.bf16.gmra.mrb[0].mxu0 %v1414
      %v1633 = vpop.f32.mrb[0].mxu0
      %v1634 = vadd.f32 %v1345, %v1633
      %v1635 = vpop.f32.mrb[0].mxu0
      %v1636 = vpop.f32.mrb[0].mxu0
      %v1637 = vadd.f32 %v1345, %v1636
      %v1638 = vpop.f32.mrb[0].mxu0
      %1639 = vmatprep.mubr.bf16.mxu0 0
      %1640 = vmatmul.mubr.bf16.gmra.mrb[0].mxu0 %v1417
      %v1641 = vpop.f32.mrb[0].mxu0
      %v1642 = vadd.f32 %v1345, %v1641
      %v1643 = vpop.f32.mrb[0].mxu0
      %v1644 = vpop.f32.mrb[0].mxu0
      %v1645 = vadd.f32 %v1345, %v1644
      %v1646 = vpop.f32.mrb[0].mxu0
      %1647 = vmatprep.mubr.bf16.mxu0 0
      %1648 = vmatmul.mubr.bf16.gmra.mrb[0].mxu0 %v1420
      %v1649 = vpop.f32.mrb[0].mxu0
      %v1650 = vadd.f32 %v1345, %v1649
      %v1651 = vpop.f32.mrb[0].mxu0
      %v1652 = vpop.f32.mrb[0].mxu0
      %v1653 = vadd.f32 %v1345, %v1652
      %v1654 = vpop.f32.mrb[0].mxu0
      %1655 = vmatprep.mubr.bf16.mxu0 0
      %1656 = vmatmul.mubr.bf16.gmra.mrb[0].mxu0 %v1423
      %v1657 = vpop.f32.mrb[0].mxu0
      %v1658 = vadd.f32 %v1345, %v1657
      %v1659 = vpop.f32.mrb[0].mxu0
      %v1660 = vpop.f32.mrb[0].mxu0
      %v1661 = vadd.f32 %v1345, %v1660
      %v1662 = vpop.f32.mrb[0].mxu0
      %1663 = vmatprep.mubr.bf16.mxu0 0
      %1664 = vmatmul.mubr.bf16.gmra.mrb[0].mxu0 %v1426
      %v1665 = vpop.f32.mrb[0].mxu0
      %v1666 = vadd.f32 %v1345, %v1665
      %v1667 = vpop.f32.mrb[0].mxu0
      %v1668 = vpop.f32.mrb[0].mxu0
      %v1669 = vadd.f32 %v1345, %v1668
      %v1670 = vpop.f32.mrb[0].mxu0
      %1671 = vmatprep.mubr.bf16.mxu0 0
      %1672 = vmatmul.mubr.bf16.gmra.mrb[0].mxu0 %v1429
      %v1673 = vpop.f32.mrb[0].mxu0
      %v1674 = vadd.f32 %v1345, %v1673
      %v1675 = vpop.f32.mrb[0].mxu0
      %v1676 = vpop.f32.mrb[0].mxu0
      %v1677 = vadd.f32 %v1345, %v1676
      %v1678 = vpop.f32.mrb[0].mxu0
      %1679 = vmatprep.mubr.bf16.mxu0 0
      %1680 = vmatmul.mubr.bf16.gmra.mrb[0].mxu0 %v1432
      %v1681 = vpop.f32.mrb[0].mxu0
      %v1682 = vadd.f32 %v1345, %v1681
      %v1683 = vpop.f32.mrb[0].mxu0
      %v1684 = vpop.f32.mrb[0].mxu0
      %v1685 = vadd.f32 %v1345, %v1684
      %v1686 = vpop.f32.mrb[0].mxu0
      %1687 = vmatprep.mubr.bf16.mxu0 0
      %1688 = vmatmul.mubr.bf16.gmra.mrb[0].mxu0 %v1435
      %v1689 = vpop.f32.mrb[0].mxu0
      %v1690 = vadd.f32 %v1345, %v1689
      %v1691 = vpop.f32.mrb[0].mxu0
      %v1692 = vpop.f32.mrb[0].mxu0
      %v1693 = vadd.f32 %v1345, %v1692
      %v1694 = vpop.f32.mrb[0].mxu0
      %1695 = vmatprep.mubr.bf16.mxu0 0
      %1696 = vmatmul.mubr.bf16.gmra.mrb[0].mxu0 %v1438
      %v1697 = vpop.f32.mrb[0].mxu0
      %v1698 = vadd.f32 %v1345, %v1697
      %v1699 = vpop.f32.mrb[0].mxu0
      %v1700 = vpop.f32.mrb[0].mxu0
      %v1701 = vadd.f32 %v1345, %v1700
      %v1702 = vpop.f32.mrb[0].mxu0
      %1703 = vmatprep.mubr.bf16.mxu0 0
      %1704 = vmatmul.mubr.bf16.gmra.mrb[0].mxu0 %v1441
      %v1705 = vpop.f32.mrb[0].mxu0
      %v1706 = vadd.f32 %v1345, %v1705
      %v1707 = vpop.f32.mrb[0].mxu0
      %v1708 = vpop.f32.mrb[0].mxu0
      %v1709 = vadd.f32 %v1345, %v1708
      %v1710 = vpop.f32.mrb[0].mxu0
      %1711 = vmatprep.mubr.bf16.mxu0 0
      %1712 = vmatmul.mubr.bf16.gmra.mrb[0].mxu0 %v1444
      %v1713 = vpop.f32.mrb[0].mxu0
      %v1714 = vadd.f32 %v1345, %v1713
      %v1715 = vpop.f32.mrb[0].mxu0
      %v1716 = vpop.f32.mrb[0].mxu0
      %v1717 = vadd.f32 %v1345, %v1716
      %v1718 = vpop.f32.mrb[0].mxu0
      %1719 = vmatprep.mubr.bf16.mxu0 0
      %1720 = vmatmul.mubr.bf16.gmra.mrb[0].mxu0 %v1447
      %v1721 = vpop.f32.mrb[0].mxu0
      %v1722 = vadd.f32 %v1345, %v1721
      %v1723 = vpop.f32.mrb[0].mxu0
      %v1724 = vpop.f32.mrb[0].mxu0
      %v1725 = vadd.f32 %v1345, %v1724
      %v1726 = vpop.f32.mrb[0].mxu0
      %1727 = vmatprep.mubr.bf16.mxu0 0
      %1728 = vmatmul.mubr.bf16.gmra.mrb[0].mxu0 %v1450
      %v1729 = vpop.f32.mrb[0].mxu0
      %v1730 = vadd.f32 %v1345, %v1729
      %v1731 = vpop.f32.mrb[0].mxu0
      %v1732 = vpop.f32.mrb[0].mxu0
      %v1733 = vadd.f32 %v1345, %v1732
      %v1734 = vpop.f32.mrb[0].mxu0
      %1735 = vmatprep.mubr.bf16.mxu0 0
      %1736 = vmatmul.mubr.bf16.gmra.mrb[0].mxu0 %v1453
      %v1737 = vpop.f32.mrb[0].mxu0
      %v1738 = vadd.f32 %v1345, %v1737
      %v1739 = vpop.f32.mrb[0].mxu0
      %v1740 = vpop.f32.mrb[0].mxu0
      %v1741 = vadd.f32 %v1345, %v1740
      %v1742 = vpop.f32.mrb[0].mxu0
      %1743 = vdwg.mxu0
      %v1744 = vmul.f32 %v1490, 0.5
      %v1745 = vmul.f32 %v1493, 0.5
      %v1746 = vmul.f32 %v1498, 0.5
      %v1747 = vmul.f32 %v1501, 0.5
      %v1748 = vmul.f32 %v1506, 0.5
      %v1749 = vmul.f32 %v1509, 0.5
      %v1750 = vmul.f32 %v1514, 0.5
      %v1751 = vmul.f32 %v1517, 0.5
      %v1752 = vmul.f32 %v1522, 0.5
      %v1753 = vmul.f32 %v1525, 0.5
      %v1754 = vmul.f32 %v1530, 0.5
      %v1755 = vmul.f32 %v1533, 0.5
      %v1756 = vmul.f32 %v1538, 0.5
      %v1757 = vmul.f32 %v1541, 0.5
      %v1758 = vmul.f32 %v1546, 0.5
      %v1759 = vmul.f32 %v1549, 0.5
      %v1760 = vmul.f32 %v1554, 0.5
      %v1761 = vmul.f32 %v1557, 0.5
      %v1762 = vmul.f32 %v1562, 0.5
      %v1763 = vmul.f32 %v1565, 0.5
      %v1764 = vmul.f32 %v1570, 0.5
      %v1765 = vmul.f32 %v1573, 0.5
      %v1766 = vmul.f32 %v1578, 0.5
      %v1767 = vmul.f32 %v1581, 0.5
      %v1768 = vmul.f32 %v1586, 0.5
      %v1769 = vmul.f32 %v1589, 0.5
      %v1770 = vmul.f32 %v1594, 0.5
      %v1771 = vmul.f32 %v1597, 0.5
      %v1772 = vmul.f32 %v1602, 0.5
      %v1773 = vmul.f32 %v1605, 0.5
      %v1774 = vmul.f32 %v1610, 0.5
      %v1775 = vmul.f32 %v1613, 0.5
      %v1776 = vmul.f32 %v1618, 0.5
      %v1777 = vmul.f32 %v1621, 0.5
      %v1778 = vmul.f32 %v1626, 0.5
      %v1779 = vmul.f32 %v1629, 0.5
      %v1780 = vmul.f32 %v1634, 0.5
      %v1781 = vmul.f32 %v1637, 0.5
      %v1782 = vmul.f32 %v1642, 0.5
      %v1783 = vmul.f32 %v1645, 0.5
      %v1784 = vmul.f32 %v1650, 0.5
      %v1785 = vmul.f32 %v1653, 0.5
      %v1786 = vmul.f32 %v1658, 0.5
      %v1787 = vmul.f32 %v1661, 0.5
      %v1788 = vmul.f32 %v1666, 0.5
      %v1789 = vmul.f32 %v1669, 0.5
      %v1790 = vmul.f32 %v1674, 0.5
      %v1791 = vmul.f32 %v1677, 0.5
      %v1792 = vmul.f32 %v1682, 0.5
      %v1793 = vmul.f32 %v1685, 0.5
      %v1794 = vmul.f32 %v1690, 0.5
      %v1795 = vmul.f32 %v1693, 0.5
      %v1796 = vmul.f32 %v1698, 0.5
      %v1797 = vmul.f32 %v1701, 0.5
      %v1798 = vmul.f32 %v1706, 0.5
      %v1799 = vmul.f32 %v1709, 0.5
      %v1800 = vmul.f32 %v1714, 0.5
      %v1801 = vmul.f32 %v1717, 0.5
      %v1802 = vmul.f32 %v1722, 0.5
      %v1803 = vmul.f32 %v1725, 0.5
      %v1804 = vmul.f32 %v1730, 0.5
      %v1805 = vmul.f32 %v1733, 0.5
      %v1806 = vmul.f32 %v1738, 0.5
      %v1807 = vmul.f32 %v1741, 0.5
      %v1808 = vmul.f32 %v1490, 0.044715
      %v1809 = vmul.f32 %v1493, 0.044715
      %v1810 = vmul.f32 %v1498, 0.044715
      %v1811 = vmul.f32 %v1501, 0.044715
      %v1812 = vmul.f32 %v1506, 0.044715
      %v1813 = vmul.f32 %v1509, 0.044715
      %v1814 = vmul.f32 %v1514, 0.044715
      %v1815 = vmul.f32 %v1517, 0.044715
      %v1816 = vmul.f32 %v1522, 0.044715
      %v1817 = vmul.f32 %v1525, 0.044715
      %v1818 = vmul.f32 %v1530, 0.044715
      %v1819 = vmul.f32 %v1533, 0.044715
      %v1820 = vmul.f32 %v1538, 0.044715
      %v1821 = vmul.f32 %v1541, 0.044715
      %v1822 = vmul.f32 %v1546, 0.044715
      %v1823 = vmul.f32 %v1549, 0.044715
      %v1824 = vmul.f32 %v1554, 0.044715
      %v1825 = vmul.f32 %v1557, 0.044715
      %v1826 = vmul.f32 %v1562, 0.044715
      %v1827 = vmul.f32 %v1565, 0.044715
      %v1828 = vmul.f32 %v1570, 0.044715
      %v1829 = vmul.f32 %v1573, 0.044715
      %v1830 = vmul.f32 %v1578, 0.044715
      %v1831 = vmul.f32 %v1581, 0.044715
      %v1832 = vmul.f32 %v1586, 0.044715
      %v1833 = vmul.f32 %v1589, 0.044715
      %v1834 = vmul.f32 %v1594, 0.044715
      %v1835 = vmul.f32 %v1597, 0.044715
      %v1836 = vmul.f32 %v1602, 0.044715
      %v1837 = vmul.f32 %v1605, 0.044715
      %v1838 = vmul.f32 %v1610, 0.044715
      %v1839 = vmul.f32 %v1613, 0.044715
      %v1840 = vmul.f32 %v1618, 0.044715
      %v1841 = vmul.f32 %v1621, 0.044715
      %v1842 = vmul.f32 %v1626, 0.044715
      %v1843 = vmul.f32 %v1629, 0.044715
      %v1844 = vmul.f32 %v1634, 0.044715
      %v1845 = vmul.f32 %v1637, 0.044715
      %v1846 = vmul.f32 %v1642, 0.044715
      %v1847 = vmul.f32 %v1645, 0.044715
      %v1848 = vmul.f32 %v1650, 0.044715
      %v1849 = vmul.f32 %v1653, 0.044715
      %v1850 = vmul.f32 %v1658, 0.044715
      %v1851 = vmul.f32 %v1661, 0.044715
      %v1852 = vmul.f32 %v1666, 0.044715
      %v1853 = vmul.f32 %v1669, 0.044715
      %v1854 = vmul.f32 %v1674, 0.044715
      %v1855 = vmul.f32 %v1677, 0.044715
      %v1856 = vmul.f32 %v1682, 0.044715
      %v1857 = vmul.f32 %v1685, 0.044715
      %v1858 = vmul.f32 %v1690, 0.044715
      %v1859 = vmul.f32 %v1693, 0.044715
      %v1860 = vmul.f32 %v1698, 0.044715
      %v1861 = vmul.f32 %v1701, 0.044715
      %v1862 = vmul.f32 %v1706, 0.044715
      %v1863 = vmul.f32 %v1709, 0.044715
      %v1864 = vmul.f32 %v1714, 0.044715
      %v1865 = vmul.f32 %v1717, 0.044715
      %v1866 = vmul.f32 %v1722, 0.044715
      %v1867 = vmul.f32 %v1725, 0.044715
      %v1868 = vmul.f32 %v1730, 0.044715
      %v1869 = vmul.f32 %v1733, 0.044715
      %v1870 = vmul.f32 %v1738, 0.044715
      %v1871 = vmul.f32 %v1741, 0.044715
      %v1872 = vmul.f32 %v1808, %v1490
      %v1873 = vmul.f32 %v1809, %v1493
      %v1874 = vmul.f32 %v1810, %v1498
      %v1875 = vmul.f32 %v1811, %v1501
      %v1876 = vmul.f32 %v1812, %v1506
      %v1877 = vmul.f32 %v1813, %v1509
      %v1878 = vmul.f32 %v1814, %v1514
      %v1879 = vmul.f32 %v1815, %v1517
      %v1880 = vmul.f32 %v1816, %v1522
      %v1881 = vmul.f32 %v1817, %v1525
      %v1882 = vmul.f32 %v1818, %v1530
      %v1883 = vmul.f32 %v1819, %v1533
      %v1884 = vmul.f32 %v1820, %v1538
      %v1885 = vmul.f32 %v1821, %v1541
      %v1886 = vmul.f32 %v1822, %v1546
      %v1887 = vmul.f32 %v1823, %v1549
      %v1888 = vmul.f32 %v1824, %v1554
      %v1889 = vmul.f32 %v1825, %v1557
      %v1890 = vmul.f32 %v1826, %v1562
      %v1891 = vmul.f32 %v1827, %v1565
      %v1892 = vmul.f32 %v1828, %v1570
      %v1893 = vmul.f32 %v1829, %v1573
      %v1894 = vmul.f32 %v1830, %v1578
      %v1895 = vmul.f32 %v1831, %v1581
      %v1896 = vmul.f32 %v1832, %v1586
      %v1897 = vmul.f32 %v1833, %v1589
      %v1898 = vmul.f32 %v1834, %v1594
      %v1899 = vmul.f32 %v1835, %v1597
      %v1900 = vmul.f32 %v1836, %v1602
      %v1901 = vmul.f32 %v1837, %v1605
      %v1902 = vmul.f32 %v1838, %v1610
      %v1903 = vmul.f32 %v1839, %v1613
      %v1904 = vmul.f32 %v1840, %v1618
      %v1905 = vmul.f32 %v1841, %v1621
      %v1906 = vmul.f32 %v1842, %v1626
      %v1907 = vmul.f32 %v1843, %v1629
      %v1908 = vmul.f32 %v1844, %v1634
      %v1909 = vmul.f32 %v1845, %v1637
      %v1910 = vmul.f32 %v1846, %v1642
      %v1911 = vmul.f32 %v1847, %v1645
      %v1912 = vmul.f32 %v1848, %v1650
      %v1913 = vmul.f32 %v1849, %v1653
      %v1914 = vmul.f32 %v1850, %v1658
      %v1915 = vmul.f32 %v1851, %v1661
      %v1916 = vmul.f32 %v1852, %v1666
      %v1917 = vmul.f32 %v1853, %v1669
      %v1918 = vmul.f32 %v1854, %v1674
      %v1919 = vmul.f32 %v1855, %v1677
      %v1920 = vmul.f32 %v1856, %v1682
      %v1921 = vmul.f32 %v1857, %v1685
      %v1922 = vmul.f32 %v1858, %v1690
      %v1923 = vmul.f32 %v1859, %v1693
      %v1924 = vmul.f32 %v1860, %v1698
      %v1925 = vmul.f32 %v1861, %v1701
      %v1926 = vmul.f32 %v1862, %v1706
      %v1927 = vmul.f32 %v1863, %v1709
      %v1928 = vmul.f32 %v1864, %v1714
      %v1929 = vmul.f32 %v1865, %v1717
      %v1930 = vmul.f32 %v1866, %v1722
      %v1931 = vmul.f32 %v1867, %v1725
      %v1932 = vmul.f32 %v1868, %v1730
      %v1933 = vmul.f32 %v1869, %v1733
      %v1934 = vmul.f32 %v1870, %v1738
      %v1935 = vmul.f32 %v1871, %v1741
      %v1936 = vmul.f32 %v1872, %v1490
      %v1937 = vmul.f32 %v1873, %v1493
      %v1938 = vmul.f32 %v1874, %v1498
      %v1939 = vmul.f32 %v1875, %v1501
      %v1940 = vmul.f32 %v1876, %v1506
      %v1941 = vmul.f32 %v1877, %v1509
      %v1942 = vmul.f32 %v1878, %v1514
      %v1943 = vmul.f32 %v1879, %v1517
      %v1944 = vmul.f32 %v1880, %v1522
      %v1945 = vmul.f32 %v1881, %v1525
      %v1946 = vmul.f32 %v1882, %v1530
      %v1947 = vmul.f32 %v1883, %v1533
      %v1948 = vmul.f32 %v1884, %v1538
      %v1949 = vmul.f32 %v1885, %v1541
      %v1950 = vmul.f32 %v1886, %v1546
      %v1951 = vmul.f32 %v1887, %v1549
      %v1952 = vmul.f32 %v1888, %v1554
      %v1953 = vmul.f32 %v1889, %v1557
      %v1954 = vmul.f32 %v1890, %v1562
      %v1955 = vmul.f32 %v1891, %v1565
      %v1956 = vmul.f32 %v1892, %v1570
      %v1957 = vmul.f32 %v1893, %v1573
      %v1958 = vmul.f32 %v1894, %v1578
      %v1959 = vmul.f32 %v1895, %v1581
      %v1960 = vmul.f32 %v1896, %v1586
      %v1961 = vmul.f32 %v1897, %v1589
      %v1962 = vmul.f32 %v1898, %v1594
      %v1963 = vmul.f32 %v1899, %v1597
      %v1964 = vmul.f32 %v1900, %v1602
      %v1965 = vmul.f32 %v1901, %v1605
      %v1966 = vmul.f32 %v1902, %v1610
      %v1967 = vmul.f32 %v1903, %v1613
      %v1968 = vmul.f32 %v1904, %v1618
      %v1969 = vmul.f32 %v1905, %v1621
      %v1970 = vmul.f32 %v1906, %v1626
      %v1971 = vmul.f32 %v1907, %v1629
      %v1972 = vmul.f32 %v1908, %v1634
      %v1973 = vmul.f32 %v1909, %v1637
      %v1974 = vmul.f32 %v1910, %v1642
      %v1975 = vmul.f32 %v1911, %v1645
      %v1976 = vmul.f32 %v1912, %v1650
      %v1977 = vmul.f32 %v1913, %v1653
      %v1978 = vmul.f32 %v1914, %v1658
      %v1979 = vmul.f32 %v1915, %v1661
      %v1980 = vmul.f32 %v1916, %v1666
      %v1981 = vmul.f32 %v1917, %v1669
      %v1982 = vmul.f32 %v1918, %v1674
      %v1983 = vmul.f32 %v1919, %v1677
      %v1984 = vmul.f32 %v1920, %v1682
      %v1985 = vmul.f32 %v1921, %v1685
      %v1986 = vmul.f32 %v1922, %v1690
      %v1987 = vmul.f32 %v1923, %v1693
      %v1988 = vmul.f32 %v1924, %v1698
      %v1989 = vmul.f32 %v1925, %v1701
      %v1990 = vmul.f32 %v1926, %v1706
      %v1991 = vmul.f32 %v1927, %v1709
      %v1992 = vmul.f32 %v1928, %v1714
      %v1993 = vmul.f32 %v1929, %v1717
      %v1994 = vmul.f32 %v1930, %v1722
      %v1995 = vmul.f32 %v1931, %v1725
      %v1996 = vmul.f32 %v1932, %v1730
      %v1997 = vmul.f32 %v1933, %v1733
      %v1998 = vmul.f32 %v1934, %v1738
      %v1999 = vmul.f32 %v1935, %v1741
      %v2000 = vadd.f32 %v1490, %v1936
      %v2001 = vadd.f32 %v1493, %v1937
      %v2002 = vadd.f32 %v1498, %v1938
      %v2003 = vadd.f32 %v1501, %v1939
      %v2004 = vadd.f32 %v1506, %v1940
      %v2005 = vadd.f32 %v1509, %v1941
      %v2006 = vadd.f32 %v1514, %v1942
      %v2007 = vadd.f32 %v1517, %v1943
      %v2008 = vadd.f32 %v1522, %v1944
      %v2009 = vadd.f32 %v1525, %v1945
      %v2010 = vadd.f32 %v1530, %v1946
      %v2011 = vadd.f32 %v1533, %v1947
      %v2012 = vadd.f32 %v1538, %v1948
      %v2013 = vadd.f32 %v1541, %v1949
      %v2014 = vadd.f32 %v1546, %v1950
      %v2015 = vadd.f32 %v1549, %v1951
      %v2016 = vadd.f32 %v1554, %v1952
      %v2017 = vadd.f32 %v1557, %v1953
      %v2018 = vadd.f32 %v1562, %v1954
      %v2019 = vadd.f32 %v1565, %v1955
      %v2020 = vadd.f32 %v1570, %v1956
      %v2021 = vadd.f32 %v1573, %v1957
      %v2022 = vadd.f32 %v1578, %v1958
      %v2023 = vadd.f32 %v1581, %v1959
      %v2024 = vadd.f32 %v1586, %v1960
      %v2025 = vadd.f32 %v1589, %v1961
      %v2026 = vadd.f32 %v1594, %v1962
      %v2027 = vadd.f32 %v1597, %v1963
      %v2028 = vadd.f32 %v1602, %v1964
      %v2029 = vadd.f32 %v1605, %v1965
      %v2030 = vadd.f32 %v1610, %v1966
      %v2031 = vadd.f32 %v1613, %v1967
      %v2032 = vadd.f32 %v1618, %v1968
      %v2033 = vadd.f32 %v1621, %v1969
      %v2034 = vadd.f32 %v1626, %v1970
      %v2035 = vadd.f32 %v1629, %v1971
      %v2036 = vadd.f32 %v1634, %v1972
      %v2037 = vadd.f32 %v1637, %v1973
      %v2038 = vadd.f32 %v1642, %v1974
      %v2039 = vadd.f32 %v1645, %v1975
      %v2040 = vadd.f32 %v1650, %v1976
      %v2041 = vadd.f32 %v1653, %v1977
      %v2042 = vadd.f32 %v1658, %v1978
      %v2043 = vadd.f32 %v1661, %v1979
      %v2044 = vadd.f32 %v1666, %v1980
      %v2045 = vadd.f32 %v1669, %v1981
      %v2046 = vadd.f32 %v1674, %v1982
      %v2047 = vadd.f32 %v1677, %v1983
      %v2048 = vadd.f32 %v1682, %v1984
      %v2049 = vadd.f32 %v1685, %v1985
      %v2050 = vadd.f32 %v1690, %v1986
      %v2051 = vadd.f32 %v1693, %v1987
      %v2052 = vadd.f32 %v1698, %v1988
      %v2053 = vadd.f32 %v1701, %v1989
      %v2054 = vadd.f32 %v1706, %v1990
      %v2055 = vadd.f32 %v1709, %v1991
      %v2056 = vadd.f32 %v1714, %v1992
      %v2057 = vadd.f32 %v1717, %v1993
      %v2058 = vadd.f32 %v1722, %v1994
      %v2059 = vadd.f32 %v1725, %v1995
      %v2060 = vadd.f32 %v1730, %v1996
      %v2061 = vadd.f32 %v1733, %v1997
      %v2062 = vadd.f32 %v1738, %v1998
      %v2063 = vadd.f32 %v1741, %v1999
      %v2064 = vmul.f32 %v2000, 0.7978846
      %v2065 = vmul.f32 %v2001, 0.7978846
      %v2066 = vmul.f32 %v2002, 0.7978846
      %v2067 = vmul.f32 %v2003, 0.7978846
      %v2068 = vmul.f32 %v2004, 0.7978846
      %v2069 = vmul.f32 %v2005, 0.7978846
      %v2070 = vmul.f32 %v2006, 0.7978846
      %v2071 = vmul.f32 %v2007, 0.7978846
      %v2072 = vmul.f32 %v2008, 0.7978846
      %v2073 = vmul.f32 %v2009, 0.7978846
      %v2074 = vmul.f32 %v2010, 0.7978846
      %v2075 = vmul.f32 %v2011, 0.7978846
      %v2076 = vmul.f32 %v2012, 0.7978846
      %v2077 = vmul.f32 %v2013, 0.7978846
      %v2078 = vmul.f32 %v2014, 0.7978846
      %v2079 = vmul.f32 %v2015, 0.7978846
      %v2080 = vmul.f32 %v2016, 0.7978846
      %v2081 = vmul.f32 %v2017, 0.7978846
      %v2082 = vmul.f32 %v2018, 0.7978846
      %v2083 = vmul.f32 %v2019, 0.7978846
      %v2084 = vmul.f32 %v2020, 0.7978846
      %v2085 = vmul.f32 %v2021, 0.7978846
      %v2086 = vmul.f32 %v2022, 0.7978846
      %v2087 = vmul.f32 %v2023, 0.7978846
      %v2088 = vmul.f32 %v2024, 0.7978846
      %v2089 = vmul.f32 %v2025, 0.7978846
      %v2090 = vmul.f32 %v2026, 0.7978846
      %v2091 = vmul.f32 %v2027, 0.7978846
      %v2092 = vmul.f32 %v2028, 0.7978846
      %v2093 = vmul.f32 %v2029, 0.7978846
      %v2094 = vmul.f32 %v2030, 0.7978846
      %v2095 = vmul.f32 %v2031, 0.7978846
      %v2096 = vmul.f32 %v2032, 0.7978846
      %v2097 = vmul.f32 %v2033, 0.7978846
      %v2098 = vmul.f32 %v2034, 0.7978846
      %v2099 = vmul.f32 %v2035, 0.7978846
      %v2100 = vmul.f32 %v2036, 0.7978846
      %v2101 = vmul.f32 %v2037, 0.7978846
      %v2102 = vmul.f32 %v2038, 0.7978846
      %v2103 = vmul.f32 %v2039, 0.7978846
      %v2104 = vmul.f32 %v2040, 0.7978846
      %v2105 = vmul.f32 %v2041, 0.7978846
      %v2106 = vmul.f32 %v2042, 0.7978846
      %v2107 = vmul.f32 %v2043, 0.7978846
      %v2108 = vmul.f32 %v2044, 0.7978846
      %v2109 = vmul.f32 %v2045, 0.7978846
      %v2110 = vmul.f32 %v2046, 0.7978846
      %v2111 = vmul.f32 %v2047, 0.7978846
      %v2112 = vmul.f32 %v2048, 0.7978846
      %v2113 = vmul.f32 %v2049, 0.7978846
      %v2114 = vmul.f32 %v2050, 0.7978846
      %v2115 = vmul.f32 %v2051, 0.7978846
      %v2116 = vmul.f32 %v2052, 0.7978846
      %v2117 = vmul.f32 %v2053, 0.7978846
      %v2118 = vmul.f32 %v2054, 0.7978846
      %v2119 = vmul.f32 %v2055, 0.7978846
      %v2120 = vmul.f32 %v2056, 0.7978846
      %v2121 = vmul.f32 %v2057, 0.7978846
      %v2122 = vmul.f32 %v2058, 0.7978846
      %v2123 = vmul.f32 %v2059, 0.7978846
      %v2124 = vmul.f32 %v2060, 0.7978846
      %v2125 = vmul.f32 %v2061, 0.7978846
      %v2126 = vmul.f32 %v2062, 0.7978846
      %v2127 = vmul.f32 %v2063, 0.7978846
      %v2128 = vtanh.pop %v2064
      %v2129 = vtanh.pop %v2065
      %v2130 = vtanh.pop %v2066
      %v2131 = vtanh.pop %v2067
      %v2132 = vtanh.pop %v2068
      %v2133 = vtanh.pop %v2069
      %v2134 = vtanh.pop %v2070
      %v2135 = vtanh.pop %v2071
      %v2136 = vtanh.pop %v2072
      %v2137 = vtanh.pop %v2073
      %v2138 = vtanh.pop %v2074
      %v2139 = vtanh.pop %v2075
      %v2140 = vtanh.pop %v2076
      %v2141 = vtanh.pop %v2077
      %v2142 = vtanh.pop %v2078
      %v2143 = vtanh.pop %v2079
      %v2144 = vtanh.pop %v2080
      %v2145 = vtanh.pop %v2081
      %v2146 = vtanh.pop %v2082
      %v2147 = vtanh.pop %v2083
      %v2148 = vtanh.pop %v2084
      %v2149 = vtanh.pop %v2085
      %v2150 = vtanh.pop %v2086
      %v2151 = vtanh.pop %v2087
      %v2152 = vtanh.pop %v2088
      %v2153 = vtanh.pop %v2089
      %v2154 = vtanh.pop %v2090
      %v2155 = vtanh.pop %v2091
      %v2156 = vtanh.pop %v2092
      %v2157 = vtanh.pop %v2093
      %v2158 = vtanh.pop %v2094
      %v2159 = vtanh.pop %v2095
      %v2160 = vtanh.pop %v2096
      %v2161 = vtanh.pop %v2097
      %v2162 = vtanh.pop %v2098
      %v2163 = vtanh.pop %v2099
      %v2164 = vtanh.pop %v2100
      %v2165 = vtanh.pop %v2101
      %v2166 = vtanh.pop %v2102
      %v2167 = vtanh.pop %v2103
      %v2168 = vtanh.pop %v2104
      %v2169 = vtanh.pop %v2105
      %v2170 = vtanh.pop %v2106
      %v2171 = vtanh.pop %v2107
      %v2172 = vtanh.pop %v2108
      %v2173 = vtanh.pop %v2109
      %v2174 = vtanh.pop %v2110
      %v2175 = vtanh.pop %v2111
      %v2176 = vtanh.pop %v2112
      %v2177 = vtanh.pop %v2113
      %v2178 = vtanh.pop %v2114
      %v2179 = vtanh.pop %v2115
      %v2180 = vtanh.pop %v2116
      %v2181 = vtanh.pop %v2117
      %v2182 = vtanh.pop %v2118
      %v2183 = vtanh.pop %v2119
      %v2184 = vtanh.pop %v2120
      %v2185 = vtanh.pop %v2121
      %v2186 = vtanh.pop %v2122
      %v2187 = vtanh.pop %v2123
      %v2188 = vtanh.pop %v2124
      %v2189 = vtanh.pop %v2125
      %v2190 = vtanh.pop %v2126
      %v2191 = vtanh.pop %v2127
      %v2192 = vadd.f32 %v2128, 1.0
      %v2193 = vadd.f32 %v2129, 1.0
      %v2194 = vadd.f32 %v2130, 1.0
      %v2195 = vadd.f32 %v2131, 1.0
      %v2196 = vadd.f32 %v2132, 1.0
      %v2197 = vadd.f32 %v2133, 1.0
      %v2198 = vadd.f32 %v2134, 1.0
      %v2199 = vadd.f32 %v2135, 1.0
      %v2200 = vadd.f32 %v2136, 1.0
      %v2201 = vadd.f32 %v2137, 1.0
      %v2202 = vadd.f32 %v2138, 1.0
      %v2203 = vadd.f32 %v2139, 1.0
      %v2204 = vadd.f32 %v2140, 1.0
      %v2205 = vadd.f32 %v2141, 1.0
      %v2206 = vadd.f32 %v2142, 1.0
      %v2207 = vadd.f32 %v2143, 1.0
      %v2208 = vadd.f32 %v2144, 1.0
      %v2209 = vadd.f32 %v2145, 1.0
      %v2210 = vadd.f32 %v2146, 1.0
      %v2211 = vadd.f32 %v2147, 1.0
      %v2212 = vadd.f32 %v2148, 1.0
      %v2213 = vadd.f32 %v2149, 1.0
      %v2214 = vadd.f32 %v2150, 1.0
      %v2215 = vadd.f32 %v2151, 1.0
      %v2216 = vadd.f32 %v2152, 1.0
      %v2217 = vadd.f32 %v2153, 1.0
      %v2218 = vadd.f32 %v2154, 1.0
      %v2219 = vadd.f32 %v2155, 1.0
      %v2220 = vadd.f32 %v2156, 1.0
      %v2221 = vadd.f32 %v2157, 1.0
      %v2222 = vadd.f32 %v2158, 1.0
      %v2223 = vadd.f32 %v2159, 1.0
      %v2224 = vadd.f32 %v2160, 1.0
      %v2225 = vadd.f32 %v2161, 1.0
      %v2226 = vadd.f32 %v2162, 1.0
      %v2227 = vadd.f32 %v2163, 1.0
      %v2228 = vadd.f32 %v2164, 1.0
      %v2229 = vadd.f32 %v2165, 1.0
      %v2230 = vadd.f32 %v2166, 1.0
      %v2231 = vadd.f32 %v2167, 1.0
      %v2232 = vadd.f32 %v2168, 1.0
      %v2233 = vadd.f32 %v2169, 1.0
      %v2234 = vadd.f32 %v2170, 1.0
      %v2235 = vadd.f32 %v2171, 1.0
      %v2236 = vadd.f32 %v2172, 1.0
      %v2237 = vadd.f32 %v2173, 1.0
      %v2238 = vadd.f32 %v2174, 1.0
      %v2239 = vadd.f32 %v2175, 1.0
      %v2240 = vadd.f32 %v2176, 1.0
      %v2241 = vadd.f32 %v2177, 1.0
      %v2242 = vadd.f32 %v2178, 1.0
      %v2243 = vadd.f32 %v2179, 1.0
      %v2244 = vadd.f32 %v2180, 1.0
      %v2245 = vadd.f32 %v2181, 1.0
      %v2246 = vadd.f32 %v2182, 1.0
      %v2247 = vadd.f32 %v2183, 1.0
      %v2248 = vadd.f32 %v2184, 1.0
      %v2249 = vadd.f32 %v2185, 1.0
      %v2250 = vadd.f32 %v2186, 1.0
      %v2251 = vadd.f32 %v2187, 1.0
      %v2252 = vadd.f32 %v2188, 1.0
      %v2253 = vadd.f32 %v2189, 1.0
      %v2254 = vadd.f32 %v2190, 1.0
      %v2255 = vadd.f32 %v2191, 1.0
      %v2256 = vmul.f32 %v1744, %v2192
      %v2257 = vmul.f32 %v1745, %v2193
      %v2258 = vmul.f32 %v1746, %v2194
      %v2259 = vmul.f32 %v1747, %v2195
      %v2260 = vmul.f32 %v1748, %v2196
      %v2261 = vmul.f32 %v1749, %v2197
      %v2262 = vmul.f32 %v1750, %v2198
      %v2263 = vmul.f32 %v1751, %v2199
      %v2264 = vmul.f32 %v1752, %v2200
      %v2265 = vmul.f32 %v1753, %v2201
      %v2266 = vmul.f32 %v1754, %v2202
      %v2267 = vmul.f32 %v1755, %v2203
      %v2268 = vmul.f32 %v1756, %v2204
      %v2269 = vmul.f32 %v1757, %v2205
      %v2270 = vmul.f32 %v1758, %v2206
      %v2271 = vmul.f32 %v1759, %v2207
      %v2272 = vmul.f32 %v1760, %v2208
      %v2273 = vmul.f32 %v1761, %v2209
      %v2274 = vmul.f32 %v1762, %v2210
      %v2275 = vmul.f32 %v1763, %v2211
      %v2276 = vmul.f32 %v1764, %v2212
      %v2277 = vmul.f32 %v1765, %v2213
      %v2278 = vmul.f32 %v1766, %v2214
      %v2279 = vmul.f32 %v1767, %v2215
      %v2280 = vmul.f32 %v1768, %v2216
      %v2281 = vmul.f32 %v1769, %v2217
      %v2282 = vmul.f32 %v1770, %v2218
      %v2283 = vmul.f32 %v1771, %v2219
      %v2284 = vmul.f32 %v1772, %v2220
      %v2285 = vmul.f32 %v1773, %v2221
      %v2286 = vmul.f32 %v1774, %v2222
      %v2287 = vmul.f32 %v1775, %v2223
      %v2288 = vmul.f32 %v1776, %v2224
      %v2289 = vmul.f32 %v1777, %v2225
      %v2290 = vmul.f32 %v1778, %v2226
      %v2291 = vmul.f32 %v1779, %v2227
      %v2292 = vmul.f32 %v1780, %v2228
      %v2293 = vmul.f32 %v1781, %v2229
      %v2294 = vmul.f32 %v1782, %v2230
      %v2295 = vmul.f32 %v1783, %v2231
      %v2296 = vmul.f32 %v1784, %v2232
      %v2297 = vmul.f32 %v1785, %v2233
      %v2298 = vmul.f32 %v1786, %v2234
      %v2299 = vmul.f32 %v1787, %v2235
      %v2300 = vmul.f32 %v1788, %v2236
      %v2301 = vmul.f32 %v1789, %v2237
      %v2302 = vmul.f32 %v1790, %v2238
      %v2303 = vmul.f32 %v1791, %v2239
      %v2304 = vmul.f32 %v1792, %v2240
      %v2305 = vmul.f32 %v1793, %v2241
      %v2306 = vmul.f32 %v1794, %v2242
      %v2307 = vmul.f32 %v1795, %v2243
      %v2308 = vmul.f32 %v1796, %v2244
      %v2309 = vmul.f32 %v1797, %v2245
      %v2310 = vmul.f32 %v1798, %v2246
      %v2311 = vmul.f32 %v1799, %v2247
      %v2312 = vmul.f32 %v1800, %v2248
      %v2313 = vmul.f32 %v1801, %v2249
      %v2314 = vmul.f32 %v1802, %v2250
      %v2315 = vmul.f32 %v1803, %v2251
      %v2316 = vmul.f32 %v1804, %v2252
      %v2317 = vmul.f32 %v1805, %v2253
      %v2318 = vmul.f32 %v1806, %v2254
      %v2319 = vmul.f32 %v1807, %v2255
      %v2320 = vpack.c.bf16 %v2257, %v2256
      %v2321 = vpack.c.bf16 %v2259, %v2258
      %v2322 = vpack.c.bf16 %v2261, %v2260
      %v2323 = vpack.c.bf16 %v2263, %v2262
      %v2324 = vpack.c.bf16 %v2265, %v2264
      %v2325 = vpack.c.bf16 %v2267, %v2266
      %v2326 = vpack.c.bf16 %v2269, %v2268
      %v2327 = vpack.c.bf16 %v2271, %v2270
      %v2328 = vpack.c.bf16 %v2273, %v2272
      %v2329 = vpack.c.bf16 %v2275, %v2274
      %v2330 = vpack.c.bf16 %v2277, %v2276
      %v2331 = vpack.c.bf16 %v2279, %v2278
      %v2332 = vpack.c.bf16 %v2281, %v2280
      %v2333 = vpack.c.bf16 %v2283, %v2282
      %v2334 = vpack.c.bf16 %v2285, %v2284
      %v2335 = vpack.c.bf16 %v2287, %v2286
      %v2336 = vpack.c.bf16 %v2289, %v2288
      %v2337 = vpack.c.bf16 %v2291, %v2290
      %v2338 = vpack.c.bf16 %v2293, %v2292
      %v2339 = vpack.c.bf16 %v2295, %v2294
      %v2340 = vpack.c.bf16 %v2297, %v2296
      %v2341 = vpack.c.bf16 %v2299, %v2298
      %v2342 = vpack.c.bf16 %v2301, %v2300
      %v2343 = vpack.c.bf16 %v2303, %v2302
      %v2344 = vpack.c.bf16 %v2305, %v2304
      %v2345 = vpack.c.bf16 %v2307, %v2306
      %v2346 = vpack.c.bf16 %v2309, %v2308
      %v2347 = vpack.c.bf16 %v2311, %v2310
      %v2348 = vpack.c.bf16 %v2313, %v2312
      %v2349 = vpack.c.bf16 %v2315, %v2314
      %v2350 = vpack.c.bf16 %v2317, %v2316
      %v2351 = vpack.c.bf16 %v2319, %v2318
      %v2352 = vld [vmem:[%s4] sm:$0xf]
      %v2353 = vld [vmem:[%s4 + $0x4] sm:$0xf]
      %v2354 = vld [vmem:[%s4 + $0x8] sm:$0xf]
      %v2355 = vld [vmem:[%s4 + $0xc] sm:$0xf]
      %v2356 = vld [vmem:[%s4 + $0x10] sm:$0xf]
      %v2357 = vld [vmem:[%s4 + $0x14] sm:$0xf]
      %v2358 = vld [vmem:[%s4 + $0x18] sm:$0xf]
      %v2359 = vld [vmem:[%s4 + $0x1c] sm:$0xf]
      %v2360 = vld [vmem:[%s4 + $0x20] sm:$0xf]
      %v2361 = vld [vmem:[%s4 + $0x24] sm:$0xf]
      %v2362 = vld [vmem:[%s4 + $0x28] sm:$0xf]
      %v2363 = vld [vmem:[%s4 + $0x2c] sm:$0xf]
      %v2364 = vld [vmem:[%s4 + $0x30] sm:$0xf]
      %v2365 = vld [vmem:[%s4 + $0x34] sm:$0xf]
      %v2366 = vld [vmem:[%s4 + $0x38] sm:$0xf]
      %v2367 = vld [vmem:[%s4 + $0x3c] sm:$0xf]
      %v2368 = vld [vmem:[%s5] sm:$0x1]
      %v2370 = vlaneseq
      %v2371 = vshrl.u32 %v2370, 7
      %v2372 = vsub.s32 0, %v2371
      %v2373 = vrot.slane %v2368, %v2372
      %v2391 = vunpack.c.l.b16 %v2352
      %v2392 = vunpack.c.l.b16 %v2353
      %v2393 = vunpack.c.l.b16 %v2354
      %v2394 = vunpack.c.l.b16 %v2355
      %v2395 = vunpack.c.l.b16 %v2356
      %v2396 = vunpack.c.l.b16 %v2357
      %v2397 = vunpack.c.l.b16 %v2358
      %v2398 = vunpack.c.l.b16 %v2359
      %v2399 = vunpack.c.l.b16 %v2360
      %v2400 = vunpack.c.l.b16 %v2361
      %v2401 = vunpack.c.l.b16 %v2362
      %v2402 = vunpack.c.l.b16 %v2363
      %v2403 = vunpack.c.l.b16 %v2364
      %v2404 = vunpack.c.l.b16 %v2365
      %v2405 = vunpack.c.l.b16 %v2366
      %v2406 = vunpack.c.l.b16 %v2367
      %v2407 = vpack.c.b16 %v2392, %v2391
      %v2408 = vpack.c.b16 %v2394, %v2393
      %v2409 = vpack.c.b16 %v2396, %v2395
      %v2410 = vpack.c.b16 %v2398, %v2397
      %v2411 = vpack.c.b16 %v2400, %v2399
      %v2412 = vpack.c.b16 %v2402, %v2401
      %v2413 = vpack.c.b16 %v2404, %v2403
      %v2414 = vpack.c.b16 %v2406, %v2405
      %2423 = vmatprep.subr.bf16.mxu0 0
      %2424 = vmatpush1.bf16.msra.mxu0 %v2407
      %2425 = vmatprep.subr.bf16.mxu0 0
      %2426 = vmatpush1.bf16.msra.mxu0 %v2408
      %2427 = vmatprep.subr.bf16.mxu0 0
      %2428 = vmatpush1.bf16.msra.mxu0 %v2409
      %2429 = vmatprep.subr.bf16.mxu0 0
      %2430 = vmatpush1.bf16.msra.mxu0 %v2410
      %2431 = vmatprep.subr.bf16.mxu0 0
      %2432 = vmatpush1.bf16.msra.mxu0 %v2411
      %2433 = vmatprep.subr.bf16.mxu0 0
      %2434 = vmatpush1.bf16.msra.mxu0 %v2412
      %2435 = vmatprep.subr.bf16.mxu0 0
      %2436 = vmatpush1.bf16.msra.mxu0 %v2413
      %2437 = vmatprep.subr.bf16.mxu0 0
      %2438 = vmatpush1.bf16.msra.mxu0 %v2414
      %2439 = vmatprep.subr.bf16.mxu0 0
      %2440 = vmatpush1.bf16.msra.mxu0 0
      %2441 = vmatprep.subr.bf16.mxu0 0
      %2442 = vmatpush1.bf16.msra.mxu0 0
      %2443 = vmatprep.subr.bf16.mxu0 0
      %2444 = vmatpush1.bf16.msra.mxu0 0
      %2445 = vmatprep.subr.bf16.mxu0 0
      %2446 = vmatpush1.bf16.msra.mxu0 0
      %2447 = vmatprep.subr.bf16.mxu0 0
      %2448 = vmatpush1.bf16.msra.mxu0 0
      %2449 = vmatprep.subr.bf16.mxu0 0
      %2450 = vmatpush1.bf16.msra.mxu0 0
      %2451 = vmatprep.subr.bf16.mxu0 0
      %2452 = vmatpush1.bf16.msra.mxu0 0
      %2453 = vmatprep.subr.bf16.mxu0 0
      %2454 = vmatpush1.bf16.msra.mxu0 0
      %2455 = vmatprep.mubr.bf16.mxu0 0
      %2456 = vmatmul.mubr.bf16.gmra.mrb[0].mxu0 %v2320
      %v2457 = vpop.f32.mrb[0].mxu0
      %v2458 = vadd.f32 %v2373, %v2457
      %v2459 = vpop.f32.mrb[0].mxu0
      %v2460 = vpop.f32.mrb[0].mxu0
      %v2461 = vadd.f32 %v2373, %v2460
      %v2462 = vpop.f32.mrb[0].mxu0
      %2463 = vmatprep.mubr.bf16.mxu0 0
      %2464 = vmatmul.mubr.bf16.gmra.mrb[0].mxu0 %v2321
      %v2465 = vpop.f32.mrb[0].mxu0
      %v2466 = vadd.f32 %v2373, %v2465
      %v2467 = vpop.f32.mrb[0].mxu0
      %v2468 = vpop.f32.mrb[0].mxu0
      %v2469 = vadd.f32 %v2373, %v2468
      %v2470 = vpop.f32.mrb[0].mxu0
      %2471 = vmatprep.mubr.bf16.mxu0 0
      %2472 = vmatmul.mubr.bf16.gmra.mrb[0].mxu0 %v2322
      %v2473 = vpop.f32.mrb[0].mxu0
      %v2474 = vadd.f32 %v2373, %v2473
      %v2475 = vpop.f32.mrb[0].mxu0
      %v2476 = vpop.f32.mrb[0].mxu0
      %v2477 = vadd.f32 %v2373, %v2476
      %v2478 = vpop.f32.mrb[0].mxu0
      %2479 = vmatprep.mubr.bf16.mxu0 0
      %2480 = vmatmul.mubr.bf16.gmra.mrb[0].mxu0 %v2323
      %v2481 = vpop.f32.mrb[0].mxu0
      %v2482 = vadd.f32 %v2373, %v2481
      %v2483 = vpop.f32.mrb[0].mxu0
      %v2484 = vpop.f32.mrb[0].mxu0
      %v2485 = vadd.f32 %v2373, %v2484
      %v2486 = vpop.f32.mrb[0].mxu0
      %2487 = vmatprep.mubr.bf16.mxu0 0
      %2488 = vmatmul.mubr.bf16.gmra.mrb[0].mxu0 %v2324
      %v2489 = vpop.f32.mrb[0].mxu0
      %v2490 = vadd.f32 %v2373, %v2489
      %v2491 = vpop.f32.mrb[0].mxu0
      %v2492 = vpop.f32.mrb[0].mxu0
      %v2493 = vadd.f32 %v2373, %v2492
      %v2494 = vpop.f32.mrb[0].mxu0
      %2495 = vmatprep.mubr.bf16.mxu0 0
      %2496 = vmatmul.mubr.bf16.gmra.mrb[0].mxu0 %v2325
      %v2497 = vpop.f32.mrb[0].mxu0
      %v2498 = vadd.f32 %v2373, %v2497
      %v2499 = vpop.f32.mrb[0].mxu0
      %v2500 = vpop.f32.mrb[0].mxu0
      %v2501 = vadd.f32 %v2373, %v2500
      %v2502 = vpop.f32.mrb[0].mxu0
      %2503 = vmatprep.mubr.bf16.mxu0 0
      %2504 = vmatmul.mubr.bf16.gmra.mrb[0].mxu0 %v2326
      %v2505 = vpop.f32.mrb[0].mxu0
      %v2506 = vadd.f32 %v2373, %v2505
      %v2507 = vpop.f32.mrb[0].mxu0
      %v2508 = vpop.f32.mrb[0].mxu0
      %v2509 = vadd.f32 %v2373, %v2508
      %v2510 = vpop.f32.mrb[0].mxu0
      %2511 = vmatprep.mubr.bf16.mxu0 0
      %2512 = vmatmul.mubr.bf16.gmra.mrb[0].mxu0 %v2327
      %v2513 = vpop.f32.mrb[0].mxu0
      %v2514 = vadd.f32 %v2373, %v2513
      %v2515 = vpop.f32.mrb[0].mxu0
      %v2516 = vpop.f32.mrb[0].mxu0
      %v2517 = vadd.f32 %v2373, %v2516
      %v2518 = vpop.f32.mrb[0].mxu0
      %2519 = vmatprep.mubr.bf16.mxu0 0
      %2520 = vmatmul.mubr.bf16.gmra.mrb[0].mxu0 %v2328
      %v2521 = vpop.f32.mrb[0].mxu0
      %v2522 = vadd.f32 %v2373, %v2521
      %v2523 = vpop.f32.mrb[0].mxu0
      %v2524 = vpop.f32.mrb[0].mxu0
      %v2525 = vadd.f32 %v2373, %v2524
      %v2526 = vpop.f32.mrb[0].mxu0
      %2527 = vmatprep.mubr.bf16.mxu0 0
      %2528 = vmatmul.mubr.bf16.gmra.mrb[0].mxu0 %v2329
      %v2529 = vpop.f32.mrb[0].mxu0
      %v2530 = vadd.f32 %v2373, %v2529
      %v2531 = vpop.f32.mrb[0].mxu0
      %v2532 = vpop.f32.mrb[0].mxu0
      %v2533 = vadd.f32 %v2373, %v2532
      %v2534 = vpop.f32.mrb[0].mxu0
      %2535 = vmatprep.mubr.bf16.mxu0 0
      %2536 = vmatmul.mubr.bf16.gmra.mrb[0].mxu0 %v2330
      %v2537 = vpop.f32.mrb[0].mxu0
      %v2538 = vadd.f32 %v2373, %v2537
      %v2539 = vpop.f32.mrb[0].mxu0
      %v2540 = vpop.f32.mrb[0].mxu0
      %v2541 = vadd.f32 %v2373, %v2540
      %v2542 = vpop.f32.mrb[0].mxu0
      %2543 = vmatprep.mubr.bf16.mxu0 0
      %2544 = vmatmul.mubr.bf16.gmra.mrb[0].mxu0 %v2331
      %v2545 = vpop.f32.mrb[0].mxu0
      %v2546 = vadd.f32 %v2373, %v2545
      %v2547 = vpop.f32.mrb[0].mxu0
      %v2548 = vpop.f32.mrb[0].mxu0
      %v2549 = vadd.f32 %v2373, %v2548
      %v2550 = vpop.f32.mrb[0].mxu0
      %2551 = vmatprep.mubr.bf16.mxu0 0
      %2552 = vmatmul.mubr.bf16.gmra.mrb[0].mxu0 %v2332
      %v2553 = vpop.f32.mrb[0].mxu0
      %v2554 = vadd.f32 %v2373, %v2553
      %v2555 = vpop.f32.mrb[0].mxu0
      %v2556 = vpop.f32.mrb[0].mxu0
      %v2557 = vadd.f32 %v2373, %v2556
      %v2558 = vpop.f32.mrb[0].mxu0
      %2559 = vmatprep.mubr.bf16.mxu0 0
      %2560 = vmatmul.mubr.bf16.gmra.mrb[0].mxu0 %v2333
      %v2561 = vpop.f32.mrb[0].mxu0
      %v2562 = vadd.f32 %v2373, %v2561
      %v2563 = vpop.f32.mrb[0].mxu0
      %v2564 = vpop.f32.mrb[0].mxu0
      %v2565 = vadd.f32 %v2373, %v2564
      %v2566 = vpop.f32.mrb[0].mxu0
      %2567 = vmatprep.mubr.bf16.mxu0 0
      %2568 = vmatmul.mubr.bf16.gmra.mrb[0].mxu0 %v2334
      %v2569 = vpop.f32.mrb[0].mxu0
      %v2570 = vadd.f32 %v2373, %v2569
      %v2571 = vpop.f32.mrb[0].mxu0
      %v2572 = vpop.f32.mrb[0].mxu0
      %v2573 = vadd.f32 %v2373, %v2572
      %v2574 = vpop.f32.mrb[0].mxu0
      %2575 = vmatprep.mubr.bf16.mxu0 0
      %2576 = vmatmul.mubr.bf16.gmra.mrb[0].mxu0 %v2335
      %v2577 = vpop.f32.mrb[0].mxu0
      %v2578 = vadd.f32 %v2373, %v2577
      %v2579 = vpop.f32.mrb[0].mxu0
      %v2580 = vpop.f32.mrb[0].mxu0
      %v2581 = vadd.f32 %v2373, %v2580
      %v2582 = vpop.f32.mrb[0].mxu0
      %2583 = vmatprep.mubr.bf16.mxu0 0
      %2584 = vmatmul.mubr.bf16.gmra.mrb[0].mxu0 %v2336
      %v2585 = vpop.f32.mrb[0].mxu0
      %v2586 = vadd.f32 %v2373, %v2585
      %v2587 = vpop.f32.mrb[0].mxu0
      %v2588 = vpop.f32.mrb[0].mxu0
      %v2589 = vadd.f32 %v2373, %v2588
      %v2590 = vpop.f32.mrb[0].mxu0
      %2591 = vmatprep.mubr.bf16.mxu0 0
      %2592 = vmatmul.mubr.bf16.gmra.mrb[0].mxu0 %v2337
      %v2593 = vpop.f32.mrb[0].mxu0
      %v2594 = vadd.f32 %v2373, %v2593
      %v2595 = vpop.f32.mrb[0].mxu0
      %v2596 = vpop.f32.mrb[0].mxu0
      %v2597 = vadd.f32 %v2373, %v2596
      %v2598 = vpop.f32.mrb[0].mxu0
      %2599 = vmatprep.mubr.bf16.mxu0 0
      %2600 = vmatmul.mubr.bf16.gmra.mrb[0].mxu0 %v2338
      %v2601 = vpop.f32.mrb[0].mxu0
      %v2602 = vadd.f32 %v2373, %v2601
      %v2603 = vpop.f32.mrb[0].mxu0
      %v2604 = vpop.f32.mrb[0].mxu0
      %v2605 = vadd.f32 %v2373, %v2604
      %v2606 = vpop.f32.mrb[0].mxu0
      %2607 = vmatprep.mubr.bf16.mxu0 0
      %2608 = vmatmul.mubr.bf16.gmra.mrb[0].mxu0 %v2339
      %v2609 = vpop.f32.mrb[0].mxu0
      %v2610 = vadd.f32 %v2373, %v2609
      %v2611 = vpop.f32.mrb[0].mxu0
      %v2612 = vpop.f32.mrb[0].mxu0
      %v2613 = vadd.f32 %v2373, %v2612
      %v2614 = vpop.f32.mrb[0].mxu0
      %2615 = vmatprep.mubr.bf16.mxu0 0
      %2616 = vmatmul.mubr.bf16.gmra.mrb[0].mxu0 %v2340
      %v2617 = vpop.f32.mrb[0].mxu0
      %v2618 = vadd.f32 %v2373, %v2617
      %v2619 = vpop.f32.mrb[0].mxu0
      %v2620 = vpop.f32.mrb[0].mxu0
      %v2621 = vadd.f32 %v2373, %v2620
      %v2622 = vpop.f32.mrb[0].mxu0
      %2623 = vmatprep.mubr.bf16.mxu0 0
      %2624 = vmatmul.mubr.bf16.gmra.mrb[0].mxu0 %v2341
      %v2625 = vpop.f32.mrb[0].mxu0
      %v2626 = vadd.f32 %v2373, %v2625
      %v2627 = vpop.f32.mrb[0].mxu0
      %v2628 = vpop.f32.mrb[0].mxu0
      %v2629 = vadd.f32 %v2373, %v2628
      %v2630 = vpop.f32.mrb[0].mxu0
      %2631 = vmatprep.mubr.bf16.mxu0 0
      %2632 = vmatmul.mubr.bf16.gmra.mrb[0].mxu0 %v2342
      %v2633 = vpop.f32.mrb[0].mxu0
      %v2634 = vadd.f32 %v2373, %v2633
      %v2635 = vpop.f32.mrb[0].mxu0
      %v2636 = vpop.f32.mrb[0].mxu0
      %v2637 = vadd.f32 %v2373, %v2636
      %v2638 = vpop.f32.mrb[0].mxu0
      %2639 = vmatprep.mubr.bf16.mxu0 0
      %2640 = vmatmul.mubr.bf16.gmra.mrb[0].mxu0 %v2343
      %v2641 = vpop.f32.mrb[0].mxu0
      %v2642 = vadd.f32 %v2373, %v2641
      %v2643 = vpop.f32.mrb[0].mxu0
      %v2644 = vpop.f32.mrb[0].mxu0
      %v2645 = vadd.f32 %v2373, %v2644
      %v2646 = vpop.f32.mrb[0].mxu0
      %2647 = vmatprep.mubr.bf16.mxu0 0
      %2648 = vmatmul.mubr.bf16.gmra.mrb[0].mxu0 %v2344
      %v2649 = vpop.f32.mrb[0].mxu0
      %v2650 = vadd.f32 %v2373, %v2649
      %v2651 = vpop.f32.mrb[0].mxu0
      %v2652 = vpop.f32.mrb[0].mxu0
      %v2653 = vadd.f32 %v2373, %v2652
      %v2654 = vpop.f32.mrb[0].mxu0
      %2655 = vmatprep.mubr.bf16.mxu0 0
      %2656 = vmatmul.mubr.bf16.gmra.mrb[0].mxu0 %v2345
      %v2657 = vpop.f32.mrb[0].mxu0
      %v2658 = vadd.f32 %v2373, %v2657
      %v2659 = vpop.f32.mrb[0].mxu0
      %v2660 = vpop.f32.mrb[0].mxu0
      %v2661 = vadd.f32 %v2373, %v2660
      %v2662 = vpop.f32.mrb[0].mxu0
      %2663 = vmatprep.mubr.bf16.mxu0 0
      %2664 = vmatmul.mubr.bf16.gmra.mrb[0].mxu0 %v2346
      %v2665 = vpop.f32.mrb[0].mxu0
      %v2666 = vadd.f32 %v2373, %v2665
      %v2667 = vpop.f32.mrb[0].mxu0
      %v2668 = vpop.f32.mrb[0].mxu0
      %v2669 = vadd.f32 %v2373, %v2668
      %v2670 = vpop.f32.mrb[0].mxu0
      %2671 = vmatprep.mubr.bf16.mxu0 0
      %2672 = vmatmul.mubr.bf16.gmra.mrb[0].mxu0 %v2347
      %v2673 = vpop.f32.mrb[0].mxu0
      %v2674 = vadd.f32 %v2373, %v2673
      %v2675 = vpop.f32.mrb[0].mxu0
      %v2676 = vpop.f32.mrb[0].mxu0
      %v2677 = vadd.f32 %v2373, %v2676
      %v2678 = vpop.f32.mrb[0].mxu0
      %2679 = vmatprep.mubr.bf16.mxu0 0
      %2680 = vmatmul.mubr.bf16.gmra.mrb[0].mxu0 %v2348
      %v2681 = vpop.f32.mrb[0].mxu0
      %v2682 = vadd.f32 %v2373, %v2681
      %v2683 = vpop.f32.mrb[0].mxu0
      %v2684 = vpop.f32.mrb[0].mxu0
      %v2685 = vadd.f32 %v2373, %v2684
      %v2686 = vpop.f32.mrb[0].mxu0
      %2687 = vmatprep.mubr.bf16.mxu0 0
      %2688 = vmatmul.mubr.bf16.gmra.mrb[0].mxu0 %v2349
      %v2689 = vpop.f32.mrb[0].mxu0
      %v2690 = vadd.f32 %v2373, %v2689
      %v2691 = vpop.f32.mrb[0].mxu0
      %v2692 = vpop.f32.mrb[0].mxu0
      %v2693 = vadd.f32 %v2373, %v2692
      %v2694 = vpop.f32.mrb[0].mxu0
      %2695 = vmatprep.mubr.bf16.mxu0 0
      %2696 = vmatmul.mubr.bf16.gmra.mrb[0].mxu0 %v2350
      %v2697 = vpop.f32.mrb[0].mxu0
      %v2698 = vadd.f32 %v2373, %v2697
      %v2699 = vpop.f32.mrb[0].mxu0
      %v2700 = vpop.f32.mrb[0].mxu0
      %v2701 = vadd.f32 %v2373, %v2700
      %v2702 = vpop.f32.mrb[0].mxu0
      %2703 = vmatprep.mubr.bf16.mxu0 0
      %2704 = vmatmul.mubr.bf16.gmra.mrb[0].mxu0 %v2351
      %v2705 = vpop.f32.mrb[0].mxu0
      %v2706 = vadd.f32 %v2373, %v2705
      %v2707 = vpop.f32.mrb[0].mxu0
      %v2708 = vpop.f32.mrb[0].mxu0
      %v2709 = vadd.f32 %v2373, %v2708
      %v2710 = vpop.f32.mrb[0].mxu0
      %2711 = vdwg.mxu0
      %v2712 = vadd.f32 %v406, %v2458
      %v2713 = vadd.f32 %v407, %v2461
      %v2714 = vadd.f32 %v408, %v2466
      %v2715 = vadd.f32 %v409, %v2469
      %v2716 = vadd.f32 %v410, %v2474
      %v2717 = vadd.f32 %v411, %v2477
      %v2718 = vadd.f32 %v412, %v2482
      %v2719 = vadd.f32 %v413, %v2485
      %v2720 = vadd.f32 %v414, %v2490
      %v2721 = vadd.f32 %v415, %v2493
      %v2722 = vadd.f32 %v416, %v2498
      %v2723 = vadd.f32 %v417, %v2501
      %v2724 = vadd.f32 %v418, %v2506
      %v2725 = vadd.f32 %v419, %v2509
      %v2726 = vadd.f32 %v420, %v2514
      %v2727 = vadd.f32 %v421, %v2517
      %v2728 = vadd.f32 %v422, %v2522
      %v2729 = vadd.f32 %v423, %v2525
      %v2730 = vadd.f32 %v424, %v2530
      %v2731 = vadd.f32 %v425, %v2533
      %v2732 = vadd.f32 %v426, %v2538
      %v2733 = vadd.f32 %v427, %v2541
      %v2734 = vadd.f32 %v428, %v2546
      %v2735 = vadd.f32 %v429, %v2549
      %v2736 = vadd.f32 %v430, %v2554
      %v2737 = vadd.f32 %v431, %v2557
      %v2738 = vadd.f32 %v432, %v2562
      %v2739 = vadd.f32 %v433, %v2565
      %v2740 = vadd.f32 %v434, %v2570
      %v2741 = vadd.f32 %v435, %v2573
      %v2742 = vadd.f32 %v436, %v2578
      %v2743 = vadd.f32 %v437, %v2581
      %v2744 = vadd.f32 %v438, %v2586
      %v2745 = vadd.f32 %v439, %v2589
      %v2746 = vadd.f32 %v440, %v2594
      %v2747 = vadd.f32 %v441, %v2597
      %v2748 = vadd.f32 %v442, %v2602
      %v2749 = vadd.f32 %v443, %v2605
      %v2750 = vadd.f32 %v444, %v2610
      %v2751 = vadd.f32 %v445, %v2613
      %v2752 = vadd.f32 %v446, %v2618
      %v2753 = vadd.f32 %v447, %v2621
      %v2754 = vadd.f32 %v448, %v2626
      %v2755 = vadd.f32 %v449, %v2629
      %v2756 = vadd.f32 %v450, %v2634
      %v2757 = vadd.f32 %v451, %v2637
      %v2758 = vadd.f32 %v452, %v2642
      %v2759 = vadd.f32 %v453, %v2645
      %v2760 = vadd.f32 %v454, %v2650
      %v2761 = vadd.f32 %v455, %v2653
      %v2762 = vadd.f32 %v456, %v2658
      %v2763 = vadd.f32 %v457, %v2661
      %v2764 = vadd.f32 %v458, %v2666
      %v2765 = vadd.f32 %v459, %v2669
      %v2766 = vadd.f32 %v460, %v2674
      %v2767 = vadd.f32 %v461, %v2677
      %v2768 = vadd.f32 %v462, %v2682
      %v2769 = vadd.f32 %v463, %v2685
      %v2770 = vadd.f32 %v464, %v2690
      %v2771 = vadd.f32 %v465, %v2693
      %v2772 = vadd.f32 %v466, %v2698
      %v2773 = vadd.f32 %v467, %v2701
      %v2774 = vadd.f32 %v468, %v2706
      %v2775 = vadd.f32 %v469, %v2709
      %2776 = vst.msk [vmem:[%s275] sm:$0xff] %vm470, %v2712
      %2777 = vst.msk [vmem:[%s275 + $0x8] sm:$0xff] %vm470, %v2713
      %2778 = vst.msk [vmem:[%s275 + $0x10] sm:$0xff] %vm470, %v2714
      %2779 = vst.msk [vmem:[%s275 + $0x18] sm:$0xff] %vm470, %v2715
      %2780 = vst.msk [vmem:[%s275 + $0x20] sm:$0xff] %vm470, %v2716
      %2781 = vst.msk [vmem:[%s275 + $0x28] sm:$0xff] %vm470, %v2717
      %2782 = vst.msk [vmem:[%s275 + $0x30] sm:$0xff] %vm470, %v2718
      %2783 = vst.msk [vmem:[%s275 + $0x38] sm:$0xff] %vm470, %v2719
      %2784 = vst.msk [vmem:[%s275 + $0x40] sm:$0xff] %vm470, %v2720
      %2785 = vst.msk [vmem:[%s275 + $0x48] sm:$0xff] %vm470, %v2721
      %2786 = vst.msk [vmem:[%s275 + $0x50] sm:$0xff] %vm470, %v2722
      %2787 = vst.msk [vmem:[%s275 + $0x58] sm:$0xff] %vm470, %v2723
      %2788 = vst.msk [vmem:[%s275 + $0x60] sm:$0xff] %vm470, %v2724
      %2789 = vst.msk [vmem:[%s275 + $0x68] sm:$0xff] %vm470, %v2725
      %2790 = vst.msk [vmem:[%s275 + $0x70] sm:$0xff] %vm470, %v2726
      %2791 = vst.msk [vmem:[%s275 + $0x78] sm:$0xff] %vm470, %v2727
      %2792 = vst.msk [vmem:[%s275 + $0x80] sm:$0xff] %vm470, %v2728
      %2793 = vst.msk [vmem:[%s275 + $0x88] sm:$0xff] %vm470, %v2729
      %2794 = vst.msk [vmem:[%s275 + $0x90] sm:$0xff] %vm470, %v2730
      %2795 = vst.msk [vmem:[%s275 + $0x98] sm:$0xff] %vm470, %v2731
      %2796 = vst.msk [vmem:[%s275 + $0xa0] sm:$0xff] %vm470, %v2732
      %2797 = vst.msk [vmem:[%s275 + $0xa8] sm:$0xff] %vm470, %v2733
      %2798 = vst.msk [vmem:[%s275 + $0xb0] sm:$0xff] %vm470, %v2734
      %2799 = vst.msk [vmem:[%s275 + $0xb8] sm:$0xff] %vm470, %v2735
      %2800 = vst.msk [vmem:[%s275 + $0xc0] sm:$0xff] %vm470, %v2736
      %2801 = vst.msk [vmem:[%s275 + $0xc8] sm:$0xff] %vm470, %v2737
      %2802 = vst.msk [vmem:[%s275 + $0xd0] sm:$0xff] %vm470, %v2738
      %2803 = vst.msk [vmem:[%s275 + $0xd8] sm:$0xff] %vm470, %v2739
      %2804 = vst.msk [vmem:[%s275 + $0xe0] sm:$0xff] %vm470, %v2740
      %2805 = vst.msk [vmem:[%s275 + $0xe8] sm:$0xff] %vm470, %v2741
      %2806 = vst.msk [vmem:[%s275 + $0xf0] sm:$0xff] %vm470, %v2742
      %2807 = vst.msk [vmem:[%s275 + $0xf8] sm:$0xff] %vm470, %v2743
      %2808 = vst.msk [vmem:[%s275 + $0x100] sm:$0xff] %vm470, %v2744
      %2809 = vst.msk [vmem:[%s275 + $0x108] sm:$0xff] %vm470, %v2745
      %2810 = vst.msk [vmem:[%s275 + $0x110] sm:$0xff] %vm470, %v2746
      %2811 = vst.msk [vmem:[%s275 + $0x118] sm:$0xff] %vm470, %v2747
      %2812 = vst.msk [vmem:[%s275 + $0x120] sm:$0xff] %vm470, %v2748
      %2813 = vst.msk [vmem:[%s275 + $0x128] sm:$0xff] %vm470, %v2749
      %2814 = vst.msk [vmem:[%s275 + $0x130] sm:$0xff] %vm470, %v2750
      %2815 = vst.msk [vmem:[%s275 + $0x138] sm:$0xff] %vm470, %v2751
      %2816 = vst.msk [vmem:[%s275 + $0x140] sm:$0xff] %vm470, %v2752
      %2817 = vst.msk [vmem:[%s275 + $0x148] sm:$0xff] %vm470, %v2753
      %2818 = vst.msk [vmem:[%s275 + $0x150] sm:$0xff] %vm470, %v2754
      %2819 = vst.msk [vmem:[%s275 + $0x158] sm:$0xff] %vm470, %v2755
      %2820 = vst.msk [vmem:[%s275 + $0x160] sm:$0xff] %vm470, %v2756
      %2821 = vst.msk [vmem:[%s275 + $0x168] sm:$0xff] %vm470, %v2757
      %2822 = vst.msk [vmem:[%s275 + $0x170] sm:$0xff] %vm470, %v2758
      %2823 = vst.msk [vmem:[%s275 + $0x178] sm:$0xff] %vm470, %v2759
      %2824 = vst.msk [vmem:[%s275 + $0x180] sm:$0xff] %vm470, %v2760
      %2825 = vst.msk [vmem:[%s275 + $0x188] sm:$0xff] %vm470, %v2761
      %2826 = vst.msk [vmem:[%s275 + $0x190] sm:$0xff] %vm470, %v2762
      %2827 = vst.msk [vmem:[%s275 + $0x198] sm:$0xff] %vm470, %v2763
      %2828 = vst.msk [vmem:[%s275 + $0x1a0] sm:$0xff] %vm470, %v2764
      %2829 = vst.msk [vmem:[%s275 + $0x1a8] sm:$0xff] %vm470, %v2765
      %2830 = vst.msk [vmem:[%s275 + $0x1b0] sm:$0xff] %vm470, %v2766
      %2831 = vst.msk [vmem:[%s275 + $0x1b8] sm:$0xff] %vm470, %v2767
      %2832 = vst.msk [vmem:[%s275 + $0x1c0] sm:$0xff] %vm470, %v2768
      %2833 = vst.msk [vmem:[%s275 + $0x1c8] sm:$0xff] %vm470, %v2769
      %2834 = vst.msk [vmem:[%s275 + $0x1d0] sm:$0xff] %vm470, %v2770
      %2835 = vst.msk [vmem:[%s275 + $0x1d8] sm:$0xff] %vm470, %v2771
      %2836 = vst.msk [vmem:[%s275 + $0x1e0] sm:$0xff] %vm470, %v2772
      %2837 = vst.msk [vmem:[%s275 + $0x1e8] sm:$0xff] %vm470, %v2773
      %2838 = vst.msk [vmem:[%s275 + $0x1f0] sm:$0xff] %vm470, %v2774
      %2839 = vst.msk [vmem:[%s275 + $0x1f8] sm:$0xff] %vm470, %v2775
      %s2840 = smul.u32 64, %s17
      %p2841 = scmp.lt.s32.totalorder %s2840, 127
      %s2842 = scalar_select %p2841, %s2840, 127
      %s2843 = smul.addr %s2842, 8
      %s2844 = scalar_lea.vmem %s6, %s2843
      // Predicated region
      $region45: #{_lambda_.5} parent=43 // pred_check
        %p2845 = pneg %p171
      $region46: #{_lambda_.5} parent=43 // pred_check_branch
        %2847 = sbr.rel (%p2845) target = $region48
      $region47: #{_lambda_.5} parent=43 // pred_region
        %s2848 = smul.u32 64, %s17
      $region48: #{_lambda_.5} parent=43 // pred_fallthru
        _
    $region44: #{_lambda_.5} parent=5 // pred_fallthru
      _
    %p2849 = scmp.le.s32.totalorder 2, %s12
    // Predicated region
    $region49: #{_lambda_.5} parent=5 // pred_check
      %p2850 = pneg %p2849
    $region50: #{_lambda_.5} parent=5 // pred_check_branch
      %2852 = sbr.rel (%p2850) target = $region52
    $region51: #{_lambda_.5} parent=5 // pred_region
      %s2853 = ssub.s32 %s12, 2
      // Predicated region
      $region53: #{_lambda_.5} parent=51 // pred_check
        %p2854 = pneg %p177
      $region54: #{_lambda_.5} parent=51 // pred_check_branch
        %2856 = sbr.rel (%p2854) target = $region56
      $region55: #{_lambda_.5} parent=51 // pred_region
        %s2857 = smul.u32 64, %s18
        %p2858 = scmp.lt.s32.totalorder %s2857, 127
        %s2859 = scalar_select %p2858, %s2857, 127
        %s2860 = smul.addr %s2859, 8
        %s2861 = scalar_lea.vmem %s6, %s2860
      $region56: #{_lambda_.5} parent=51 // pred_fallthru
        _
    $region52: #{_lambda_.5} parent=5 // pred_fallthru
      _
  $region6: #{_lambda_.5} parent=0 // loop_footer
    %s16 = sadd.s32 1, %s12
  $region7: #{_lambda_.5} parent=0 // loop_footer_branch
    %11 = sbr.rel target = $region3
  $region8: #{_lambda_.5} parent=0 // loop_exit
    _

// kernel: _lambda_.4
$region0: #{_lambda_.4}
  #allocation0 [shape = 'u32[]', space=smem, size = 0x4, offset = 0x4, fixed_abs, tag = 'smem constant byte address 0x4 - core index']
  #allocation1 [shape = 'u32[144,128]{1,0:T(1,128)}', space=vmem, size = 0x12000, scoped, tag = 'internal scratch']
  %s0 = inlined_call_operand.vmem [shape: f32[2,512,32], index: 0, kind: input, shape index: {}]
  %s1 = inlined_call_operand.vmem [shape: bf16[32,64], index: 1, kind: input, shape index: {}]
  %s2 = inlined_call_operand.vmem [shape: f32[3,32], index: 2, kind: input, shape index: {}]
  %s3 = inlined_call_operand.vmem [shape: f32[1,32], index: 3, kind: input, shape index: {}]
  %s4 = inlined_call_operand.vmem [shape: bf16[32,34], index: 4, kind: input, shape index: {}]
  %s5 = inlined_call_operand.vmem [shape: f32[1,32], index: 5, kind: input, shape index: {}]
  %s6 = inlined_call_operand.vmem [shape: f32[1,32], index: 6, kind: input, shape index: {}]
  %s7 = inlined_call_operand.vmem [shape: f32[1,32], index: 7, kind: input, shape index: {}]
  %s8 = inlined_call_operand.vmem [shape: bf16[32,32], index: 8, kind: input, shape index: {}]
  %s9 = inlined_call_operand.vmem [shape: f32[2,512,32], index: 9, kind: output, shape index: {}]
  %s10 = sld [smem:[#allocation0]]
  $region69: #{_lambda_.4} parent=0
    _
  %s12 = ssub.s32 1, %s10
  %s13 = scalar_select 0, %s12, %s10
  loop: start=0, step=1, limit=4
  $region2: #{_lambda_.4} parent=0 // loop_pre_header
    _
  $region3: #{_lambda_.4} parent=0 // loop_header
    %s15 = sphi 0, %s19
    %p16 = scmp.ge.s32.totalorder %s15, 4
    %s25 = sphi 0, %s27
    %s28 = sphi 0, %s25
    %s29 = sphi 0, %s28
    %s45 = sphi 0, %s29
    %s49 = sphi 0, %s49
    %s51 = sphi 0, %s49
    %s52 = sphi 0, %s51
    %s66 = sphi 0, %s52
    %s70 = sphi 0, %s70
    %s72 = sphi 0, %s70
    %s73 = sphi 0, %s72
    %s87 = sphi 0, %s73
    %s91 = sphi 0, %s91
    %s93 = sphi 0, %s91
    %s94 = sphi 0, %s93
    %s108 = sphi 0, %s94
    %s112 = sphi 0, %s112
    %s114 = sphi 0, %s112
    %s115 = sphi 0, %s114
    %s129 = sphi 0, %s115
    %s133 = sphi 0, %s133
    %s135 = sphi 0, %s133
    %s136 = sphi 0, %s135
    %s150 = sphi 0, %s136
    %s154 = sphi 0, %s154
    %s156 = sphi 0, %s154
    %s157 = sphi 0, %s156
    %s171 = sphi 0, %s157
    %s175 = sphi 0, %s175
    %s177 = sphi 0, %s175
    %s178 = sphi 0, %s177
    %s192 = sphi 0, %s178
    %s196 = sphi 0, %s196
    %s198 = sphi 0, %s196
    %s199 = sphi 0, %s198
    %s213 = sphi 0, %s199
    %s219 = sphi 0, %s221
    %s222 = sphi 0, %s219
    %s223 = sphi 0, %s222
    %s239 = sphi 0, %s223
  $region4: #{_lambda_.4} parent=0 // loop_header_branch
    %18 = sbr.rel (%p16) target = $region8
  $region5: #{_lambda_.4} parent=0 // loop_body
    %s20 = ssub.s32 %s15, 1
    %s21 = ssub.s32 %s15, 2
    %s22 = sadd.s32 %s15, 1
    %s23 = ssub.s32 %s15, %s22
    %p24 = scmp.eq.s32.totalorder %s23, 0
    %s26 = sadd.s32 %s25, 1
    %s27 = scalar_select %p24, %s25, %s26
    %p30 = pneg %p24
    %p31 = scmp.eq.s32.totalorder %s15, 1
    %p32 = por %p30, %p31
    %p33 = scmp.ne.s32.totalorder %s25, %s28
    %p34 = scmp.eq.s32.totalorder %s15, 0
    %p35 = por %p33, %p34
    %p36 = scmp.ne.s32.totalorder %s25, %s28
    %p37 = scmp.eq.s32.totalorder %s20, 1
    %p38 = por %p36, %p37
    %p39 = scmp.ne.s32.totalorder %s28, %s29
    %p40 = scmp.eq.s32.totalorder %s20, 0
    %p41 = por %p39, %p40
    %p42 = scmp.ne.s32.totalorder %s28, %s29
    %p43 = scmp.eq.s32.totalorder %s21, 1
    %p44 = por %p42, %p43
    %p46 = scmp.ne.s32.totalorder %s29, %s45
    %p47 = scmp.eq.s32.totalorder %s21, 0
    %p48 = por %p46, %p47
    %s50 = sadd.s32 %s49, 1
    %p53 = scmp.eq.s32.totalorder %s15, 1
    %p54 = scmp.ne.s32.totalorder %s49, %s51
    %p55 = scmp.eq.s32.totalorder %s15, 0
    %p56 = por %p54, %p55
    %p57 = scmp.ne.s32.totalorder %s49, %s51
    %p58 = scmp.eq.s32.totalorder %s20, 1
    %p59 = por %p57, %p58
    %p60 = scmp.ne.s32.totalorder %s51, %s52
    %p61 = scmp.eq.s32.totalorder %s20, 0
    %p62 = por %p60, %p61
    %p63 = scmp.ne.s32.totalorder %s51, %s52
    %p64 = scmp.eq.s32.totalorder %s21, 1
    %p65 = por %p63, %p64
    %p67 = scmp.ne.s32.totalorder %s52, %s66
    %p68 = scmp.eq.s32.totalorder %s21, 0
    %p69 = por %p67, %p68
    %s71 = sadd.s32 %s70, 1
    %p74 = scmp.eq.s32.totalorder %s15, 1
    %p75 = scmp.ne.s32.totalorder %s70, %s72
    %p76 = scmp.eq.s32.totalorder %s15, 0
    %p77 = por %p75, %p76
    %p78 = scmp.ne.s32.totalorder %s70, %s72
    %p79 = scmp.eq.s32.totalorder %s20, 1
    %p80 = por %p78, %p79
    %p81 = scmp.ne.s32.totalorder %s72, %s73
    %p82 = scmp.eq.s32.totalorder %s20, 0
    %p83 = por %p81, %p82
    %p84 = scmp.ne.s32.totalorder %s72, %s73
    %p85 = scmp.eq.s32.totalorder %s21, 1
    %p86 = por %p84, %p85
    %p88 = scmp.ne.s32.totalorder %s73, %s87
    %p89 = scmp.eq.s32.totalorder %s21, 0
    %p90 = por %p88, %p89
    %s92 = sadd.s32 %s91, 1
    %p95 = scmp.eq.s32.totalorder %s15, 1
    %p96 = scmp.ne.s32.totalorder %s91, %s93
    %p97 = scmp.eq.s32.totalorder %s15, 0
    %p98 = por %p96, %p97
    %p99 = scmp.ne.s32.totalorder %s91, %s93
    %p100 = scmp.eq.s32.totalorder %s20, 1
    %p101 = por %p99, %p100
    %p102 = scmp.ne.s32.totalorder %s93, %s94
    %p103 = scmp.eq.s32.totalorder %s20, 0
    %p104 = por %p102, %p103
    %p105 = scmp.ne.s32.totalorder %s93, %s94
    %p106 = scmp.eq.s32.totalorder %s21, 1
    %p107 = por %p105, %p106
    %p109 = scmp.ne.s32.totalorder %s94, %s108
    %p110 = scmp.eq.s32.totalorder %s21, 0
    %p111 = por %p109, %p110
    %s113 = sadd.s32 %s112, 1
    %p116 = scmp.eq.s32.totalorder %s15, 1
    %p117 = scmp.ne.s32.totalorder %s112, %s114
    %p118 = scmp.eq.s32.totalorder %s15, 0
    %p119 = por %p117, %p118
    %p120 = scmp.ne.s32.totalorder %s112, %s114
    %p121 = scmp.eq.s32.totalorder %s20, 1
    %p122 = por %p120, %p121
    %p123 = scmp.ne.s32.totalorder %s114, %s115
    %p124 = scmp.eq.s32.totalorder %s20, 0
    %p125 = por %p123, %p124
    %p126 = scmp.ne.s32.totalorder %s114, %s115
    %p127 = scmp.eq.s32.totalorder %s21, 1
    %p128 = por %p126, %p127
    %p130 = scmp.ne.s32.totalorder %s115, %s129
    %p131 = scmp.eq.s32.totalorder %s21, 0
    %p132 = por %p130, %p131
    %s134 = sadd.s32 %s133, 1
    %p137 = scmp.eq.s32.totalorder %s15, 1
    %p138 = scmp.ne.s32.totalorder %s133, %s135
    %p139 = scmp.eq.s32.totalorder %s15, 0
    %p140 = por %p138, %p139
    %p141 = scmp.ne.s32.totalorder %s133, %s135
    %p142 = scmp.eq.s32.totalorder %s20, 1
    %p143 = por %p141, %p142
    %p144 = scmp.ne.s32.totalorder %s135, %s136
    %p145 = scmp.eq.s32.totalorder %s20, 0
    %p146 = por %p144, %p145
    %p147 = scmp.ne.s32.totalorder %s135, %s136
    %p148 = scmp.eq.s32.totalorder %s21, 1
    %p149 = por %p147, %p148
    %p151 = scmp.ne.s32.totalorder %s136, %s150
    %p152 = scmp.eq.s32.totalorder %s21, 0
    %p153 = por %p151, %p152
    %s155 = sadd.s32 %s154, 1
    %p158 = scmp.eq.s32.totalorder %s15, 1
    %p159 = scmp.ne.s32.totalorder %s154, %s156
    %p160 = scmp.eq.s32.totalorder %s15, 0
    %p161 = por %p159, %p160
    %p162 = scmp.ne.s32.totalorder %s154, %s156
    %p163 = scmp.eq.s32.totalorder %s20, 1
    %p164 = por %p162, %p163
    %p165 = scmp.ne.s32.totalorder %s156, %s157
    %p166 = scmp.eq.s32.totalorder %s20, 0
    %p167 = por %p165, %p166
    %p168 = scmp.ne.s32.totalorder %s156, %s157
    %p169 = scmp.eq.s32.totalorder %s21, 1
    %p170 = por %p168, %p169
    %p172 = scmp.ne.s32.totalorder %s157, %s171
    %p173 = scmp.eq.s32.totalorder %s21, 0
    %p174 = por %p172, %p173
    %s176 = sadd.s32 %s175, 1
    %p179 = scmp.eq.s32.totalorder %s15, 1
    %p180 = scmp.ne.s32.totalorder %s175, %s177
    %p181 = scmp.eq.s32.totalorder %s15, 0
    %p182 = por %p180, %p181
    %p183 = scmp.ne.s32.totalorder %s175, %s177
    %p184 = scmp.eq.s32.totalorder %s20, 1
    %p185 = por %p183, %p184
    %p186 = scmp.ne.s32.totalorder %s177, %s178
    %p187 = scmp.eq.s32.totalorder %s20, 0
    %p188 = por %p186, %p187
    %p189 = scmp.ne.s32.totalorder %s177, %s178
    %p190 = scmp.eq.s32.totalorder %s21, 1
    %p191 = por %p189, %p190
    %p193 = scmp.ne.s32.totalorder %s178, %s192
    %p194 = scmp.eq.s32.totalorder %s21, 0
    %p195 = por %p193, %p194
    %s197 = sadd.s32 %s196, 1
    %p200 = scmp.eq.s32.totalorder %s15, 1
    %p201 = scmp.ne.s32.totalorder %s196, %s198
    %p202 = scmp.eq.s32.totalorder %s15, 0
    %p203 = por %p201, %p202
    %p204 = scmp.ne.s32.totalorder %s196, %s198
    %p205 = scmp.eq.s32.totalorder %s20, 1
    %p206 = por %p204, %p205
    %p207 = scmp.ne.s32.totalorder %s198, %s199
    %p208 = scmp.eq.s32.totalorder %s20, 0
    %p209 = por %p207, %p208
    %p210 = scmp.ne.s32.totalorder %s198, %s199
    %p211 = scmp.eq.s32.totalorder %s21, 1
    %p212 = por %p210, %p211
    %p214 = scmp.ne.s32.totalorder %s199, %s213
    %p215 = scmp.eq.s32.totalorder %s21, 0
    %p216 = por %p214, %p215
    %s217 = ssub.s32 %s15, %s22
    %p218 = scmp.eq.s32.totalorder %s217, 0
    %s220 = sadd.s32 %s219, 1
    %s221 = scalar_select %p218, %s219, %s220
    %p224 = pneg %p218
    %p225 = scmp.eq.s32.totalorder %s15, 1
    %p226 = por %p224, %p225
    %p227 = scmp.ne.s32.totalorder %s219, %s222
    %p228 = scmp.eq.s32.totalorder %s15, 0
    %p229 = por %p227, %p228
    %p230 = scmp.ne.s32.totalorder %s219, %s222
    %p231 = scmp.eq.s32.totalorder %s20, 1
    %p232 = por %p230, %p231
    %p233 = scmp.ne.s32.totalorder %s222, %s223
    %p234 = scmp.eq.s32.totalorder %s20, 0
    %p235 = por %p233, %p234
    %p236 = scmp.ne.s32.totalorder %s222, %s223
    %p237 = scmp.eq.s32.totalorder %s21, 1
    %p238 = por %p236, %p237
    %p240 = scmp.ne.s32.totalorder %s223, %s239
    %p241 = scmp.eq.s32.totalorder %s21, 0
    %p242 = por %p240, %p241
    %p243 = scmp.le.s32.totalorder 1, %s15
    %p244 = scmp.lt.s32.totalorder %s15, 3
    %p245 = pnand %p243, %p244
    %p246 = pneg %p245
    // Predicated region
    $region9: #{_lambda_.4} parent=5 // pred_check
      _
    $region10: #{_lambda_.4} parent=5 // pred_check_branch
      %248 = sbr.rel (%p245) target = $region12
    $region11: #{_lambda_.4} parent=5 // pred_region
      %s249 = ssub.s32 %s15, 1
      // Predicated region
      $region13: #{_lambda_.4} parent=11 // pred_check
        %p250 = pneg %p62
      $region14: #{_lambda_.4} parent=11 // pred_check_branch
        %252 = sbr.rel (%p250) target = $region16
      $region15: #{_lambda_.4} parent=11 // pred_region
        _
      $region16: #{_lambda_.4} parent=11 // pred_fallthru
        _
      // Predicated region
      $region17: #{_lambda_.4} parent=11 // pred_check
        %p253 = pneg %p83
      $region18: #{_lambda_.4} parent=11 // pred_check_branch
        %255 = sbr.rel (%p253) target = $region20
      $region19: #{_lambda_.4} parent=11 // pred_region
        _
      $region20: #{_lambda_.4} parent=11 // pred_fallthru
        _
      // Predicated region
      $region21: #{_lambda_.4} parent=11 // pred_check
        %p256 = pneg %p104
      $region22: #{_lambda_.4} parent=11 // pred_check_branch
        %258 = sbr.rel (%p256) target = $region24
      $region23: #{_lambda_.4} parent=11 // pred_region
        _
      $region24: #{_lambda_.4} parent=11 // pred_fallthru
        _
      // Predicated region
      $region25: #{_lambda_.4} parent=11 // pred_check
        %p259 = pneg %p125
      $region26: #{_lambda_.4} parent=11 // pred_check_branch
        %261 = sbr.rel (%p259) target = $region28
      $region27: #{_lambda_.4} parent=11 // pred_region
        _
      $region28: #{_lambda_.4} parent=11 // pred_fallthru
        _
      // Predicated region
      $region29: #{_lambda_.4} parent=11 // pred_check
        %p262 = pneg %p146
      $region30: #{_lambda_.4} parent=11 // pred_check_branch
        %264 = sbr.rel (%p262) target = $region32
      $region31: #{_lambda_.4} parent=11 // pred_region
        _
      $region32: #{_lambda_.4} parent=11 // pred_fallthru
        _
      // Predicated region
      $region33: #{_lambda_.4} parent=11 // pred_check
        %p265 = pneg %p167
      $region34: #{_lambda_.4} parent=11 // pred_check_branch
        %267 = sbr.rel (%p265) target = $region36
      $region35: #{_lambda_.4} parent=11 // pred_region
        _
      $region36: #{_lambda_.4} parent=11 // pred_fallthru
        _
      // Predicated region
      $region37: #{_lambda_.4} parent=11 // pred_check
        %p268 = pneg %p188
      $region38: #{_lambda_.4} parent=11 // pred_check_branch
        %270 = sbr.rel (%p268) target = $region40
      $region39: #{_lambda_.4} parent=11 // pred_region
        _
      $region40: #{_lambda_.4} parent=11 // pred_fallthru
        _
      // Predicated region
      $region41: #{_lambda_.4} parent=11 // pred_check
        %p271 = pneg %p209
      $region42: #{_lambda_.4} parent=11 // pred_check_branch
        %273 = sbr.rel (%p271) target = $region44
      $region43: #{_lambda_.4} parent=11 // pred_region
        _
      $region44: #{_lambda_.4} parent=11 // pred_fallthru
        _
    $region12: #{_lambda_.4} parent=5 // pred_fallthru
      _
    %p274 = scmp.lt.s32.totalorder %s15, 2
    // Predicated region
    $region45: #{_lambda_.4} parent=5 // pred_check
      %p275 = pneg %p274
    $region46: #{_lambda_.4} parent=5 // pred_check_branch
      %277 = sbr.rel (%p275) target = $region48
    $region47: #{_lambda_.4} parent=5 // pred_region
      // Predicated region
      $region49: #{_lambda_.4} parent=47 // pred_check
        %p278 = pneg %p35
      $region50: #{_lambda_.4} parent=47 // pred_check_branch
        %280 = sbr.rel (%p278) target = $region52
      $region51: #{_lambda_.4} parent=47 // pred_region
        %p281 = scmp.lt.s32.totalorder %s15, 1
        %s282 = scalar_select %p281, %s15, 1
        %s283 = smul.addr %s282, 64
        %s284 = smul.addr %s283, 8
        %s285 = scalar_lea.vmem %s0, %s284
      $region52: #{_lambda_.4} parent=47 // pred_fallthru
        _
    $region48: #{_lambda_.4} parent=5 // pred_fallthru
      _
    %p286 = scmp.le.s32.totalorder 1, %s15
    %p287 = scmp.lt.s32.totalorder %s15, 3
    %p288 = pnand %p286, %p287
    %p289 = pneg %p288
    // Predicated region
    $region53: #{_lambda_.4} parent=5 // pred_check
      _
    $region54: #{_lambda_.4} parent=5 // pred_check_branch
      %291 = sbr.rel (%p288) target = $region56
    $region55: #{_lambda_.4} parent=5 // pred_region
      %s292 = ssub.s32 %s15, 1
      %p293 = scmp.lt.s32.totalorder %s20, 1
      %s294 = scalar_select %p293, %s20, 1
      %s295 = smul.addr %s294, 64
      %s296 = smul.addr %s295, 8
      %s297 = scalar_lea.vmem %s0, %s296
      %p298 = pneg %p41
      %p299 = pneg %p38
      %p300 = pneg %p62
      %p301 = pneg %p59
      %p302 = pneg %p83
      %p303 = pneg %p80
      %p304 = pneg %p104
      %p305 = pneg %p101
      %p306 = pneg %p125
      %p307 = pneg %p122
      %p308 = pneg %p146
      %p309 = pneg %p143
      %p310 = pneg %p167
      %p311 = pneg %p164
      %p312 = pneg %p188
      %p313 = pneg %p185
      %p314 = pneg %p209
      %p315 = pneg %p206
      %p316 = pneg %p235
      %p317 = pneg %p232
      %p318 = scmp.lt.s32.totalorder %s20, 1
      %s319 = scalar_select %p318, %s20, 1
      %s320 = smul.addr %s319, 64
      %s321 = smul.addr %s320, 8
      %s322 = scalar_lea.vmem %s9, %s321
      %p323 = scmp.lt.s32.totalorder %s20, 1
      %s324 = scalar_select %p323, %s20, 1
      %s325 = smul.addr %s324, 64
      %s326 = smul.addr %s325, 8
      %s327 = scalar_lea.vmem %s0, %s326
      %p328 = scmp.lt.s32.totalorder %s20, 1
      %s329 = scalar_select %p328, %s20, 1
      %s330 = smul.addr %s329, 64
      %s331 = smul.addr %s330, 8
      %s332 = scalar_lea.vmem %s9, %s331
      %v334 = vld [vmem:[%s327] sm:$0xff]
      %v335 = vld [vmem:[%s327 + $0x8] sm:$0xff]
      %v336 = vld [vmem:[%s327 + $0x10] sm:$0xff]
      %v337 = vld [vmem:[%s327 + $0x18] sm:$0xff]
      %v338 = vld [vmem:[%s327 + $0x20] sm:$0xff]
      %v339 = vld [vmem:[%s327 + $0x28] sm:$0xff]
      %v340 = vld [vmem:[%s327 + $0x30] sm:$0xff]
      %v341 = vld [vmem:[%s327 + $0x38] sm:$0xff]
      %v342 = vld [vmem:[%s327 + $0x40] sm:$0xff]
      %v343 = vld [vmem:[%s327 + $0x48] sm:$0xff]
      %v344 = vld [vmem:[%s327 + $0x50] sm:$0xff]
      %v345 = vld [vmem:[%s327 + $0x58] sm:$0xff]
      %v346 = vld [vmem:[%s327 + $0x60] sm:$0xff]
      %v347 = vld [vmem:[%s327 + $0x68] sm:$0xff]
      %v348 = vld [vmem:[%s327 + $0x70] sm:$0xff]
      %v349 = vld [vmem:[%s327 + $0x78] sm:$0xff]
      %v350 = vld [vmem:[%s327 + $0x80] sm:$0xff]
      %v351 = vld [vmem:[%s327 + $0x88] sm:$0xff]
      %v352 = vld [vmem:[%s327 + $0x90] sm:$0xff]
      %v353 = vld [vmem:[%s327 + $0x98] sm:$0xff]
      %v354 = vld [vmem:[%s327 + $0xa0] sm:$0xff]
      %v355 = vld [vmem:[%s327 + $0xa8] sm:$0xff]
      %v356 = vld [vmem:[%s327 + $0xb0] sm:$0xff]
      %v357 = vld [vmem:[%s327 + $0xb8] sm:$0xff]
      %v358 = vld [vmem:[%s327 + $0xc0] sm:$0xff]
      %v359 = vld [vmem:[%s327 + $0xc8] sm:$0xff]
      %v360 = vld [vmem:[%s327 + $0xd0] sm:$0xff]
      %v361 = vld [vmem:[%s327 + $0xd8] sm:$0xff]
      %v362 = vld [vmem:[%s327 + $0xe0] sm:$0xff]
      %v363 = vld [vmem:[%s327 + $0xe8] sm:$0xff]
      %v364 = vld [vmem:[%s327 + $0xf0] sm:$0xff]
      %v365 = vld [vmem:[%s327 + $0xf8] sm:$0xff]
      %v366 = vld [vmem:[%s327 + $0x100] sm:$0xff]
      %v367 = vld [vmem:[%s327 + $0x108] sm:$0xff]
      %v368 = vld [vmem:[%s327 + $0x110] sm:$0xff]
      %v369 = vld [vmem:[%s327 + $0x118] sm:$0xff]
      %v370 = vld [vmem:[%s327 + $0x120] sm:$0xff]
      %v371 = vld [vmem:[%s327 + $0x128] sm:$0xff]
      %v372 = vld [vmem:[%s327 + $0x130] sm:$0xff]
      %v373 = vld [vmem:[%s327 + $0x138] sm:$0xff]
      %v374 = vld [vmem:[%s327 + $0x140] sm:$0xff]
      %v375 = vld [vmem:[%s327 + $0x148] sm:$0xff]
      %v376 = vld [vmem:[%s327 + $0x150] sm:$0xff]
      %v377 = vld [vmem:[%s327 + $0x158] sm:$0xff]
      %v378 = vld [vmem:[%s327 + $0x160] sm:$0xff]
      %v379 = vld [vmem:[%s327 + $0x168] sm:$0xff]
      %v380 = vld [vmem:[%s327 + $0x170] sm:$0xff]
      %v381 = vld [vmem:[%s327 + $0x178] sm:$0xff]
      %v382 = vld [vmem:[%s327 + $0x180] sm:$0xff]
      %v383 = vld [vmem:[%s327 + $0x188] sm:$0xff]
      %v384 = vld [vmem:[%s327 + $0x190] sm:$0xff]
      %v385 = vld [vmem:[%s327 + $0x198] sm:$0xff]
      %v386 = vld [vmem:[%s327 + $0x1a0] sm:$0xff]
      %v387 = vld [vmem:[%s327 + $0x1a8] sm:$0xff]
      %v388 = vld [vmem:[%s327 + $0x1b0] sm:$0xff]
      %v389 = vld [vmem:[%s327 + $0x1b8] sm:$0xff]
      %v390 = vld [vmem:[%s327 + $0x1c0] sm:$0xff]
      %v391 = vld [vmem:[%s327 + $0x1c8] sm:$0xff]
      %v392 = vld [vmem:[%s327 + $0x1d0] sm:$0xff]
      %v393 = vld [vmem:[%s327 + $0x1d8] sm:$0xff]
      %v394 = vld [vmem:[%s327 + $0x1e0] sm:$0xff]
      %v395 = vld [vmem:[%s327 + $0x1e8] sm:$0xff]
      %v396 = vld [vmem:[%s327 + $0x1f0] sm:$0xff]
      %v397 = vld [vmem:[%s327 + $0x1f8] sm:$0xff]
      %vm398 = vcmask 261120
      %v399 = vsel %vm398, %v334, 0.0
      %400 = vadd.xlane.f32.xlu0 %v399
      %v401 = vpop.xlane.xlu0 %400
      %v402 = vsel %vm398, %v335, 0.0
      %403 = vadd.xlane.f32.xlu0 %v402
      %v404 = vpop.xlane.xlu0 %403
      %v405 = vsel %vm398, %v336, 0.0
      %406 = vadd.xlane.f32.xlu0 %v405
      %v407 = vpop.xlane.xlu0 %406
      %v408 = vsel %vm398, %v337, 0.0
      %409 = vadd.xlane.f32.xlu0 %v408
      %v410 = vpop.xlane.xlu0 %409
      %v411 = vsel %vm398, %v338, 0.0
      %412 = vadd.xlane.f32.xlu0 %v411
      %v413 = vpop.xlane.xlu0 %412
      %v414 = vsel %vm398, %v339, 0.0
      %415 = vadd.xlane.f32.xlu0 %v414
      %v416 = vpop.xlane.xlu0 %415
      %v417 = vsel %vm398, %v340, 0.0
      %418 = vadd.xlane.f32.xlu0 %v417
      %v419 = vpop.xlane.xlu0 %418
      %v420 = vsel %vm398, %v341, 0.0
      %421 = vadd.xlane.f32.xlu0 %v420
      %v422 = vpop.xlane.xlu0 %421
      %v423 = vsel %vm398, %v342, 0.0
      %424 = vadd.xlane.f32.xlu0 %v423
      %v425 = vpop.xlane.xlu0 %424
      %v426 = vsel %vm398, %v343, 0.0
      %427 = vadd.xlane.f32.xlu0 %v426
      %v428 = vpop.xlane.xlu0 %427
      %v429 = vsel %vm398, %v344, 0.0
      %430 = vadd.xlane.f32.xlu0 %v429
      %v431 = vpop.xlane.xlu0 %430
      %v432 = vsel %vm398, %v345, 0.0
      %433 = vadd.xlane.f32.xlu0 %v432
      %v434 = vpop.xlane.xlu0 %433
      %v435 = vsel %vm398, %v346, 0.0
      %436 = vadd.xlane.f32.xlu0 %v435
      %v437 = vpop.xlane.xlu0 %436
      %v438 = vsel %vm398, %v347, 0.0
      %439 = vadd.xlane.f32.xlu0 %v438
      %v440 = vpop.xlane.xlu0 %439
      %v441 = vsel %vm398, %v348, 0.0
      %442 = vadd.xlane.f32.xlu0 %v441
      %v443 = vpop.xlane.xlu0 %442
      %v444 = vsel %vm398, %v349, 0.0
      %445 = vadd.xlane.f32.xlu0 %v444
      %v446 = vpop.xlane.xlu0 %445
      %v447 = vsel %vm398, %v350, 0.0
      %448 = vadd.xlane.f32.xlu0 %v447
      %v449 = vpop.xlane.xlu0 %448
      %v450 = vsel %vm398, %v351, 0.0
      %451 = vadd.xlane.f32.xlu0 %v450
      %v452 = vpop.xlane.xlu0 %451
      %v453 = vsel %vm398, %v352, 0.0
      %454 = vadd.xlane.f32.xlu0 %v453
      %v455 = vpop.xlane.xlu0 %454
      %v456 = vsel %vm398, %v353, 0.0
      %457 = vadd.xlane.f32.xlu0 %v456
      %v458 = vpop.xlane.xlu0 %457
      %v459 = vsel %vm398, %v354, 0.0
      %460 = vadd.xlane.f32.xlu0 %v459
      %v461 = vpop.xlane.xlu0 %460
      %v462 = vsel %vm398, %v355, 0.0
      %463 = vadd.xlane.f32.xlu0 %v462
      %v464 = vpop.xlane.xlu0 %463
      %v465 = vsel %vm398, %v356, 0.0
      %466 = vadd.xlane.f32.xlu0 %v465
      %v467 = vpop.xlane.xlu0 %466
      %v468 = vsel %vm398, %v357, 0.0
      %469 = vadd.xlane.f32.xlu0 %v468
      %v470 = vpop.xlane.xlu0 %469
      %v471 = vsel %vm398, %v358, 0.0
      %472 = vadd.xlane.f32.xlu0 %v471
      %v473 = vpop.xlane.xlu0 %472
      %v474 = vsel %vm398, %v359, 0.0
      %475 = vadd.xlane.f32.xlu0 %v474
      %v476 = vpop.xlane.xlu0 %475
      %v477 = vsel %vm398, %v360, 0.0
      %478 = vadd.xlane.f32.xlu0 %v477
      %v479 = vpop.xlane.xlu0 %478
      %v480 = vsel %vm398, %v361, 0.0
      %481 = vadd.xlane.f32.xlu0 %v480
      %v482 = vpop.xlane.xlu0 %481
      %v483 = vsel %vm398, %v362, 0.0
      %484 = vadd.xlane.f32.xlu0 %v483
      %v485 = vpop.xlane.xlu0 %484
      %v486 = vsel %vm398, %v363, 0.0
      %487 = vadd.xlane.f32.xlu0 %v486
      %v488 = vpop.xlane.xlu0 %487
      %v489 = vsel %vm398, %v364, 0.0
      %490 = vadd.xlane.f32.xlu0 %v489
      %v491 = vpop.xlane.xlu0 %490
      %v492 = vsel %vm398, %v365, 0.0
      %493 = vadd.xlane.f32.xlu0 %v492
      %v494 = vpop.xlane.xlu0 %493
      %v495 = vsel %vm398, %v366, 0.0
      %496 = vadd.xlane.f32.xlu0 %v495
      %v497 = vpop.xlane.xlu0 %496
      %v498 = vsel %vm398, %v367, 0.0
      %499 = vadd.xlane.f32.xlu0 %v498
      %v500 = vpop.xlane.xlu0 %499
      %v501 = vsel %vm398, %v368, 0.0
      %502 = vadd.xlane.f32.xlu0 %v501
      %v503 = vpop.xlane.xlu0 %502
      %v504 = vsel %vm398, %v369, 0.0
      %505 = vadd.xlane.f32.xlu0 %v504
      %v506 = vpop.xlane.xlu0 %505
      %v507 = vsel %vm398, %v370, 0.0
      %508 = vadd.xlane.f32.xlu0 %v507
      %v509 = vpop.xlane.xlu0 %508
      %v510 = vsel %vm398, %v371, 0.0
      %511 = vadd.xlane.f32.xlu0 %v510
      %v512 = vpop.xlane.xlu0 %511
      %v513 = vsel %vm398, %v372, 0.0
      %514 = vadd.xlane.f32.xlu0 %v513
      %v515 = vpop.xlane.xlu0 %514
      %v516 = vsel %vm398, %v373, 0.0
      %517 = vadd.xlane.f32.xlu0 %v516
      %v518 = vpop.xlane.xlu0 %517
      %v519 = vsel %vm398, %v374, 0.0
      %520 = vadd.xlane.f32.xlu0 %v519
      %v521 = vpop.xlane.xlu0 %520
      %v522 = vsel %vm398, %v375, 0.0
      %523 = vadd.xlane.f32.xlu0 %v522
      %v524 = vpop.xlane.xlu0 %523
      %v525 = vsel %vm398, %v376, 0.0
      %526 = vadd.xlane.f32.xlu0 %v525
      %v527 = vpop.xlane.xlu0 %526
      %v528 = vsel %vm398, %v377, 0.0
      %529 = vadd.xlane.f32.xlu0 %v528
      %v530 = vpop.xlane.xlu0 %529
      %v531 = vsel %vm398, %v378, 0.0
      %532 = vadd.xlane.f32.xlu0 %v531
      %v533 = vpop.xlane.xlu0 %532
      %v534 = vsel %vm398, %v379, 0.0
      %535 = vadd.xlane.f32.xlu0 %v534
      %v536 = vpop.xlane.xlu0 %535
      %v537 = vsel %vm398, %v380, 0.0
      %538 = vadd.xlane.f32.xlu0 %v537
      %v539 = vpop.xlane.xlu0 %538
      %v540 = vsel %vm398, %v381, 0.0
      %541 = vadd.xlane.f32.xlu0 %v540
      %v542 = vpop.xlane.xlu0 %541
      %v543 = vsel %vm398, %v382, 0.0
      %544 = vadd.xlane.f32.xlu0 %v543
      %v545 = vpop.xlane.xlu0 %544
      %v546 = vsel %vm398, %v383, 0.0
      %547 = vadd.xlane.f32.xlu0 %v546
      %v548 = vpop.xlane.xlu0 %547
      %v549 = vsel %vm398, %v384, 0.0
      %550 = vadd.xlane.f32.xlu0 %v549
      %v551 = vpop.xlane.xlu0 %550
      %v552 = vsel %vm398, %v385, 0.0
      %553 = vadd.xlane.f32.xlu0 %v552
      %v554 = vpop.xlane.xlu0 %553
      %v555 = vsel %vm398, %v386, 0.0
      %556 = vadd.xlane.f32.xlu0 %v555
      %v557 = vpop.xlane.xlu0 %556
      %v558 = vsel %vm398, %v387, 0.0
      %559 = vadd.xlane.f32.xlu0 %v558
      %v560 = vpop.xlane.xlu0 %559
      %v561 = vsel %vm398, %v388, 0.0
      %562 = vadd.xlane.f32.xlu0 %v561
      %v563 = vpop.xlane.xlu0 %562
      %v564 = vsel %vm398, %v389, 0.0
      %565 = vadd.xlane.f32.xlu0 %v564
      %v566 = vpop.xlane.xlu0 %565
      %v567 = vsel %vm398, %v390, 0.0
      %568 = vadd.xlane.f32.xlu0 %v567
      %v569 = vpop.xlane.xlu0 %568
      %v570 = vsel %vm398, %v391, 0.0
      %571 = vadd.xlane.f32.xlu0 %v570
      %v572 = vpop.xlane.xlu0 %571
      %v573 = vsel %vm398, %v392, 0.0
      %574 = vadd.xlane.f32.xlu0 %v573
      %v575 = vpop.xlane.xlu0 %574
      %v576 = vsel %vm398, %v393, 0.0
      %577 = vadd.xlane.f32.xlu0 %v576
      %v578 = vpop.xlane.xlu0 %577
      %v579 = vsel %vm398, %v394, 0.0
      %580 = vadd.xlane.f32.xlu0 %v579
      %v581 = vpop.xlane.xlu0 %580
      %v582 = vsel %vm398, %v395, 0.0
      %583 = vadd.xlane.f32.xlu0 %v582
      %v584 = vpop.xlane.xlu0 %583
      %v585 = vsel %vm398, %v396, 0.0
      %586 = vadd.xlane.f32.xlu0 %v585
      %v587 = vpop.xlane.xlu0 %586
      %v588 = vsel %vm398, %v397, 0.0
      %589 = vadd.xlane.f32.xlu0 %v588
      %v590 = vpop.xlane.xlu0 %589
      %v591 = vrcp.pop 32.0
      %v592 = vmul.f32 %v401, %v591
      %v593 = vmul.f32 %v404, %v591
      %v594 = vmul.f32 %v407, %v591
      %v595 = vmul.f32 %v410, %v591
      %v596 = vmul.f32 %v413, %v591
      %v597 = vmul.f32 %v416, %v591
      %v598 = vmul.f32 %v419, %v591
      %v599 = vmul.f32 %v422, %v591
      %v600 = vmul.f32 %v425, %v591
      %v601 = vmul.f32 %v428, %v591
      %v602 = vmul.f32 %v431, %v591
      %v603 = vmul.f32 %v434, %v591
      %v604 = vmul.f32 %v437, %v591
      %v605 = vmul.f32 %v440, %v591
      %v606 = vmul.f32 %v443, %v591
      %v607 = vmul.f32 %v446, %v591
      %v608 = vmul.f32 %v449, %v591
      %v609 = vmul.f32 %v452, %v591
      %v610 = vmul.f32 %v455, %v591
      %v611 = vmul.f32 %v458, %v591
      %v612 = vmul.f32 %v461, %v591
      %v613 = vmul.f32 %v464, %v591
      %v614 = vmul.f32 %v467, %v591
      %v615 = vmul.f32 %v470, %v591
      %v616 = vmul.f32 %v473, %v591
      %v617 = vmul.f32 %v476, %v591
      %v618 = vmul.f32 %v479, %v591
      %v619 = vmul.f32 %v482, %v591
      %v620 = vmul.f32 %v485, %v591
      %v621 = vmul.f32 %v488, %v591
      %v622 = vmul.f32 %v491, %v591
      %v623 = vmul.f32 %v494, %v591
      %v624 = vmul.f32 %v497, %v591
      %v625 = vmul.f32 %v500, %v591
      %v626 = vmul.f32 %v503, %v591
      %v627 = vmul.f32 %v506, %v591
      %v628 = vmul.f32 %v509, %v591
      %v629 = vmul.f32 %v512, %v591
      %v630 = vmul.f32 %v515, %v591
      %v631 = vmul.f32 %v518, %v591
      %v632 = vmul.f32 %v521, %v591
      %v633 = vmul.f32 %v524, %v591
      %v634 = vmul.f32 %v527, %v591
      %v635 = vmul.f32 %v530, %v591
      %v636 = vmul.f32 %v533, %v591
      %v637 = vmul.f32 %v536, %v591
      %v638 = vmul.f32 %v539, %v591
      %v639 = vmul.f32 %v542, %v591
      %v640 = vmul.f32 %v545, %v591
      %v641 = vmul.f32 %v548, %v591
      %v642 = vmul.f32 %v551, %v591
      %v643 = vmul.f32 %v554, %v591
      %v644 = vmul.f32 %v557, %v591
      %v645 = vmul.f32 %v560, %v591
      %v646 = vmul.f32 %v563, %v591
      %v647 = vmul.f32 %v566, %v591
      %v648 = vmul.f32 %v569, %v591
      %v649 = vmul.f32 %v572, %v591
      %v650 = vmul.f32 %v575, %v591
      %v651 = vmul.f32 %v578, %v591
      %v652 = vmul.f32 %v581, %v591
      %v653 = vmul.f32 %v584, %v591
      %v654 = vmul.f32 %v587, %v591
      %v655 = vmul.f32 %v590, %v591
      %v656 = vsub.f32 %v334, %v592
      %v657 = vsub.f32 %v335, %v593
      %v658 = vsub.f32 %v336, %v594
      %v659 = vsub.f32 %v337, %v595
      %v660 = vsub.f32 %v338, %v596
      %v661 = vsub.f32 %v339, %v597
      %v662 = vsub.f32 %v340, %v598
      %v663 = vsub.f32 %v341, %v599
      %v664 = vsub.f32 %v342, %v600
      %v665 = vsub.f32 %v343, %v601
      %v666 = vsub.f32 %v344, %v602
      %v667 = vsub.f32 %v345, %v603
      %v668 = vsub.f32 %v346, %v604
      %v669 = vsub.f32 %v347, %v605
      %v670 = vsub.f32 %v348, %v606
      %v671 = vsub.f32 %v349, %v607
      %v672 = vsub.f32 %v350, %v608
      %v673 = vsub.f32 %v351, %v609
      %v674 = vsub.f32 %v352, %v610
      %v675 = vsub.f32 %v353, %v611
      %v676 = vsub.f32 %v354, %v612
      %v677 = vsub.f32 %v355, %v613
      %v678 = vsub.f32 %v356, %v614
      %v679 = vsub.f32 %v357, %v615
      %v680 = vsub.f32 %v358, %v616
      %v681 = vsub.f32 %v359, %v617
      %v682 = vsub.f32 %v360, %v618
      %v683 = vsub.f32 %v361, %v619
      %v684 = vsub.f32 %v362, %v620
      %v685 = vsub.f32 %v363, %v621
      %v686 = vsub.f32 %v364, %v622
      %v687 = vsub.f32 %v365, %v623
      %v688 = vsub.f32 %v366, %v624
      %v689 = vsub.f32 %v367, %v625
      %v690 = vsub.f32 %v368, %v626
      %v691 = vsub.f32 %v369, %v627
      %v692 = vsub.f32 %v370, %v628
      %v693 = vsub.f32 %v371, %v629
      %v694 = vsub.f32 %v372, %v630
      %v695 = vsub.f32 %v373, %v631
      %v696 = vsub.f32 %v374, %v632
      %v697 = vsub.f32 %v375, %v633
      %v698 = vsub.f32 %v376, %v634
      %v699 = vsub.f32 %v377, %v635
      %v700 = vsub.f32 %v378, %v636
      %v701 = vsub.f32 %v379, %v637
      %v702 = vsub.f32 %v380, %v638
      %v703 = vsub.f32 %v381, %v639
      %v704 = vsub.f32 %v382, %v640
      %v705 = vsub.f32 %v383, %v641
      %v706 = vsub.f32 %v384, %v642
      %v707 = vsub.f32 %v385, %v643
      %v708 = vsub.f32 %v386, %v644
      %v709 = vsub.f32 %v387, %v645
      %v710 = vsub.f32 %v388, %v646
      %v711 = vsub.f32 %v389, %v647
      %v712 = vsub.f32 %v390, %v648
      %v713 = vsub.f32 %v391, %v649
      %v714 = vsub.f32 %v392, %v650
      %v715 = vsub.f32 %v393, %v651
      %v716 = vsub.f32 %v394, %v652
      %v717 = vsub.f32 %v395, %v653
      %v718 = vsub.f32 %v396, %v654
      %v719 = vsub.f32 %v397, %v655
      %v720 = vmul.f32 %v656, %v656
      %v721 = vmul.f32 %v657, %v657
      %v722 = vmul.f32 %v658, %v658
      %v723 = vmul.f32 %v659, %v659
      %v724 = vmul.f32 %v660, %v660
      %v725 = vmul.f32 %v661, %v661
      %v726 = vmul.f32 %v662, %v662
      %v727 = vmul.f32 %v663, %v663
      %v728 = vmul.f32 %v664, %v664
      %v729 = vmul.f32 %v665, %v665
      %v730 = vmul.f32 %v666, %v666
      %v731 = vmul.f32 %v667, %v667
      %v732 = vmul.f32 %v668, %v668
      %v733 = vmul.f32 %v669, %v669
      %v734 = vmul.f32 %v670, %v670
      %v735 = vmul.f32 %v671, %v671
      %v736 = vmul.f32 %v672, %v672
      %v737 = vmul.f32 %v673, %v673
      %v738 = vmul.f32 %v674, %v674
      %v739 = vmul.f32 %v675, %v675
      %v740 = vmul.f32 %v676, %v676
      %v741 = vmul.f32 %v677, %v677
      %v742 = vmul.f32 %v678, %v678
      %v743 = vmul.f32 %v679, %v679
      %v744 = vmul.f32 %v680, %v680
      %v745 = vmul.f32 %v681, %v681
      %v746 = vmul.f32 %v682, %v682
      %v747 = vmul.f32 %v683, %v683
      %v748 = vmul.f32 %v684, %v684
      %v749 = vmul.f32 %v685, %v685
      %v750 = vmul.f32 %v686, %v686
      %v751 = vmul.f32 %v687, %v687
      %v752 = vmul.f32 %v688, %v688
      %v753 = vmul.f32 %v689, %v689
      %v754 = vmul.f32 %v690, %v690
      %v755 = vmul.f32 %v691, %v691
      %v756 = vmul.f32 %v692, %v692
      %v757 = vmul.f32 %v693, %v693
      %v758 = vmul.f32 %v694, %v694
      %v759 = vmul.f32 %v695, %v695
      %v760 = vmul.f32 %v696, %v696
      %v761 = vmul.f32 %v697, %v697
      %v762 = vmul.f32 %v698, %v698
      %v763 = vmul.f32 %v699, %v699
      %v764 = vmul.f32 %v700, %v700
      %v765 = vmul.f32 %v701, %v701
      %v766 = vmul.f32 %v702, %v702
      %v767 = vmul.f32 %v703, %v703
      %v768 = vmul.f32 %v704, %v704
      %v769 = vmul.f32 %v705, %v705
      %v770 = vmul.f32 %v706, %v706
      %v771 = vmul.f32 %v707, %v707
      %v772 = vmul.f32 %v708, %v708
      %v773 = vmul.f32 %v709, %v709
      %v774 = vmul.f32 %v710, %v710
      %v775 = vmul.f32 %v711, %v711
      %v776 = vmul.f32 %v712, %v712
      %v777 = vmul.f32 %v713, %v713
      %v778 = vmul.f32 %v714, %v714
      %v779 = vmul.f32 %v715, %v715
      %v780 = vmul.f32 %v716, %v716
      %v781 = vmul.f32 %v717, %v717
      %v782 = vmul.f32 %v718, %v718
      %v783 = vmul.f32 %v719, %v719
      %v784 = vsel %vm398, %v720, 0.0
      %785 = vadd.xlane.f32.xlu0 %v784
      %v786 = vpop.xlane.xlu0 %785
      %v787 = vsel %vm398, %v721, 0.0
      %788 = vadd.xlane.f32.xlu0 %v787
      %v789 = vpop.xlane.xlu0 %788
      %v790 = vsel %vm398, %v722, 0.0
      %791 = vadd.xlane.f32.xlu0 %v790
      %v792 = vpop.xlane.xlu0 %791
      %v793 = vsel %vm398, %v723, 0.0
      %794 = vadd.xlane.f32.xlu0 %v793
      %v795 = vpop.xlane.xlu0 %794
      %v796 = vsel %vm398, %v724, 0.0
      %797 = vadd.xlane.f32.xlu0 %v796
      %v798 = vpop.xlane.xlu0 %797
      %v799 = vsel %vm398, %v725, 0.0
      %800 = vadd.xlane.f32.xlu0 %v799
      %v801 = vpop.xlane.xlu0 %800
      %v802 = vsel %vm398, %v726, 0.0
      %803 = vadd.xlane.f32.xlu0 %v802
      %v804 = vpop.xlane.xlu0 %803
      %v805 = vsel %vm398, %v727, 0.0
      %806 = vadd.xlane.f32.xlu0 %v805
      %v807 = vpop.xlane.xlu0 %806
      %v808 = vsel %vm398, %v728, 0.0
      %809 = vadd.xlane.f32.xlu0 %v808
      %v810 = vpop.xlane.xlu0 %809
      %v811 = vsel %vm398, %v729, 0.0
      %812 = vadd.xlane.f32.xlu0 %v811
      %v813 = vpop.xlane.xlu0 %812
      %v814 = vsel %vm398, %v730, 0.0
      %815 = vadd.xlane.f32.xlu0 %v814
      %v816 = vpop.xlane.xlu0 %815
      %v817 = vsel %vm398, %v731, 0.0
      %818 = vadd.xlane.f32.xlu0 %v817
      %v819 = vpop.xlane.xlu0 %818
      %v820 = vsel %vm398, %v732, 0.0
      %821 = vadd.xlane.f32.xlu0 %v820
      %v822 = vpop.xlane.xlu0 %821
      %v823 = vsel %vm398, %v733, 0.0
      %824 = vadd.xlane.f32.xlu0 %v823
      %v825 = vpop.xlane.xlu0 %824
      %v826 = vsel %vm398, %v734, 0.0
      %827 = vadd.xlane.f32.xlu0 %v826
      %v828 = vpop.xlane.xlu0 %827
      %v829 = vsel %vm398, %v735, 0.0
      %830 = vadd.xlane.f32.xlu0 %v829
      %v831 = vpop.xlane.xlu0 %830
      %v832 = vsel %vm398, %v736, 0.0
      %833 = vadd.xlane.f32.xlu0 %v832
      %v834 = vpop.xlane.xlu0 %833
      %v835 = vsel %vm398, %v737, 0.0
      %836 = vadd.xlane.f32.xlu0 %v835
      %v837 = vpop.xlane.xlu0 %836
      %v838 = vsel %vm398, %v738, 0.0
      %839 = vadd.xlane.f32.xlu0 %v838
      %v840 = vpop.xlane.xlu0 %839
      %v841 = vsel %vm398, %v739, 0.0
      %842 = vadd.xlane.f32.xlu0 %v841
      %v843 = vpop.xlane.xlu0 %842
      %v844 = vsel %vm398, %v740, 0.0
      %845 = vadd.xlane.f32.xlu0 %v844
      %v846 = vpop.xlane.xlu0 %845
      %v847 = vsel %vm398, %v741, 0.0
      %848 = vadd.xlane.f32.xlu0 %v847
      %v849 = vpop.xlane.xlu0 %848
      %v850 = vsel %vm398, %v742, 0.0
      %851 = vadd.xlane.f32.xlu0 %v850
      %v852 = vpop.xlane.xlu0 %851
      %v853 = vsel %vm398, %v743, 0.0
      %854 = vadd.xlane.f32.xlu0 %v853
      %v855 = vpop.xlane.xlu0 %854
      %v856 = vsel %vm398, %v744, 0.0
      %857 = vadd.xlane.f32.xlu0 %v856
      %v858 = vpop.xlane.xlu0 %857
      %v859 = vsel %vm398, %v745, 0.0
      %860 = vadd.xlane.f32.xlu0 %v859
      %v861 = vpop.xlane.xlu0 %860
      %v862 = vsel %vm398, %v746, 0.0
      %863 = vadd.xlane.f32.xlu0 %v862
      %v864 = vpop.xlane.xlu0 %863
      %v865 = vsel %vm398, %v747, 0.0
      %866 = vadd.xlane.f32.xlu0 %v865
      %v867 = vpop.xlane.xlu0 %866
      %v868 = vsel %vm398, %v748, 0.0
      %869 = vadd.xlane.f32.xlu0 %v868
      %v870 = vpop.xlane.xlu0 %869
      %v871 = vsel %vm398, %v749, 0.0
      %872 = vadd.xlane.f32.xlu0 %v871
      %v873 = vpop.xlane.xlu0 %872
      %v874 = vsel %vm398, %v750, 0.0
      %875 = vadd.xlane.f32.xlu0 %v874
      %v876 = vpop.xlane.xlu0 %875
      %v877 = vsel %vm398, %v751, 0.0
      %878 = vadd.xlane.f32.xlu0 %v877
      %v879 = vpop.xlane.xlu0 %878
      %v880 = vsel %vm398, %v752, 0.0
      %881 = vadd.xlane.f32.xlu0 %v880
      %v882 = vpop.xlane.xlu0 %881
      %v883 = vsel %vm398, %v753, 0.0
      %884 = vadd.xlane.f32.xlu0 %v883
      %v885 = vpop.xlane.xlu0 %884
      %v886 = vsel %vm398, %v754, 0.0
      %887 = vadd.xlane.f32.xlu0 %v886
      %v888 = vpop.xlane.xlu0 %887
      %v889 = vsel %vm398, %v755, 0.0
      %890 = vadd.xlane.f32.xlu0 %v889
      %v891 = vpop.xlane.xlu0 %890
      %v892 = vsel %vm398, %v756, 0.0
      %893 = vadd.xlane.f32.xlu0 %v892
      %v894 = vpop.xlane.xlu0 %893
      %v895 = vsel %vm398, %v757, 0.0
      %896 = vadd.xlane.f32.xlu0 %v895
      %v897 = vpop.xlane.xlu0 %896
      %v898 = vsel %vm398, %v758, 0.0
      %899 = vadd.xlane.f32.xlu0 %v898
      %v900 = vpop.xlane.xlu0 %899
      %v901 = vsel %vm398, %v759, 0.0
      %902 = vadd.xlane.f32.xlu0 %v901
      %v903 = vpop.xlane.xlu0 %902
      %v904 = vsel %vm398, %v760, 0.0
      %905 = vadd.xlane.f32.xlu0 %v904
      %v906 = vpop.xlane.xlu0 %905
      %v907 = vsel %vm398, %v761, 0.0
      %908 = vadd.xlane.f32.xlu0 %v907
      %v909 = vpop.xlane.xlu0 %908
      %v910 = vsel %vm398, %v762, 0.0
      %911 = vadd.xlane.f32.xlu0 %v910
      %v912 = vpop.xlane.xlu0 %911
      %v913 = vsel %vm398, %v763, 0.0
      %914 = vadd.xlane.f32.xlu0 %v913
      %v915 = vpop.xlane.xlu0 %914
      %v916 = vsel %vm398, %v764, 0.0
      %917 = vadd.xlane.f32.xlu0 %v916
      %v918 = vpop.xlane.xlu0 %917
      %v919 = vsel %vm398, %v765, 0.0
      %920 = vadd.xlane.f32.xlu0 %v919
      %v921 = vpop.xlane.xlu0 %920
      %v922 = vsel %vm398, %v766, 0.0
      %923 = vadd.xlane.f32.xlu0 %v922
      %v924 = vpop.xlane.xlu0 %923
      %v925 = vsel %vm398, %v767, 0.0
      %926 = vadd.xlane.f32.xlu0 %v925
      %v927 = vpop.xlane.xlu0 %926
      %v928 = vsel %vm398, %v768, 0.0
      %929 = vadd.xlane.f32.xlu0 %v928
      %v930 = vpop.xlane.xlu0 %929
      %v931 = vsel %vm398, %v769, 0.0
      %932 = vadd.xlane.f32.xlu0 %v931
      %v933 = vpop.xlane.xlu0 %932
      %v934 = vsel %vm398, %v770, 0.0
      %935 = vadd.xlane.f32.xlu0 %v934
      %v936 = vpop.xlane.xlu0 %935
      %v937 = vsel %vm398, %v771, 0.0
      %938 = vadd.xlane.f32.xlu0 %v937
      %v939 = vpop.xlane.xlu0 %938
      %v940 = vsel %vm398, %v772, 0.0
      %941 = vadd.xlane.f32.xlu0 %v940
      %v942 = vpop.xlane.xlu0 %941
      %v943 = vsel %vm398, %v773, 0.0
      %944 = vadd.xlane.f32.xlu0 %v943
      %v945 = vpop.xlane.xlu0 %944
      %v946 = vsel %vm398, %v774, 0.0
      %947 = vadd.xlane.f32.xlu0 %v946
      %v948 = vpop.xlane.xlu0 %947
      %v949 = vsel %vm398, %v775, 0.0
      %950 = vadd.xlane.f32.xlu0 %v949
      %v951 = vpop.xlane.xlu0 %950
      %v952 = vsel %vm398, %v776, 0.0
      %953 = vadd.xlane.f32.xlu0 %v952
      %v954 = vpop.xlane.xlu0 %953
      %v955 = vsel %vm398, %v777, 0.0
      %956 = vadd.xlane.f32.xlu0 %v955
      %v957 = vpop.xlane.xlu0 %956
      %v958 = vsel %vm398, %v778, 0.0
      %959 = vadd.xlane.f32.xlu0 %v958
      %v960 = vpop.xlane.xlu0 %959
      %v961 = vsel %vm398, %v779, 0.0
      %962 = vadd.xlane.f32.xlu0 %v961
      %v963 = vpop.xlane.xlu0 %962
      %v964 = vsel %vm398, %v780, 0.0
      %965 = vadd.xlane.f32.xlu0 %v964
      %v966 = vpop.xlane.xlu0 %965
      %v967 = vsel %vm398, %v781, 0.0
      %968 = vadd.xlane.f32.xlu0 %v967
      %v969 = vpop.xlane.xlu0 %968
      %v970 = vsel %vm398, %v782, 0.0
      %971 = vadd.xlane.f32.xlu0 %v970
      %v972 = vpop.xlane.xlu0 %971
      %v973 = vsel %vm398, %v783, 0.0
      %974 = vadd.xlane.f32.xlu0 %v973
      %v975 = vpop.xlane.xlu0 %974
      %v976 = vmul.f32 %v786, %v591
      %v977 = vmul.f32 %v789, %v591
      %v978 = vmul.f32 %v792, %v591
      %v979 = vmul.f32 %v795, %v591
      %v980 = vmul.f32 %v798, %v591
      %v981 = vmul.f32 %v801, %v591
      %v982 = vmul.f32 %v804, %v591
      %v983 = vmul.f32 %v807, %v591
      %v984 = vmul.f32 %v810, %v591
      %v985 = vmul.f32 %v813, %v591
      %v986 = vmul.f32 %v816, %v591
      %v987 = vmul.f32 %v819, %v591
      %v988 = vmul.f32 %v822, %v591
      %v989 = vmul.f32 %v825, %v591
      %v990 = vmul.f32 %v828, %v591
      %v991 = vmul.f32 %v831, %v591
      %v992 = vmul.f32 %v834, %v591
      %v993 = vmul.f32 %v837, %v591
      %v994 = vmul.f32 %v840, %v591
      %v995 = vmul.f32 %v843, %v591
      %v996 = vmul.f32 %v846, %v591
      %v997 = vmul.f32 %v849, %v591
      %v998 = vmul.f32 %v852, %v591
      %v999 = vmul.f32 %v855, %v591
      %v1000 = vmul.f32 %v858, %v591
      %v1001 = vmul.f32 %v861, %v591
      %v1002 = vmul.f32 %v864, %v591
      %v1003 = vmul.f32 %v867, %v591
      %v1004 = vmul.f32 %v870, %v591
      %v1005 = vmul.f32 %v873, %v591
      %v1006 = vmul.f32 %v876, %v591
      %v1007 = vmul.f32 %v879, %v591
      %v1008 = vmul.f32 %v882, %v591
      %v1009 = vmul.f32 %v885, %v591
      %v1010 = vmul.f32 %v888, %v591
      %v1011 = vmul.f32 %v891, %v591
      %v1012 = vmul.f32 %v894, %v591
      %v1013 = vmul.f32 %v897, %v591
      %v1014 = vmul.f32 %v900, %v591
      %v1015 = vmul.f32 %v903, %v591
      %v1016 = vmul.f32 %v906, %v591
      %v1017 = vmul.f32 %v909, %v591
      %v1018 = vmul.f32 %v912, %v591
      %v1019 = vmul.f32 %v915, %v591
      %v1020 = vmul.f32 %v918, %v591
      %v1021 = vmul.f32 %v921, %v591
      %v1022 = vmul.f32 %v924, %v591
      %v1023 = vmul.f32 %v927, %v591
      %v1024 = vmul.f32 %v930, %v591
      %v1025 = vmul.f32 %v933, %v591
      %v1026 = vmul.f32 %v936, %v591
      %v1027 = vmul.f32 %v939, %v591
      %v1028 = vmul.f32 %v942, %v591
      %v1029 = vmul.f32 %v945, %v591
      %v1030 = vmul.f32 %v948, %v591
      %v1031 = vmul.f32 %v951, %v591
      %v1032 = vmul.f32 %v954, %v591
      %v1033 = vmul.f32 %v957, %v591
      %v1034 = vmul.f32 %v960, %v591
      %v1035 = vmul.f32 %v963, %v591
      %v1036 = vmul.f32 %v966, %v591
      %v1037 = vmul.f32 %v969, %v591
      %v1038 = vmul.f32 %v972, %v591
      %v1039 = vmul.f32 %v975, %v591
      %v1040 = vadd.f32 %v976, 1e-05
      %v1041 = vadd.f32 %v977, 1e-05
      %v1042 = vadd.f32 %v978, 1e-05
      %v1043 = vadd.f32 %v979, 1e-05
      %v1044 = vadd.f32 %v980, 1e-05
      %v1045 = vadd.f32 %v981, 1e-05
      %v1046 = vadd.f32 %v982, 1e-05
      %v1047 = vadd.f32 %v983, 1e-05
      %v1048 = vadd.f32 %v984, 1e-05
      %v1049 = vadd.f32 %v985, 1e-05
      %v1050 = vadd.f32 %v986, 1e-05
      %v1051 = vadd.f32 %v987, 1e-05
      %v1052 = vadd.f32 %v988, 1e-05
      %v1053 = vadd.f32 %v989, 1e-05
      %v1054 = vadd.f32 %v990, 1e-05
      %v1055 = vadd.f32 %v991, 1e-05
      %v1056 = vadd.f32 %v992, 1e-05
      %v1057 = vadd.f32 %v993, 1e-05
      %v1058 = vadd.f32 %v994, 1e-05
      %v1059 = vadd.f32 %v995, 1e-05
      %v1060 = vadd.f32 %v996, 1e-05
      %v1061 = vadd.f32 %v997, 1e-05
      %v1062 = vadd.f32 %v998, 1e-05
      %v1063 = vadd.f32 %v999, 1e-05
      %v1064 = vadd.f32 %v1000, 1e-05
      %v1065 = vadd.f32 %v1001, 1e-05
      %v1066 = vadd.f32 %v1002, 1e-05
      %v1067 = vadd.f32 %v1003, 1e-05
      %v1068 = vadd.f32 %v1004, 1e-05
      %v1069 = vadd.f32 %v1005, 1e-05
      %v1070 = vadd.f32 %v1006, 1e-05
      %v1071 = vadd.f32 %v1007, 1e-05
      %v1072 = vadd.f32 %v1008, 1e-05
      %v1073 = vadd.f32 %v1009, 1e-05
      %v1074 = vadd.f32 %v1010, 1e-05
      %v1075 = vadd.f32 %v1011, 1e-05
      %v1076 = vadd.f32 %v1012, 1e-05
      %v1077 = vadd.f32 %v1013, 1e-05
      %v1078 = vadd.f32 %v1014, 1e-05
      %v1079 = vadd.f32 %v1015, 1e-05
      %v1080 = vadd.f32 %v1016, 1e-05
      %v1081 = vadd.f32 %v1017, 1e-05
      %v1082 = vadd.f32 %v1018, 1e-05
      %v1083 = vadd.f32 %v1019, 1e-05
      %v1084 = vadd.f32 %v1020, 1e-05
      %v1085 = vadd.f32 %v1021, 1e-05
      %v1086 = vadd.f32 %v1022, 1e-05
      %v1087 = vadd.f32 %v1023, 1e-05
      %v1088 = vadd.f32 %v1024, 1e-05
      %v1089 = vadd.f32 %v1025, 1e-05
      %v1090 = vadd.f32 %v1026, 1e-05
      %v1091 = vadd.f32 %v1027, 1e-05
      %v1092 = vadd.f32 %v1028, 1e-05
      %v1093 = vadd.f32 %v1029, 1e-05
      %v1094 = vadd.f32 %v1030, 1e-05
      %v1095 = vadd.f32 %v1031, 1e-05
      %v1096 = vadd.f32 %v1032, 1e-05
      %v1097 = vadd.f32 %v1033, 1e-05
      %v1098 = vadd.f32 %v1034, 1e-05
      %v1099 = vadd.f32 %v1035, 1e-05
      %v1100 = vadd.f32 %v1036, 1e-05
      %v1101 = vadd.f32 %v1037, 1e-05
      %v1102 = vadd.f32 %v1038, 1e-05
      %v1103 = vadd.f32 %v1039, 1e-05
      %v1104 = vrsqrt.pop %v1040
      %v1105 = vrsqrt.pop %v1041
      %v1106 = vrsqrt.pop %v1042
      %v1107 = vrsqrt.pop %v1043
      %v1108 = vrsqrt.pop %v1044
      %v1109 = vrsqrt.pop %v1045
      %v1110 = vrsqrt.pop %v1046
      %v1111 = vrsqrt.pop %v1047
      %v1112 = vrsqrt.pop %v1048
      %v1113 = vrsqrt.pop %v1049
      %v1114 = vrsqrt.pop %v1050
      %v1115 = vrsqrt.pop %v1051
      %v1116 = vrsqrt.pop %v1052
      %v1117 = vrsqrt.pop %v1053
      %v1118 = vrsqrt.pop %v1054
      %v1119 = vrsqrt.pop %v1055
      %v1120 = vrsqrt.pop %v1056
      %v1121 = vrsqrt.pop %v1057
      %v1122 = vrsqrt.pop %v1058
      %v1123 = vrsqrt.pop %v1059
      %v1124 = vrsqrt.pop %v1060
      %v1125 = vrsqrt.pop %v1061
      %v1126 = vrsqrt.pop %v1062
      %v1127 = vrsqrt.pop %v1063
      %v1128 = vrsqrt.pop %v1064
      %v1129 = vrsqrt.pop %v1065
      %v1130 = vrsqrt.pop %v1066
      %v1131 = vrsqrt.pop %v1067
      %v1132 = vrsqrt.pop %v1068
      %v1133 = vrsqrt.pop %v1069
      %v1134 = vrsqrt.pop %v1070
      %v1135 = vrsqrt.pop %v1071
      %v1136 = vrsqrt.pop %v1072
      %v1137 = vrsqrt.pop %v1073
      %v1138 = vrsqrt.pop %v1074
      %v1139 = vrsqrt.pop %v1075
      %v1140 = vrsqrt.pop %v1076
      %v1141 = vrsqrt.pop %v1077
      %v1142 = vrsqrt.pop %v1078
      %v1143 = vrsqrt.pop %v1079
      %v1144 = vrsqrt.pop %v1080
      %v1145 = vrsqrt.pop %v1081
      %v1146 = vrsqrt.pop %v1082
      %v1147 = vrsqrt.pop %v1083
      %v1148 = vrsqrt.pop %v1084
      %v1149 = vrsqrt.pop %v1085
      %v1150 = vrsqrt.pop %v1086
      %v1151 = vrsqrt.pop %v1087
      %v1152 = vrsqrt.pop %v1088
      %v1153 = vrsqrt.pop %v1089
      %v1154 = vrsqrt.pop %v1090
      %v1155 = vrsqrt.pop %v1091
      %v1156 = vrsqrt.pop %v1092
      %v1157 = vrsqrt.pop %v1093
      %v1158 = vrsqrt.pop %v1094
      %v1159 = vrsqrt.pop %v1095
      %v1160 = vrsqrt.pop %v1096
      %v1161 = vrsqrt.pop %v1097
      %v1162 = vrsqrt.pop %v1098
      %v1163 = vrsqrt.pop %v1099
      %v1164 = vrsqrt.pop %v1100
      %v1165 = vrsqrt.pop %v1101
      %v1166 = vrsqrt.pop %v1102
      %v1167 = vrsqrt.pop %v1103
      %v1168 = vmul.f32 %v656, %v1104
      %v1169 = vmul.f32 %v657, %v1105
      %v1170 = vmul.f32 %v658, %v1106
      %v1171 = vmul.f32 %v659, %v1107
      %v1172 = vmul.f32 %v660, %v1108
      %v1173 = vmul.f32 %v661, %v1109
      %v1174 = vmul.f32 %v662, %v1110
      %v1175 = vmul.f32 %v663, %v1111
      %v1176 = vmul.f32 %v664, %v1112
      %v1177 = vmul.f32 %v665, %v1113
      %v1178 = vmul.f32 %v666, %v1114
      %v1179 = vmul.f32 %v667, %v1115
      %v1180 = vmul.f32 %v668, %v1116
      %v1181 = vmul.f32 %v669, %v1117
      %v1182 = vmul.f32 %v670, %v1118
      %v1183 = vmul.f32 %v671, %v1119
      %v1184 = vmul.f32 %v672, %v1120
      %v1185 = vmul.f32 %v673, %v1121
      %v1186 = vmul.f32 %v674, %v1122
      %v1187 = vmul.f32 %v675, %v1123
      %v1188 = vmul.f32 %v676, %v1124
      %v1189 = vmul.f32 %v677, %v1125
      %v1190 = vmul.f32 %v678, %v1126
      %v1191 = vmul.f32 %v679, %v1127
      %v1192 = vmul.f32 %v680, %v1128
      %v1193 = vmul.f32 %v681, %v1129
      %v1194 = vmul.f32 %v682, %v1130
      %v1195 = vmul.f32 %v683, %v1131
      %v1196 = vmul.f32 %v684, %v1132
      %v1197 = vmul.f32 %v685, %v1133
      %v1198 = vmul.f32 %v686, %v1134
      %v1199 = vmul.f32 %v687, %v1135
      %v1200 = vmul.f32 %v688, %v1136
      %v1201 = vmul.f32 %v689, %v1137
      %v1202 = vmul.f32 %v690, %v1138
      %v1203 = vmul.f32 %v691, %v1139
      %v1204 = vmul.f32 %v692, %v1140
      %v1205 = vmul.f32 %v693, %v1141
      %v1206 = vmul.f32 %v694, %v1142
      %v1207 = vmul.f32 %v695, %v1143
      %v1208 = vmul.f32 %v696, %v1144
      %v1209 = vmul.f32 %v697, %v1145
      %v1210 = vmul.f32 %v698, %v1146
      %v1211 = vmul.f32 %v699, %v1147
      %v1212 = vmul.f32 %v700, %v1148
      %v1213 = vmul.f32 %v701, %v1149
      %v1214 = vmul.f32 %v702, %v1150
      %v1215 = vmul.f32 %v703, %v1151
      %v1216 = vmul.f32 %v704, %v1152
      %v1217 = vmul.f32 %v705, %v1153
      %v1218 = vmul.f32 %v706, %v1154
      %v1219 = vmul.f32 %v707, %v1155
      %v1220 = vmul.f32 %v708, %v1156
      %v1221 = vmul.f32 %v709, %v1157
      %v1222 = vmul.f32 %v710, %v1158
      %v1223 = vmul.f32 %v711, %v1159
      %v1224 = vmul.f32 %v712, %v1160
      %v1225 = vmul.f32 %v713, %v1161
      %v1226 = vmul.f32 %v714, %v1162
      %v1227 = vmul.f32 %v715, %v1163
      %v1228 = vmul.f32 %v716, %v1164
      %v1229 = vmul.f32 %v717, %v1165
      %v1230 = vmul.f32 %v718, %v1166
      %v1231 = vmul.f32 %v719, %v1167
      %v1232 = vpack.c.bf16 %v1169, %v1168
      %v1233 = vpack.c.bf16 %v1171, %v1170
      %v1234 = vpack.c.bf16 %v1173, %v1172
      %v1235 = vpack.c.bf16 %v1175, %v1174
      %v1236 = vpack.c.bf16 %v1177, %v1176
      %v1237 = vpack.c.bf16 %v1179, %v1178
      %v1238 = vpack.c.bf16 %v1181, %v1180
      %v1239 = vpack.c.bf16 %v1183, %v1182
      %v1240 = vpack.c.bf16 %v1185, %v1184
      %v1241 = vpack.c.bf16 %v1187, %v1186
      %v1242 = vpack.c.bf16 %v1189, %v1188
      %v1243 = vpack.c.bf16 %v1191, %v1190
      %v1244 = vpack.c.bf16 %v1193, %v1192
      %v1245 = vpack.c.bf16 %v1195, %v1194
      %v1246 = vpack.c.bf16 %v1197, %v1196
      %v1247 = vpack.c.bf16 %v1199, %v1198
      %v1248 = vpack.c.bf16 %v1201, %v1200
      %v1249 = vpack.c.bf16 %v1203, %v1202
      %v1250 = vpack.c.bf16 %v1205, %v1204
      %v1251 = vpack.c.bf16 %v1207, %v1206
      %v1252 = vpack.c.bf16 %v1209, %v1208
      %v1253 = vpack.c.bf16 %v1211, %v1210
      %v1254 = vpack.c.bf16 %v1213, %v1212
      %v1255 = vpack.c.bf16 %v1215, %v1214
      %v1256 = vpack.c.bf16 %v1217, %v1216
      %v1257 = vpack.c.bf16 %v1219, %v1218
      %v1258 = vpack.c.bf16 %v1221, %v1220
      %v1259 = vpack.c.bf16 %v1223, %v1222
      %v1260 = vpack.c.bf16 %v1225, %v1224
      %v1261 = vpack.c.bf16 %v1227, %v1226
      %v1262 = vpack.c.bf16 %v1229, %v1228
      %v1263 = vpack.c.bf16 %v1231, %v1230
      %v1264 = vld [vmem:[%s1] sm:$0xf]
      %v1265 = vld [vmem:[%s1 + $0x4] sm:$0xf]
      %v1266 = vld [vmem:[%s1 + $0x8] sm:$0xf]
      %v1267 = vld [vmem:[%s1 + $0xc] sm:$0xf]
      %v1272 = vunpack.c.l.b16 %v1264
      %v1273 = vunpack.c.l.b16 %v1265
      %v1274 = vunpack.c.l.b16 %v1266
      %v1275 = vunpack.c.l.b16 %v1267
      %v1276 = vpack.c.b16 %v1273, %v1272
      %v1277 = vpack.c.b16 %v1275, %v1274
      %v1281 = vsel %vm398, %v1232, 0
      %v1284 = vsel %vm398, %v1233, 0
      %v1287 = vsel %vm398, %v1234, 0
      %v1290 = vsel %vm398, %v1235, 0
      %v1293 = vsel %vm398, %v1236, 0
      %v1296 = vsel %vm398, %v1237, 0
      %v1299 = vsel %vm398, %v1238, 0
      %v1302 = vsel %vm398, %v1239, 0
      %v1305 = vsel %vm398, %v1240, 0
      %v1308 = vsel %vm398, %v1241, 0
      %v1311 = vsel %vm398, %v1242, 0
      %v1314 = vsel %vm398, %v1243, 0
      %v1317 = vsel %vm398, %v1244, 0
      %v1320 = vsel %vm398, %v1245, 0
      %v1323 = vsel %vm398, %v1246, 0
      %v1326 = vsel %vm398, %v1247, 0
      %v1329 = vsel %vm398, %v1248, 0
      %v1332 = vsel %vm398, %v1249, 0
      %v1335 = vsel %vm398, %v1250, 0
      %v1338 = vsel %vm398, %v1251, 0
      %v1341 = vsel %vm398, %v1252, 0
      %v1344 = vsel %vm398, %v1253, 0
      %v1347 = vsel %vm398, %v1254, 0
      %v1350 = vsel %vm398, %v1255, 0
      %v1353 = vsel %vm398, %v1256, 0
      %v1356 = vsel %vm398, %v1257, 0
      %v1359 = vsel %vm398, %v1258, 0
      %v1362 = vsel %vm398, %v1259, 0
      %v1365 = vsel %vm398, %v1260, 0
      %v1368 = vsel %vm398, %v1261, 0
      %v1371 = vsel %vm398, %v1262, 0
      %v1374 = vsel %vm398, %v1263, 0
      %1376 = vmatprep.subr.bf16.mxu0 0
      %1377 = vmatpush1.bf16.msra.mxu0 %v1276
      %1378 = vmatprep.subr.bf16.mxu0 0
      %1379 = vmatpush1.bf16.msra.mxu0 %v1277
      %1380 = vmatprep.subr.bf16.mxu0 0
      %1381 = vmatpush1.bf16.msra.mxu0 0
      %1382 = vmatprep.subr.bf16.mxu0 0
      %1383 = vmatpush1.bf16.msra.mxu0 0
      %1384 = vmatprep.subr.bf16.mxu0 0
      %1385 = vmatpush1.bf16.msra.mxu0 0
      %1386 = vmatprep.subr.bf16.mxu0 0
      %1387 = vmatpush1.bf16.msra.mxu0 0
      %1388 = vmatprep.subr.bf16.mxu0 0
      %1389 = vmatpush1.bf16.msra.mxu0 0
      %1390 = vmatprep.subr.bf16.mxu0 0
      %1391 = vmatpush1.bf16.msra.mxu0 0
      %1392 = vmatprep.subr.bf16.mxu0 0
      %1393 = vmatpush1.bf16.msra.mxu0 0
      %1394 = vmatprep.subr.bf16.mxu0 0
      %1395 = vmatpush1.bf16.msra.mxu0 0
      %1396 = vmatprep.subr.bf16.mxu0 0
      %1397 = vmatpush1.bf16.msra.mxu0 0
      %1398 = vmatprep.subr.bf16.mxu0 0
      %1399 = vmatpush1.bf16.msra.mxu0 0
      %1400 = vmatprep.subr.bf16.mxu0 0
      %1401 = vmatpush1.bf16.msra.mxu0 0
      %1402 = vmatprep.subr.bf16.mxu0 0
      %1403 = vmatpush1.bf16.msra.mxu0 0
      %1404 = vmatprep.subr.bf16.mxu0 0
      %1405 = vmatpush1.bf16.msra.mxu0 0
      %1406 = vmatprep.subr.bf16.mxu0 0
      %1407 = vmatpush1.bf16.msra.mxu0 0
      %1408 = vmatprep.mubr.bf16.mxu0 0
      %1409 = vmatmul.mubr.bf16.gmra.mrb[0].mxu0 %v1281
      %v1410 = vpop.f32.mrb[0].mxu0
      %v1411 = vadd.f32 0.0, %v1410
      %v1412 = vpop.f32.mrb[0].mxu0
      %v1413 = vpop.f32.mrb[0].mxu0
      %v1414 = vadd.f32 0.0, %v1413
      %v1415 = vpop.f32.mrb[0].mxu0
      %1416 = vmatprep.mubr.bf16.mxu0 0
      %1417 = vmatmul.mubr.bf16.gmra.mrb[0].mxu0 %v1284
      %v1418 = vpop.f32.mrb[0].mxu0
      %v1419 = vadd.f32 0.0, %v1418
      %v1420 = vpop.f32.mrb[0].mxu0
      %v1421 = vpop.f32.mrb[0].mxu0
      %v1422 = vadd.f32 0.0, %v1421
      %v1423 = vpop.f32.mrb[0].mxu0
      %1424 = vmatprep.mubr.bf16.mxu0 0
      %1425 = vmatmul.mubr.bf16.gmra.mrb[0].mxu0 %v1287
      %v1426 = vpop.f32.mrb[0].mxu0
      %v1427 = vadd.f32 0.0, %v1426
      %v1428 = vpop.f32.mrb[0].mxu0
      %v1429 = vpop.f32.mrb[0].mxu0
      %v1430 = vadd.f32 0.0, %v1429
      %v1431 = vpop.f32.mrb[0].mxu0
      %1432 = vmatprep.mubr.bf16.mxu0 0
      %1433 = vmatmul.mubr.bf16.gmra.mrb[0].mxu0 %v1290
      %v1434 = vpop.f32.mrb[0].mxu0
      %v1435 = vadd.f32 0.0, %v1434
      %v1436 = vpop.f32.mrb[0].mxu0
      %v1437 = vpop.f32.mrb[0].mxu0
      %v1438 = vadd.f32 0.0, %v1437
      %v1439 = vpop.f32.mrb[0].mxu0
      %1440 = vmatprep.mubr.bf16.mxu0 0
      %1441 = vmatmul.mubr.bf16.gmra.mrb[0].mxu0 %v1293
      %v1442 = vpop.f32.mrb[0].mxu0
      %v1443 = vadd.f32 0.0, %v1442
      %v1444 = vpop.f32.mrb[0].mxu0
      %v1445 = vpop.f32.mrb[0].mxu0
      %v1446 = vadd.f32 0.0, %v1445
      %v1447 = vpop.f32.mrb[0].mxu0
      %1448 = vmatprep.mubr.bf16.mxu0 0
      %1449 = vmatmul.mubr.bf16.gmra.mrb[0].mxu0 %v1296
      %v1450 = vpop.f32.mrb[0].mxu0
      %v1451 = vadd.f32 0.0, %v1450
      %v1452 = vpop.f32.mrb[0].mxu0
      %v1453 = vpop.f32.mrb[0].mxu0
      %v1454 = vadd.f32 0.0, %v1453
      %v1455 = vpop.f32.mrb[0].mxu0
      %1456 = vmatprep.mubr.bf16.mxu0 0
      %1457 = vmatmul.mubr.bf16.gmra.mrb[0].mxu0 %v1299
      %v1458 = vpop.f32.mrb[0].mxu0
      %v1459 = vadd.f32 0.0, %v1458
      %v1460 = vpop.f32.mrb[0].mxu0
      %v1461 = vpop.f32.mrb[0].mxu0
      %v1462 = vadd.f32 0.0, %v1461
      %v1463 = vpop.f32.mrb[0].mxu0
      %1464 = vmatprep.mubr.bf16.mxu0 0
      %1465 = vmatmul.mubr.bf16.gmra.mrb[0].mxu0 %v1302
      %v1466 = vpop.f32.mrb[0].mxu0
      %v1467 = vadd.f32 0.0, %v1466
      %v1468 = vpop.f32.mrb[0].mxu0
      %v1469 = vpop.f32.mrb[0].mxu0
      %v1470 = vadd.f32 0.0, %v1469
      %v1471 = vpop.f32.mrb[0].mxu0
      %1472 = vmatprep.mubr.bf16.mxu0 0
      %1473 = vmatmul.mubr.bf16.gmra.mrb[0].mxu0 %v1305
      %v1474 = vpop.f32.mrb[0].mxu0
      %v1475 = vadd.f32 0.0, %v1474
      %v1476 = vpop.f32.mrb[0].mxu0
      %v1477 = vpop.f32.mrb[0].mxu0
      %v1478 = vadd.f32 0.0, %v1477
      %v1479 = vpop.f32.mrb[0].mxu0
      %1480 = vmatprep.mubr.bf16.mxu0 0
      %1481 = vmatmul.mubr.bf16.gmra.mrb[0].mxu0 %v1308
      %v1482 = vpop.f32.mrb[0].mxu0
      %v1483 = vadd.f32 0.0, %v1482
      %v1484 = vpop.f32.mrb[0].mxu0
      %v1485 = vpop.f32.mrb[0].mxu0
      %v1486 = vadd.f32 0.0, %v1485
      %v1487 = vpop.f32.mrb[0].mxu0
      %1488 = vmatprep.mubr.bf16.mxu0 0
      %1489 = vmatmul.mubr.bf16.gmra.mrb[0].mxu0 %v1311
      %v1490 = vpop.f32.mrb[0].mxu0
      %v1491 = vadd.f32 0.0, %v1490
      %v1492 = vpop.f32.mrb[0].mxu0
      %v1493 = vpop.f32.mrb[0].mxu0
      %v1494 = vadd.f32 0.0, %v1493
      %v1495 = vpop.f32.mrb[0].mxu0
      %1496 = vmatprep.mubr.bf16.mxu0 0
      %1497 = vmatmul.mubr.bf16.gmra.mrb[0].mxu0 %v1314
      %v1498 = vpop.f32.mrb[0].mxu0
      %v1499 = vadd.f32 0.0, %v1498
      %v1500 = vpop.f32.mrb[0].mxu0
      %v1501 = vpop.f32.mrb[0].mxu0
      %v1502 = vadd.f32 0.0, %v1501
      %v1503 = vpop.f32.mrb[0].mxu0
      %1504 = vmatprep.mubr.bf16.mxu0 0
      %1505 = vmatmul.mubr.bf16.gmra.mrb[0].mxu0 %v1317
      %v1506 = vpop.f32.mrb[0].mxu0
      %v1507 = vadd.f32 0.0, %v1506
      %v1508 = vpop.f32.mrb[0].mxu0
      %v1509 = vpop.f32.mrb[0].mxu0
      %v1510 = vadd.f32 0.0, %v1509
      %v1511 = vpop.f32.mrb[0].mxu0
      %1512 = vmatprep.mubr.bf16.mxu0 0
      %1513 = vmatmul.mubr.bf16.gmra.mrb[0].mxu0 %v1320
      %v1514 = vpop.f32.mrb[0].mxu0
      %v1515 = vadd.f32 0.0, %v1514
      %v1516 = vpop.f32.mrb[0].mxu0
      %v1517 = vpop.f32.mrb[0].mxu0
      %v1518 = vadd.f32 0.0, %v1517
      %v1519 = vpop.f32.mrb[0].mxu0
      %1520 = vmatprep.mubr.bf16.mxu0 0
      %1521 = vmatmul.mubr.bf16.gmra.mrb[0].mxu0 %v1323
      %v1522 = vpop.f32.mrb[0].mxu0
      %v1523 = vadd.f32 0.0, %v1522
      %v1524 = vpop.f32.mrb[0].mxu0
      %v1525 = vpop.f32.mrb[0].mxu0
      %v1526 = vadd.f32 0.0, %v1525
      %v1527 = vpop.f32.mrb[0].mxu0
      %1528 = vmatprep.mubr.bf16.mxu0 0
      %1529 = vmatmul.mubr.bf16.gmra.mrb[0].mxu0 %v1326
      %v1530 = vpop.f32.mrb[0].mxu0
      %v1531 = vadd.f32 0.0, %v1530
      %v1532 = vpop.f32.mrb[0].mxu0
      %v1533 = vpop.f32.mrb[0].mxu0
      %v1534 = vadd.f32 0.0, %v1533
      %v1535 = vpop.f32.mrb[0].mxu0
      %1536 = vmatprep.mubr.bf16.mxu0 0
      %1537 = vmatmul.mubr.bf16.gmra.mrb[0].mxu0 %v1329
      %v1538 = vpop.f32.mrb[0].mxu0
      %v1539 = vadd.f32 0.0, %v1538
      %v1540 = vpop.f32.mrb[0].mxu0
      %v1541 = vpop.f32.mrb[0].mxu0
      %v1542 = vadd.f32 0.0, %v1541
      %v1543 = vpop.f32.mrb[0].mxu0
      %1544 = vmatprep.mubr.bf16.mxu0 0
      %1545 = vmatmul.mubr.bf16.gmra.mrb[0].mxu0 %v1332
      %v1546 = vpop.f32.mrb[0].mxu0
      %v1547 = vadd.f32 0.0, %v1546
      %v1548 = vpop.f32.mrb[0].mxu0
      %v1549 = vpop.f32.mrb[0].mxu0
      %v1550 = vadd.f32 0.0, %v1549
      %v1551 = vpop.f32.mrb[0].mxu0
      %1552 = vmatprep.mubr.bf16.mxu0 0
      %1553 = vmatmul.mubr.bf16.gmra.mrb[0].mxu0 %v1335
      %v1554 = vpop.f32.mrb[0].mxu0
      %v1555 = vadd.f32 0.0, %v1554
      %v1556 = vpop.f32.mrb[0].mxu0
      %v1557 = vpop.f32.mrb[0].mxu0
      %v1558 = vadd.f32 0.0, %v1557
      %v1559 = vpop.f32.mrb[0].mxu0
      %1560 = vmatprep.mubr.bf16.mxu0 0
      %1561 = vmatmul.mubr.bf16.gmra.mrb[0].mxu0 %v1338
      %v1562 = vpop.f32.mrb[0].mxu0
      %v1563 = vadd.f32 0.0, %v1562
      %v1564 = vpop.f32.mrb[0].mxu0
      %v1565 = vpop.f32.mrb[0].mxu0
      %v1566 = vadd.f32 0.0, %v1565
      %v1567 = vpop.f32.mrb[0].mxu0
      %1568 = vmatprep.mubr.bf16.mxu0 0
      %1569 = vmatmul.mubr.bf16.gmra.mrb[0].mxu0 %v1341
      %v1570 = vpop.f32.mrb[0].mxu0
      %v1571 = vadd.f32 0.0, %v1570
      %v1572 = vpop.f32.mrb[0].mxu0
      %v1573 = vpop.f32.mrb[0].mxu0
      %v1574 = vadd.f32 0.0, %v1573
      %v1575 = vpop.f32.mrb[0].mxu0
      %1576 = vmatprep.mubr.bf16.mxu0 0
      %1577 = vmatmul.mubr.bf16.gmra.mrb[0].mxu0 %v1344
      %v1578 = vpop.f32.mrb[0].mxu0
      %v1579 = vadd.f32 0.0, %v1578
      %v1580 = vpop.f32.mrb[0].mxu0
      %v1581 = vpop.f32.mrb[0].mxu0
      %v1582 = vadd.f32 0.0, %v1581
      %v1583 = vpop.f32.mrb[0].mxu0
      %1584 = vmatprep.mubr.bf16.mxu0 0
      %1585 = vmatmul.mubr.bf16.gmra.mrb[0].mxu0 %v1347
      %v1586 = vpop.f32.mrb[0].mxu0
      %v1587 = vadd.f32 0.0, %v1586
      %v1588 = vpop.f32.mrb[0].mxu0
      %v1589 = vpop.f32.mrb[0].mxu0
      %v1590 = vadd.f32 0.0, %v1589
      %v1591 = vpop.f32.mrb[0].mxu0
      %1592 = vmatprep.mubr.bf16.mxu0 0
      %1593 = vmatmul.mubr.bf16.gmra.mrb[0].mxu0 %v1350
      %v1594 = vpop.f32.mrb[0].mxu0
      %v1595 = vadd.f32 0.0, %v1594
      %v1596 = vpop.f32.mrb[0].mxu0
      %v1597 = vpop.f32.mrb[0].mxu0
      %v1598 = vadd.f32 0.0, %v1597
      %v1599 = vpop.f32.mrb[0].mxu0
      %1600 = vmatprep.mubr.bf16.mxu0 0
      %1601 = vmatmul.mubr.bf16.gmra.mrb[0].mxu0 %v1353
      %v1602 = vpop.f32.mrb[0].mxu0
      %v1603 = vadd.f32 0.0, %v1602
      %v1604 = vpop.f32.mrb[0].mxu0
      %v1605 = vpop.f32.mrb[0].mxu0
      %v1606 = vadd.f32 0.0, %v1605
      %v1607 = vpop.f32.mrb[0].mxu0
      %1608 = vmatprep.mubr.bf16.mxu0 0
      %1609 = vmatmul.mubr.bf16.gmra.mrb[0].mxu0 %v1356
      %v1610 = vpop.f32.mrb[0].mxu0
      %v1611 = vadd.f32 0.0, %v1610
      %v1612 = vpop.f32.mrb[0].mxu0
      %v1613 = vpop.f32.mrb[0].mxu0
      %v1614 = vadd.f32 0.0, %v1613
      %v1615 = vpop.f32.mrb[0].mxu0
      %1616 = vmatprep.mubr.bf16.mxu0 0
      %1617 = vmatmul.mubr.bf16.gmra.mrb[0].mxu0 %v1359
      %v1618 = vpop.f32.mrb[0].mxu0
      %v1619 = vadd.f32 0.0, %v1618
      %v1620 = vpop.f32.mrb[0].mxu0
      %v1621 = vpop.f32.mrb[0].mxu0
      %v1622 = vadd.f32 0.0, %v1621
      %v1623 = vpop.f32.mrb[0].mxu0
      %1624 = vmatprep.mubr.bf16.mxu0 0
      %1625 = vmatmul.mubr.bf16.gmra.mrb[0].mxu0 %v1362
      %v1626 = vpop.f32.mrb[0].mxu0
      %v1627 = vadd.f32 0.0, %v1626
      %v1628 = vpop.f32.mrb[0].mxu0
      %v1629 = vpop.f32.mrb[0].mxu0
      %v1630 = vadd.f32 0.0, %v1629
      %v1631 = vpop.f32.mrb[0].mxu0
      %1632 = vmatprep.mubr.bf16.mxu0 0
      %1633 = vmatmul.mubr.bf16.gmra.mrb[0].mxu0 %v1365
      %v1634 = vpop.f32.mrb[0].mxu0
      %v1635 = vadd.f32 0.0, %v1634
      %v1636 = vpop.f32.mrb[0].mxu0
      %v1637 = vpop.f32.mrb[0].mxu0
      %v1638 = vadd.f32 0.0, %v1637
      %v1639 = vpop.f32.mrb[0].mxu0
      %1640 = vmatprep.mubr.bf16.mxu0 0
      %1641 = vmatmul.mubr.bf16.gmra.mrb[0].mxu0 %v1368
      %v1642 = vpop.f32.mrb[0].mxu0
      %v1643 = vadd.f32 0.0, %v1642
      %v1644 = vpop.f32.mrb[0].mxu0
      %v1645 = vpop.f32.mrb[0].mxu0
      %v1646 = vadd.f32 0.0, %v1645
      %v1647 = vpop.f32.mrb[0].mxu0
      %1648 = vmatprep.mubr.bf16.mxu0 0
      %1649 = vmatmul.mubr.bf16.gmra.mrb[0].mxu0 %v1371
      %v1650 = vpop.f32.mrb[0].mxu0
      %v1651 = vadd.f32 0.0, %v1650
      %v1652 = vpop.f32.mrb[0].mxu0
      %v1653 = vpop.f32.mrb[0].mxu0
      %v1654 = vadd.f32 0.0, %v1653
      %v1655 = vpop.f32.mrb[0].mxu0
      %1656 = vmatprep.mubr.bf16.mxu0 0
      %1657 = vmatmul.mubr.bf16.gmra.mrb[0].mxu0 %v1374
      %v1658 = vpop.f32.mrb[0].mxu0
      %v1659 = vadd.f32 0.0, %v1658
      %v1660 = vpop.f32.mrb[0].mxu0
      %v1661 = vpop.f32.mrb[0].mxu0
      %v1662 = vadd.f32 0.0, %v1661
      %v1663 = vpop.f32.mrb[0].mxu0
      %1664 = vdwg.mxu0
      %v1665 = vld [vmem:[%s2] sm:$0x7]
      %v1666 = vlaneseq
      %v1667 = vshrl.u32 %v1666, 7
      %v1668 = vsub.s32 2, %v1667
      %v1669 = vrot.slane %v1665, %v1668
      %v1670 = vmul.f32 %v1411, %v1669
      %v1671 = vmul.f32 %v1414, %v1669
      %v1672 = vmul.f32 %v1419, %v1669
      %v1673 = vmul.f32 %v1422, %v1669
      %v1674 = vmul.f32 %v1427, %v1669
      %v1675 = vmul.f32 %v1430, %v1669
      %v1676 = vmul.f32 %v1435, %v1669
      %v1677 = vmul.f32 %v1438, %v1669
      %v1678 = vmul.f32 %v1443, %v1669
      %v1679 = vmul.f32 %v1446, %v1669
      %v1680 = vmul.f32 %v1451, %v1669
      %v1681 = vmul.f32 %v1454, %v1669
      %v1682 = vmul.f32 %v1459, %v1669
      %v1683 = vmul.f32 %v1462, %v1669
      %v1684 = vmul.f32 %v1467, %v1669
      %v1685 = vmul.f32 %v1470, %v1669
      %v1686 = vmul.f32 %v1475, %v1669
      %v1687 = vmul.f32 %v1478, %v1669
      %v1688 = vmul.f32 %v1483, %v1669
      %v1689 = vmul.f32 %v1486, %v1669
      %v1690 = vmul.f32 %v1491, %v1669
      %v1691 = vmul.f32 %v1494, %v1669
      %v1692 = vmul.f32 %v1499, %v1669
      %v1693 = vmul.f32 %v1502, %v1669
      %v1694 = vmul.f32 %v1507, %v1669
      %v1695 = vmul.f32 %v1510, %v1669
      %v1696 = vmul.f32 %v1515, %v1669
      %v1697 = vmul.f32 %v1518, %v1669
      %v1698 = vmul.f32 %v1523, %v1669
      %v1699 = vmul.f32 %v1526, %v1669
      %v1700 = vmul.f32 %v1531, %v1669
      %v1701 = vmul.f32 %v1534, %v1669
      %v1702 = vmul.f32 %v1539, %v1669
      %v1703 = vmul.f32 %v1542, %v1669
      %v1704 = vmul.f32 %v1547, %v1669
      %v1705 = vmul.f32 %v1550, %v1669
      %v1706 = vmul.f32 %v1555, %v1669
      %v1707 = vmul.f32 %v1558, %v1669
      %v1708 = vmul.f32 %v1563, %v1669
      %v1709 = vmul.f32 %v1566, %v1669
      %v1710 = vmul.f32 %v1571, %v1669
      %v1711 = vmul.f32 %v1574, %v1669
      %v1712 = vmul.f32 %v1579, %v1669
      %v1713 = vmul.f32 %v1582, %v1669
      %v1714 = vmul.f32 %v1587, %v1669
      %v1715 = vmul.f32 %v1590, %v1669
      %v1716 = vmul.f32 %v1595, %v1669
      %v1717 = vmul.f32 %v1598, %v1669
      %v1718 = vmul.f32 %v1603, %v1669
      %v1719 = vmul.f32 %v1606, %v1669
      %v1720 = vmul.f32 %v1611, %v1669
      %v1721 = vmul.f32 %v1614, %v1669
      %v1722 = vmul.f32 %v1619, %v1669
      %v1723 = vmul.f32 %v1622, %v1669
      %v1724 = vmul.f32 %v1627, %v1669
      %v1725 = vmul.f32 %v1630, %v1669
      %v1726 = vmul.f32 %v1635, %v1669
      %v1727 = vmul.f32 %v1638, %v1669
      %v1728 = vmul.f32 %v1643, %v1669
      %v1729 = vmul.f32 %v1646, %v1669
      %v1730 = vmul.f32 %v1651, %v1669
      %v1731 = vmul.f32 %v1654, %v1669
      %v1732 = vmul.f32 %v1659, %v1669
      %v1733 = vmul.f32 %v1662, %v1669
      %v1734 = vlaneseq
      %v1735 = vshrl.u32 %v1734, 7
      %v1736 = vsub.s32 0, %v1735
      %v1737 = vrot.slane %v1665, %v1736
      %v1738 = vmul.f32 %v1737, 0.0
      %v1739 = vmul.f32 %v1411, %v1737
      %v1740 = vmul.f32 %v1414, %v1737
      %v1741 = vmul.f32 %v1419, %v1737
      %v1742 = vmul.f32 %v1422, %v1737
      %v1743 = vmul.f32 %v1427, %v1737
      %v1744 = vmul.f32 %v1430, %v1737
      %v1745 = vmul.f32 %v1435, %v1737
      %v1746 = vmul.f32 %v1438, %v1737
      %v1747 = vmul.f32 %v1443, %v1737
      %v1748 = vmul.f32 %v1446, %v1737
      %v1749 = vmul.f32 %v1451, %v1737
      %v1750 = vmul.f32 %v1454, %v1737
      %v1751 = vmul.f32 %v1459, %v1737
      %v1752 = vmul.f32 %v1462, %v1737
      %v1753 = vmul.f32 %v1467, %v1737
      %v1754 = vmul.f32 %v1470, %v1737
      %v1755 = vmul.f32 %v1475, %v1737
      %v1756 = vmul.f32 %v1478, %v1737
      %v1757 = vmul.f32 %v1483, %v1737
      %v1758 = vmul.f32 %v1486, %v1737
      %v1759 = vmul.f32 %v1491, %v1737
      %v1760 = vmul.f32 %v1494, %v1737
      %v1761 = vmul.f32 %v1499, %v1737
      %v1762 = vmul.f32 %v1502, %v1737
      %v1763 = vmul.f32 %v1507, %v1737
      %v1764 = vmul.f32 %v1510, %v1737
      %v1765 = vmul.f32 %v1515, %v1737
      %v1766 = vmul.f32 %v1518, %v1737
      %v1767 = vmul.f32 %v1523, %v1737
      %v1768 = vmul.f32 %v1526, %v1737
      %v1769 = vmul.f32 %v1531, %v1737
      %v1770 = vmul.f32 %v1534, %v1737
      %v1771 = vmul.f32 %v1539, %v1737
      %v1772 = vmul.f32 %v1542, %v1737
      %v1773 = vmul.f32 %v1547, %v1737
      %v1774 = vmul.f32 %v1550, %v1737
      %v1775 = vmul.f32 %v1555, %v1737
      %v1776 = vmul.f32 %v1558, %v1737
      %v1777 = vmul.f32 %v1563, %v1737
      %v1778 = vmul.f32 %v1566, %v1737
      %v1779 = vmul.f32 %v1571, %v1737
      %v1780 = vmul.f32 %v1574, %v1737
      %v1781 = vmul.f32 %v1579, %v1737
      %v1782 = vmul.f32 %v1582, %v1737
      %v1783 = vmul.f32 %v1587, %v1737
      %v1784 = vmul.f32 %v1590, %v1737
      %v1785 = vmul.f32 %v1595, %v1737
      %v1786 = vmul.f32 %v1598, %v1737
      %v1787 = vmul.f32 %v1603, %v1737
      %v1788 = vmul.f32 %v1606, %v1737
      %v1789 = vmul.f32 %v1611, %v1737
      %v1790 = vmul.f32 %v1614, %v1737
      %v1791 = vmul.f32 %v1619, %v1737
      %v1792 = vmul.f32 %v1622, %v1737
      %v1793 = vmul.f32 %v1627, %v1737
      %v1794 = vmul.f32 %v1630, %v1737
      %v1795 = vmul.f32 %v1635, %v1737
      %v1796 = vmul.f32 %v1638, %v1737
      %v1797 = vmul.f32 %v1643, %v1737
      %v1798 = vmul.f32 %v1646, %v1737
      %v1799 = vmul.f32 %v1651, %v1737
      %v1800 = vmul.f32 %v1654, %v1737
      %v1801 = vadd.f32 %v1670, %v1738
      %v1802 = vadd.f32 %v1671, %v1738
      %v1803 = vadd.f32 %v1672, %v1739
      %v1804 = vadd.f32 %v1673, %v1740
      %v1805 = vadd.f32 %v1674, %v1741
      %v1806 = vadd.f32 %v1675, %v1742
      %v1807 = vadd.f32 %v1676, %v1743
      %v1808 = vadd.f32 %v1677, %v1744
      %v1809 = vadd.f32 %v1678, %v1745
      %v1810 = vadd.f32 %v1679, %v1746
      %v1811 = vadd.f32 %v1680, %v1747
      %v1812 = vadd.f32 %v1681, %v1748
      %v1813 = vadd.f32 %v1682, %v1749
      %v1814 = vadd.f32 %v1683, %v1750
      %v1815 = vadd.f32 %v1684, %v1751
      %v1816 = vadd.f32 %v1685, %v1752
      %v1817 = vadd.f32 %v1686, %v1753
      %v1818 = vadd.f32 %v1687, %v1754
      %v1819 = vadd.f32 %v1688, %v1755
      %v1820 = vadd.f32 %v1689, %v1756
      %v1821 = vadd.f32 %v1690, %v1757
      %v1822 = vadd.f32 %v1691, %v1758
      %v1823 = vadd.f32 %v1692, %v1759
      %v1824 = vadd.f32 %v1693, %v1760
      %v1825 = vadd.f32 %v1694, %v1761
      %v1826 = vadd.f32 %v1695, %v1762
      %v1827 = vadd.f32 %v1696, %v1763
      %v1828 = vadd.f32 %v1697, %v1764
      %v1829 = vadd.f32 %v1698, %v1765
      %v1830 = vadd.f32 %v1699, %v1766
      %v1831 = vadd.f32 %v1700, %v1767
      %v1832 = vadd.f32 %v1701, %v1768
      %v1833 = vadd.f32 %v1702, %v1769
      %v1834 = vadd.f32 %v1703, %v1770
      %v1835 = vadd.f32 %v1704, %v1771
      %v1836 = vadd.f32 %v1705, %v1772
      %v1837 = vadd.f32 %v1706, %v1773
      %v1838 = vadd.f32 %v1707, %v1774
      %v1839 = vadd.f32 %v1708, %v1775
      %v1840 = vadd.f32 %v1709, %v1776
      %v1841 = vadd.f32 %v1710, %v1777
      %v1842 = vadd.f32 %v1711, %v1778
      %v1843 = vadd.f32 %v1712, %v1779
      %v1844 = vadd.f32 %v1713, %v1780
      %v1845 = vadd.f32 %v1714, %v1781
      %v1846 = vadd.f32 %v1715, %v1782
      %v1847 = vadd.f32 %v1716, %v1783
      %v1848 = vadd.f32 %v1717, %v1784
      %v1849 = vadd.f32 %v1718, %v1785
      %v1850 = vadd.f32 %v1719, %v1786
      %v1851 = vadd.f32 %v1720, %v1787
      %v1852 = vadd.f32 %v1721, %v1788
      %v1853 = vadd.f32 %v1722, %v1789
      %v1854 = vadd.f32 %v1723, %v1790
      %v1855 = vadd.f32 %v1724, %v1791
      %v1856 = vadd.f32 %v1725, %v1792
      %v1857 = vadd.f32 %v1726, %v1793
      %v1858 = vadd.f32 %v1727, %v1794
      %v1859 = vadd.f32 %v1728, %v1795
      %v1860 = vadd.f32 %v1729, %v1796
      %v1861 = vadd.f32 %v1730, %v1797
      %v1862 = vadd.f32 %v1731, %v1798
      %v1863 = vadd.f32 %v1732, %v1799
      %v1864 = vadd.f32 %v1733, %v1800
      %v1865 = vlaneseq
      %v1866 = vshrl.u32 %v1865, 7
      %v1867 = vsub.s32 1, %v1866
      %v1868 = vrot.slane %v1665, %v1867
      %v1869 = vmul.f32 %v1868, 0.0
      %v1870 = vmul.f32 %v1411, %v1868
      %v1871 = vmul.f32 %v1414, %v1868
      %v1872 = vmul.f32 %v1419, %v1868
      %v1873 = vmul.f32 %v1422, %v1868
      %v1874 = vmul.f32 %v1427, %v1868
      %v1875 = vmul.f32 %v1430, %v1868
      %v1876 = vmul.f32 %v1435, %v1868
      %v1877 = vmul.f32 %v1438, %v1868
      %v1878 = vmul.f32 %v1443, %v1868
      %v1879 = vmul.f32 %v1446, %v1868
      %v1880 = vmul.f32 %v1451, %v1868
      %v1881 = vmul.f32 %v1454, %v1868
      %v1882 = vmul.f32 %v1459, %v1868
      %v1883 = vmul.f32 %v1462, %v1868
      %v1884 = vmul.f32 %v1467, %v1868
      %v1885 = vmul.f32 %v1470, %v1868
      %v1886 = vmul.f32 %v1475, %v1868
      %v1887 = vmul.f32 %v1478, %v1868
      %v1888 = vmul.f32 %v1483, %v1868
      %v1889 = vmul.f32 %v1486, %v1868
      %v1890 = vmul.f32 %v1491, %v1868
      %v1891 = vmul.f32 %v1494, %v1868
      %v1892 = vmul.f32 %v1499, %v1868
      %v1893 = vmul.f32 %v1502, %v1868
      %v1894 = vmul.f32 %v1507, %v1868
      %v1895 = vmul.f32 %v1510, %v1868
      %v1896 = vmul.f32 %v1515, %v1868
      %v1897 = vmul.f32 %v1518, %v1868
      %v1898 = vmul.f32 %v1523, %v1868
      %v1899 = vmul.f32 %v1526, %v1868
      %v1900 = vmul.f32 %v1531, %v1868
      %v1901 = vmul.f32 %v1534, %v1868
      %v1902 = vmul.f32 %v1539, %v1868
      %v1903 = vmul.f32 %v1542, %v1868
      %v1904 = vmul.f32 %v1547, %v1868
      %v1905 = vmul.f32 %v1550, %v1868
      %v1906 = vmul.f32 %v1555, %v1868
      %v1907 = vmul.f32 %v1558, %v1868
      %v1908 = vmul.f32 %v1563, %v1868
      %v1909 = vmul.f32 %v1566, %v1868
      %v1910 = vmul.f32 %v1571, %v1868
      %v1911 = vmul.f32 %v1574, %v1868
      %v1912 = vmul.f32 %v1579, %v1868
      %v1913 = vmul.f32 %v1582, %v1868
      %v1914 = vmul.f32 %v1587, %v1868
      %v1915 = vmul.f32 %v1590, %v1868
      %v1916 = vmul.f32 %v1595, %v1868
      %v1917 = vmul.f32 %v1598, %v1868
      %v1918 = vmul.f32 %v1603, %v1868
      %v1919 = vmul.f32 %v1606, %v1868
      %v1920 = vmul.f32 %v1611, %v1868
      %v1921 = vmul.f32 %v1614, %v1868
      %v1922 = vmul.f32 %v1619, %v1868
      %v1923 = vmul.f32 %v1622, %v1868
      %v1924 = vmul.f32 %v1627, %v1868
      %v1925 = vmul.f32 %v1630, %v1868
      %v1926 = vmul.f32 %v1635, %v1868
      %v1927 = vmul.f32 %v1638, %v1868
      %v1928 = vmul.f32 %v1643, %v1868
      %v1929 = vmul.f32 %v1646, %v1868
      %v1930 = vmul.f32 %v1651, %v1868
      %v1931 = vmul.f32 %v1654, %v1868
      %v1932 = vmul.f32 %v1659, %v1868
      %v1933 = vadd.f32 %v1801, %v1869
      %v1934 = vadd.f32 %v1802, %v1870
      %v1935 = vadd.f32 %v1803, %v1871
      %v1936 = vadd.f32 %v1804, %v1872
      %v1937 = vadd.f32 %v1805, %v1873
      %v1938 = vadd.f32 %v1806, %v1874
      %v1939 = vadd.f32 %v1807, %v1875
      %v1940 = vadd.f32 %v1808, %v1876
      %v1941 = vadd.f32 %v1809, %v1877
      %v1942 = vadd.f32 %v1810, %v1878
      %v1943 = vadd.f32 %v1811, %v1879
      %v1944 = vadd.f32 %v1812, %v1880
      %v1945 = vadd.f32 %v1813, %v1881
      %v1946 = vadd.f32 %v1814, %v1882
      %v1947 = vadd.f32 %v1815, %v1883
      %v1948 = vadd.f32 %v1816, %v1884
      %v1949 = vadd.f32 %v1817, %v1885
      %v1950 = vadd.f32 %v1818, %v1886
      %v1951 = vadd.f32 %v1819, %v1887
      %v1952 = vadd.f32 %v1820, %v1888
      %v1953 = vadd.f32 %v1821, %v1889
      %v1954 = vadd.f32 %v1822, %v1890
      %v1955 = vadd.f32 %v1823, %v1891
      %v1956 = vadd.f32 %v1824, %v1892
      %v1957 = vadd.f32 %v1825, %v1893
      %v1958 = vadd.f32 %v1826, %v1894
      %v1959 = vadd.f32 %v1827, %v1895
      %v1960 = vadd.f32 %v1828, %v1896
      %v1961 = vadd.f32 %v1829, %v1897
      %v1962 = vadd.f32 %v1830, %v1898
      %v1963 = vadd.f32 %v1831, %v1899
      %v1964 = vadd.f32 %v1832, %v1900
      %v1965 = vadd.f32 %v1833, %v1901
      %v1966 = vadd.f32 %v1834, %v1902
      %v1967 = vadd.f32 %v1835, %v1903
      %v1968 = vadd.f32 %v1836, %v1904
      %v1969 = vadd.f32 %v1837, %v1905
      %v1970 = vadd.f32 %v1838, %v1906
      %v1971 = vadd.f32 %v1839, %v1907
      %v1972 = vadd.f32 %v1840, %v1908
      %v1973 = vadd.f32 %v1841, %v1909
      %v1974 = vadd.f32 %v1842, %v1910
      %v1975 = vadd.f32 %v1843, %v1911
      %v1976 = vadd.f32 %v1844, %v1912
      %v1977 = vadd.f32 %v1845, %v1913
      %v1978 = vadd.f32 %v1846, %v1914
      %v1979 = vadd.f32 %v1847, %v1915
      %v1980 = vadd.f32 %v1848, %v1916
      %v1981 = vadd.f32 %v1849, %v1917
      %v1982 = vadd.f32 %v1850, %v1918
      %v1983 = vadd.f32 %v1851, %v1919
      %v1984 = vadd.f32 %v1852, %v1920
      %v1985 = vadd.f32 %v1853, %v1921
      %v1986 = vadd.f32 %v1854, %v1922
      %v1987 = vadd.f32 %v1855, %v1923
      %v1988 = vadd.f32 %v1856, %v1924
      %v1989 = vadd.f32 %v1857, %v1925
      %v1990 = vadd.f32 %v1858, %v1926
      %v1991 = vadd.f32 %v1859, %v1927
      %v1992 = vadd.f32 %v1860, %v1928
      %v1993 = vadd.f32 %v1861, %v1929
      %v1994 = vadd.f32 %v1862, %v1930
      %v1995 = vadd.f32 %v1863, %v1931
      %v1996 = vadd.f32 %v1864, %v1932
      %v1997 = vld [vmem:[%s3] sm:$0x1]
      %v1999 = vlaneseq
      %v2000 = vshrl.u32 %v1999, 7
      %v2001 = vsub.s32 0, %v2000
      %v2002 = vrot.slane %v1997, %v2001
      %v2004 = vadd.f32 %v1933, %v2002
      %v2005 = vadd.f32 %v1934, %v2002
      %v2006 = vadd.f32 %v1935, %v2002
      %v2007 = vadd.f32 %v1936, %v2002
      %v2008 = vadd.f32 %v1937, %v2002
      %v2009 = vadd.f32 %v1938, %v2002
      %v2010 = vadd.f32 %v1939, %v2002
      %v2011 = vadd.f32 %v1940, %v2002
      %v2012 = vadd.f32 %v1941, %v2002
      %v2013 = vadd.f32 %v1942, %v2002
      %v2014 = vadd.f32 %v1943, %v2002
      %v2015 = vadd.f32 %v1944, %v2002
      %v2016 = vadd.f32 %v1945, %v2002
      %v2017 = vadd.f32 %v1946, %v2002
      %v2018 = vadd.f32 %v1947, %v2002
      %v2019 = vadd.f32 %v1948, %v2002
      %v2020 = vadd.f32 %v1949, %v2002
      %v2021 = vadd.f32 %v1950, %v2002
      %v2022 = vadd.f32 %v1951, %v2002
      %v2023 = vadd.f32 %v1952, %v2002
      %v2024 = vadd.f32 %v1953, %v2002
      %v2025 = vadd.f32 %v1954, %v2002
      %v2026 = vadd.f32 %v1955, %v2002
      %v2027 = vadd.f32 %v1956, %v2002
      %v2028 = vadd.f32 %v1957, %v2002
      %v2029 = vadd.f32 %v1958, %v2002
      %v2030 = vadd.f32 %v1959, %v2002
      %v2031 = vadd.f32 %v1960, %v2002
      %v2032 = vadd.f32 %v1961, %v2002
      %v2033 = vadd.f32 %v1962, %v2002
      %v2034 = vadd.f32 %v1963, %v2002
      %v2035 = vadd.f32 %v1964, %v2002
      %v2036 = vadd.f32 %v1965, %v2002
      %v2037 = vadd.f32 %v1966, %v2002
      %v2038 = vadd.f32 %v1967, %v2002
      %v2039 = vadd.f32 %v1968, %v2002
      %v2040 = vadd.f32 %v1969, %v2002
      %v2041 = vadd.f32 %v1970, %v2002
      %v2042 = vadd.f32 %v1971, %v2002
      %v2043 = vadd.f32 %v1972, %v2002
      %v2044 = vadd.f32 %v1973, %v2002
      %v2045 = vadd.f32 %v1974, %v2002
      %v2046 = vadd.f32 %v1975, %v2002
      %v2047 = vadd.f32 %v1976, %v2002
      %v2048 = vadd.f32 %v1977, %v2002
      %v2049 = vadd.f32 %v1978, %v2002
      %v2050 = vadd.f32 %v1979, %v2002
      %v2051 = vadd.f32 %v1980, %v2002
      %v2052 = vadd.f32 %v1981, %v2002
      %v2053 = vadd.f32 %v1982, %v2002
      %v2054 = vadd.f32 %v1983, %v2002
      %v2055 = vadd.f32 %v1984, %v2002
      %v2056 = vadd.f32 %v1985, %v2002
      %v2057 = vadd.f32 %v1986, %v2002
      %v2058 = vadd.f32 %v1987, %v2002
      %v2059 = vadd.f32 %v1988, %v2002
      %v2060 = vadd.f32 %v1989, %v2002
      %v2061 = vadd.f32 %v1990, %v2002
      %v2062 = vadd.f32 %v1991, %v2002
      %v2063 = vadd.f32 %v1992, %v2002
      %v2064 = vadd.f32 %v1993, %v2002
      %v2065 = vadd.f32 %v1994, %v2002
      %v2066 = vadd.f32 %v1995, %v2002
      %v2067 = vadd.f32 %v1996, %v2002
      %v2068 = vxor.u32 %v2004, 2147483648
      %v2069 = vxor.u32 %v2005, 2147483648
      %v2070 = vxor.u32 %v2006, 2147483648
      %v2071 = vxor.u32 %v2007, 2147483648
      %v2072 = vxor.u32 %v2008, 2147483648
      %v2073 = vxor.u32 %v2009, 2147483648
      %v2074 = vxor.u32 %v2010, 2147483648
      %v2075 = vxor.u32 %v2011, 2147483648
      %v2076 = vxor.u32 %v2012, 2147483648
      %v2077 = vxor.u32 %v2013, 2147483648
      %v2078 = vxor.u32 %v2014, 2147483648
      %v2079 = vxor.u32 %v2015, 2147483648
      %v2080 = vxor.u32 %v2016, 2147483648
      %v2081 = vxor.u32 %v2017, 2147483648
      %v2082 = vxor.u32 %v2018, 2147483648
      %v2083 = vxor.u32 %v2019, 2147483648
      %v2084 = vxor.u32 %v2020, 2147483648
      %v2085 = vxor.u32 %v2021, 2147483648
      %v2086 = vxor.u32 %v2022, 2147483648
      %v2087 = vxor.u32 %v2023, 2147483648
      %v2088 = vxor.u32 %v2024, 2147483648
      %v2089 = vxor.u32 %v2025, 2147483648
      %v2090 = vxor.u32 %v2026, 2147483648
      %v2091 = vxor.u32 %v2027, 2147483648
      %v2092 = vxor.u32 %v2028, 2147483648
      %v2093 = vxor.u32 %v2029, 2147483648
      %v2094 = vxor.u32 %v2030, 2147483648
      %v2095 = vxor.u32 %v2031, 2147483648
      %v2096 = vxor.u32 %v2032, 2147483648
      %v2097 = vxor.u32 %v2033, 2147483648
      %v2098 = vxor.u32 %v2034, 2147483648
      %v2099 = vxor.u32 %v2035, 2147483648
      %v2100 = vxor.u32 %v2036, 2147483648
      %v2101 = vxor.u32 %v2037, 2147483648
      %v2102 = vxor.u32 %v2038, 2147483648
      %v2103 = vxor.u32 %v2039, 2147483648
      %v2104 = vxor.u32 %v2040, 2147483648
      %v2105 = vxor.u32 %v2041, 2147483648
      %v2106 = vxor.u32 %v2042, 2147483648
      %v2107 = vxor.u32 %v2043, 2147483648
      %v2108 = vxor.u32 %v2044, 2147483648
      %v2109 = vxor.u32 %v2045, 2147483648
      %v2110 = vxor.u32 %v2046, 2147483648
      %v2111 = vxor.u32 %v2047, 2147483648
      %v2112 = vxor.u32 %v2048, 2147483648
      %v2113 = vxor.u32 %v2049, 2147483648
      %v2114 = vxor.u32 %v2050, 2147483648
      %v2115 = vxor.u32 %v2051, 2147483648
      %v2116 = vxor.u32 %v2052, 2147483648
      %v2117 = vxor.u32 %v2053, 2147483648
      %v2118 = vxor.u32 %v2054, 2147483648
      %v2119 = vxor.u32 %v2055, 2147483648
      %v2120 = vxor.u32 %v2056, 2147483648
      %v2121 = vxor.u32 %v2057, 2147483648
      %v2122 = vxor.u32 %v2058, 2147483648
      %v2123 = vxor.u32 %v2059, 2147483648
      %v2124 = vxor.u32 %v2060, 2147483648
      %v2125 = vxor.u32 %v2061, 2147483648
      %v2126 = vxor.u32 %v2062, 2147483648
      %v2127 = vxor.u32 %v2063, 2147483648
      %v2128 = vxor.u32 %v2064, 2147483648
      %v2129 = vxor.u32 %v2065, 2147483648
      %v2130 = vxor.u32 %v2066, 2147483648
      %v2131 = vxor.u32 %v2067, 2147483648
      %v2132 = vmul.f32 %v2068, 1.442695
      %v2133 = vpow.pop %v2132
      %v2134 = vmul.f32 %v2069, 1.442695
      %v2135 = vpow.pop %v2134
      %v2136 = vmul.f32 %v2070, 1.442695
      %v2137 = vpow.pop %v2136
      %v2138 = vmul.f32 %v2071, 1.442695
      %v2139 = vpow.pop %v2138
      %v2140 = vmul.f32 %v2072, 1.442695
      %v2141 = vpow.pop %v2140
      %v2142 = vmul.f32 %v2073, 1.442695
      %v2143 = vpow.pop %v2142
      %v2144 = vmul.f32 %v2074, 1.442695
      %v2145 = vpow.pop %v2144
      %v2146 = vmul.f32 %v2075, 1.442695
      %v2147 = vpow.pop %v2146
      %v2148 = vmul.f32 %v2076, 1.442695
      %v2149 = vpow.pop %v2148
      %v2150 = vmul.f32 %v2077, 1.442695
      %v2151 = vpow.pop %v2150
      %v2152 = vmul.f32 %v2078, 1.442695
      %v2153 = vpow.pop %v2152
      %v2154 = vmul.f32 %v2079, 1.442695
      %v2155 = vpow.pop %v2154
      %v2156 = vmul.f32 %v2080, 1.442695
      %v2157 = vpow.pop %v2156
      %v2158 = vmul.f32 %v2081, 1.442695
      %v2159 = vpow.pop %v2158
      %v2160 = vmul.f32 %v2082, 1.442695
      %v2161 = vpow.pop %v2160
      %v2162 = vmul.f32 %v2083, 1.442695
      %v2163 = vpow.pop %v2162
      %v2164 = vmul.f32 %v2084, 1.442695
      %v2165 = vpow.pop %v2164
      %v2166 = vmul.f32 %v2085, 1.442695
      %v2167 = vpow.pop %v2166
      %v2168 = vmul.f32 %v2086, 1.442695
      %v2169 = vpow.pop %v2168
      %v2170 = vmul.f32 %v2087, 1.442695
      %v2171 = vpow.pop %v2170
      %v2172 = vmul.f32 %v2088, 1.442695
      %v2173 = vpow.pop %v2172
      %v2174 = vmul.f32 %v2089, 1.442695
      %v2175 = vpow.pop %v2174
      %v2176 = vmul.f32 %v2090, 1.442695
      %v2177 = vpow.pop %v2176
      %v2178 = vmul.f32 %v2091, 1.442695
      %v2179 = vpow.pop %v2178
      %v2180 = vmul.f32 %v2092, 1.442695
      %v2181 = vpow.pop %v2180
      %v2182 = vmul.f32 %v2093, 1.442695
      %v2183 = vpow.pop %v2182
      %v2184 = vmul.f32 %v2094, 1.442695
      %v2185 = vpow.pop %v2184
      %v2186 = vmul.f32 %v2095, 1.442695
      %v2187 = vpow.pop %v2186
      %v2188 = vmul.f32 %v2096, 1.442695
      %v2189 = vpow.pop %v2188
      %v2190 = vmul.f32 %v2097, 1.442695
      %v2191 = vpow.pop %v2190
      %v2192 = vmul.f32 %v2098, 1.442695
      %v2193 = vpow.pop %v2192
      %v2194 = vmul.f32 %v2099, 1.442695
      %v2195 = vpow.pop %v2194
      %v2196 = vmul.f32 %v2100, 1.442695
      %v2197 = vpow.pop %v2196
      %v2198 = vmul.f32 %v2101, 1.442695
      %v2199 = vpow.pop %v2198
      %v2200 = vmul.f32 %v2102, 1.442695
      %v2201 = vpow.pop %v2200
      %v2202 = vmul.f32 %v2103, 1.442695
      %v2203 = vpow.pop %v2202
      %v2204 = vmul.f32 %v2104, 1.442695
      %v2205 = vpow.pop %v2204
      %v2206 = vmul.f32 %v2105, 1.442695
      %v2207 = vpow.pop %v2206
      %v2208 = vmul.f32 %v2106, 1.442695
      %v2209 = vpow.pop %v2208
      %v2210 = vmul.f32 %v2107, 1.442695
      %v2211 = vpow.pop %v2210
      %v2212 = vmul.f32 %v2108, 1.442695
      %v2213 = vpow.pop %v2212
      %v2214 = vmul.f32 %v2109, 1.442695
      %v2215 = vpow.pop %v2214
      %v2216 = vmul.f32 %v2110, 1.442695
      %v2217 = vpow.pop %v2216
      %v2218 = vmul.f32 %v2111, 1.442695
      %v2219 = vpow.pop %v2218
      %v2220 = vmul.f32 %v2112, 1.442695
      %v2221 = vpow.pop %v2220
      %v2222 = vmul.f32 %v2113, 1.442695
      %v2223 = vpow.pop %v2222
      %v2224 = vmul.f32 %v2114, 1.442695
      %v2225 = vpow.pop %v2224
      %v2226 = vmul.f32 %v2115, 1.442695
      %v2227 = vpow.pop %v2226
      %v2228 = vmul.f32 %v2116, 1.442695
      %v2229 = vpow.pop %v2228
      %v2230 = vmul.f32 %v2117, 1.442695
      %v2231 = vpow.pop %v2230
      %v2232 = vmul.f32 %v2118, 1.442695
      %v2233 = vpow.pop %v2232
      %v2234 = vmul.f32 %v2119, 1.442695
      %v2235 = vpow.pop %v2234
      %v2236 = vmul.f32 %v2120, 1.442695
      %v2237 = vpow.pop %v2236
      %v2238 = vmul.f32 %v2121, 1.442695
      %v2239 = vpow.pop %v2238
      %v2240 = vmul.f32 %v2122, 1.442695
      %v2241 = vpow.pop %v2240
      %v2242 = vmul.f32 %v2123, 1.442695
      %v2243 = vpow.pop %v2242
      %v2244 = vmul.f32 %v2124, 1.442695
      %v2245 = vpow.pop %v2244
      %v2246 = vmul.f32 %v2125, 1.442695
      %v2247 = vpow.pop %v2246
      %v2248 = vmul.f32 %v2126, 1.442695
      %v2249 = vpow.pop %v2248
      %v2250 = vmul.f32 %v2127, 1.442695
      %v2251 = vpow.pop %v2250
      %v2252 = vmul.f32 %v2128, 1.442695
      %v2253 = vpow.pop %v2252
      %v2254 = vmul.f32 %v2129, 1.442695
      %v2255 = vpow.pop %v2254
      %v2256 = vmul.f32 %v2130, 1.442695
      %v2257 = vpow.pop %v2256
      %v2258 = vmul.f32 %v2131, 1.442695
      %v2259 = vpow.pop %v2258
      %v2260 = vadd.f32 %v2133, 1.0
      %v2261 = vadd.f32 %v2135, 1.0
      %v2262 = vadd.f32 %v2137, 1.0
      %v2263 = vadd.f32 %v2139, 1.0
      %v2264 = vadd.f32 %v2141, 1.0
      %v2265 = vadd.f32 %v2143, 1.0
      %v2266 = vadd.f32 %v2145, 1.0
      %v2267 = vadd.f32 %v2147, 1.0
      %v2268 = vadd.f32 %v2149, 1.0
      %v2269 = vadd.f32 %v2151, 1.0
      %v2270 = vadd.f32 %v2153, 1.0
      %v2271 = vadd.f32 %v2155, 1.0
      %v2272 = vadd.f32 %v2157, 1.0
      %v2273 = vadd.f32 %v2159, 1.0
      %v2274 = vadd.f32 %v2161, 1.0
      %v2275 = vadd.f32 %v2163, 1.0
      %v2276 = vadd.f32 %v2165, 1.0
      %v2277 = vadd.f32 %v2167, 1.0
      %v2278 = vadd.f32 %v2169, 1.0
      %v2279 = vadd.f32 %v2171, 1.0
      %v2280 = vadd.f32 %v2173, 1.0
      %v2281 = vadd.f32 %v2175, 1.0
      %v2282 = vadd.f32 %v2177, 1.0
      %v2283 = vadd.f32 %v2179, 1.0
      %v2284 = vadd.f32 %v2181, 1.0
      %v2285 = vadd.f32 %v2183, 1.0
      %v2286 = vadd.f32 %v2185, 1.0
      %v2287 = vadd.f32 %v2187, 1.0
      %v2288 = vadd.f32 %v2189, 1.0
      %v2289 = vadd.f32 %v2191, 1.0
      %v2290 = vadd.f32 %v2193, 1.0
      %v2291 = vadd.f32 %v2195, 1.0
      %v2292 = vadd.f32 %v2197, 1.0
      %v2293 = vadd.f32 %v2199, 1.0
      %v2294 = vadd.f32 %v2201, 1.0
      %v2295 = vadd.f32 %v2203, 1.0
      %v2296 = vadd.f32 %v2205, 1.0
      %v2297 = vadd.f32 %v2207, 1.0
      %v2298 = vadd.f32 %v2209, 1.0
      %v2299 = vadd.f32 %v2211, 1.0
      %v2300 = vadd.f32 %v2213, 1.0
      %v2301 = vadd.f32 %v2215, 1.0
      %v2302 = vadd.f32 %v2217, 1.0
      %v2303 = vadd.f32 %v2219, 1.0
      %v2304 = vadd.f32 %v2221, 1.0
      %v2305 = vadd.f32 %v2223, 1.0
      %v2306 = vadd.f32 %v2225, 1.0
      %v2307 = vadd.f32 %v2227, 1.0
      %v2308 = vadd.f32 %v2229, 1.0
      %v2309 = vadd.f32 %v2231, 1.0
      %v2310 = vadd.f32 %v2233, 1.0
      %v2311 = vadd.f32 %v2235, 1.0
      %v2312 = vadd.f32 %v2237, 1.0
      %v2313 = vadd.f32 %v2239, 1.0
      %v2314 = vadd.f32 %v2241, 1.0
      %v2315 = vadd.f32 %v2243, 1.0
      %v2316 = vadd.f32 %v2245, 1.0
      %v2317 = vadd.f32 %v2247, 1.0
      %v2318 = vadd.f32 %v2249, 1.0
      %v2319 = vadd.f32 %v2251, 1.0
      %v2320 = vadd.f32 %v2253, 1.0
      %v2321 = vadd.f32 %v2255, 1.0
      %v2322 = vadd.f32 %v2257, 1.0
      %v2323 = vadd.f32 %v2259, 1.0
      %v2324 = vrcp.pop %v2260
      %v2325 = vmul.f32 1.0, %v2324
      %v2326 = vrcp.pop %v2261
      %v2327 = vmul.f32 1.0, %v2326
      %v2328 = vrcp.pop %v2262
      %v2329 = vmul.f32 1.0, %v2328
      %v2330 = vrcp.pop %v2263
      %v2331 = vmul.f32 1.0, %v2330
      %v2332 = vrcp.pop %v2264
      %v2333 = vmul.f32 1.0, %v2332
      %v2334 = vrcp.pop %v2265
      %v2335 = vmul.f32 1.0, %v2334
      %v2336 = vrcp.pop %v2266
      %v2337 = vmul.f32 1.0, %v2336
      %v2338 = vrcp.pop %v2267
      %v2339 = vmul.f32 1.0, %v2338
      %v2340 = vrcp.pop %v2268
      %v2341 = vmul.f32 1.0, %v2340
      %v2342 = vrcp.pop %v2269
      %v2343 = vmul.f32 1.0, %v2342
      %v2344 = vrcp.pop %v2270
      %v2345 = vmul.f32 1.0, %v2344
      %v2346 = vrcp.pop %v2271
      %v2347 = vmul.f32 1.0, %v2346
      %v2348 = vrcp.pop %v2272
      %v2349 = vmul.f32 1.0, %v2348
      %v2350 = vrcp.pop %v2273
      %v2351 = vmul.f32 1.0, %v2350
      %v2352 = vrcp.pop %v2274
      %v2353 = vmul.f32 1.0, %v2352
      %v2354 = vrcp.pop %v2275
      %v2355 = vmul.f32 1.0, %v2354
      %v2356 = vrcp.pop %v2276
      %v2357 = vmul.f32 1.0, %v2356
      %v2358 = vrcp.pop %v2277
      %v2359 = vmul.f32 1.0, %v2358
      %v2360 = vrcp.pop %v2278
      %v2361 = vmul.f32 1.0, %v2360
      %v2362 = vrcp.pop %v2279
      %v2363 = vmul.f32 1.0, %v2362
      %v2364 = vrcp.pop %v2280
      %v2365 = vmul.f32 1.0, %v2364
      %v2366 = vrcp.pop %v2281
      %v2367 = vmul.f32 1.0, %v2366
      %v2368 = vrcp.pop %v2282
      %v2369 = vmul.f32 1.0, %v2368
      %v2370 = vrcp.pop %v2283
      %v2371 = vmul.f32 1.0, %v2370
      %v2372 = vrcp.pop %v2284
      %v2373 = vmul.f32 1.0, %v2372
      %v2374 = vrcp.pop %v2285
      %v2375 = vmul.f32 1.0, %v2374
      %v2376 = vrcp.pop %v2286
      %v2377 = vmul.f32 1.0, %v2376
      %v2378 = vrcp.pop %v2287
      %v2379 = vmul.f32 1.0, %v2378
      %v2380 = vrcp.pop %v2288
      %v2381 = vmul.f32 1.0, %v2380
      %v2382 = vrcp.pop %v2289
      %v2383 = vmul.f32 1.0, %v2382
      %v2384 = vrcp.pop %v2290
      %v2385 = vmul.f32 1.0, %v2384
      %v2386 = vrcp.pop %v2291
      %v2387 = vmul.f32 1.0, %v2386
      %v2388 = vrcp.pop %v2292
      %v2389 = vmul.f32 1.0, %v2388
      %v2390 = vrcp.pop %v2293
      %v2391 = vmul.f32 1.0, %v2390
      %v2392 = vrcp.pop %v2294
      %v2393 = vmul.f32 1.0, %v2392
      %v2394 = vrcp.pop %v2295
      %v2395 = vmul.f32 1.0, %v2394
      %v2396 = vrcp.pop %v2296
      %v2397 = vmul.f32 1.0, %v2396
      %v2398 = vrcp.pop %v2297
      %v2399 = vmul.f32 1.0, %v2398
      %v2400 = vrcp.pop %v2298
      %v2401 = vmul.f32 1.0, %v2400
      %v2402 = vrcp.pop %v2299
      %v2403 = vmul.f32 1.0, %v2402
      %v2404 = vrcp.pop %v2300
      %v2405 = vmul.f32 1.0, %v2404
      %v2406 = vrcp.pop %v2301
      %v2407 = vmul.f32 1.0, %v2406
      %v2408 = vrcp.pop %v2302
      %v2409 = vmul.f32 1.0, %v2408
      %v2410 = vrcp.pop %v2303
      %v2411 = vmul.f32 1.0, %v2410
      %v2412 = vrcp.pop %v2304
      %v2413 = vmul.f32 1.0, %v2412
      %v2414 = vrcp.pop %v2305
      %v2415 = vmul.f32 1.0, %v2414
      %v2416 = vrcp.pop %v2306
      %v2417 = vmul.f32 1.0, %v2416
      %v2418 = vrcp.pop %v2307
      %v2419 = vmul.f32 1.0, %v2418
      %v2420 = vrcp.pop %v2308
      %v2421 = vmul.f32 1.0, %v2420
      %v2422 = vrcp.pop %v2309
      %v2423 = vmul.f32 1.0, %v2422
      %v2424 = vrcp.pop %v2310
      %v2425 = vmul.f32 1.0, %v2424
      %v2426 = vrcp.pop %v2311
      %v2427 = vmul.f32 1.0, %v2426
      %v2428 = vrcp.pop %v2312
      %v2429 = vmul.f32 1.0, %v2428
      %v2430 = vrcp.pop %v2313
      %v2431 = vmul.f32 1.0, %v2430
      %v2432 = vrcp.pop %v2314
      %v2433 = vmul.f32 1.0, %v2432
      %v2434 = vrcp.pop %v2315
      %v2435 = vmul.f32 1.0, %v2434
      %v2436 = vrcp.pop %v2316
      %v2437 = vmul.f32 1.0, %v2436
      %v2438 = vrcp.pop %v2317
      %v2439 = vmul.f32 1.0, %v2438
      %v2440 = vrcp.pop %v2318
      %v2441 = vmul.f32 1.0, %v2440
      %v2442 = vrcp.pop %v2319
      %v2443 = vmul.f32 1.0, %v2442
      %v2444 = vrcp.pop %v2320
      %v2445 = vmul.f32 1.0, %v2444
      %v2446 = vrcp.pop %v2321
      %v2447 = vmul.f32 1.0, %v2446
      %v2448 = vrcp.pop %v2322
      %v2449 = vmul.f32 1.0, %v2448
      %v2450 = vrcp.pop %v2323
      %v2451 = vmul.f32 1.0, %v2450
      %v2452 = vmul.f32 %v2004, %v2325
      %v2453 = vmul.f32 %v2005, %v2327
      %v2454 = vmul.f32 %v2006, %v2329
      %v2455 = vmul.f32 %v2007, %v2331
      %v2456 = vmul.f32 %v2008, %v2333
      %v2457 = vmul.f32 %v2009, %v2335
      %v2458 = vmul.f32 %v2010, %v2337
      %v2459 = vmul.f32 %v2011, %v2339
      %v2460 = vmul.f32 %v2012, %v2341
      %v2461 = vmul.f32 %v2013, %v2343
      %v2462 = vmul.f32 %v2014, %v2345
      %v2463 = vmul.f32 %v2015, %v2347
      %v2464 = vmul.f32 %v2016, %v2349
      %v2465 = vmul.f32 %v2017, %v2351
      %v2466 = vmul.f32 %v2018, %v2353
      %v2467 = vmul.f32 %v2019, %v2355
      %v2468 = vmul.f32 %v2020, %v2357
      %v2469 = vmul.f32 %v2021, %v2359
      %v2470 = vmul.f32 %v2022, %v2361
      %v2471 = vmul.f32 %v2023, %v2363
      %v2472 = vmul.f32 %v2024, %v2365
      %v2473 = vmul.f32 %v2025, %v2367
      %v2474 = vmul.f32 %v2026, %v2369
      %v2475 = vmul.f32 %v2027, %v2371
      %v2476 = vmul.f32 %v2028, %v2373
      %v2477 = vmul.f32 %v2029, %v2375
      %v2478 = vmul.f32 %v2030, %v2377
      %v2479 = vmul.f32 %v2031, %v2379
      %v2480 = vmul.f32 %v2032, %v2381
      %v2481 = vmul.f32 %v2033, %v2383
      %v2482 = vmul.f32 %v2034, %v2385
      %v2483 = vmul.f32 %v2035, %v2387
      %v2484 = vmul.f32 %v2036, %v2389
      %v2485 = vmul.f32 %v2037, %v2391
      %v2486 = vmul.f32 %v2038, %v2393
      %v2487 = vmul.f32 %v2039, %v2395
      %v2488 = vmul.f32 %v2040, %v2397
      %v2489 = vmul.f32 %v2041, %v2399
      %v2490 = vmul.f32 %v2042, %v2401
      %v2491 = vmul.f32 %v2043, %v2403
      %v2492 = vmul.f32 %v2044, %v2405
      %v2493 = vmul.f32 %v2045, %v2407
      %v2494 = vmul.f32 %v2046, %v2409
      %v2495 = vmul.f32 %v2047, %v2411
      %v2496 = vmul.f32 %v2048, %v2413
      %v2497 = vmul.f32 %v2049, %v2415
      %v2498 = vmul.f32 %v2050, %v2417
      %v2499 = vmul.f32 %v2051, %v2419
      %v2500 = vmul.f32 %v2052, %v2421
      %v2501 = vmul.f32 %v2053, %v2423
      %v2502 = vmul.f32 %v2054, %v2425
      %v2503 = vmul.f32 %v2055, %v2427
      %v2504 = vmul.f32 %v2056, %v2429
      %v2505 = vmul.f32 %v2057, %v2431
      %v2506 = vmul.f32 %v2058, %v2433
      %v2507 = vmul.f32 %v2059, %v2435
      %v2508 = vmul.f32 %v2060, %v2437
      %v2509 = vmul.f32 %v2061, %v2439
      %v2510 = vmul.f32 %v2062, %v2441
      %v2511 = vmul.f32 %v2063, %v2443
      %v2512 = vmul.f32 %v2064, %v2445
      %v2513 = vmul.f32 %v2065, %v2447
      %v2514 = vmul.f32 %v2066, %v2449
      %v2515 = vmul.f32 %v2067, %v2451
      %v2516 = vpack.c.bf16 %v2453, %v2452
      %v2517 = vpack.c.bf16 %v2455, %v2454
      %v2518 = vpack.c.bf16 %v2457, %v2456
      %v2519 = vpack.c.bf16 %v2459, %v2458
      %v2520 = vpack.c.bf16 %v2461, %v2460
      %v2521 = vpack.c.bf16 %v2463, %v2462
      %v2522 = vpack.c.bf16 %v2465, %v2464
      %v2523 = vpack.c.bf16 %v2467, %v2466
      %v2524 = vpack.c.bf16 %v2469, %v2468
      %v2525 = vpack.c.bf16 %v2471, %v2470
      %v2526 = vpack.c.bf16 %v2473, %v2472
      %v2527 = vpack.c.bf16 %v2475, %v2474
      %v2528 = vpack.c.bf16 %v2477, %v2476
      %v2529 = vpack.c.bf16 %v2479, %v2478
      %v2530 = vpack.c.bf16 %v2481, %v2480
      %v2531 = vpack.c.bf16 %v2483, %v2482
      %v2532 = vpack.c.bf16 %v2485, %v2484
      %v2533 = vpack.c.bf16 %v2487, %v2486
      %v2534 = vpack.c.bf16 %v2489, %v2488
      %v2535 = vpack.c.bf16 %v2491, %v2490
      %v2536 = vpack.c.bf16 %v2493, %v2492
      %v2537 = vpack.c.bf16 %v2495, %v2494
      %v2538 = vpack.c.bf16 %v2497, %v2496
      %v2539 = vpack.c.bf16 %v2499, %v2498
      %v2540 = vpack.c.bf16 %v2501, %v2500
      %v2541 = vpack.c.bf16 %v2503, %v2502
      %v2542 = vpack.c.bf16 %v2505, %v2504
      %v2543 = vpack.c.bf16 %v2507, %v2506
      %v2544 = vpack.c.bf16 %v2509, %v2508
      %v2545 = vpack.c.bf16 %v2511, %v2510
      %v2546 = vpack.c.bf16 %v2513, %v2512
      %v2547 = vpack.c.bf16 %v2515, %v2514
      %v2548 = vld [vmem:[%s4] sm:$0xf]
      %v2549 = vld [vmem:[%s4 + $0x4] sm:$0xf]
      %v2550 = vld [vmem:[%s4 + $0x8] sm:$0xf]
      %v2551 = vld [vmem:[%s4 + $0xc] sm:$0xf]
      %v2556 = vunpack.c.l.b16 %v2548
      %v2557 = vunpack.c.l.b16 %v2549
      %v2558 = vunpack.c.l.b16 %v2550
      %v2559 = vunpack.c.l.b16 %v2551
      %v2560 = vpack.c.b16 %v2557, %v2556
      %v2561 = vpack.c.b16 %v2559, %v2558
      %v2565 = vsel %vm398, %v2516, 0
      %v2568 = vsel %vm398, %v2517, 0
      %v2571 = vsel %vm398, %v2518, 0
      %v2574 = vsel %vm398, %v2519, 0
      %v2577 = vsel %vm398, %v2520, 0
      %v2580 = vsel %vm398, %v2521, 0
      %v2583 = vsel %vm398, %v2522, 0
      %v2586 = vsel %vm398, %v2523, 0
      %v2589 = vsel %vm398, %v2524, 0
      %v2592 = vsel %vm398, %v2525, 0
      %v2595 = vsel %vm398, %v2526, 0
      %v2598 = vsel %vm398, %v2527, 0
      %v2601 = vsel %vm398, %v2528, 0
      %v2604 = vsel %vm398, %v2529, 0
      %v2607 = vsel %vm398, %v2530, 0
      %v2610 = vsel %vm398, %v2531, 0
      %v2613 = vsel %vm398, %v2532, 0
      %v2616 = vsel %vm398, %v2533, 0
      %v2619 = vsel %vm398, %v2534, 0
      %v2622 = vsel %vm398, %v2535, 0
      %v2625 = vsel %vm398, %v2536, 0
      %v2628 = vsel %vm398, %v2537, 0
      %v2631 = vsel %vm398, %v2538, 0
      %v2634 = vsel %vm398, %v2539, 0
      %v2637 = vsel %vm398, %v2540, 0
      %v2640 = vsel %vm398, %v2541, 0
      %v2643 = vsel %vm398, %v2542, 0
      %v2646 = vsel %vm398, %v2543, 0
      %v2649 = vsel %vm398, %v2544, 0
      %v2652 = vsel %vm398, %v2545, 0
      %v2655 = vsel %vm398, %v2546, 0
      %v2658 = vsel %vm398, %v2547, 0
      %2660 = vmatprep.subr.bf16.mxu0 0
      %2661 = vmatpush1.bf16.msra.mxu0 %v2560
      %2662 = vmatprep.subr.bf16.mxu0 0
      %2663 = vmatpush1.bf16.msra.mxu0 %v2561
      %2664 = vmatprep.subr.bf16.mxu0 0
      %2665 = vmatpush1.bf16.msra.mxu0 0
      %2666 = vmatprep.subr.bf16.mxu0 0
      %2667 = vmatpush1.bf16.msra.mxu0 0
      %2668 = vmatprep.subr.bf16.mxu0 0
      %2669 = vmatpush1.bf16.msra.mxu0 0
      %2670 = vmatprep.subr.bf16.mxu0 0
      %2671 = vmatpush1.bf16.msra.mxu0 0
      %2672 = vmatprep.subr.bf16.mxu0 0
      %2673 = vmatpush1.bf16.msra.mxu0 0
      %2674 = vmatprep.subr.bf16.mxu0 0
      %2675 = vmatpush1.bf16.msra.mxu0 0
      %2676 = vmatprep.subr.bf16.mxu0 0
      %2677 = vmatpush1.bf16.msra.mxu0 0
      %2678 = vmatprep.subr.bf16.mxu0 0
      %2679 = vmatpush1.bf16.msra.mxu0 0
      %2680 = vmatprep.subr.bf16.mxu0 0
      %2681 = vmatpush1.bf16.msra.mxu0 0
      %2682 = vmatprep.subr.bf16.mxu0 0
      %2683 = vmatpush1.bf16.msra.mxu0 0
      %2684 = vmatprep.subr.bf16.mxu0 0
      %2685 = vmatpush1.bf16.msra.mxu0 0
      %2686 = vmatprep.subr.bf16.mxu0 0
      %2687 = vmatpush1.bf16.msra.mxu0 0
      %2688 = vmatprep.subr.bf16.mxu0 0
      %2689 = vmatpush1.bf16.msra.mxu0 0
      %2690 = vmatprep.subr.bf16.mxu0 0
      %2691 = vmatpush1.bf16.msra.mxu0 0
      %2692 = vmatprep.mubr.bf16.mxu0 0
      %2693 = vmatmul.mubr.bf16.gmra.mrb[0].mxu0 %v2565
      %v2694 = vpop.f32.mrb[0].mxu0
      %v2695 = vadd.f32 0.0, %v2694
      %v2696 = vpop.f32.mrb[0].mxu0
      %v2697 = vpop.f32.mrb[0].mxu0
      %v2698 = vadd.f32 0.0, %v2697
      %v2699 = vpop.f32.mrb[0].mxu0
      %2700 = vmatprep.mubr.bf16.mxu0 0
      %2701 = vmatmul.mubr.bf16.gmra.mrb[0].mxu0 %v2568
      %v2702 = vpop.f32.mrb[0].mxu0
      %v2703 = vadd.f32 0.0, %v2702
      %v2704 = vpop.f32.mrb[0].mxu0
      %v2705 = vpop.f32.mrb[0].mxu0
      %v2706 = vadd.f32 0.0, %v2705
      %v2707 = vpop.f32.mrb[0].mxu0
      %2708 = vmatprep.mubr.bf16.mxu0 0
      %2709 = vmatmul.mubr.bf16.gmra.mrb[0].mxu0 %v2571
      %v2710 = vpop.f32.mrb[0].mxu0
      %v2711 = vadd.f32 0.0, %v2710
      %v2712 = vpop.f32.mrb[0].mxu0
      %v2713 = vpop.f32.mrb[0].mxu0
      %v2714 = vadd.f32 0.0, %v2713
      %v2715 = vpop.f32.mrb[0].mxu0
      %2716 = vmatprep.mubr.bf16.mxu0 0
      %2717 = vmatmul.mubr.bf16.gmra.mrb[0].mxu0 %v2574
      %v2718 = vpop.f32.mrb[0].mxu0
      %v2719 = vadd.f32 0.0, %v2718
      %v2720 = vpop.f32.mrb[0].mxu0
      %v2721 = vpop.f32.mrb[0].mxu0
      %v2722 = vadd.f32 0.0, %v2721
      %v2723 = vpop.f32.mrb[0].mxu0
      %2724 = vmatprep.mubr.bf16.mxu0 0
      %2725 = vmatmul.mubr.bf16.gmra.mrb[0].mxu0 %v2577
      %v2726 = vpop.f32.mrb[0].mxu0
      %v2727 = vadd.f32 0.0, %v2726
      %v2728 = vpop.f32.mrb[0].mxu0
      %v2729 = vpop.f32.mrb[0].mxu0
      %v2730 = vadd.f32 0.0, %v2729
      %v2731 = vpop.f32.mrb[0].mxu0
      %2732 = vmatprep.mubr.bf16.mxu0 0
      %2733 = vmatmul.mubr.bf16.gmra.mrb[0].mxu0 %v2580
      %v2734 = vpop.f32.mrb[0].mxu0
      %v2735 = vadd.f32 0.0, %v2734
      %v2736 = vpop.f32.mrb[0].mxu0
      %v2737 = vpop.f32.mrb[0].mxu0
      %v2738 = vadd.f32 0.0, %v2737
      %v2739 = vpop.f32.mrb[0].mxu0
      %2740 = vmatprep.mubr.bf16.mxu0 0
      %2741 = vmatmul.mubr.bf16.gmra.mrb[0].mxu0 %v2583
      %v2742 = vpop.f32.mrb[0].mxu0
      %v2743 = vadd.f32 0.0, %v2742
      %v2744 = vpop.f32.mrb[0].mxu0
      %v2745 = vpop.f32.mrb[0].mxu0
      %v2746 = vadd.f32 0.0, %v2745
      %v2747 = vpop.f32.mrb[0].mxu0
      %2748 = vmatprep.mubr.bf16.mxu0 0
      %2749 = vmatmul.mubr.bf16.gmra.mrb[0].mxu0 %v2586
      %v2750 = vpop.f32.mrb[0].mxu0
      %v2751 = vadd.f32 0.0, %v2750
      %v2752 = vpop.f32.mrb[0].mxu0
      %v2753 = vpop.f32.mrb[0].mxu0
      %v2754 = vadd.f32 0.0, %v2753
      %v2755 = vpop.f32.mrb[0].mxu0
      %2756 = vmatprep.mubr.bf16.mxu0 0
      %2757 = vmatmul.mubr.bf16.gmra.mrb[0].mxu0 %v2589
      %v2758 = vpop.f32.mrb[0].mxu0
      %v2759 = vadd.f32 0.0, %v2758
      %v2760 = vpop.f32.mrb[0].mxu0
      %v2761 = vpop.f32.mrb[0].mxu0
      %v2762 = vadd.f32 0.0, %v2761
      %v2763 = vpop.f32.mrb[0].mxu0
      %2764 = vmatprep.mubr.bf16.mxu0 0
      %2765 = vmatmul.mubr.bf16.gmra.mrb[0].mxu0 %v2592
      %v2766 = vpop.f32.mrb[0].mxu0
      %v2767 = vadd.f32 0.0, %v2766
      %v2768 = vpop.f32.mrb[0].mxu0
      %v2769 = vpop.f32.mrb[0].mxu0
      %v2770 = vadd.f32 0.0, %v2769
      %v2771 = vpop.f32.mrb[0].mxu0
      %2772 = vmatprep.mubr.bf16.mxu0 0
      %2773 = vmatmul.mubr.bf16.gmra.mrb[0].mxu0 %v2595
      %v2774 = vpop.f32.mrb[0].mxu0
      %v2775 = vadd.f32 0.0, %v2774
      %v2776 = vpop.f32.mrb[0].mxu0
      %v2777 = vpop.f32.mrb[0].mxu0
      %v2778 = vadd.f32 0.0, %v2777
      %v2779 = vpop.f32.mrb[0].mxu0
      %2780 = vmatprep.mubr.bf16.mxu0 0
      %2781 = vmatmul.mubr.bf16.gmra.mrb[0].mxu0 %v2598
      %v2782 = vpop.f32.mrb[0].mxu0
      %v2783 = vadd.f32 0.0, %v2782
      %v2784 = vpop.f32.mrb[0].mxu0
      %v2785 = vpop.f32.mrb[0].mxu0
      %v2786 = vadd.f32 0.0, %v2785
      %v2787 = vpop.f32.mrb[0].mxu0
      %2788 = vmatprep.mubr.bf16.mxu0 0
      %2789 = vmatmul.mubr.bf16.gmra.mrb[0].mxu0 %v2601
      %v2790 = vpop.f32.mrb[0].mxu0
      %v2791 = vadd.f32 0.0, %v2790
      %v2792 = vpop.f32.mrb[0].mxu0
      %v2793 = vpop.f32.mrb[0].mxu0
      %v2794 = vadd.f32 0.0, %v2793
      %v2795 = vpop.f32.mrb[0].mxu0
      %2796 = vmatprep.mubr.bf16.mxu0 0
      %2797 = vmatmul.mubr.bf16.gmra.mrb[0].mxu0 %v2604
      %v2798 = vpop.f32.mrb[0].mxu0
      %v2799 = vadd.f32 0.0, %v2798
      %v2800 = vpop.f32.mrb[0].mxu0
      %v2801 = vpop.f32.mrb[0].mxu0
      %v2802 = vadd.f32 0.0, %v2801
      %v2803 = vpop.f32.mrb[0].mxu0
      %2804 = vmatprep.mubr.bf16.mxu0 0
      %2805 = vmatmul.mubr.bf16.gmra.mrb[0].mxu0 %v2607
      %v2806 = vpop.f32.mrb[0].mxu0
      %v2807 = vadd.f32 0.0, %v2806
      %v2808 = vpop.f32.mrb[0].mxu0
      %v2809 = vpop.f32.mrb[0].mxu0
      %v2810 = vadd.f32 0.0, %v2809
      %v2811 = vpop.f32.mrb[0].mxu0
      %2812 = vmatprep.mubr.bf16.mxu0 0
      %2813 = vmatmul.mubr.bf16.gmra.mrb[0].mxu0 %v2610
      %v2814 = vpop.f32.mrb[0].mxu0
      %v2815 = vadd.f32 0.0, %v2814
      %v2816 = vpop.f32.mrb[0].mxu0
      %v2817 = vpop.f32.mrb[0].mxu0
      %v2818 = vadd.f32 0.0, %v2817
      %v2819 = vpop.f32.mrb[0].mxu0
      %2820 = vmatprep.mubr.bf16.mxu0 0
      %2821 = vmatmul.mubr.bf16.gmra.mrb[0].mxu0 %v2613
      %v2822 = vpop.f32.mrb[0].mxu0
      %v2823 = vadd.f32 0.0, %v2822
      %v2824 = vpop.f32.mrb[0].mxu0
      %v2825 = vpop.f32.mrb[0].mxu0
      %v2826 = vadd.f32 0.0, %v2825
      %v2827 = vpop.f32.mrb[0].mxu0
      %2828 = vmatprep.mubr.bf16.mxu0 0
      %2829 = vmatmul.mubr.bf16.gmra.mrb[0].mxu0 %v2616
      %v2830 = vpop.f32.mrb[0].mxu0
      %v2831 = vadd.f32 0.0, %v2830
      %v2832 = vpop.f32.mrb[0].mxu0
      %v2833 = vpop.f32.mrb[0].mxu0
      %v2834 = vadd.f32 0.0, %v2833
      %v2835 = vpop.f32.mrb[0].mxu0
      %2836 = vmatprep.mubr.bf16.mxu0 0
      %2837 = vmatmul.mubr.bf16.gmra.mrb[0].mxu0 %v2619
      %v2838 = vpop.f32.mrb[0].mxu0
      %v2839 = vadd.f32 0.0, %v2838
      %v2840 = vpop.f32.mrb[0].mxu0
      %v2841 = vpop.f32.mrb[0].mxu0
      %v2842 = vadd.f32 0.0, %v2841
      %v2843 = vpop.f32.mrb[0].mxu0
      %2844 = vmatprep.mubr.bf16.mxu0 0
      %2845 = vmatmul.mubr.bf16.gmra.mrb[0].mxu0 %v2622
      %v2846 = vpop.f32.mrb[0].mxu0
      %v2847 = vadd.f32 0.0, %v2846
      %v2848 = vpop.f32.mrb[0].mxu0
      %v2849 = vpop.f32.mrb[0].mxu0
      %v2850 = vadd.f32 0.0, %v2849
      %v2851 = vpop.f32.mrb[0].mxu0
      %2852 = vmatprep.mubr.bf16.mxu0 0
      %2853 = vmatmul.mubr.bf16.gmra.mrb[0].mxu0 %v2625
      %v2854 = vpop.f32.mrb[0].mxu0
      %v2855 = vadd.f32 0.0, %v2854
      %v2856 = vpop.f32.mrb[0].mxu0
      %v2857 = vpop.f32.mrb[0].mxu0
      %v2858 = vadd.f32 0.0, %v2857
      %v2859 = vpop.f32.mrb[0].mxu0
      %2860 = vmatprep.mubr.bf16.mxu0 0
      %2861 = vmatmul.mubr.bf16.gmra.mrb[0].mxu0 %v2628
      %v2862 = vpop.f32.mrb[0].mxu0
      %v2863 = vadd.f32 0.0, %v2862
      %v2864 = vpop.f32.mrb[0].mxu0
      %v2865 = vpop.f32.mrb[0].mxu0
      %v2866 = vadd.f32 0.0, %v2865
      %v2867 = vpop.f32.mrb[0].mxu0
      %2868 = vmatprep.mubr.bf16.mxu0 0
      %2869 = vmatmul.mubr.bf16.gmra.mrb[0].mxu0 %v2631
      %v2870 = vpop.f32.mrb[0].mxu0
      %v2871 = vadd.f32 0.0, %v2870
      %v2872 = vpop.f32.mrb[0].mxu0
      %v2873 = vpop.f32.mrb[0].mxu0
      %v2874 = vadd.f32 0.0, %v2873
      %v2875 = vpop.f32.mrb[0].mxu0
      %2876 = vmatprep.mubr.bf16.mxu0 0
      %2877 = vmatmul.mubr.bf16.gmra.mrb[0].mxu0 %v2634
      %v2878 = vpop.f32.mrb[0].mxu0
      %v2879 = vadd.f32 0.0, %v2878
      %v2880 = vpop.f32.mrb[0].mxu0
      %v2881 = vpop.f32.mrb[0].mxu0
      %v2882 = vadd.f32 0.0, %v2881
      %v2883 = vpop.f32.mrb[0].mxu0
      %2884 = vmatprep.mubr.bf16.mxu0 0
      %2885 = vmatmul.mubr.bf16.gmra.mrb[0].mxu0 %v2637
      %v2886 = vpop.f32.mrb[0].mxu0
      %v2887 = vadd.f32 0.0, %v2886
      %v2888 = vpop.f32.mrb[0].mxu0
      %v2889 = vpop.f32.mrb[0].mxu0
      %v2890 = vadd.f32 0.0, %v2889
      %v2891 = vpop.f32.mrb[0].mxu0
      %2892 = vmatprep.mubr.bf16.mxu0 0
      %2893 = vmatmul.mubr.bf16.gmra.mrb[0].mxu0 %v2640
      %v2894 = vpop.f32.mrb[0].mxu0
      %v2895 = vadd.f32 0.0, %v2894
      %v2896 = vpop.f32.mrb[0].mxu0
      %v2897 = vpop.f32.mrb[0].mxu0
      %v2898 = vadd.f32 0.0, %v2897
      %v2899 = vpop.f32.mrb[0].mxu0
      %2900 = vmatprep.mubr.bf16.mxu0 0
      %2901 = vmatmul.mubr.bf16.gmra.mrb[0].mxu0 %v2643
      %v2902 = vpop.f32.mrb[0].mxu0
      %v2903 = vadd.f32 0.0, %v2902
      %v2904 = vpop.f32.mrb[0].mxu0
      %v2905 = vpop.f32.mrb[0].mxu0
      %v2906 = vadd.f32 0.0, %v2905
      %v2907 = vpop.f32.mrb[0].mxu0
      %2908 = vmatprep.mubr.bf16.mxu0 0
      %2909 = vmatmul.mubr.bf16.gmra.mrb[0].mxu0 %v2646
      %v2910 = vpop.f32.mrb[0].mxu0
      %v2911 = vadd.f32 0.0, %v2910
      %v2912 = vpop.f32.mrb[0].mxu0
      %v2913 = vpop.f32.mrb[0].mxu0
      %v2914 = vadd.f32 0.0, %v2913
      %v2915 = vpop.f32.mrb[0].mxu0
      %2916 = vmatprep.mubr.bf16.mxu0 0
      %2917 = vmatmul.mubr.bf16.gmra.mrb[0].mxu0 %v2649
      %v2918 = vpop.f32.mrb[0].mxu0
      %v2919 = vadd.f32 0.0, %v2918
      %v2920 = vpop.f32.mrb[0].mxu0
      %v2921 = vpop.f32.mrb[0].mxu0
      %v2922 = vadd.f32 0.0, %v2921
      %v2923 = vpop.f32.mrb[0].mxu0
      %2924 = vmatprep.mubr.bf16.mxu0 0
      %2925 = vmatmul.mubr.bf16.gmra.mrb[0].mxu0 %v2652
      %v2926 = vpop.f32.mrb[0].mxu0
      %v2927 = vadd.f32 0.0, %v2926
      %v2928 = vpop.f32.mrb[0].mxu0
      %v2929 = vpop.f32.mrb[0].mxu0
      %v2930 = vadd.f32 0.0, %v2929
      %v2931 = vpop.f32.mrb[0].mxu0
      %2932 = vmatprep.mubr.bf16.mxu0 0
      %2933 = vmatmul.mubr.bf16.gmra.mrb[0].mxu0 %v2655
      %v2934 = vpop.f32.mrb[0].mxu0
      %v2935 = vadd.f32 0.0, %v2934
      %v2936 = vpop.f32.mrb[0].mxu0
      %v2937 = vpop.f32.mrb[0].mxu0
      %v2938 = vadd.f32 0.0, %v2937
      %v2939 = vpop.f32.mrb[0].mxu0
      %2940 = vmatprep.mubr.bf16.mxu0 0
      %2941 = vmatmul.mubr.bf16.gmra.mrb[0].mxu0 %v2658
      %v2942 = vpop.f32.mrb[0].mxu0
      %v2943 = vadd.f32 0.0, %v2942
      %v2944 = vpop.f32.mrb[0].mxu0
      %v2945 = vpop.f32.mrb[0].mxu0
      %v2946 = vadd.f32 0.0, %v2945
      %v2947 = vpop.f32.mrb[0].mxu0
      %2948 = vdwg.mxu0
      %v2949 = vld [vmem:[%s5] sm:$0x1]
      %v2951 = vlaneseq
      %v2952 = vshrl.u32 %v2951, 7
      %v2953 = vsub.s32 0, %v2952
      %v2954 = vrot.slane %v2949, %v2953
      %v2956 = vadd.f32 %v2695, %v2954
      %v2957 = vadd.f32 %v2698, %v2954
      %v2958 = vadd.f32 %v2703, %v2954
      %v2959 = vadd.f32 %v2706, %v2954
      %v2960 = vadd.f32 %v2711, %v2954
      %v2961 = vadd.f32 %v2714, %v2954
      %v2962 = vadd.f32 %v2719, %v2954
      %v2963 = vadd.f32 %v2722, %v2954
      %v2964 = vadd.f32 %v2727, %v2954
      %v2965 = vadd.f32 %v2730, %v2954
      %v2966 = vadd.f32 %v2735, %v2954
      %v2967 = vadd.f32 %v2738, %v2954
      %v2968 = vadd.f32 %v2743, %v2954
      %v2969 = vadd.f32 %v2746, %v2954
      %v2970 = vadd.f32 %v2751, %v2954
      %v2971 = vadd.f32 %v2754, %v2954
      %v2972 = vadd.f32 %v2759, %v2954
      %v2973 = vadd.f32 %v2762, %v2954
      %v2974 = vadd.f32 %v2767, %v2954
      %v2975 = vadd.f32 %v2770, %v2954
      %v2976 = vadd.f32 %v2775, %v2954
      %v2977 = vadd.f32 %v2778, %v2954
      %v2978 = vadd.f32 %v2783, %v2954
      %v2979 = vadd.f32 %v2786, %v2954
      %v2980 = vadd.f32 %v2791, %v2954
      %v2981 = vadd.f32 %v2794, %v2954
      %v2982 = vadd.f32 %v2799, %v2954
      %v2983 = vadd.f32 %v2802, %v2954
      %v2984 = vadd.f32 %v2807, %v2954
      %v2985 = vadd.f32 %v2810, %v2954
      %v2986 = vadd.f32 %v2815, %v2954
      %v2987 = vadd.f32 %v2818, %v2954
      %v2988 = vadd.f32 %v2823, %v2954
      %v2989 = vadd.f32 %v2826, %v2954
      %v2990 = vadd.f32 %v2831, %v2954
      %v2991 = vadd.f32 %v2834, %v2954
      %v2992 = vadd.f32 %v2839, %v2954
      %v2993 = vadd.f32 %v2842, %v2954
      %v2994 = vadd.f32 %v2847, %v2954
      %v2995 = vadd.f32 %v2850, %v2954
      %v2996 = vadd.f32 %v2855, %v2954
      %v2997 = vadd.f32 %v2858, %v2954
      %v2998 = vadd.f32 %v2863, %v2954
      %v2999 = vadd.f32 %v2866, %v2954
      %v3000 = vadd.f32 %v2871, %v2954
      %v3001 = vadd.f32 %v2874, %v2954
      %v3002 = vadd.f32 %v2879, %v2954
      %v3003 = vadd.f32 %v2882, %v2954
      %v3004 = vadd.f32 %v2887, %v2954
      %v3005 = vadd.f32 %v2890, %v2954
      %v3006 = vadd.f32 %v2895, %v2954
      %v3007 = vadd.f32 %v2898, %v2954
      %v3008 = vadd.f32 %v2903, %v2954
      %v3009 = vadd.f32 %v2906, %v2954
      %v3010 = vadd.f32 %v2911, %v2954
      %v3011 = vadd.f32 %v2914, %v2954
      %v3012 = vadd.f32 %v2919, %v2954
      %v3013 = vadd.f32 %v2922, %v2954
      %v3014 = vadd.f32 %v2927, %v2954
      %v3015 = vadd.f32 %v2930, %v2954
      %v3016 = vadd.f32 %v2935, %v2954
      %v3017 = vadd.f32 %v2938, %v2954
      %v3018 = vadd.f32 %v2943, %v2954
      %v3019 = vadd.f32 %v2946, %v2954
      %v3020 = vand.u32 2147483647, %v2956
      %v3021 = vand.u32 2147483647, %v2957
      %v3022 = vand.u32 2147483647, %v2958
      %v3023 = vand.u32 2147483647, %v2959
      %v3024 = vand.u32 2147483647, %v2960
      %v3025 = vand.u32 2147483647, %v2961
      %v3026 = vand.u32 2147483647, %v2962
      %v3027 = vand.u32 2147483647, %v2963
      %v3028 = vand.u32 2147483647, %v2964
      %v3029 = vand.u32 2147483647, %v2965
      %v3030 = vand.u32 2147483647, %v2966
      %v3031 = vand.u32 2147483647, %v2967
      %v3032 = vand.u32 2147483647, %v2968
      %v3033 = vand.u32 2147483647, %v2969
      %v3034 = vand.u32 2147483647, %v2970
      %v3035 = vand.u32 2147483647, %v2971
      %v3036 = vand.u32 2147483647, %v2972
      %v3037 = vand.u32 2147483647, %v2973
      %v3038 = vand.u32 2147483647, %v2974
      %v3039 = vand.u32 2147483647, %v2975
      %v3040 = vand.u32 2147483647, %v2976
      %v3041 = vand.u32 2147483647, %v2977
      %v3042 = vand.u32 2147483647, %v2978
      %v3043 = vand.u32 2147483647, %v2979
      %v3044 = vand.u32 2147483647, %v2980
      %v3045 = vand.u32 2147483647, %v2981
      %v3046 = vand.u32 2147483647, %v2982
      %v3047 = vand.u32 2147483647, %v2983
      %v3048 = vand.u32 2147483647, %v2984
      %v3049 = vand.u32 2147483647, %v2985
      %v3050 = vand.u32 2147483647, %v2986
      %v3051 = vand.u32 2147483647, %v2987
      %v3052 = vand.u32 2147483647, %v2988
      %v3053 = vand.u32 2147483647, %v2989
      %v3054 = vand.u32 2147483647, %v2990
      %v3055 = vand.u32 2147483647, %v2991
      %v3056 = vand.u32 2147483647, %v2992
      %v3057 = vand.u32 2147483647, %v2993
      %v3058 = vand.u32 2147483647, %v2994
      %v3059 = vand.u32 2147483647, %v2995
      %v3060 = vand.u32 2147483647, %v2996
      %v3061 = vand.u32 2147483647, %v2997
      %v3062 = vand.u32 2147483647, %v2998
      %v3063 = vand.u32 2147483647, %v2999
      %v3064 = vand.u32 2147483647, %v3000
      %v3065 = vand.u32 2147483647, %v3001
      %v3066 = vand.u32 2147483647, %v3002
      %v3067 = vand.u32 2147483647, %v3003
      %v3068 = vand.u32 2147483647, %v3004
      %v3069 = vand.u32 2147483647, %v3005
      %v3070 = vand.u32 2147483647, %v3006
      %v3071 = vand.u32 2147483647, %v3007
      %v3072 = vand.u32 2147483647, %v3008
      %v3073 = vand.u32 2147483647, %v3009
      %v3074 = vand.u32 2147483647, %v3010
      %v3075 = vand.u32 2147483647, %v3011
      %v3076 = vand.u32 2147483647, %v3012
      %v3077 = vand.u32 2147483647, %v3013
      %v3078 = vand.u32 2147483647, %v3014
      %v3079 = vand.u32 2147483647, %v3015
      %v3080 = vand.u32 2147483647, %v3016
      %v3081 = vand.u32 2147483647, %v3017
      %v3082 = vand.u32 2147483647, %v3018
      %v3083 = vand.u32 2147483647, %v3019
      %v3084 = vsub.f32 0.0, %v3020
      %v3085 = vsub.f32 0.0, %v3021
      %v3086 = vsub.f32 0.0, %v3022
      %v3087 = vsub.f32 0.0, %v3023
      %v3088 = vsub.f32 0.0, %v3024
      %v3089 = vsub.f32 0.0, %v3025
      %v3090 = vsub.f32 0.0, %v3026
      %v3091 = vsub.f32 0.0, %v3027
      %v3092 = vsub.f32 0.0, %v3028
      %v3093 = vsub.f32 0.0, %v3029
      %v3094 = vsub.f32 0.0, %v3030
      %v3095 = vsub.f32 0.0, %v3031
      %v3096 = vsub.f32 0.0, %v3032
      %v3097 = vsub.f32 0.0, %v3033
      %v3098 = vsub.f32 0.0, %v3034
      %v3099 = vsub.f32 0.0, %v3035
      %v3100 = vsub.f32 0.0, %v3036
      %v3101 = vsub.f32 0.0, %v3037
      %v3102 = vsub.f32 0.0, %v3038
      %v3103 = vsub.f32 0.0, %v3039
      %v3104 = vsub.f32 0.0, %v3040
      %v3105 = vsub.f32 0.0, %v3041
      %v3106 = vsub.f32 0.0, %v3042
      %v3107 = vsub.f32 0.0, %v3043
      %v3108 = vsub.f32 0.0, %v3044
      %v3109 = vsub.f32 0.0, %v3045
      %v3110 = vsub.f32 0.0, %v3046
      %v3111 = vsub.f32 0.0, %v3047
      %v3112 = vsub.f32 0.0, %v3048
      %v3113 = vsub.f32 0.0, %v3049
      %v3114 = vsub.f32 0.0, %v3050
      %v3115 = vsub.f32 0.0, %v3051
      %v3116 = vsub.f32 0.0, %v3052
      %v3117 = vsub.f32 0.0, %v3053
      %v3118 = vsub.f32 0.0, %v3054
      %v3119 = vsub.f32 0.0, %v3055
      %v3120 = vsub.f32 0.0, %v3056
      %v3121 = vsub.f32 0.0, %v3057
      %v3122 = vsub.f32 0.0, %v3058
      %v3123 = vsub.f32 0.0, %v3059
      %v3124 = vsub.f32 0.0, %v3060
      %v3125 = vsub.f32 0.0, %v3061
      %v3126 = vsub.f32 0.0, %v3062
      %v3127 = vsub.f32 0.0, %v3063
      %v3128 = vsub.f32 0.0, %v3064
      %v3129 = vsub.f32 0.0, %v3065
      %v3130 = vsub.f32 0.0, %v3066
      %v3131 = vsub.f32 0.0, %v3067
      %v3132 = vsub.f32 0.0, %v3068
      %v3133 = vsub.f32 0.0, %v3069
      %v3134 = vsub.f32 0.0, %v3070
      %v3135 = vsub.f32 0.0, %v3071
      %v3136 = vsub.f32 0.0, %v3072
      %v3137 = vsub.f32 0.0, %v3073
      %v3138 = vsub.f32 0.0, %v3074
      %v3139 = vsub.f32 0.0, %v3075
      %v3140 = vsub.f32 0.0, %v3076
      %v3141 = vsub.f32 0.0, %v3077
      %v3142 = vsub.f32 0.0, %v3078
      %v3143 = vsub.f32 0.0, %v3079
      %v3144 = vsub.f32 0.0, %v3080
      %v3145 = vsub.f32 0.0, %v3081
      %v3146 = vsub.f32 0.0, %v3082
      %v3147 = vsub.f32 0.0, %v3083
      %v3148 = vmul.f32 %v3084, 1.442695
      %v3149 = vpow.pop %v3148
      %v3150 = vmul.f32 %v3085, 1.442695
      %v3151 = vpow.pop %v3150
      %v3152 = vmul.f32 %v3086, 1.442695
      %v3153 = vpow.pop %v3152
      %v3154 = vmul.f32 %v3087, 1.442695
      %v3155 = vpow.pop %v3154
      %v3156 = vmul.f32 %v3088, 1.442695
      %v3157 = vpow.pop %v3156
      %v3158 = vmul.f32 %v3089, 1.442695
      %v3159 = vpow.pop %v3158
      %v3160 = vmul.f32 %v3090, 1.442695
      %v3161 = vpow.pop %v3160
      %v3162 = vmul.f32 %v3091, 1.442695
      %v3163 = vpow.pop %v3162
      %v3164 = vmul.f32 %v3092, 1.442695
      %v3165 = vpow.pop %v3164
      %v3166 = vmul.f32 %v3093, 1.442695
      %v3167 = vpow.pop %v3166
      %v3168 = vmul.f32 %v3094, 1.442695
      %v3169 = vpow.pop %v3168
      %v3170 = vmul.f32 %v3095, 1.442695
      %v3171 = vpow.pop %v3170
      %v3172 = vmul.f32 %v3096, 1.442695
      %v3173 = vpow.pop %v3172
      %v3174 = vmul.f32 %v3097, 1.442695
      %v3175 = vpow.pop %v3174
      %v3176 = vmul.f32 %v3098, 1.442695
      %v3177 = vpow.pop %v3176
      %v3178 = vmul.f32 %v3099, 1.442695
      %v3179 = vpow.pop %v3178
      %v3180 = vmul.f32 %v3100, 1.442695
      %v3181 = vpow.pop %v3180
      %v3182 = vmul.f32 %v3101, 1.442695
      %v3183 = vpow.pop %v3182
      %v3184 = vmul.f32 %v3102, 1.442695
      %v3185 = vpow.pop %v3184
      %v3186 = vmul.f32 %v3103, 1.442695
      %v3187 = vpow.pop %v3186
      %v3188 = vmul.f32 %v3104, 1.442695
      %v3189 = vpow.pop %v3188
      %v3190 = vmul.f32 %v3105, 1.442695
      %v3191 = vpow.pop %v3190
      %v3192 = vmul.f32 %v3106, 1.442695
      %v3193 = vpow.pop %v3192
      %v3194 = vmul.f32 %v3107, 1.442695
      %v3195 = vpow.pop %v3194
      %v3196 = vmul.f32 %v3108, 1.442695
      %v3197 = vpow.pop %v3196
      %v3198 = vmul.f32 %v3109, 1.442695
      %v3199 = vpow.pop %v3198
      %v3200 = vmul.f32 %v3110, 1.442695
      %v3201 = vpow.pop %v3200
      %v3202 = vmul.f32 %v3111, 1.442695
      %v3203 = vpow.pop %v3202
      %v3204 = vmul.f32 %v3112, 1.442695
      %v3205 = vpow.pop %v3204
      %v3206 = vmul.f32 %v3113, 1.442695
      %v3207 = vpow.pop %v3206
      %v3208 = vmul.f32 %v3114, 1.442695
      %v3209 = vpow.pop %v3208
      %v3210 = vmul.f32 %v3115, 1.442695
      %v3211 = vpow.pop %v3210
      %v3212 = vmul.f32 %v3116, 1.442695
      %v3213 = vpow.pop %v3212
      %v3214 = vmul.f32 %v3117, 1.442695
      %v3215 = vpow.pop %v3214
      %v3216 = vmul.f32 %v3118, 1.442695
      %v3217 = vpow.pop %v3216
      %v3218 = vmul.f32 %v3119, 1.442695
      %v3219 = vpow.pop %v3218
      %v3220 = vmul.f32 %v3120, 1.442695
      %v3221 = vpow.pop %v3220
      %v3222 = vmul.f32 %v3121, 1.442695
      %v3223 = vpow.pop %v3222
      %v3224 = vmul.f32 %v3122, 1.442695
      %v3225 = vpow.pop %v3224
      %v3226 = vmul.f32 %v3123, 1.442695
      %v3227 = vpow.pop %v3226
      %v3228 = vmul.f32 %v3124, 1.442695
      %v3229 = vpow.pop %v3228
      %v3230 = vmul.f32 %v3125, 1.442695
      %v3231 = vpow.pop %v3230
      %v3232 = vmul.f32 %v3126, 1.442695
      %v3233 = vpow.pop %v3232
      %v3234 = vmul.f32 %v3127, 1.442695
      %v3235 = vpow.pop %v3234
      %v3236 = vmul.f32 %v3128, 1.442695
      %v3237 = vpow.pop %v3236
      %v3238 = vmul.f32 %v3129, 1.442695
      %v3239 = vpow.pop %v3238
      %v3240 = vmul.f32 %v3130, 1.442695
      %v3241 = vpow.pop %v3240
      %v3242 = vmul.f32 %v3131, 1.442695
      %v3243 = vpow.pop %v3242
      %v3244 = vmul.f32 %v3132, 1.442695
      %v3245 = vpow.pop %v3244
      %v3246 = vmul.f32 %v3133, 1.442695
      %v3247 = vpow.pop %v3246
      %v3248 = vmul.f32 %v3134, 1.442695
      %v3249 = vpow.pop %v3248
      %v3250 = vmul.f32 %v3135, 1.442695
      %v3251 = vpow.pop %v3250
      %v3252 = vmul.f32 %v3136, 1.442695
      %v3253 = vpow.pop %v3252
      %v3254 = vmul.f32 %v3137, 1.442695
      %v3255 = vpow.pop %v3254
      %v3256 = vmul.f32 %v3138, 1.442695
      %v3257 = vpow.pop %v3256
      %v3258 = vmul.f32 %v3139, 1.442695
      %v3259 = vpow.pop %v3258
      %v3260 = vmul.f32 %v3140, 1.442695
      %v3261 = vpow.pop %v3260
      %v3262 = vmul.f32 %v3141, 1.442695
      %v3263 = vpow.pop %v3262
      %v3264 = vmul.f32 %v3142, 1.442695
      %v3265 = vpow.pop %v3264
      %v3266 = vmul.f32 %v3143, 1.442695
      %v3267 = vpow.pop %v3266
      %v3268 = vmul.f32 %v3144, 1.442695
      %v3269 = vpow.pop %v3268
      %v3270 = vmul.f32 %v3145, 1.442695
      %v3271 = vpow.pop %v3270
      %v3272 = vmul.f32 %v3146, 1.442695
      %v3273 = vpow.pop %v3272
      %v3274 = vmul.f32 %v3147, 1.442695
      %v3275 = vpow.pop %v3274
      %v3276 = vadd.f32 %v3149, 1.0
      %v3277 = vadd.f32 %v3151, 1.0
      %v3278 = vadd.f32 %v3153, 1.0
      %v3279 = vadd.f32 %v3155, 1.0
      %v3280 = vadd.f32 %v3157, 1.0
      %v3281 = vadd.f32 %v3159, 1.0
      %v3282 = vadd.f32 %v3161, 1.0
      %v3283 = vadd.f32 %v3163, 1.0
      %v3284 = vadd.f32 %v3165, 1.0
      %v3285 = vadd.f32 %v3167, 1.0
      %v3286 = vadd.f32 %v3169, 1.0
      %v3287 = vadd.f32 %v3171, 1.0
      %v3288 = vadd.f32 %v3173, 1.0
      %v3289 = vadd.f32 %v3175, 1.0
      %v3290 = vadd.f32 %v3177, 1.0
      %v3291 = vadd.f32 %v3179, 1.0
      %v3292 = vadd.f32 %v3181, 1.0
      %v3293 = vadd.f32 %v3183, 1.0
      %v3294 = vadd.f32 %v3185, 1.0
      %v3295 = vadd.f32 %v3187, 1.0
      %v3296 = vadd.f32 %v3189, 1.0
      %v3297 = vadd.f32 %v3191, 1.0
      %v3298 = vadd.f32 %v3193, 1.0
      %v3299 = vadd.f32 %v3195, 1.0
      %v3300 = vadd.f32 %v3197, 1.0
      %v3301 = vadd.f32 %v3199, 1.0
      %v3302 = vadd.f32 %v3201, 1.0
      %v3303 = vadd.f32 %v3203, 1.0
      %v3304 = vadd.f32 %v3205, 1.0
      %v3305 = vadd.f32 %v3207, 1.0
      %v3306 = vadd.f32 %v3209, 1.0
      %v3307 = vadd.f32 %v3211, 1.0
      %v3308 = vadd.f32 %v3213, 1.0
      %v3309 = vadd.f32 %v3215, 1.0
      %v3310 = vadd.f32 %v3217, 1.0
      %v3311 = vadd.f32 %v3219, 1.0
      %v3312 = vadd.f32 %v3221, 1.0
      %v3313 = vadd.f32 %v3223, 1.0
      %v3314 = vadd.f32 %v3225, 1.0
      %v3315 = vadd.f32 %v3227, 1.0
      %v3316 = vadd.f32 %v3229, 1.0
      %v3317 = vadd.f32 %v3231, 1.0
      %v3318 = vadd.f32 %v3233, 1.0
      %v3319 = vadd.f32 %v3235, 1.0
      %v3320 = vadd.f32 %v3237, 1.0
      %v3321 = vadd.f32 %v3239, 1.0
      %v3322 = vadd.f32 %v3241, 1.0
      %v3323 = vadd.f32 %v3243, 1.0
      %v3324 = vadd.f32 %v3245, 1.0
      %v3325 = vadd.f32 %v3247, 1.0
      %v3326 = vadd.f32 %v3249, 1.0
      %v3327 = vadd.f32 %v3251, 1.0
      %v3328 = vadd.f32 %v3253, 1.0
      %v3329 = vadd.f32 %v3255, 1.0
      %v3330 = vadd.f32 %v3257, 1.0
      %v3331 = vadd.f32 %v3259, 1.0
      %v3332 = vadd.f32 %v3261, 1.0
      %v3333 = vadd.f32 %v3263, 1.0
      %v3334 = vadd.f32 %v3265, 1.0
      %v3335 = vadd.f32 %v3267, 1.0
      %v3336 = vadd.f32 %v3269, 1.0
      %v3337 = vadd.f32 %v3271, 1.0
      %v3338 = vadd.f32 %v3273, 1.0
      %v3339 = vadd.f32 %v3275, 1.0
      %v3340 = vlog2.pop %v3276
      %v3341 = vmul.f32 %v3340, 0.6931472
      %v3342 = vlog2.pop %v3277
      %v3343 = vmul.f32 %v3342, 0.6931472
      %v3344 = vlog2.pop %v3278
      %v3345 = vmul.f32 %v3344, 0.6931472
      %v3346 = vlog2.pop %v3279
      %v3347 = vmul.f32 %v3346, 0.6931472
      %v3348 = vlog2.pop %v3280
      %v3349 = vmul.f32 %v3348, 0.6931472
      %v3350 = vlog2.pop %v3281
      %v3351 = vmul.f32 %v3350, 0.6931472
      %v3352 = vlog2.pop %v3282
      %v3353 = vmul.f32 %v3352, 0.6931472
      %v3354 = vlog2.pop %v3283
      %v3355 = vmul.f32 %v3354, 0.6931472
      %v3356 = vlog2.pop %v3284
      %v3357 = vmul.f32 %v3356, 0.6931472
      %v3358 = vlog2.pop %v3285
      %v3359 = vmul.f32 %v3358, 0.6931472
      %v3360 = vlog2.pop %v3286
      %v3361 = vmul.f32 %v3360, 0.6931472
      %v3362 = vlog2.pop %v3287
      %v3363 = vmul.f32 %v3362, 0.6931472
      %v3364 = vlog2.pop %v3288
      %v3365 = vmul.f32 %v3364, 0.6931472
      %v3366 = vlog2.pop %v3289
      %v3367 = vmul.f32 %v3366, 0.6931472
      %v3368 = vlog2.pop %v3290
      %v3369 = vmul.f32 %v3368, 0.6931472
      %v3370 = vlog2.pop %v3291
      %v3371 = vmul.f32 %v3370, 0.6931472
      %v3372 = vlog2.pop %v3292
      %v3373 = vmul.f32 %v3372, 0.6931472
      %v3374 = vlog2.pop %v3293
      %v3375 = vmul.f32 %v3374, 0.6931472
      %v3376 = vlog2.pop %v3294
      %v3377 = vmul.f32 %v3376, 0.6931472
      %v3378 = vlog2.pop %v3295
      %v3379 = vmul.f32 %v3378, 0.6931472
      %v3380 = vlog2.pop %v3296
      %v3381 = vmul.f32 %v3380, 0.6931472
      %v3382 = vlog2.pop %v3297
      %v3383 = vmul.f32 %v3382, 0.6931472
      %v3384 = vlog2.pop %v3298
      %v3385 = vmul.f32 %v3384, 0.6931472
      %v3386 = vlog2.pop %v3299
      %v3387 = vmul.f32 %v3386, 0.6931472
      %v3388 = vlog2.pop %v3300
      %v3389 = vmul.f32 %v3388, 0.6931472
      %v3390 = vlog2.pop %v3301
      %v3391 = vmul.f32 %v3390, 0.6931472
      %v3392 = vlog2.pop %v3302
      %v3393 = vmul.f32 %v3392, 0.6931472
      %v3394 = vlog2.pop %v3303
      %v3395 = vmul.f32 %v3394, 0.6931472
      %v3396 = vlog2.pop %v3304
      %v3397 = vmul.f32 %v3396, 0.6931472
      %v3398 = vlog2.pop %v3305
      %v3399 = vmul.f32 %v3398, 0.6931472
      %v3400 = vlog2.pop %v3306
      %v3401 = vmul.f32 %v3400, 0.6931472
      %v3402 = vlog2.pop %v3307
      %v3403 = vmul.f32 %v3402, 0.6931472
      %v3404 = vlog2.pop %v3308
      %v3405 = vmul.f32 %v3404, 0.6931472
      %v3406 = vlog2.pop %v3309
      %v3407 = vmul.f32 %v3406, 0.6931472
      %v3408 = vlog2.pop %v3310
      %v3409 = vmul.f32 %v3408, 0.6931472
      %v3410 = vlog2.pop %v3311
      %v3411 = vmul.f32 %v3410, 0.6931472
      %v3412 = vlog2.pop %v3312
      %v3413 = vmul.f32 %v3412, 0.6931472
      %v3414 = vlog2.pop %v3313
      %v3415 = vmul.f32 %v3414, 0.6931472
      %v3416 = vlog2.pop %v3314
      %v3417 = vmul.f32 %v3416, 0.6931472
      %v3418 = vlog2.pop %v3315
      %v3419 = vmul.f32 %v3418, 0.6931472
      %v3420 = vlog2.pop %v3316
      %v3421 = vmul.f32 %v3420, 0.6931472
      %v3422 = vlog2.pop %v3317
      %v3423 = vmul.f32 %v3422, 0.6931472
      %v3424 = vlog2.pop %v3318
      %v3425 = vmul.f32 %v3424, 0.6931472
      %v3426 = vlog2.pop %v3319
      %v3427 = vmul.f32 %v3426, 0.6931472
      %v3428 = vlog2.pop %v3320
      %v3429 = vmul.f32 %v3428, 0.6931472
      %v3430 = vlog2.pop %v3321
      %v3431 = vmul.f32 %v3430, 0.6931472
      %v3432 = vlog2.pop %v3322
      %v3433 = vmul.f32 %v3432, 0.6931472
      %v3434 = vlog2.pop %v3323
      %v3435 = vmul.f32 %v3434, 0.6931472
      %v3436 = vlog2.pop %v3324
      %v3437 = vmul.f32 %v3436, 0.6931472
      %v3438 = vlog2.pop %v3325
      %v3439 = vmul.f32 %v3438, 0.6931472
      %v3440 = vlog2.pop %v3326
      %v3441 = vmul.f32 %v3440, 0.6931472
      %v3442 = vlog2.pop %v3327
      %v3443 = vmul.f32 %v3442, 0.6931472
      %v3444 = vlog2.pop %v3328
      %v3445 = vmul.f32 %v3444, 0.6931472
      %v3446 = vlog2.pop %v3329
      %v3447 = vmul.f32 %v3446, 0.6931472
      %v3448 = vlog2.pop %v3330
      %v3449 = vmul.f32 %v3448, 0.6931472
      %v3450 = vlog2.pop %v3331
      %v3451 = vmul.f32 %v3450, 0.6931472
      %v3452 = vlog2.pop %v3332
      %v3453 = vmul.f32 %v3452, 0.6931472
      %v3454 = vlog2.pop %v3333
      %v3455 = vmul.f32 %v3454, 0.6931472
      %v3456 = vlog2.pop %v3334
      %v3457 = vmul.f32 %v3456, 0.6931472
      %v3458 = vlog2.pop %v3335
      %v3459 = vmul.f32 %v3458, 0.6931472
      %v3460 = vlog2.pop %v3336
      %v3461 = vmul.f32 %v3460, 0.6931472
      %v3462 = vlog2.pop %v3337
      %v3463 = vmul.f32 %v3462, 0.6931472
      %v3464 = vlog2.pop %v3338
      %v3465 = vmul.f32 %v3464, 0.6931472
      %v3466 = vlog2.pop %v3339
      %v3467 = vmul.f32 %v3466, 0.6931472
      %v3468 = vmax.f32 %v2956, 0.0
      %v3469 = vmax.f32 %v2957, 0.0
      %v3470 = vmax.f32 %v2958, 0.0
      %v3471 = vmax.f32 %v2959, 0.0
      %v3472 = vmax.f32 %v2960, 0.0
      %v3473 = vmax.f32 %v2961, 0.0
      %v3474 = vmax.f32 %v2962, 0.0
      %v3475 = vmax.f32 %v2963, 0.0
      %v3476 = vmax.f32 %v2964, 0.0
      %v3477 = vmax.f32 %v2965, 0.0
      %v3478 = vmax.f32 %v2966, 0.0
      %v3479 = vmax.f32 %v2967, 0.0
      %v3480 = vmax.f32 %v2968, 0.0
      %v3481 = vmax.f32 %v2969, 0.0
      %v3482 = vmax.f32 %v2970, 0.0
      %v3483 = vmax.f32 %v2971, 0.0
      %v3484 = vmax.f32 %v2972, 0.0
      %v3485 = vmax.f32 %v2973, 0.0
      %v3486 = vmax.f32 %v2974, 0.0
      %v3487 = vmax.f32 %v2975, 0.0
      %v3488 = vmax.f32 %v2976, 0.0
      %v3489 = vmax.f32 %v2977, 0.0
      %v3490 = vmax.f32 %v2978, 0.0
      %v3491 = vmax.f32 %v2979, 0.0
      %v3492 = vmax.f32 %v2980, 0.0
      %v3493 = vmax.f32 %v2981, 0.0
      %v3494 = vmax.f32 %v2982, 0.0
      %v3495 = vmax.f32 %v2983, 0.0
      %v3496 = vmax.f32 %v2984, 0.0
      %v3497 = vmax.f32 %v2985, 0.0
      %v3498 = vmax.f32 %v2986, 0.0
      %v3499 = vmax.f32 %v2987, 0.0
      %v3500 = vmax.f32 %v2988, 0.0
      %v3501 = vmax.f32 %v2989, 0.0
      %v3502 = vmax.f32 %v2990, 0.0
      %v3503 = vmax.f32 %v2991, 0.0
      %v3504 = vmax.f32 %v2992, 0.0
      %v3505 = vmax.f32 %v2993, 0.0
      %v3506 = vmax.f32 %v2994, 0.0
      %v3507 = vmax.f32 %v2995, 0.0
      %v3508 = vmax.f32 %v2996, 0.0
      %v3509 = vmax.f32 %v2997, 0.0
      %v3510 = vmax.f32 %v2998, 0.0
      %v3511 = vmax.f32 %v2999, 0.0
      %v3512 = vmax.f32 %v3000, 0.0
      %v3513 = vmax.f32 %v3001, 0.0
      %v3514 = vmax.f32 %v3002, 0.0
      %v3515 = vmax.f32 %v3003, 0.0
      %v3516 = vmax.f32 %v3004, 0.0
      %v3517 = vmax.f32 %v3005, 0.0
      %v3518 = vmax.f32 %v3006, 0.0
      %v3519 = vmax.f32 %v3007, 0.0
      %v3520 = vmax.f32 %v3008, 0.0
      %v3521 = vmax.f32 %v3009, 0.0
      %v3522 = vmax.f32 %v3010, 0.0
      %v3523 = vmax.f32 %v3011, 0.0
      %v3524 = vmax.f32 %v3012, 0.0
      %v3525 = vmax.f32 %v3013, 0.0
      %v3526 = vmax.f32 %v3014, 0.0
      %v3527 = vmax.f32 %v3015, 0.0
      %v3528 = vmax.f32 %v3016, 0.0
      %v3529 = vmax.f32 %v3017, 0.0
      %v3530 = vmax.f32 %v3018, 0.0
      %v3531 = vmax.f32 %v3019, 0.0
      %v3532 = vadd.f32 %v3341, %v3468
      %v3533 = vadd.f32 %v3343, %v3469
      %v3534 = vadd.f32 %v3345, %v3470
      %v3535 = vadd.f32 %v3347, %v3471
      %v3536 = vadd.f32 %v3349, %v3472
      %v3537 = vadd.f32 %v3351, %v3473
      %v3538 = vadd.f32 %v3353, %v3474
      %v3539 = vadd.f32 %v3355, %v3475
      %v3540 = vadd.f32 %v3357, %v3476
      %v3541 = vadd.f32 %v3359, %v3477
      %v3542 = vadd.f32 %v3361, %v3478
      %v3543 = vadd.f32 %v3363, %v3479
      %v3544 = vadd.f32 %v3365, %v3480
      %v3545 = vadd.f32 %v3367, %v3481
      %v3546 = vadd.f32 %v3369, %v3482
      %v3547 = vadd.f32 %v3371, %v3483
      %v3548 = vadd.f32 %v3373, %v3484
      %v3549 = vadd.f32 %v3375, %v3485
      %v3550 = vadd.f32 %v3377, %v3486
      %v3551 = vadd.f32 %v3379, %v3487
      %v3552 = vadd.f32 %v3381, %v3488
      %v3553 = vadd.f32 %v3383, %v3489
      %v3554 = vadd.f32 %v3385, %v3490
      %v3555 = vadd.f32 %v3387, %v3491
      %v3556 = vadd.f32 %v3389, %v3492
      %v3557 = vadd.f32 %v3391, %v3493
      %v3558 = vadd.f32 %v3393, %v3494
      %v3559 = vadd.f32 %v3395, %v3495
      %v3560 = vadd.f32 %v3397, %v3496
      %v3561 = vadd.f32 %v3399, %v3497
      %v3562 = vadd.f32 %v3401, %v3498
      %v3563 = vadd.f32 %v3403, %v3499
      %v3564 = vadd.f32 %v3405, %v3500
      %v3565 = vadd.f32 %v3407, %v3501
      %v3566 = vadd.f32 %v3409, %v3502
      %v3567 = vadd.f32 %v3411, %v3503
      %v3568 = vadd.f32 %v3413, %v3504
      %v3569 = vadd.f32 %v3415, %v3505
      %v3570 = vadd.f32 %v3417, %v3506
      %v3571 = vadd.f32 %v3419, %v3507
      %v3572 = vadd.f32 %v3421, %v3508
      %v3573 = vadd.f32 %v3423, %v3509
      %v3574 = vadd.f32 %v3425, %v3510
      %v3575 = vadd.f32 %v3427, %v3511
      %v3576 = vadd.f32 %v3429, %v3512
      %v3577 = vadd.f32 %v3431, %v3513
      %v3578 = vadd.f32 %v3433, %v3514
      %v3579 = vadd.f32 %v3435, %v3515
      %v3580 = vadd.f32 %v3437, %v3516
      %v3581 = vadd.f32 %v3439, %v3517
      %v3582 = vadd.f32 %v3441, %v3518
      %v3583 = vadd.f32 %v3443, %v3519
      %v3584 = vadd.f32 %v3445, %v3520
      %v3585 = vadd.f32 %v3447, %v3521
      %v3586 = vadd.f32 %v3449, %v3522
      %v3587 = vadd.f32 %v3451, %v3523
      %v3588 = vadd.f32 %v3453, %v3524
      %v3589 = vadd.f32 %v3455, %v3525
      %v3590 = vadd.f32 %v3457, %v3526
      %v3591 = vadd.f32 %v3459, %v3527
      %v3592 = vadd.f32 %v3461, %v3528
      %v3593 = vadd.f32 %v3463, %v3529
      %v3594 = vadd.f32 %v3465, %v3530
      %v3595 = vadd.f32 %v3467, %v3531
      %v3596 = vld [vmem:[%s6] sm:$0x1]
      %v3597 = vmul.f32 %v3596, 1.442695
      %v3598 = vpow.pop %v3597
      %v3599 = vsub.f32 0.0, %v3598
      %v3600 = vmul.f32 %v3532, %v2452
      %v3601 = vmul.f32 %v3533, %v2453
      %v3602 = vmul.f32 %v3534, %v2454
      %v3603 = vmul.f32 %v3535, %v2455
      %v3604 = vmul.f32 %v3536, %v2456
      %v3605 = vmul.f32 %v3537, %v2457
      %v3606 = vmul.f32 %v3538, %v2458
      %v3607 = vmul.f32 %v3539, %v2459
      %v3608 = vmul.f32 %v3540, %v2460
      %v3609 = vmul.f32 %v3541, %v2461
      %v3610 = vmul.f32 %v3542, %v2462
      %v3611 = vmul.f32 %v3543, %v2463
      %v3612 = vmul.f32 %v3544, %v2464
      %v3613 = vmul.f32 %v3545, %v2465
      %v3614 = vmul.f32 %v3546, %v2466
      %v3615 = vmul.f32 %v3547, %v2467
      %v3616 = vmul.f32 %v3548, %v2468
      %v3617 = vmul.f32 %v3549, %v2469
      %v3618 = vmul.f32 %v3550, %v2470
      %v3619 = vmul.f32 %v3551, %v2471
      %v3620 = vmul.f32 %v3552, %v2472
      %v3621 = vmul.f32 %v3553, %v2473
      %v3622 = vmul.f32 %v3554, %v2474
      %v3623 = vmul.f32 %v3555, %v2475
      %v3624 = vmul.f32 %v3556, %v2476
      %v3625 = vmul.f32 %v3557, %v2477
      %v3626 = vmul.f32 %v3558, %v2478
      %v3627 = vmul.f32 %v3559, %v2479
      %v3628 = vmul.f32 %v3560, %v2480
      %v3629 = vmul.f32 %v3561, %v2481
      %v3630 = vmul.f32 %v3562, %v2482
      %v3631 = vmul.f32 %v3563, %v2483
      %v3632 = vmul.f32 %v3564, %v2484
      %v3633 = vmul.f32 %v3565, %v2485
      %v3634 = vmul.f32 %v3566, %v2486
      %v3635 = vmul.f32 %v3567, %v2487
      %v3636 = vmul.f32 %v3568, %v2488
      %v3637 = vmul.f32 %v3569, %v2489
      %v3638 = vmul.f32 %v3570, %v2490
      %v3639 = vmul.f32 %v3571, %v2491
      %v3640 = vmul.f32 %v3572, %v2492
      %v3641 = vmul.f32 %v3573, %v2493
      %v3642 = vmul.f32 %v3574, %v2494
      %v3643 = vmul.f32 %v3575, %v2495
      %v3644 = vmul.f32 %v3576, %v2496
      %v3645 = vmul.f32 %v3577, %v2497
      %v3646 = vmul.f32 %v3578, %v2498
      %v3647 = vmul.f32 %v3579, %v2499
      %v3648 = vmul.f32 %v3580, %v2500
      %v3649 = vmul.f32 %v3581, %v2501
      %v3650 = vmul.f32 %v3582, %v2502
      %v3651 = vmul.f32 %v3583, %v2503
      %v3652 = vmul.f32 %v3584, %v2504
      %v3653 = vmul.f32 %v3585, %v2505
      %v3654 = vmul.f32 %v3586, %v2506
      %v3655 = vmul.f32 %v3587, %v2507
      %v3656 = vmul.f32 %v3588, %v2508
      %v3657 = vmul.f32 %v3589, %v2509
      %v3658 = vmul.f32 %v3590, %v2510
      %v3659 = vmul.f32 %v3591, %v2511
      %v3660 = vmul.f32 %v3592, %v2512
      %v3661 = vmul.f32 %v3593, %v2513
      %v3662 = vmul.f32 %v3594, %v2514
      %v3663 = vmul.f32 %v3595, %v2515
      %v3665 = vlaneseq
      %v3666 = vshrl.u32 %v3665, 7
      %v3667 = vsub.s32 0, %v3666
      %v3668 = vrot.slane %v3599, %v3667
      %v3670 = vmul.f32 %v3532, %v3668
      %v3671 = vmul.f32 %v3533, %v3668
      %v3672 = vmul.f32 %v3534, %v3668
      %v3673 = vmul.f32 %v3535, %v3668
      %v3674 = vmul.f32 %v3536, %v3668
      %v3675 = vmul.f32 %v3537, %v3668
      %v3676 = vmul.f32 %v3538, %v3668
      %v3677 = vmul.f32 %v3539, %v3668
      %v3678 = vmul.f32 %v3540, %v3668
      %v3679 = vmul.f32 %v3541, %v3668
      %v3680 = vmul.f32 %v3542, %v3668
      %v3681 = vmul.f32 %v3543, %v3668
      %v3682 = vmul.f32 %v3544, %v3668
      %v3683 = vmul.f32 %v3545, %v3668
      %v3684 = vmul.f32 %v3546, %v3668
      %v3685 = vmul.f32 %v3547, %v3668
      %v3686 = vmul.f32 %v3548, %v3668
      %v3687 = vmul.f32 %v3549, %v3668
      %v3688 = vmul.f32 %v3550, %v3668
      %v3689 = vmul.f32 %v3551, %v3668
      %v3690 = vmul.f32 %v3552, %v3668
      %v3691 = vmul.f32 %v3553, %v3668
      %v3692 = vmul.f32 %v3554, %v3668
      %v3693 = vmul.f32 %v3555, %v3668
      %v3694 = vmul.f32 %v3556, %v3668
      %v3695 = vmul.f32 %v3557, %v3668
      %v3696 = vmul.f32 %v3558, %v3668
      %v3697 = vmul.f32 %v3559, %v3668
      %v3698 = vmul.f32 %v3560, %v3668
      %v3699 = vmul.f32 %v3561, %v3668
      %v3700 = vmul.f32 %v3562, %v3668
      %v3701 = vmul.f32 %v3563, %v3668
      %v3702 = vmul.f32 %v3564, %v3668
      %v3703 = vmul.f32 %v3565, %v3668
      %v3704 = vmul.f32 %v3566, %v3668
      %v3705 = vmul.f32 %v3567, %v3668
      %v3706 = vmul.f32 %v3568, %v3668
      %v3707 = vmul.f32 %v3569, %v3668
      %v3708 = vmul.f32 %v3570, %v3668
      %v3709 = vmul.f32 %v3571, %v3668
      %v3710 = vmul.f32 %v3572, %v3668
      %v3711 = vmul.f32 %v3573, %v3668
      %v3712 = vmul.f32 %v3574, %v3668
      %v3713 = vmul.f32 %v3575, %v3668
      %v3714 = vmul.f32 %v3576, %v3668
      %v3715 = vmul.f32 %v3577, %v3668
      %v3716 = vmul.f32 %v3578, %v3668
      %v3717 = vmul.f32 %v3579, %v3668
      %v3718 = vmul.f32 %v3580, %v3668
      %v3719 = vmul.f32 %v3581, %v3668
      %v3720 = vmul.f32 %v3582, %v3668
      %v3721 = vmul.f32 %v3583, %v3668
      %v3722 = vmul.f32 %v3584, %v3668
      %v3723 = vmul.f32 %v3585, %v3668
      %v3724 = vmul.f32 %v3586, %v3668
      %v3725 = vmul.f32 %v3587, %v3668
      %v3726 = vmul.f32 %v3588, %v3668
      %v3727 = vmul.f32 %v3589, %v3668
      %v3728 = vmul.f32 %v3590, %v3668
      %v3729 = vmul.f32 %v3591, %v3668
      %v3730 = vmul.f32 %v3592, %v3668
      %v3731 = vmul.f32 %v3593, %v3668
      %v3732 = vmul.f32 %v3594, %v3668
      %v3733 = vmul.f32 %v3595, %v3668
      %v3734 = vmul.f32 %v3670, 1.442695
      %v3735 = vpow.pop %v3734
      %v3736 = vmul.f32 %v3671, 1.442695
      %v3737 = vpow.pop %v3736
      %v3738 = vmul.f32 %v3672, 1.442695
      %v3739 = vpow.pop %v3738
      %v3740 = vmul.f32 %v3673, 1.442695
      %v3741 = vpow.pop %v3740
      %v3742 = vmul.f32 %v3674, 1.442695
      %v3743 = vpow.pop %v3742
      %v3744 = vmul.f32 %v3675, 1.442695
      %v3745 = vpow.pop %v3744
      %v3746 = vmul.f32 %v3676, 1.442695
      %v3747 = vpow.pop %v3746
      %v3748 = vmul.f32 %v3677, 1.442695
      %v3749 = vpow.pop %v3748
      %v3750 = vmul.f32 %v3678, 1.442695
      %v3751 = vpow.pop %v3750
      %v3752 = vmul.f32 %v3679, 1.442695
      %v3753 = vpow.pop %v3752
      %v3754 = vmul.f32 %v3680, 1.442695
      %v3755 = vpow.pop %v3754
      %v3756 = vmul.f32 %v3681, 1.442695
      %v3757 = vpow.pop %v3756
      %v3758 = vmul.f32 %v3682, 1.442695
      %v3759 = vpow.pop %v3758
      %v3760 = vmul.f32 %v3683, 1.442695
      %v3761 = vpow.pop %v3760
      %v3762 = vmul.f32 %v3684, 1.442695
      %v3763 = vpow.pop %v3762
      %v3764 = vmul.f32 %v3685, 1.442695
      %v3765 = vpow.pop %v3764
      %v3766 = vmul.f32 %v3686, 1.442695
      %v3767 = vpow.pop %v3766
      %v3768 = vmul.f32 %v3687, 1.442695
      %v3769 = vpow.pop %v3768
      %v3770 = vmul.f32 %v3688, 1.442695
      %v3771 = vpow.pop %v3770
      %v3772 = vmul.f32 %v3689, 1.442695
      %v3773 = vpow.pop %v3772
      %v3774 = vmul.f32 %v3690, 1.442695
      %v3775 = vpow.pop %v3774
      %v3776 = vmul.f32 %v3691, 1.442695
      %v3777 = vpow.pop %v3776
      %v3778 = vmul.f32 %v3692, 1.442695
      %v3779 = vpow.pop %v3778
      %v3780 = vmul.f32 %v3693, 1.442695
      %v3781 = vpow.pop %v3780
      %v3782 = vmul.f32 %v3694, 1.442695
      %v3783 = vpow.pop %v3782
      %v3784 = vmul.f32 %v3695, 1.442695
      %v3785 = vpow.pop %v3784
      %v3786 = vmul.f32 %v3696, 1.442695
      %v3787 = vpow.pop %v3786
      %v3788 = vmul.f32 %v3697, 1.442695
      %v3789 = vpow.pop %v3788
      %v3790 = vmul.f32 %v3698, 1.442695
      %v3791 = vpow.pop %v3790
      %v3792 = vmul.f32 %v3699, 1.442695
      %v3793 = vpow.pop %v3792
      %v3794 = vmul.f32 %v3700, 1.442695
      %v3795 = vpow.pop %v3794
      %v3796 = vmul.f32 %v3701, 1.442695
      %v3797 = vpow.pop %v3796
      %v3798 = vmul.f32 %v3702, 1.442695
      %v3799 = vpow.pop %v3798
      %v3800 = vmul.f32 %v3703, 1.442695
      %v3801 = vpow.pop %v3800
      %v3802 = vmul.f32 %v3704, 1.442695
      %v3803 = vpow.pop %v3802
      %v3804 = vmul.f32 %v3705, 1.442695
      %v3805 = vpow.pop %v3804
      %v3806 = vmul.f32 %v3706, 1.442695
      %v3807 = vpow.pop %v3806
      %v3808 = vmul.f32 %v3707, 1.442695
      %v3809 = vpow.pop %v3808
      %v3810 = vmul.f32 %v3708, 1.442695
      %v3811 = vpow.pop %v3810
      %v3812 = vmul.f32 %v3709, 1.442695
      %v3813 = vpow.pop %v3812
      %v3814 = vmul.f32 %v3710, 1.442695
      %v3815 = vpow.pop %v3814
      %v3816 = vmul.f32 %v3711, 1.442695
      %v3817 = vpow.pop %v3816
      %v3818 = vmul.f32 %v3712, 1.442695
      %v3819 = vpow.pop %v3818
      %v3820 = vmul.f32 %v3713, 1.442695
      %v3821 = vpow.pop %v3820
      %v3822 = vmul.f32 %v3714, 1.442695
      %v3823 = vpow.pop %v3822
      %v3824 = vmul.f32 %v3715, 1.442695
      %v3825 = vpow.pop %v3824
      %v3826 = vmul.f32 %v3716, 1.442695
      %v3827 = vpow.pop %v3826
      %v3828 = vmul.f32 %v3717, 1.442695
      %v3829 = vpow.pop %v3828
      %v3830 = vmul.f32 %v3718, 1.442695
      %v3831 = vpow.pop %v3830
      %v3832 = vmul.f32 %v3719, 1.442695
      %v3833 = vpow.pop %v3832
      %v3834 = vmul.f32 %v3720, 1.442695
      %v3835 = vpow.pop %v3834
      %v3836 = vmul.f32 %v3721, 1.442695
      %v3837 = vpow.pop %v3836
      %v3838 = vmul.f32 %v3722, 1.442695
      %v3839 = vpow.pop %v3838
      %v3840 = vmul.f32 %v3723, 1.442695
      %v3841 = vpow.pop %v3840
      %v3842 = vmul.f32 %v3724, 1.442695
      %v3843 = vpow.pop %v3842
      %v3844 = vmul.f32 %v3725, 1.442695
      %v3845 = vpow.pop %v3844
      %v3846 = vmul.f32 %v3726, 1.442695
      %v3847 = vpow.pop %v3846
      %v3848 = vmul.f32 %v3727, 1.442695
      %v3849 = vpow.pop %v3848
      %v3850 = vmul.f32 %v3728, 1.442695
      %v3851 = vpow.pop %v3850
      %v3852 = vmul.f32 %v3729, 1.442695
      %v3853 = vpow.pop %v3852
      %v3854 = vmul.f32 %v3730, 1.442695
      %v3855 = vpow.pop %v3854
      %v3856 = vmul.f32 %v3731, 1.442695
      %v3857 = vpow.pop %v3856
      %v3858 = vmul.f32 %v3732, 1.442695
      %v3859 = vpow.pop %v3858
      %v3860 = vmul.f32 %v3733, 1.442695
      %v3861 = vpow.pop %v3860
      %3863 = vset.pattern.permute.xlu0 32
      %3864 = vperm.xlu0 %3863, %v2695
      %v3865 = vpop.permute.xlu0 %3864
      %3868 = vset.pattern.permute.xlu0 32
      %3869 = vperm.xlu0 %3868, %v2698
      %v3870 = vpop.permute.xlu0 %3869
      %3873 = vset.pattern.permute.xlu0 32
      %3874 = vperm.xlu0 %3873, %v2703
      %v3875 = vpop.permute.xlu0 %3874
      %3878 = vset.pattern.permute.xlu0 32
      %3879 = vperm.xlu0 %3878, %v2706
      %v3880 = vpop.permute.xlu0 %3879
      %3883 = vset.pattern.permute.xlu0 32
      %3884 = vperm.xlu0 %3883, %v2711
      %v3885 = vpop.permute.xlu0 %3884
      %3888 = vset.pattern.permute.xlu0 32
      %3889 = vperm.xlu0 %3888, %v2714
      %v3890 = vpop.permute.xlu0 %3889
      %3893 = vset.pattern.permute.xlu0 32
      %3894 = vperm.xlu0 %3893, %v2719
      %v3895 = vpop.permute.xlu0 %3894
      %3898 = vset.pattern.permute.xlu0 32
      %3899 = vperm.xlu0 %3898, %v2722
      %v3900 = vpop.permute.xlu0 %3899
      %3903 = vset.pattern.permute.xlu0 32
      %3904 = vperm.xlu0 %3903, %v2727
      %v3905 = vpop.permute.xlu0 %3904
      %3908 = vset.pattern.permute.xlu0 32
      %3909 = vperm.xlu0 %3908, %v2730
      %v3910 = vpop.permute.xlu0 %3909
      %3913 = vset.pattern.permute.xlu0 32
      %3914 = vperm.xlu0 %3913, %v2735
      %v3915 = vpop.permute.xlu0 %3914
      %3918 = vset.pattern.permute.xlu0 32
      %3919 = vperm.xlu0 %3918, %v2738
      %v3920 = vpop.permute.xlu0 %3919
      %3923 = vset.pattern.permute.xlu0 32
      %3924 = vperm.xlu0 %3923, %v2743
      %v3925 = vpop.permute.xlu0 %3924
      %3928 = vset.pattern.permute.xlu0 32
      %3929 = vperm.xlu0 %3928, %v2746
      %v3930 = vpop.permute.xlu0 %3929
      %3933 = vset.pattern.permute.xlu0 32
      %3934 = vperm.xlu0 %3933, %v2751
      %v3935 = vpop.permute.xlu0 %3934
      %3938 = vset.pattern.permute.xlu0 32
      %3939 = vperm.xlu0 %3938, %v2754
      %v3940 = vpop.permute.xlu0 %3939
      %3943 = vset.pattern.permute.xlu0 32
      %3944 = vperm.xlu0 %3943, %v2759
      %v3945 = vpop.permute.xlu0 %3944
      %3948 = vset.pattern.permute.xlu0 32
      %3949 = vperm.xlu0 %3948, %v2762
      %v3950 = vpop.permute.xlu0 %3949
      %3953 = vset.pattern.permute.xlu0 32
      %3954 = vperm.xlu0 %3953, %v2767
      %v3955 = vpop.permute.xlu0 %3954
      %3958 = vset.pattern.permute.xlu0 32
      %3959 = vperm.xlu0 %3958, %v2770
      %v3960 = vpop.permute.xlu0 %3959
      %3963 = vset.pattern.permute.xlu0 32
      %3964 = vperm.xlu0 %3963, %v2775
      %v3965 = vpop.permute.xlu0 %3964
      %3968 = vset.pattern.permute.xlu0 32
      %3969 = vperm.xlu0 %3968, %v2778
      %v3970 = vpop.permute.xlu0 %3969
      %3973 = vset.pattern.permute.xlu0 32
      %3974 = vperm.xlu0 %3973, %v2783
      %v3975 = vpop.permute.xlu0 %3974
      %3978 = vset.pattern.permute.xlu0 32
      %3979 = vperm.xlu0 %3978, %v2786
      %v3980 = vpop.permute.xlu0 %3979
      %3983 = vset.pattern.permute.xlu0 32
      %3984 = vperm.xlu0 %3983, %v2791
      %v3985 = vpop.permute.xlu0 %3984
      %3988 = vset.pattern.permute.xlu0 32
      %3989 = vperm.xlu0 %3988, %v2794
      %v3990 = vpop.permute.xlu0 %3989
      %3993 = vset.pattern.permute.xlu0 32
      %3994 = vperm.xlu0 %3993, %v2799
      %v3995 = vpop.permute.xlu0 %3994
      %3998 = vset.pattern.permute.xlu0 32
      %3999 = vperm.xlu0 %3998, %v2802
      %v4000 = vpop.permute.xlu0 %3999
      %4003 = vset.pattern.permute.xlu0 32
      %4004 = vperm.xlu0 %4003, %v2807
      %v4005 = vpop.permute.xlu0 %4004
      %4008 = vset.pattern.permute.xlu0 32
      %4009 = vperm.xlu0 %4008, %v2810
      %v4010 = vpop.permute.xlu0 %4009
      %4013 = vset.pattern.permute.xlu0 32
      %4014 = vperm.xlu0 %4013, %v2815
      %v4015 = vpop.permute.xlu0 %4014
      %4018 = vset.pattern.permute.xlu0 32
      %4019 = vperm.xlu0 %4018, %v2818
      %v4020 = vpop.permute.xlu0 %4019
      %4023 = vset.pattern.permute.xlu0 32
      %4024 = vperm.xlu0 %4023, %v2823
      %v4025 = vpop.permute.xlu0 %4024
      %4028 = vset.pattern.permute.xlu0 32
      %4029 = vperm.xlu0 %4028, %v2826
      %v4030 = vpop.permute.xlu0 %4029
      %4033 = vset.pattern.permute.xlu0 32
      %4034 = vperm.xlu0 %4033, %v2831
      %v4035 = vpop.permute.xlu0 %4034
      %4038 = vset.pattern.permute.xlu0 32
      %4039 = vperm.xlu0 %4038, %v2834
      %v4040 = vpop.permute.xlu0 %4039
      %4043 = vset.pattern.permute.xlu0 32
      %4044 = vperm.xlu0 %4043, %v2839
      %v4045 = vpop.permute.xlu0 %4044
      %4048 = vset.pattern.permute.xlu0 32
      %4049 = vperm.xlu0 %4048, %v2842
      %v4050 = vpop.permute.xlu0 %4049
      %4053 = vset.pattern.permute.xlu0 32
      %4054 = vperm.xlu0 %4053, %v2847
      %v4055 = vpop.permute.xlu0 %4054
      %4058 = vset.pattern.permute.xlu0 32
      %4059 = vperm.xlu0 %4058, %v2850
      %v4060 = vpop.permute.xlu0 %4059
      %4063 = vset.pattern.permute.xlu0 32
      %4064 = vperm.xlu0 %4063, %v2855
      %v4065 = vpop.permute.xlu0 %4064
      %4068 = vset.pattern.permute.xlu0 32
      %4069 = vperm.xlu0 %4068, %v2858
      %v4070 = vpop.permute.xlu0 %4069
      %4073 = vset.pattern.permute.xlu0 32
      %4074 = vperm.xlu0 %4073, %v2863
      %v4075 = vpop.permute.xlu0 %4074
      %4078 = vset.pattern.permute.xlu0 32
      %4079 = vperm.xlu0 %4078, %v2866
      %v4080 = vpop.permute.xlu0 %4079
      %4083 = vset.pattern.permute.xlu0 32
      %4084 = vperm.xlu0 %4083, %v2871
      %v4085 = vpop.permute.xlu0 %4084
      %4088 = vset.pattern.permute.xlu0 32
      %4089 = vperm.xlu0 %4088, %v2874
      %v4090 = vpop.permute.xlu0 %4089
      %4093 = vset.pattern.permute.xlu0 32
      %4094 = vperm.xlu0 %4093, %v2879
      %v4095 = vpop.permute.xlu0 %4094
      %4098 = vset.pattern.permute.xlu0 32
      %4099 = vperm.xlu0 %4098, %v2882
      %v4100 = vpop.permute.xlu0 %4099
      %4103 = vset.pattern.permute.xlu0 32
      %4104 = vperm.xlu0 %4103, %v2887
      %v4105 = vpop.permute.xlu0 %4104
      %4108 = vset.pattern.permute.xlu0 32
      %4109 = vperm.xlu0 %4108, %v2890
      %v4110 = vpop.permute.xlu0 %4109
      %4113 = vset.pattern.permute.xlu0 32
      %4114 = vperm.xlu0 %4113, %v2895
      %v4115 = vpop.permute.xlu0 %4114
      %4118 = vset.pattern.permute.xlu0 32
      %4119 = vperm.xlu0 %4118, %v2898
      %v4120 = vpop.permute.xlu0 %4119
      %4123 = vset.pattern.permute.xlu0 32
      %4124 = vperm.xlu0 %4123, %v2903
      %v4125 = vpop.permute.xlu0 %4124
      %4128 = vset.pattern.permute.xlu0 32
      %4129 = vperm.xlu0 %4128, %v2906
      %v4130 = vpop.permute.xlu0 %4129
      %4133 = vset.pattern.permute.xlu0 32
      %4134 = vperm.xlu0 %4133, %v2911
      %v4135 = vpop.permute.xlu0 %4134
      %4138 = vset.pattern.permute.xlu0 32
      %4139 = vperm.xlu0 %4138, %v2914
      %v4140 = vpop.permute.xlu0 %4139
      %4143 = vset.pattern.permute.xlu0 32
      %4144 = vperm.xlu0 %4143, %v2919
      %v4145 = vpop.permute.xlu0 %4144
      %4148 = vset.pattern.permute.xlu0 32
      %4149 = vperm.xlu0 %4148, %v2922
      %v4150 = vpop.permute.xlu0 %4149
      %4153 = vset.pattern.permute.xlu0 32
      %4154 = vperm.xlu0 %4153, %v2927
      %v4155 = vpop.permute.xlu0 %4154
      %4158 = vset.pattern.permute.xlu0 32
      %4159 = vperm.xlu0 %4158, %v2930
      %v4160 = vpop.permute.xlu0 %4159
      %4163 = vset.pattern.permute.xlu0 32
      %4164 = vperm.xlu0 %4163, %v2935
      %v4165 = vpop.permute.xlu0 %4164
      %4168 = vset.pattern.permute.xlu0 32
      %4169 = vperm.xlu0 %4168, %v2938
      %v4170 = vpop.permute.xlu0 %4169
      %4173 = vset.pattern.permute.xlu0 32
      %4174 = vperm.xlu0 %4173, %v2943
      %v4175 = vpop.permute.xlu0 %4174
      %4178 = vset.pattern.permute.xlu0 32
      %4179 = vperm.xlu0 %4178, %v2946
      %v4180 = vpop.permute.xlu0 %4179
      %v4182 = vmul.f32 %v3600, %v3865
      %v4183 = vmul.f32 %v3601, %v3870
      %v4184 = vmul.f32 %v3602, %v3875
      %v4185 = vmul.f32 %v3603, %v3880
      %v4186 = vmul.f32 %v3604, %v3885
      %v4187 = vmul.f32 %v3605, %v3890
      %v4188 = vmul.f32 %v3606, %v3895
      %v4189 = vmul.f32 %v3607, %v3900
      %v4190 = vmul.f32 %v3608, %v3905
      %v4191 = vmul.f32 %v3609, %v3910
      %v4192 = vmul.f32 %v3610, %v3915
      %v4193 = vmul.f32 %v3611, %v3920
      %v4194 = vmul.f32 %v3612, %v3925
      %v4195 = vmul.f32 %v3613, %v3930
      %v4196 = vmul.f32 %v3614, %v3935
      %v4197 = vmul.f32 %v3615, %v3940
      %v4198 = vmul.f32 %v3616, %v3945
      %v4199 = vmul.f32 %v3617, %v3950
      %v4200 = vmul.f32 %v3618, %v3955
      %v4201 = vmul.f32 %v3619, %v3960
      %v4202 = vmul.f32 %v3620, %v3965
      %v4203 = vmul.f32 %v3621, %v3970
      %v4204 = vmul.f32 %v3622, %v3975
      %v4205 = vmul.f32 %v3623, %v3980
      %v4206 = vmul.f32 %v3624, %v3985
      %v4207 = vmul.f32 %v3625, %v3990
      %v4208 = vmul.f32 %v3626, %v3995
      %v4209 = vmul.f32 %v3627, %v4000
      %v4210 = vmul.f32 %v3628, %v4005
      %v4211 = vmul.f32 %v3629, %v4010
      %v4212 = vmul.f32 %v3630, %v4015
      %v4213 = vmul.f32 %v3631, %v4020
      %v4214 = vmul.f32 %v3632, %v4025
      %v4215 = vmul.f32 %v3633, %v4030
      %v4216 = vmul.f32 %v3634, %v4035
      %v4217 = vmul.f32 %v3635, %v4040
      %v4218 = vmul.f32 %v3636, %v4045
      %v4219 = vmul.f32 %v3637, %v4050
      %v4220 = vmul.f32 %v3638, %v4055
      %v4221 = vmul.f32 %v3639, %v4060
      %v4222 = vmul.f32 %v3640, %v4065
      %v4223 = vmul.f32 %v3641, %v4070
      %v4224 = vmul.f32 %v3642, %v4075
      %v4225 = vmul.f32 %v3643, %v4080
      %v4226 = vmul.f32 %v3644, %v4085
      %v4227 = vmul.f32 %v3645, %v4090
      %v4228 = vmul.f32 %v3646, %v4095
      %v4229 = vmul.f32 %v3647, %v4100
      %v4230 = vmul.f32 %v3648, %v4105
      %v4231 = vmul.f32 %v3649, %v4110
      %v4232 = vmul.f32 %v3650, %v4115
      %v4233 = vmul.f32 %v3651, %v4120
      %v4234 = vmul.f32 %v3652, %v4125
      %v4235 = vmul.f32 %v3653, %v4130
      %v4236 = vmul.f32 %v3654, %v4135
      %v4237 = vmul.f32 %v3655, %v4140
      %v4238 = vmul.f32 %v3656, %v4145
      %v4239 = vmul.f32 %v3657, %v4150
      %v4240 = vmul.f32 %v3658, %v4155
      %v4241 = vmul.f32 %v3659, %v4160
      %v4242 = vmul.f32 %v3660, %v4165
      %v4243 = vmul.f32 %v3661, %v4170
      %v4244 = vmul.f32 %v3662, %v4175
      %v4245 = vmul.f32 %v3663, %v4180
      %v4246 = vmul.f32 %v3735, 0.0
      %v4247 = vmul.f32 %v3737, %v4182
      %v4248 = vmul.f32 %v3739, %v4183
      %v4249 = vmul.f32 %v3741, %v4184
      %v4250 = vmul.f32 %v3743, %v4185
      %v4251 = vmul.f32 %v3745, %v4186
      %v4252 = vmul.f32 %v3747, %v4187
      %v4253 = vmul.f32 %v3749, %v4188
      %v4254 = vmul.f32 %v3751, %v4189
      %v4255 = vmul.f32 %v3753, %v4190
      %v4256 = vmul.f32 %v3755, %v4191
      %v4257 = vmul.f32 %v3757, %v4192
      %v4258 = vmul.f32 %v3759, %v4193
      %v4259 = vmul.f32 %v3761, %v4194
      %v4260 = vmul.f32 %v3763, %v4195
      %v4261 = vmul.f32 %v3765, %v4196
      %v4262 = vmul.f32 %v3767, %v4197
      %v4263 = vmul.f32 %v3769, %v4198
      %v4264 = vmul.f32 %v3771, %v4199
      %v4265 = vmul.f32 %v3773, %v4200
      %v4266 = vmul.f32 %v3775, %v4201
      %v4267 = vmul.f32 %v3777, %v4202
      %v4268 = vmul.f32 %v3779, %v4203
      %v4269 = vmul.f32 %v3781, %v4204
      %v4270 = vmul.f32 %v3783, %v4205
      %v4271 = vmul.f32 %v3785, %v4206
      %v4272 = vmul.f32 %v3787, %v4207
      %v4273 = vmul.f32 %v3789, %v4208
      %v4274 = vmul.f32 %v3791, %v4209
      %v4275 = vmul.f32 %v3793, %v4210
      %v4276 = vmul.f32 %v3795, %v4211
      %v4277 = vmul.f32 %v3797, %v4212
      %v4278 = vmul.f32 %v3799, %v4213
      %v4279 = vmul.f32 %v3801, %v4214
      %v4280 = vmul.f32 %v3803, %v4215
      %v4281 = vmul.f32 %v3805, %v4216
      %v4282 = vmul.f32 %v3807, %v4217
      %v4283 = vmul.f32 %v3809, %v4218
      %v4284 = vmul.f32 %v3811, %v4219
      %v4285 = vmul.f32 %v3813, %v4220
      %v4286 = vmul.f32 %v3815, %v4221
      %v4287 = vmul.f32 %v3817, %v4222
      %v4288 = vmul.f32 %v3819, %v4223
      %v4289 = vmul.f32 %v3821, %v4224
      %v4290 = vmul.f32 %v3823, %v4225
      %v4291 = vmul.f32 %v3825, %v4226
      %v4292 = vmul.f32 %v3827, %v4227
      %v4293 = vmul.f32 %v3829, %v4228
      %v4294 = vmul.f32 %v3831, %v4229
      %v4295 = vmul.f32 %v3833, %v4230
      %v4296 = vmul.f32 %v3835, %v4231
      %v4297 = vmul.f32 %v3837, %v4232
      %v4298 = vmul.f32 %v3839, %v4233
      %v4299 = vmul.f32 %v3841, %v4234
      %v4300 = vmul.f32 %v3843, %v4235
      %v4301 = vmul.f32 %v3845, %v4236
      %v4302 = vmul.f32 %v3847, %v4237
      %v4303 = vmul.f32 %v3849, %v4238
      %v4304 = vmul.f32 %v3851, %v4239
      %v4305 = vmul.f32 %v3853, %v4240
      %v4306 = vmul.f32 %v3855, %v4241
      %v4307 = vmul.f32 %v3857, %v4242
      %v4308 = vmul.f32 %v3859, %v4243
      %v4309 = vmul.f32 %v3861, %v4244
      %v4310 = vadd.f32 %v4246, %v4182
      %v4311 = vadd.f32 %v4247, %v4183
      %v4312 = vadd.f32 %v4248, %v4184
      %v4313 = vadd.f32 %v4249, %v4185
      %v4314 = vadd.f32 %v4250, %v4186
      %v4315 = vadd.f32 %v4251, %v4187
      %v4316 = vadd.f32 %v4252, %v4188
      %v4317 = vadd.f32 %v4253, %v4189
      %v4318 = vadd.f32 %v4254, %v4190
      %v4319 = vadd.f32 %v4255, %v4191
      %v4320 = vadd.f32 %v4256, %v4192
      %v4321 = vadd.f32 %v4257, %v4193
      %v4322 = vadd.f32 %v4258, %v4194
      %v4323 = vadd.f32 %v4259, %v4195
      %v4324 = vadd.f32 %v4260, %v4196
      %v4325 = vadd.f32 %v4261, %v4197
      %v4326 = vadd.f32 %v4262, %v4198
      %v4327 = vadd.f32 %v4263, %v4199
      %v4328 = vadd.f32 %v4264, %v4200
      %v4329 = vadd.f32 %v4265, %v4201
      %v4330 = vadd.f32 %v4266, %v4202
      %v4331 = vadd.f32 %v4267, %v4203
      %v4332 = vadd.f32 %v4268, %v4204
      %v4333 = vadd.f32 %v4269, %v4205
      %v4334 = vadd.f32 %v4270, %v4206
      %v4335 = vadd.f32 %v4271, %v4207
      %v4336 = vadd.f32 %v4272, %v4208
      %v4337 = vadd.f32 %v4273, %v4209
      %v4338 = vadd.f32 %v4274, %v4210
      %v4339 = vadd.f32 %v4275, %v4211
      %v4340 = vadd.f32 %v4276, %v4212
      %v4341 = vadd.f32 %v4277, %v4213
      %v4342 = vadd.f32 %v4278, %v4214
      %v4343 = vadd.f32 %v4279, %v4215
      %v4344 = vadd.f32 %v4280, %v4216
      %v4345 = vadd.f32 %v4281, %v4217
      %v4346 = vadd.f32 %v4282, %v4218
      %v4347 = vadd.f32 %v4283, %v4219
      %v4348 = vadd.f32 %v4284, %v4220
      %v4349 = vadd.f32 %v4285, %v4221
      %v4350 = vadd.f32 %v4286, %v4222
      %v4351 = vadd.f32 %v4287, %v4223
      %v4352 = vadd.f32 %v4288, %v4224
      %v4353 = vadd.f32 %v4289, %v4225
      %v4354 = vadd.f32 %v4290, %v4226
      %v4355 = vadd.f32 %v4291, %v4227
      %v4356 = vadd.f32 %v4292, %v4228
      %v4357 = vadd.f32 %v4293, %v4229
      %v4358 = vadd.f32 %v4294, %v4230
      %v4359 = vadd.f32 %v4295, %v4231
      %v4360 = vadd.f32 %v4296, %v4232
      %v4361 = vadd.f32 %v4297, %v4233
      %v4362 = vadd.f32 %v4298, %v4234
      %v4363 = vadd.f32 %v4299, %v4235
      %v4364 = vadd.f32 %v4300, %v4236
      %v4365 = vadd.f32 %v4301, %v4237
      %v4366 = vadd.f32 %v4302, %v4238
      %v4367 = vadd.f32 %v4303, %v4239
      %v4368 = vadd.f32 %v4304, %v4240
      %v4369 = vadd.f32 %v4305, %v4241
      %v4370 = vadd.f32 %v4306, %v4242
      %v4371 = vadd.f32 %v4307, %v4243
      %v4372 = vadd.f32 %v4308, %v4244
      %v4373 = vadd.f32 %v4309, %v4245
      %v4374 = vmul.f32 %v3737, %v3735
      %v4375 = vmul.f32 %v3739, %v3737
      %v4376 = vmul.f32 %v3741, %v3739
      %v4377 = vmul.f32 %v3743, %v3741
      %v4378 = vmul.f32 %v3745, %v3743
      %v4379 = vmul.f32 %v3747, %v3745
      %v4380 = vmul.f32 %v3749, %v3747
      %v4381 = vmul.f32 %v3751, %v3749
      %v4382 = vmul.f32 %v3753, %v3751
      %v4383 = vmul.f32 %v3755, %v3753
      %v4384 = vmul.f32 %v3757, %v3755
      %v4385 = vmul.f32 %v3759, %v3757
      %v4386 = vmul.f32 %v3761, %v3759
      %v4387 = vmul.f32 %v3763, %v3761
      %v4388 = vmul.f32 %v3765, %v3763
      %v4389 = vmul.f32 %v3767, %v3765
      %v4390 = vmul.f32 %v3769, %v3767
      %v4391 = vmul.f32 %v3771, %v3769
      %v4392 = vmul.f32 %v3773, %v3771
      %v4393 = vmul.f32 %v3775, %v3773
      %v4394 = vmul.f32 %v3777, %v3775
      %v4395 = vmul.f32 %v3779, %v3777
      %v4396 = vmul.f32 %v3781, %v3779
      %v4397 = vmul.f32 %v3783, %v3781
      %v4398 = vmul.f32 %v3785, %v3783
      %v4399 = vmul.f32 %v3787, %v3785
      %v4400 = vmul.f32 %v3789, %v3787
      %v4401 = vmul.f32 %v3791, %v3789
      %v4402 = vmul.f32 %v3793, %v3791
      %v4403 = vmul.f32 %v3795, %v3793
      %v4404 = vmul.f32 %v3797, %v3795
      %v4405 = vmul.f32 %v3799, %v3797
      %v4406 = vmul.f32 %v3801, %v3799
      %v4407 = vmul.f32 %v3803, %v3801
      %v4408 = vmul.f32 %v3805, %v3803
      %v4409 = vmul.f32 %v3807, %v3805
      %v4410 = vmul.f32 %v3809, %v3807
      %v4411 = vmul.f32 %v3811, %v3809
      %v4412 = vmul.f32 %v3813, %v3811
      %v4413 = vmul.f32 %v3815, %v3813
      %v4414 = vmul.f32 %v3817, %v3815
      %v4415 = vmul.f32 %v3819, %v3817
      %v4416 = vmul.f32 %v3821, %v3819
      %v4417 = vmul.f32 %v3823, %v3821
      %v4418 = vmul.f32 %v3825, %v3823
      %v4419 = vmul.f32 %v3827, %v3825
      %v4420 = vmul.f32 %v3829, %v3827
      %v4421 = vmul.f32 %v3831, %v3829
      %v4422 = vmul.f32 %v3833, %v3831
      %v4423 = vmul.f32 %v3835, %v3833
      %v4424 = vmul.f32 %v3837, %v3835
      %v4425 = vmul.f32 %v3839, %v3837
      %v4426 = vmul.f32 %v3841, %v3839
      %v4427 = vmul.f32 %v3843, %v3841
      %v4428 = vmul.f32 %v3845, %v3843
      %v4429 = vmul.f32 %v3847, %v3845
      %v4430 = vmul.f32 %v3849, %v3847
      %v4431 = vmul.f32 %v3851, %v3849
      %v4432 = vmul.f32 %v3853, %v3851
      %v4433 = vmul.f32 %v3855, %v3853
      %v4434 = vmul.f32 %v3857, %v3855
      %v4435 = vmul.f32 %v3859, %v3857
      %v4436 = vmul.f32 %v3861, %v3859
      %v4437 = vmul.f32 %v4374, 0.0
      %v4438 = vmul.f32 %v4375, %v4310
      %v4439 = vmul.f32 %v4376, %v4311
      %v4440 = vmul.f32 %v4377, %v4312
      %v4441 = vmul.f32 %v4378, %v4313
      %v4442 = vmul.f32 %v4379, %v4314
      %v4443 = vmul.f32 %v4380, %v4315
      %v4444 = vmul.f32 %v4381, %v4316
      %v4445 = vmul.f32 %v4382, %v4317
      %v4446 = vmul.f32 %v4383, %v4318
      %v4447 = vmul.f32 %v4384, %v4319
      %v4448 = vmul.f32 %v4385, %v4320
      %v4449 = vmul.f32 %v4386, %v4321
      %v4450 = vmul.f32 %v4387, %v4322
      %v4451 = vmul.f32 %v4388, %v4323
      %v4452 = vmul.f32 %v4389, %v4324
      %v4453 = vmul.f32 %v4390, %v4325
      %v4454 = vmul.f32 %v4391, %v4326
      %v4455 = vmul.f32 %v4392, %v4327
      %v4456 = vmul.f32 %v4393, %v4328
      %v4457 = vmul.f32 %v4394, %v4329
      %v4458 = vmul.f32 %v4395, %v4330
      %v4459 = vmul.f32 %v4396, %v4331
      %v4460 = vmul.f32 %v4397, %v4332
      %v4461 = vmul.f32 %v4398, %v4333
      %v4462 = vmul.f32 %v4399, %v4334
      %v4463 = vmul.f32 %v4400, %v4335
      %v4464 = vmul.f32 %v4401, %v4336
      %v4465 = vmul.f32 %v4402, %v4337
      %v4466 = vmul.f32 %v4403, %v4338
      %v4467 = vmul.f32 %v4404, %v4339
      %v4468 = vmul.f32 %v4405, %v4340
      %v4469 = vmul.f32 %v4406, %v4341
      %v4470 = vmul.f32 %v4407, %v4342
      %v4471 = vmul.f32 %v4408, %v4343
      %v4472 = vmul.f32 %v4409, %v4344
      %v4473 = vmul.f32 %v4410, %v4345
      %v4474 = vmul.f32 %v4411, %v4346
      %v4475 = vmul.f32 %v4412, %v4347
      %v4476 = vmul.f32 %v4413, %v4348
      %v4477 = vmul.f32 %v4414, %v4349
      %v4478 = vmul.f32 %v4415, %v4350
      %v4479 = vmul.f32 %v4416, %v4351
      %v4480 = vmul.f32 %v4417, %v4352
      %v4481 = vmul.f32 %v4418, %v4353
      %v4482 = vmul.f32 %v4419, %v4354
      %v4483 = vmul.f32 %v4420, %v4355
      %v4484 = vmul.f32 %v4421, %v4356
      %v4485 = vmul.f32 %v4422, %v4357
      %v4486 = vmul.f32 %v4423, %v4358
      %v4487 = vmul.f32 %v4424, %v4359
      %v4488 = vmul.f32 %v4425, %v4360
      %v4489 = vmul.f32 %v4426, %v4361
      %v4490 = vmul.f32 %v4427, %v4362
      %v4491 = vmul.f32 %v4428, %v4363
      %v4492 = vmul.f32 %v4429, %v4364
      %v4493 = vmul.f32 %v4430, %v4365
      %v4494 = vmul.f32 %v4431, %v4366
      %v4495 = vmul.f32 %v4432, %v4367
      %v4496 = vmul.f32 %v4433, %v4368
      %v4497 = vmul.f32 %v4434, %v4369
      %v4498 = vmul.f32 %v4435, %v4370
      %v4499 = vmul.f32 %v4436, %v4371
      %v4500 = vadd.f32 %v4246, %v4310
      %v4501 = vadd.f32 %v4437, %v4311
      %v4502 = vadd.f32 %v4438, %v4312
      %v4503 = vadd.f32 %v4439, %v4313
      %v4504 = vadd.f32 %v4440, %v4314
      %v4505 = vadd.f32 %v4441, %v4315
      %v4506 = vadd.f32 %v4442, %v4316
      %v4507 = vadd.f32 %v4443, %v4317
      %v4508 = vadd.f32 %v4444, %v4318
      %v4509 = vadd.f32 %v4445, %v4319
      %v4510 = vadd.f32 %v4446, %v4320
      %v4511 = vadd.f32 %v4447, %v4321
      %v4512 = vadd.f32 %v4448, %v4322
      %v4513 = vadd.f32 %v4449, %v4323
      %v4514 = vadd.f32 %v4450, %v4324
      %v4515 = vadd.f32 %v4451, %v4325
      %v4516 = vadd.f32 %v4452, %v4326
      %v4517 = vadd.f32 %v4453, %v4327
      %v4518 = vadd.f32 %v4454, %v4328
      %v4519 = vadd.f32 %v4455, %v4329
      %v4520 = vadd.f32 %v4456, %v4330
      %v4521 = vadd.f32 %v4457, %v4331
      %v4522 = vadd.f32 %v4458, %v4332
      %v4523 = vadd.f32 %v4459, %v4333
      %v4524 = vadd.f32 %v4460, %v4334
      %v4525 = vadd.f32 %v4461, %v4335
      %v4526 = vadd.f32 %v4462, %v4336
      %v4527 = vadd.f32 %v4463, %v4337
      %v4528 = vadd.f32 %v4464, %v4338
      %v4529 = vadd.f32 %v4465, %v4339
      %v4530 = vadd.f32 %v4466, %v4340
      %v4531 = vadd.f32 %v4467, %v4341
      %v4532 = vadd.f32 %v4468, %v4342
      %v4533 = vadd.f32 %v4469, %v4343
      %v4534 = vadd.f32 %v4470, %v4344
      %v4535 = vadd.f32 %v4471, %v4345
      %v4536 = vadd.f32 %v4472, %v4346
      %v4537 = vadd.f32 %v4473, %v4347
      %v4538 = vadd.f32 %v4474, %v4348
      %v4539 = vadd.f32 %v4475, %v4349
      %v4540 = vadd.f32 %v4476, %v4350
      %v4541 = vadd.f32 %v4477, %v4351
      %v4542 = vadd.f32 %v4478, %v4352
      %v4543 = vadd.f32 %v4479, %v4353
      %v4544 = vadd.f32 %v4480, %v4354
      %v4545 = vadd.f32 %v4481, %v4355
      %v4546 = vadd.f32 %v4482, %v4356
      %v4547 = vadd.f32 %v4483, %v4357
      %v4548 = vadd.f32 %v4484, %v4358
      %v4549 = vadd.f32 %v4485, %v4359
      %v4550 = vadd.f32 %v4486, %v4360
      %v4551 = vadd.f32 %v4487, %v4361
      %v4552 = vadd.f32 %v4488, %v4362
      %v4553 = vadd.f32 %v4489, %v4363
      %v4554 = vadd.f32 %v4490, %v4364
      %v4555 = vadd.f32 %v4491, %v4365
      %v4556 = vadd.f32 %v4492, %v4366
      %v4557 = vadd.f32 %v4493, %v4367
      %v4558 = vadd.f32 %v4494, %v4368
      %v4559 = vadd.f32 %v4495, %v4369
      %v4560 = vadd.f32 %v4496, %v4370
      %v4561 = vadd.f32 %v4497, %v4371
      %v4562 = vadd.f32 %v4498, %v4372
      %v4563 = vadd.f32 %v4499, %v4373
      %v4564 = vmul.f32 %v4375, %v3735
      %v4565 = vmul.f32 %v4376, %v4374
      %v4566 = vmul.f32 %v4377, %v4375
      %v4567 = vmul.f32 %v4378, %v4376
      %v4568 = vmul.f32 %v4379, %v4377
      %v4569 = vmul.f32 %v4380, %v4378
      %v4570 = vmul.f32 %v4381, %v4379
      %v4571 = vmul.f32 %v4382, %v4380
      %v4572 = vmul.f32 %v4383, %v4381
      %v4573 = vmul.f32 %v4384, %v4382
      %v4574 = vmul.f32 %v4385, %v4383
      %v4575 = vmul.f32 %v4386, %v4384
      %v4576 = vmul.f32 %v4387, %v4385
      %v4577 = vmul.f32 %v4388, %v4386
      %v4578 = vmul.f32 %v4389, %v4387
      %v4579 = vmul.f32 %v4390, %v4388
      %v4580 = vmul.f32 %v4391, %v4389
      %v4581 = vmul.f32 %v4392, %v4390
      %v4582 = vmul.f32 %v4393, %v4391
      %v4583 = vmul.f32 %v4394, %v4392
      %v4584 = vmul.f32 %v4395, %v4393
      %v4585 = vmul.f32 %v4396, %v4394
      %v4586 = vmul.f32 %v4397, %v4395
      %v4587 = vmul.f32 %v4398, %v4396
      %v4588 = vmul.f32 %v4399, %v4397
      %v4589 = vmul.f32 %v4400, %v4398
      %v4590 = vmul.f32 %v4401, %v4399
      %v4591 = vmul.f32 %v4402, %v4400
      %v4592 = vmul.f32 %v4403, %v4401
      %v4593 = vmul.f32 %v4404, %v4402
      %v4594 = vmul.f32 %v4405, %v4403
      %v4595 = vmul.f32 %v4406, %v4404
      %v4596 = vmul.f32 %v4407, %v4405
      %v4597 = vmul.f32 %v4408, %v4406
      %v4598 = vmul.f32 %v4409, %v4407
      %v4599 = vmul.f32 %v4410, %v4408
      %v4600 = vmul.f32 %v4411, %v4409
      %v4601 = vmul.f32 %v4412, %v4410
      %v4602 = vmul.f32 %v4413, %v4411
      %v4603 = vmul.f32 %v4414, %v4412
      %v4604 = vmul.f32 %v4415, %v4413
      %v4605 = vmul.f32 %v4416, %v4414
      %v4606 = vmul.f32 %v4417, %v4415
      %v4607 = vmul.f32 %v4418, %v4416
      %v4608 = vmul.f32 %v4419, %v4417
      %v4609 = vmul.f32 %v4420, %v4418
      %v4610 = vmul.f32 %v4421, %v4419
      %v4611 = vmul.f32 %v4422, %v4420
      %v4612 = vmul.f32 %v4423, %v4421
      %v4613 = vmul.f32 %v4424, %v4422
      %v4614 = vmul.f32 %v4425, %v4423
      %v4615 = vmul.f32 %v4426, %v4424
      %v4616 = vmul.f32 %v4427, %v4425
      %v4617 = vmul.f32 %v4428, %v4426
      %v4618 = vmul.f32 %v4429, %v4427
      %v4619 = vmul.f32 %v4430, %v4428
      %v4620 = vmul.f32 %v4431, %v4429
      %v4621 = vmul.f32 %v4432, %v4430
      %v4622 = vmul.f32 %v4433, %v4431
      %v4623 = vmul.f32 %v4434, %v4432
      %v4624 = vmul.f32 %v4435, %v4433
      %v4625 = vmul.f32 %v4436, %v4434
      %v4626 = vmul.f32 %v4564, 0.0
      %v4627 = vmul.f32 %v4565, 0.0
      %v4628 = vmul.f32 %v4566, %v4500
      %v4629 = vmul.f32 %v4567, %v4501
      %v4630 = vmul.f32 %v4568, %v4502
      %v4631 = vmul.f32 %v4569, %v4503
      %v4632 = vmul.f32 %v4570, %v4504
      %v4633 = vmul.f32 %v4571, %v4505
      %v4634 = vmul.f32 %v4572, %v4506
      %v4635 = vmul.f32 %v4573, %v4507
      %v4636 = vmul.f32 %v4574, %v4508
      %v4637 = vmul.f32 %v4575, %v4509
      %v4638 = vmul.f32 %v4576, %v4510
      %v4639 = vmul.f32 %v4577, %v4511
      %v4640 = vmul.f32 %v4578, %v4512
      %v4641 = vmul.f32 %v4579, %v4513
      %v4642 = vmul.f32 %v4580, %v4514
      %v4643 = vmul.f32 %v4581, %v4515
      %v4644 = vmul.f32 %v4582, %v4516
      %v4645 = vmul.f32 %v4583, %v4517
      %v4646 = vmul.f32 %v4584, %v4518
      %v4647 = vmul.f32 %v4585, %v4519
      %v4648 = vmul.f32 %v4586, %v4520
      %v4649 = vmul.f32 %v4587, %v4521
      %v4650 = vmul.f32 %v4588, %v4522
      %v4651 = vmul.f32 %v4589, %v4523
      %v4652 = vmul.f32 %v4590, %v4524
      %v4653 = vmul.f32 %v4591, %v4525
      %v4654 = vmul.f32 %v4592, %v4526
      %v4655 = vmul.f32 %v4593, %v4527
      %v4656 = vmul.f32 %v4594, %v4528
      %v4657 = vmul.f32 %v4595, %v4529
      %v4658 = vmul.f32 %v4596, %v4530
      %v4659 = vmul.f32 %v4597, %v4531
      %v4660 = vmul.f32 %v4598, %v4532
      %v4661 = vmul.f32 %v4599, %v4533
      %v4662 = vmul.f32 %v4600, %v4534
      %v4663 = vmul.f32 %v4601, %v4535
      %v4664 = vmul.f32 %v4602, %v4536
      %v4665 = vmul.f32 %v4603, %v4537
      %v4666 = vmul.f32 %v4604, %v4538
      %v4667 = vmul.f32 %v4605, %v4539
      %v4668 = vmul.f32 %v4606, %v4540
      %v4669 = vmul.f32 %v4607, %v4541
      %v4670 = vmul.f32 %v4608, %v4542
      %v4671 = vmul.f32 %v4609, %v4543
      %v4672 = vmul.f32 %v4610, %v4544
      %v4673 = vmul.f32 %v4611, %v4545
      %v4674 = vmul.f32 %v4612, %v4546
      %v4675 = vmul.f32 %v4613, %v4547
      %v4676 = vmul.f32 %v4614, %v4548
      %v4677 = vmul.f32 %v4615, %v4549
      %v4678 = vmul.f32 %v4616, %v4550
      %v4679 = vmul.f32 %v4617, %v4551
      %v4680 = vmul.f32 %v4618, %v4552
      %v4681 = vmul.f32 %v4619, %v4553
      %v4682 = vmul.f32 %v4620, %v4554
      %v4683 = vmul.f32 %v4621, %v4555
      %v4684 = vmul.f32 %v4622, %v4556
      %v4685 = vmul.f32 %v4623, %v4557
      %v4686 = vmul.f32 %v4624, %v4558
      %v4687 = vmul.f32 %v4625, %v4559
      %v4688 = vadd.f32 %v4246, %v4500
      %v4689 = vadd.f32 %v4437, %v4501
      %v4690 = vadd.f32 %v4626, %v4502
      %v4691 = vadd.f32 %v4627, %v4503
      %v4692 = vadd.f32 %v4628, %v4504
      %v4693 = vadd.f32 %v4629, %v4505
      %v4694 = vadd.f32 %v4630, %v4506
      %v4695 = vadd.f32 %v4631, %v4507
      %v4696 = vadd.f32 %v4632, %v4508
      %v4697 = vadd.f32 %v4633, %v4509
      %v4698 = vadd.f32 %v4634, %v4510
      %v4699 = vadd.f32 %v4635, %v4511
      %v4700 = vadd.f32 %v4636, %v4512
      %v4701 = vadd.f32 %v4637, %v4513
      %v4702 = vadd.f32 %v4638, %v4514
      %v4703 = vadd.f32 %v4639, %v4515
      %v4704 = vadd.f32 %v4640, %v4516
      %v4705 = vadd.f32 %v4641, %v4517
      %v4706 = vadd.f32 %v4642, %v4518
      %v4707 = vadd.f32 %v4643, %v4519
      %v4708 = vadd.f32 %v4644, %v4520
      %v4709 = vadd.f32 %v4645, %v4521
      %v4710 = vadd.f32 %v4646, %v4522
      %v4711 = vadd.f32 %v4647, %v4523
      %v4712 = vadd.f32 %v4648, %v4524
      %v4713 = vadd.f32 %v4649, %v4525
      %v4714 = vadd.f32 %v4650, %v4526
      %v4715 = vadd.f32 %v4651, %v4527
      %v4716 = vadd.f32 %v4652, %v4528
      %v4717 = vadd.f32 %v4653, %v4529
      %v4718 = vadd.f32 %v4654, %v4530
      %v4719 = vadd.f32 %v4655, %v4531
      %v4720 = vadd.f32 %v4656, %v4532
      %v4721 = vadd.f32 %v4657, %v4533
      %v4722 = vadd.f32 %v4658, %v4534
      %v4723 = vadd.f32 %v4659, %v4535
      %v4724 = vadd.f32 %v4660, %v4536
      %v4725 = vadd.f32 %v4661, %v4537
      %v4726 = vadd.f32 %v4662, %v4538
      %v4727 = vadd.f32 %v4663, %v4539
      %v4728 = vadd.f32 %v4664, %v4540
      %v4729 = vadd.f32 %v4665, %v4541
      %v4730 = vadd.f32 %v4666, %v4542
      %v4731 = vadd.f32 %v4667, %v4543
      %v4732 = vadd.f32 %v4668, %v4544
      %v4733 = vadd.f32 %v4669, %v4545
      %v4734 = vadd.f32 %v4670, %v4546
      %v4735 = vadd.f32 %v4671, %v4547
      %v4736 = vadd.f32 %v4672, %v4548
      %v4737 = vadd.f32 %v4673, %v4549
      %v4738 = vadd.f32 %v4674, %v4550
      %v4739 = vadd.f32 %v4675, %v4551
      %v4740 = vadd.f32 %v4676, %v4552
      %v4741 = vadd.f32 %v4677, %v4553
      %v4742 = vadd.f32 %v4678, %v4554
      %v4743 = vadd.f32 %v4679, %v4555
      %v4744 = vadd.f32 %v4680, %v4556
      %v4745 = vadd.f32 %v4681, %v4557
      %v4746 = vadd.f32 %v4682, %v4558
      %v4747 = vadd.f32 %v4683, %v4559
      %v4748 = vadd.f32 %v4684, %v4560
      %v4749 = vadd.f32 %v4685, %v4561
      %v4750 = vadd.f32 %v4686, %v4562
      %v4751 = vadd.f32 %v4687, %v4563
      %v4752 = vmul.f32 %v4566, %v3735
      %v4753 = vmul.f32 %v4567, %v4374
      %v4754 = vmul.f32 %v4568, %v4564
      %v4755 = vmul.f32 %v4569, %v4565
      %v4756 = vmul.f32 %v4570, %v4566
      %v4757 = vmul.f32 %v4571, %v4567
      %v4758 = vmul.f32 %v4572, %v4568
      %v4759 = vmul.f32 %v4573, %v4569
      %v4760 = vmul.f32 %v4574, %v4570
      %v4761 = vmul.f32 %v4575, %v4571
      %v4762 = vmul.f32 %v4576, %v4572
      %v4763 = vmul.f32 %v4577, %v4573
      %v4764 = vmul.f32 %v4578, %v4574
      %v4765 = vmul.f32 %v4579, %v4575
      %v4766 = vmul.f32 %v4580, %v4576
      %v4767 = vmul.f32 %v4581, %v4577
      %v4768 = vmul.f32 %v4582, %v4578
      %v4769 = vmul.f32 %v4583, %v4579
      %v4770 = vmul.f32 %v4584, %v4580
      %v4771 = vmul.f32 %v4585, %v4581
      %v4772 = vmul.f32 %v4586, %v4582
      %v4773 = vmul.f32 %v4587, %v4583
      %v4774 = vmul.f32 %v4588, %v4584
      %v4775 = vmul.f32 %v4589, %v4585
      %v4776 = vmul.f32 %v4590, %v4586
      %v4777 = vmul.f32 %v4591, %v4587
      %v4778 = vmul.f32 %v4592, %v4588
      %v4779 = vmul.f32 %v4593, %v4589
      %v4780 = vmul.f32 %v4594, %v4590
      %v4781 = vmul.f32 %v4595, %v4591
      %v4782 = vmul.f32 %v4596, %v4592
      %v4783 = vmul.f32 %v4597, %v4593
      %v4784 = vmul.f32 %v4598, %v4594
      %v4785 = vmul.f32 %v4599, %v4595
      %v4786 = vmul.f32 %v4600, %v4596
      %v4787 = vmul.f32 %v4601, %v4597
      %v4788 = vmul.f32 %v4602, %v4598
      %v4789 = vmul.f32 %v4603, %v4599
      %v4790 = vmul.f32 %v4604, %v4600
      %v4791 = vmul.f32 %v4605, %v4601
      %v4792 = vmul.f32 %v4606, %v4602
      %v4793 = vmul.f32 %v4607, %v4603
      %v4794 = vmul.f32 %v4608, %v4604
      %v4795 = vmul.f32 %v4609, %v4605
      %v4796 = vmul.f32 %v4610, %v4606
      %v4797 = vmul.f32 %v4611, %v4607
      %v4798 = vmul.f32 %v4612, %v4608
      %v4799 = vmul.f32 %v4613, %v4609
      %v4800 = vmul.f32 %v4614, %v4610
      %v4801 = vmul.f32 %v4615, %v4611
      %v4802 = vmul.f32 %v4616, %v4612
      %v4803 = vmul.f32 %v4617, %v4613
      %v4804 = vmul.f32 %v4618, %v4614
      %v4805 = vmul.f32 %v4619, %v4615
      %v4806 = vmul.f32 %v4620, %v4616
      %v4807 = vmul.f32 %v4621, %v4617
      %v4808 = vmul.f32 %v4622, %v4618
      %v4809 = vmul.f32 %v4623, %v4619
      %v4810 = vmul.f32 %v4624, %v4620
      %v4811 = vmul.f32 %v4625, %v4621
      %v4812 = vmul.f32 %v4752, 0.0
      %v4813 = vmul.f32 %v4753, 0.0
      %v4814 = vmul.f32 %v4754, 0.0
      %v4815 = vmul.f32 %v4755, 0.0
      %v4816 = vmul.f32 %v4756, %v4688
      %v4817 = vmul.f32 %v4757, %v4689
      %v4818 = vmul.f32 %v4758, %v4690
      %v4819 = vmul.f32 %v4759, %v4691
      %v4820 = vmul.f32 %v4760, %v4692
      %v4821 = vmul.f32 %v4761, %v4693
      %v4822 = vmul.f32 %v4762, %v4694
      %v4823 = vmul.f32 %v4763, %v4695
      %v4824 = vmul.f32 %v4764, %v4696
      %v4825 = vmul.f32 %v4765, %v4697
      %v4826 = vmul.f32 %v4766, %v4698
      %v4827 = vmul.f32 %v4767, %v4699
      %v4828 = vmul.f32 %v4768, %v4700
      %v4829 = vmul.f32 %v4769, %v4701
      %v4830 = vmul.f32 %v4770, %v4702
      %v4831 = vmul.f32 %v4771, %v4703
      %v4832 = vmul.f32 %v4772, %v4704
      %v4833 = vmul.f32 %v4773, %v4705
      %v4834 = vmul.f32 %v4774, %v4706
      %v4835 = vmul.f32 %v4775, %v4707
      %v4836 = vmul.f32 %v4776, %v4708
      %v4837 = vmul.f32 %v4777, %v4709
      %v4838 = vmul.f32 %v4778, %v4710
      %v4839 = vmul.f32 %v4779, %v4711
      %v4840 = vmul.f32 %v4780, %v4712
      %v4841 = vmul.f32 %v4781, %v4713
      %v4842 = vmul.f32 %v4782, %v4714
      %v4843 = vmul.f32 %v4783, %v4715
      %v4844 = vmul.f32 %v4784, %v4716
      %v4845 = vmul.f32 %v4785, %v4717
      %v4846 = vmul.f32 %v4786, %v4718
      %v4847 = vmul.f32 %v4787, %v4719
      %v4848 = vmul.f32 %v4788, %v4720
      %v4849 = vmul.f32 %v4789, %v4721
      %v4850 = vmul.f32 %v4790, %v4722
      %v4851 = vmul.f32 %v4791, %v4723
      %v4852 = vmul.f32 %v4792, %v4724
      %v4853 = vmul.f32 %v4793, %v4725
      %v4854 = vmul.f32 %v4794, %v4726
      %v4855 = vmul.f32 %v4795, %v4727
      %v4856 = vmul.f32 %v4796, %v4728
      %v4857 = vmul.f32 %v4797, %v4729
      %v4858 = vmul.f32 %v4798, %v4730
      %v4859 = vmul.f32 %v4799, %v4731
      %v4860 = vmul.f32 %v4800, %v4732
      %v4861 = vmul.f32 %v4801, %v4733
      %v4862 = vmul.f32 %v4802, %v4734
      %v4863 = vmul.f32 %v4803, %v4735
      %v4864 = vmul.f32 %v4804, %v4736
      %v4865 = vmul.f32 %v4805, %v4737
      %v4866 = vmul.f32 %v4806, %v4738
      %v4867 = vmul.f32 %v4807, %v4739
      %v4868 = vmul.f32 %v4808, %v4740
      %v4869 = vmul.f32 %v4809, %v4741
      %v4870 = vmul.f32 %v4810, %v4742
      %v4871 = vmul.f32 %v4811, %v4743
      %v4872 = vadd.f32 %v4246, %v4688
      %v4873 = vadd.f32 %v4437, %v4689
      %v4874 = vadd.f32 %v4626, %v4690
      %v4875 = vadd.f32 %v4627, %v4691
      %v4876 = vadd.f32 %v4812, %v4692
      %v4877 = vadd.f32 %v4813, %v4693
      %v4878 = vadd.f32 %v4814, %v4694
      %v4879 = vadd.f32 %v4815, %v4695
      %v4880 = vadd.f32 %v4816, %v4696
      %v4881 = vadd.f32 %v4817, %v4697
      %v4882 = vadd.f32 %v4818, %v4698
      %v4883 = vadd.f32 %v4819, %v4699
      %v4884 = vadd.f32 %v4820, %v4700
      %v4885 = vadd.f32 %v4821, %v4701
      %v4886 = vadd.f32 %v4822, %v4702
      %v4887 = vadd.f32 %v4823, %v4703
      %v4888 = vadd.f32 %v4824, %v4704
      %v4889 = vadd.f32 %v4825, %v4705
      %v4890 = vadd.f32 %v4826, %v4706
      %v4891 = vadd.f32 %v4827, %v4707
      %v4892 = vadd.f32 %v4828, %v4708
      %v4893 = vadd.f32 %v4829, %v4709
      %v4894 = vadd.f32 %v4830, %v4710
      %v4895 = vadd.f32 %v4831, %v4711
      %v4896 = vadd.f32 %v4832, %v4712
      %v4897 = vadd.f32 %v4833, %v4713
      %v4898 = vadd.f32 %v4834, %v4714
      %v4899 = vadd.f32 %v4835, %v4715
      %v4900 = vadd.f32 %v4836, %v4716
      %v4901 = vadd.f32 %v4837, %v4717
      %v4902 = vadd.f32 %v4838, %v4718
      %v4903 = vadd.f32 %v4839, %v4719
      %v4904 = vadd.f32 %v4840, %v4720
      %v4905 = vadd.f32 %v4841, %v4721
      %v4906 = vadd.f32 %v4842, %v4722
      %v4907 = vadd.f32 %v4843, %v4723
      %v4908 = vadd.f32 %v4844, %v4724
      %v4909 = vadd.f32 %v4845, %v4725
      %v4910 = vadd.f32 %v4846, %v4726
      %v4911 = vadd.f32 %v4847, %v4727
      %v4912 = vadd.f32 %v4848, %v4728
      %v4913 = vadd.f32 %v4849, %v4729
      %v4914 = vadd.f32 %v4850, %v4730
      %v4915 = vadd.f32 %v4851, %v4731
      %v4916 = vadd.f32 %v4852, %v4732
      %v4917 = vadd.f32 %v4853, %v4733
      %v4918 = vadd.f32 %v4854, %v4734
      %v4919 = vadd.f32 %v4855, %v4735
      %v4920 = vadd.f32 %v4856, %v4736
      %v4921 = vadd.f32 %v4857, %v4737
      %v4922 = vadd.f32 %v4858, %v4738
      %v4923 = vadd.f32 %v4859, %v4739
      %v4924 = vadd.f32 %v4860, %v4740
      %v4925 = vadd.f32 %v4861, %v4741
      %v4926 = vadd.f32 %v4862, %v4742
      %v4927 = vadd.f32 %v4863, %v4743
      %v4928 = vadd.f32 %v4864, %v4744
      %v4929 = vadd.f32 %v4865, %v4745
      %v4930 = vadd.f32 %v4866, %v4746
      %v4931 = vadd.f32 %v4867, %v4747
      %v4932 = vadd.f32 %v4868, %v4748
      %v4933 = vadd.f32 %v4869, %v4749
      %v4934 = vadd.f32 %v4870, %v4750
      %v4935 = vadd.f32 %v4871, %v4751
      %v4936 = vmul.f32 %v4756, %v3735
      %v4937 = vmul.f32 %v4757, %v4374
      %v4938 = vmul.f32 %v4758, %v4564
      %v4939 = vmul.f32 %v4759, %v4565
      %v4940 = vmul.f32 %v4760, %v4752
      %v4941 = vmul.f32 %v4761, %v4753
      %v4942 = vmul.f32 %v4762, %v4754
      %v4943 = vmul.f32 %v4763, %v4755
      %v4944 = vmul.f32 %v4764, %v4756
      %v4945 = vmul.f32 %v4765, %v4757
      %v4946 = vmul.f32 %v4766, %v4758
      %v4947 = vmul.f32 %v4767, %v4759
      %v4948 = vmul.f32 %v4768, %v4760
      %v4949 = vmul.f32 %v4769, %v4761
      %v4950 = vmul.f32 %v4770, %v4762
      %v4951 = vmul.f32 %v4771, %v4763
      %v4952 = vmul.f32 %v4772, %v4764
      %v4953 = vmul.f32 %v4773, %v4765
      %v4954 = vmul.f32 %v4774, %v4766
      %v4955 = vmul.f32 %v4775, %v4767
      %v4956 = vmul.f32 %v4776, %v4768
      %v4957 = vmul.f32 %v4777, %v4769
      %v4958 = vmul.f32 %v4778, %v4770
      %v4959 = vmul.f32 %v4779, %v4771
      %v4960 = vmul.f32 %v4780, %v4772
      %v4961 = vmul.f32 %v4781, %v4773
      %v4962 = vmul.f32 %v4782, %v4774
      %v4963 = vmul.f32 %v4783, %v4775
      %v4964 = vmul.f32 %v4784, %v4776
      %v4965 = vmul.f32 %v4785, %v4777
      %v4966 = vmul.f32 %v4786, %v4778
      %v4967 = vmul.f32 %v4787, %v4779
      %v4968 = vmul.f32 %v4788, %v4780
      %v4969 = vmul.f32 %v4789, %v4781
      %v4970 = vmul.f32 %v4790, %v4782
      %v4971 = vmul.f32 %v4791, %v4783
      %v4972 = vmul.f32 %v4792, %v4784
      %v4973 = vmul.f32 %v4793, %v4785
      %v4974 = vmul.f32 %v4794, %v4786
      %v4975 = vmul.f32 %v4795, %v4787
      %v4976 = vmul.f32 %v4796, %v4788
      %v4977 = vmul.f32 %v4797, %v4789
      %v4978 = vmul.f32 %v4798, %v4790
      %v4979 = vmul.f32 %v4799, %v4791
      %v4980 = vmul.f32 %v4800, %v4792
      %v4981 = vmul.f32 %v4801, %v4793
      %v4982 = vmul.f32 %v4802, %v4794
      %v4983 = vmul.f32 %v4803, %v4795
      %v4984 = vmul.f32 %v4804, %v4796
      %v4985 = vmul.f32 %v4805, %v4797
      %v4986 = vmul.f32 %v4806, %v4798
      %v4987 = vmul.f32 %v4807, %v4799
      %v4988 = vmul.f32 %v4808, %v4800
      %v4989 = vmul.f32 %v4809, %v4801
      %v4990 = vmul.f32 %v4810, %v4802
      %v4991 = vmul.f32 %v4811, %v4803
      %v4992 = vmul.f32 %v4936, 0.0
      %v4993 = vmul.f32 %v4937, 0.0
      %v4994 = vmul.f32 %v4938, 0.0
      %v4995 = vmul.f32 %v4939, 0.0
      %v4996 = vmul.f32 %v4940, 0.0
      %v4997 = vmul.f32 %v4941, 0.0
      %v4998 = vmul.f32 %v4942, 0.0
      %v4999 = vmul.f32 %v4943, 0.0
      %v5000 = vmul.f32 %v4944, %v4872
      %v5001 = vmul.f32 %v4945, %v4873
      %v5002 = vmul.f32 %v4946, %v4874
      %v5003 = vmul.f32 %v4947, %v4875
      %v5004 = vmul.f32 %v4948, %v4876
      %v5005 = vmul.f32 %v4949, %v4877
      %v5006 = vmul.f32 %v4950, %v4878
      %v5007 = vmul.f32 %v4951, %v4879
      %v5008 = vmul.f32 %v4952, %v4880
      %v5009 = vmul.f32 %v4953, %v4881
      %v5010 = vmul.f32 %v4954, %v4882
      %v5011 = vmul.f32 %v4955, %v4883
      %v5012 = vmul.f32 %v4956, %v4884
      %v5013 = vmul.f32 %v4957, %v4885
      %v5014 = vmul.f32 %v4958, %v4886
      %v5015 = vmul.f32 %v4959, %v4887
      %v5016 = vmul.f32 %v4960, %v4888
      %v5017 = vmul.f32 %v4961, %v4889
      %v5018 = vmul.f32 %v4962, %v4890
      %v5019 = vmul.f32 %v4963, %v4891
      %v5020 = vmul.f32 %v4964, %v4892
      %v5021 = vmul.f32 %v4965, %v4893
      %v5022 = vmul.f32 %v4966, %v4894
      %v5023 = vmul.f32 %v4967, %v4895
      %v5024 = vmul.f32 %v4968, %v4896
      %v5025 = vmul.f32 %v4969, %v4897
      %v5026 = vmul.f32 %v4970, %v4898
      %v5027 = vmul.f32 %v4971, %v4899
      %v5028 = vmul.f32 %v4972, %v4900
      %v5029 = vmul.f32 %v4973, %v4901
      %v5030 = vmul.f32 %v4974, %v4902
      %v5031 = vmul.f32 %v4975, %v4903
      %v5032 = vmul.f32 %v4976, %v4904
      %v5033 = vmul.f32 %v4977, %v4905
      %v5034 = vmul.f32 %v4978, %v4906
      %v5035 = vmul.f32 %v4979, %v4907
      %v5036 = vmul.f32 %v4980, %v4908
      %v5037 = vmul.f32 %v4981, %v4909
      %v5038 = vmul.f32 %v4982, %v4910
      %v5039 = vmul.f32 %v4983, %v4911
      %v5040 = vmul.f32 %v4984, %v4912
      %v5041 = vmul.f32 %v4985, %v4913
      %v5042 = vmul.f32 %v4986, %v4914
      %v5043 = vmul.f32 %v4987, %v4915
      %v5044 = vmul.f32 %v4988, %v4916
      %v5045 = vmul.f32 %v4989, %v4917
      %v5046 = vmul.f32 %v4990, %v4918
      %v5047 = vmul.f32 %v4991, %v4919
      %v5048 = vadd.f32 %v4246, %v4872
      %v5049 = vadd.f32 %v4437, %v4873
      %v5050 = vadd.f32 %v4626, %v4874
      %v5051 = vadd.f32 %v4627, %v4875
      %v5052 = vadd.f32 %v4812, %v4876
      %v5053 = vadd.f32 %v4813, %v4877
      %v5054 = vadd.f32 %v4814, %v4878
      %v5055 = vadd.f32 %v4815, %v4879
      %v5056 = vadd.f32 %v4992, %v4880
      %v5057 = vadd.f32 %v4993, %v4881
      %v5058 = vadd.f32 %v4994, %v4882
      %v5059 = vadd.f32 %v4995, %v4883
      %v5060 = vadd.f32 %v4996, %v4884
      %v5061 = vadd.f32 %v4997, %v4885
      %v5062 = vadd.f32 %v4998, %v4886
      %v5063 = vadd.f32 %v4999, %v4887
      %v5064 = vadd.f32 %v5000, %v4888
      %v5065 = vadd.f32 %v5001, %v4889
      %v5066 = vadd.f32 %v5002, %v4890
      %v5067 = vadd.f32 %v5003, %v4891
      %v5068 = vadd.f32 %v5004, %v4892
      %v5069 = vadd.f32 %v5005, %v4893
      %v5070 = vadd.f32 %v5006, %v4894
      %v5071 = vadd.f32 %v5007, %v4895
      %v5072 = vadd.f32 %v5008, %v4896
      %v5073 = vadd.f32 %v5009, %v4897
      %v5074 = vadd.f32 %v5010, %v4898
      %v5075 = vadd.f32 %v5011, %v4899
      %v5076 = vadd.f32 %v5012, %v4900
      %v5077 = vadd.f32 %v5013, %v4901
      %v5078 = vadd.f32 %v5014, %v4902
      %v5079 = vadd.f32 %v5015, %v4903
      %v5080 = vadd.f32 %v5016, %v4904
      %v5081 = vadd.f32 %v5017, %v4905
      %v5082 = vadd.f32 %v5018, %v4906
      %v5083 = vadd.f32 %v5019, %v4907
      %v5084 = vadd.f32 %v5020, %v4908
      %v5085 = vadd.f32 %v5021, %v4909
      %v5086 = vadd.f32 %v5022, %v4910
      %v5087 = vadd.f32 %v5023, %v4911
      %v5088 = vadd.f32 %v5024, %v4912
      %v5089 = vadd.f32 %v5025, %v4913
      %v5090 = vadd.f32 %v5026, %v4914
      %v5091 = vadd.f32 %v5027, %v4915
      %v5092 = vadd.f32 %v5028, %v4916
      %v5093 = vadd.f32 %v5029, %v4917
      %v5094 = vadd.f32 %v5030, %v4918
      %v5095 = vadd.f32 %v5031, %v4919
      %v5096 = vadd.f32 %v5032, %v4920
      %v5097 = vadd.f32 %v5033, %v4921
      %v5098 = vadd.f32 %v5034, %v4922
      %v5099 = vadd.f32 %v5035, %v4923
      %v5100 = vadd.f32 %v5036, %v4924
      %v5101 = vadd.f32 %v5037, %v4925
      %v5102 = vadd.f32 %v5038, %v4926
      %v5103 = vadd.f32 %v5039, %v4927
      %v5104 = vadd.f32 %v5040, %v4928
      %v5105 = vadd.f32 %v5041, %v4929
      %v5106 = vadd.f32 %v5042, %v4930
      %v5107 = vadd.f32 %v5043, %v4931
      %v5108 = vadd.f32 %v5044, %v4932
      %v5109 = vadd.f32 %v5045, %v4933
      %v5110 = vadd.f32 %v5046, %v4934
      %v5111 = vadd.f32 %v5047, %v4935
      %v5112 = vmul.f32 %v4944, %v3735
      %v5113 = vmul.f32 %v4945, %v4374
      %v5114 = vmul.f32 %v4946, %v4564
      %v5115 = vmul.f32 %v4947, %v4565
      %v5116 = vmul.f32 %v4948, %v4752
      %v5117 = vmul.f32 %v4949, %v4753
      %v5118 = vmul.f32 %v4950, %v4754
      %v5119 = vmul.f32 %v4951, %v4755
      %v5120 = vmul.f32 %v4952, %v4936
      %v5121 = vmul.f32 %v4953, %v4937
      %v5122 = vmul.f32 %v4954, %v4938
      %v5123 = vmul.f32 %v4955, %v4939
      %v5124 = vmul.f32 %v4956, %v4940
      %v5125 = vmul.f32 %v4957, %v4941
      %v5126 = vmul.f32 %v4958, %v4942
      %v5127 = vmul.f32 %v4959, %v4943
      %v5128 = vmul.f32 %v4960, %v4944
      %v5129 = vmul.f32 %v4961, %v4945
      %v5130 = vmul.f32 %v4962, %v4946
      %v5131 = vmul.f32 %v4963, %v4947
      %v5132 = vmul.f32 %v4964, %v4948
      %v5133 = vmul.f32 %v4965, %v4949
      %v5134 = vmul.f32 %v4966, %v4950
      %v5135 = vmul.f32 %v4967, %v4951
      %v5136 = vmul.f32 %v4968, %v4952
      %v5137 = vmul.f32 %v4969, %v4953
      %v5138 = vmul.f32 %v4970, %v4954
      %v5139 = vmul.f32 %v4971, %v4955
      %v5140 = vmul.f32 %v4972, %v4956
      %v5141 = vmul.f32 %v4973, %v4957
      %v5142 = vmul.f32 %v4974, %v4958
      %v5143 = vmul.f32 %v4975, %v4959
      %v5144 = vmul.f32 %v4976, %v4960
      %v5145 = vmul.f32 %v4977, %v4961
      %v5146 = vmul.f32 %v4978, %v4962
      %v5147 = vmul.f32 %v4979, %v4963
      %v5148 = vmul.f32 %v4980, %v4964
      %v5149 = vmul.f32 %v4981, %v4965
      %v5150 = vmul.f32 %v4982, %v4966
      %v5151 = vmul.f32 %v4983, %v4967
      %v5152 = vmul.f32 %v4984, %v4968
      %v5153 = vmul.f32 %v4985, %v4969
      %v5154 = vmul.f32 %v4986, %v4970
      %v5155 = vmul.f32 %v4987, %v4971
      %v5156 = vmul.f32 %v4988, %v4972
      %v5157 = vmul.f32 %v4989, %v4973
      %v5158 = vmul.f32 %v4990, %v4974
      %v5159 = vmul.f32 %v4991, %v4975
      %v5160 = vmul.f32 %v5112, 0.0
      %v5161 = vmul.f32 %v5113, 0.0
      %v5162 = vmul.f32 %v5114, 0.0
      %v5163 = vmul.f32 %v5115, 0.0
      %v5164 = vmul.f32 %v5116, 0.0
      %v5165 = vmul.f32 %v5117, 0.0
      %v5166 = vmul.f32 %v5118, 0.0
      %v5167 = vmul.f32 %v5119, 0.0
      %v5168 = vmul.f32 %v5120, 0.0
      %v5169 = vmul.f32 %v5121, 0.0
      %v5170 = vmul.f32 %v5122, 0.0
      %v5171 = vmul.f32 %v5123, 0.0
      %v5172 = vmul.f32 %v5124, 0.0
      %v5173 = vmul.f32 %v5125, 0.0
      %v5174 = vmul.f32 %v5126, 0.0
      %v5175 = vmul.f32 %v5127, 0.0
      %v5176 = vmul.f32 %v5128, %v5048
      %v5177 = vmul.f32 %v5129, %v5049
      %v5178 = vmul.f32 %v5130, %v5050
      %v5179 = vmul.f32 %v5131, %v5051
      %v5180 = vmul.f32 %v5132, %v5052
      %v5181 = vmul.f32 %v5133, %v5053
      %v5182 = vmul.f32 %v5134, %v5054
      %v5183 = vmul.f32 %v5135, %v5055
      %v5184 = vmul.f32 %v5136, %v5056
      %v5185 = vmul.f32 %v5137, %v5057
      %v5186 = vmul.f32 %v5138, %v5058
      %v5187 = vmul.f32 %v5139, %v5059
      %v5188 = vmul.f32 %v5140, %v5060
      %v5189 = vmul.f32 %v5141, %v5061
      %v5190 = vmul.f32 %v5142, %v5062
      %v5191 = vmul.f32 %v5143, %v5063
      %v5192 = vmul.f32 %v5144, %v5064
      %v5193 = vmul.f32 %v5145, %v5065
      %v5194 = vmul.f32 %v5146, %v5066
      %v5195 = vmul.f32 %v5147, %v5067
      %v5196 = vmul.f32 %v5148, %v5068
      %v5197 = vmul.f32 %v5149, %v5069
      %v5198 = vmul.f32 %v5150, %v5070
      %v5199 = vmul.f32 %v5151, %v5071
      %v5200 = vmul.f32 %v5152, %v5072
      %v5201 = vmul.f32 %v5153, %v5073
      %v5202 = vmul.f32 %v5154, %v5074
      %v5203 = vmul.f32 %v5155, %v5075
      %v5204 = vmul.f32 %v5156, %v5076
      %v5205 = vmul.f32 %v5157, %v5077
      %v5206 = vmul.f32 %v5158, %v5078
      %v5207 = vmul.f32 %v5159, %v5079
      %v5208 = vadd.f32 %v4246, %v5048
      %v5209 = vadd.f32 %v4437, %v5049
      %v5210 = vadd.f32 %v4626, %v5050
      %v5211 = vadd.f32 %v4627, %v5051
      %v5212 = vadd.f32 %v4812, %v5052
      %v5213 = vadd.f32 %v4813, %v5053
      %v5214 = vadd.f32 %v4814, %v5054
      %v5215 = vadd.f32 %v4815, %v5055
      %v5216 = vadd.f32 %v4992, %v5056
      %v5217 = vadd.f32 %v4993, %v5057
      %v5218 = vadd.f32 %v4994, %v5058
      %v5219 = vadd.f32 %v4995, %v5059
      %v5220 = vadd.f32 %v4996, %v5060
      %v5221 = vadd.f32 %v4997, %v5061
      %v5222 = vadd.f32 %v4998, %v5062
      %v5223 = vadd.f32 %v4999, %v5063
      %v5224 = vadd.f32 %v5160, %v5064
      %v5225 = vadd.f32 %v5161, %v5065
      %v5226 = vadd.f32 %v5162, %v5066
      %v5227 = vadd.f32 %v5163, %v5067
      %v5228 = vadd.f32 %v5164, %v5068
      %v5229 = vadd.f32 %v5165, %v5069
      %v5230 = vadd.f32 %v5166, %v5070
      %v5231 = vadd.f32 %v5167, %v5071
      %v5232 = vadd.f32 %v5168, %v5072
      %v5233 = vadd.f32 %v5169, %v5073
      %v5234 = vadd.f32 %v5170, %v5074
      %v5235 = vadd.f32 %v5171, %v5075
      %v5236 = vadd.f32 %v5172, %v5076
      %v5237 = vadd.f32 %v5173, %v5077
      %v5238 = vadd.f32 %v5174, %v5078
      %v5239 = vadd.f32 %v5175, %v5079
      %v5240 = vadd.f32 %v5176, %v5080
      %v5241 = vadd.f32 %v5177, %v5081
      %v5242 = vadd.f32 %v5178, %v5082
      %v5243 = vadd.f32 %v5179, %v5083
      %v5244 = vadd.f32 %v5180, %v5084
      %v5245 = vadd.f32 %v5181, %v5085
      %v5246 = vadd.f32 %v5182, %v5086
      %v5247 = vadd.f32 %v5183, %v5087
      %v5248 = vadd.f32 %v5184, %v5088
      %v5249 = vadd.f32 %v5185, %v5089
      %v5250 = vadd.f32 %v5186, %v5090
      %v5251 = vadd.f32 %v5187, %v5091
      %v5252 = vadd.f32 %v5188, %v5092
      %v5253 = vadd.f32 %v5189, %v5093
      %v5254 = vadd.f32 %v5190, %v5094
      %v5255 = vadd.f32 %v5191, %v5095
      %v5256 = vadd.f32 %v5192, %v5096
      %v5257 = vadd.f32 %v5193, %v5097
      %v5258 = vadd.f32 %v5194, %v5098
      %v5259 = vadd.f32 %v5195, %v5099
      %v5260 = vadd.f32 %v5196, %v5100
      %v5261 = vadd.f32 %v5197, %v5101
      %v5262 = vadd.f32 %v5198, %v5102
      %v5263 = vadd.f32 %v5199, %v5103
      %v5264 = vadd.f32 %v5200, %v5104
      %v5265 = vadd.f32 %v5201, %v5105
      %v5266 = vadd.f32 %v5202, %v5106
      %v5267 = vadd.f32 %v5203, %v5107
      %v5268 = vadd.f32 %v5204, %v5108
      %v5269 = vadd.f32 %v5205, %v5109
      %v5270 = vadd.f32 %v5206, %v5110
      %v5271 = vadd.f32 %v5207, %v5111
      %v5272 = vld [vmem:[%s7] sm:$0x1]
      %v5274 = vlaneseq
      %v5275 = vshrl.u32 %v5274, 7
      %v5276 = vsub.s32 0, %v5275
      %v5277 = vrot.slane %v5272, %v5276
      %v5279 = vmul.f32 %v2452, %v5277
      %v5280 = vmul.f32 %v2453, %v5277
      %v5281 = vmul.f32 %v2454, %v5277
      %v5282 = vmul.f32 %v2455, %v5277
      %v5283 = vmul.f32 %v2456, %v5277
      %v5284 = vmul.f32 %v2457, %v5277
      %v5285 = vmul.f32 %v2458, %v5277
      %v5286 = vmul.f32 %v2459, %v5277
      %v5287 = vmul.f32 %v2460, %v5277
      %v5288 = vmul.f32 %v2461, %v5277
      %v5289 = vmul.f32 %v2462, %v5277
      %v5290 = vmul.f32 %v2463, %v5277
      %v5291 = vmul.f32 %v2464, %v5277
      %v5292 = vmul.f32 %v2465, %v5277
      %v5293 = vmul.f32 %v2466, %v5277
      %v5294 = vmul.f32 %v2467, %v5277
      %v5295 = vmul.f32 %v2468, %v5277
      %v5296 = vmul.f32 %v2469, %v5277
      %v5297 = vmul.f32 %v2470, %v5277
      %v5298 = vmul.f32 %v2471, %v5277
      %v5299 = vmul.f32 %v2472, %v5277
      %v5300 = vmul.f32 %v2473, %v5277
      %v5301 = vmul.f32 %v2474, %v5277
      %v5302 = vmul.f32 %v2475, %v5277
      %v5303 = vmul.f32 %v2476, %v5277
      %v5304 = vmul.f32 %v2477, %v5277
      %v5305 = vmul.f32 %v2478, %v5277
      %v5306 = vmul.f32 %v2479, %v5277
      %v5307 = vmul.f32 %v2480, %v5277
      %v5308 = vmul.f32 %v2481, %v5277
      %v5309 = vmul.f32 %v2482, %v5277
      %v5310 = vmul.f32 %v2483, %v5277
      %v5311 = vmul.f32 %v2484, %v5277
      %v5312 = vmul.f32 %v2485, %v5277
      %v5313 = vmul.f32 %v2486, %v5277
      %v5314 = vmul.f32 %v2487, %v5277
      %v5315 = vmul.f32 %v2488, %v5277
      %v5316 = vmul.f32 %v2489, %v5277
      %v5317 = vmul.f32 %v2490, %v5277
      %v5318 = vmul.f32 %v2491, %v5277
      %v5319 = vmul.f32 %v2492, %v5277
      %v5320 = vmul.f32 %v2493, %v5277
      %v5321 = vmul.f32 %v2494, %v5277
      %v5322 = vmul.f32 %v2495, %v5277
      %v5323 = vmul.f32 %v2496, %v5277
      %v5324 = vmul.f32 %v2497, %v5277
      %v5325 = vmul.f32 %v2498, %v5277
      %v5326 = vmul.f32 %v2499, %v5277
      %v5327 = vmul.f32 %v2500, %v5277
      %v5328 = vmul.f32 %v2501, %v5277
      %v5329 = vmul.f32 %v2502, %v5277
      %v5330 = vmul.f32 %v2503, %v5277
      %v5331 = vmul.f32 %v2504, %v5277
      %v5332 = vmul.f32 %v2505, %v5277
      %v5333 = vmul.f32 %v2506, %v5277
      %v5334 = vmul.f32 %v2507, %v5277
      %v5335 = vmul.f32 %v2508, %v5277
      %v5336 = vmul.f32 %v2509, %v5277
      %v5337 = vmul.f32 %v2510, %v5277
      %v5338 = vmul.f32 %v2511, %v5277
      %v5339 = vmul.f32 %v2512, %v5277
      %v5340 = vmul.f32 %v2513, %v5277
      %v5341 = vmul.f32 %v2514, %v5277
      %v5342 = vmul.f32 %v2515, %v5277
      %5343 = vset.pattern.permute.xlu0 33
      %5344 = vperm.xlu0 %5343, %v2695
      %v5345 = vpop.permute.xlu0 %5344
      %5347 = vset.pattern.permute.xlu0 33
      %5348 = vperm.xlu0 %5347, %v2698
      %v5349 = vpop.permute.xlu0 %5348
      %5351 = vset.pattern.permute.xlu0 33
      %5352 = vperm.xlu0 %5351, %v2703
      %v5353 = vpop.permute.xlu0 %5352
      %5355 = vset.pattern.permute.xlu0 33
      %5356 = vperm.xlu0 %5355, %v2706
      %v5357 = vpop.permute.xlu0 %5356
      %5359 = vset.pattern.permute.xlu0 33
      %5360 = vperm.xlu0 %5359, %v2711
      %v5361 = vpop.permute.xlu0 %5360
      %5363 = vset.pattern.permute.xlu0 33
      %5364 = vperm.xlu0 %5363, %v2714
      %v5365 = vpop.permute.xlu0 %5364
      %5367 = vset.pattern.permute.xlu0 33
      %5368 = vperm.xlu0 %5367, %v2719
      %v5369 = vpop.permute.xlu0 %5368
      %5371 = vset.pattern.permute.xlu0 33
      %5372 = vperm.xlu0 %5371, %v2722
      %v5373 = vpop.permute.xlu0 %5372
      %5375 = vset.pattern.permute.xlu0 33
      %5376 = vperm.xlu0 %5375, %v2727
      %v5377 = vpop.permute.xlu0 %5376
      %5379 = vset.pattern.permute.xlu0 33
      %5380 = vperm.xlu0 %5379, %v2730
      %v5381 = vpop.permute.xlu0 %5380
      %5383 = vset.pattern.permute.xlu0 33
      %5384 = vperm.xlu0 %5383, %v2735
      %v5385 = vpop.permute.xlu0 %5384
      %5387 = vset.pattern.permute.xlu0 33
      %5388 = vperm.xlu0 %5387, %v2738
      %v5389 = vpop.permute.xlu0 %5388
      %5391 = vset.pattern.permute.xlu0 33
      %5392 = vperm.xlu0 %5391, %v2743
      %v5393 = vpop.permute.xlu0 %5392
      %5395 = vset.pattern.permute.xlu0 33
      %5396 = vperm.xlu0 %5395, %v2746
      %v5397 = vpop.permute.xlu0 %5396
      %5399 = vset.pattern.permute.xlu0 33
      %5400 = vperm.xlu0 %5399, %v2751
      %v5401 = vpop.permute.xlu0 %5400
      %5403 = vset.pattern.permute.xlu0 33
      %5404 = vperm.xlu0 %5403, %v2754
      %v5405 = vpop.permute.xlu0 %5404
      %5407 = vset.pattern.permute.xlu0 33
      %5408 = vperm.xlu0 %5407, %v2759
      %v5409 = vpop.permute.xlu0 %5408
      %5411 = vset.pattern.permute.xlu0 33
      %5412 = vperm.xlu0 %5411, %v2762
      %v5413 = vpop.permute.xlu0 %5412
      %5415 = vset.pattern.permute.xlu0 33
      %5416 = vperm.xlu0 %5415, %v2767
      %v5417 = vpop.permute.xlu0 %5416
      %5419 = vset.pattern.permute.xlu0 33
      %5420 = vperm.xlu0 %5419, %v2770
      %v5421 = vpop.permute.xlu0 %5420
      %5423 = vset.pattern.permute.xlu0 33
      %5424 = vperm.xlu0 %5423, %v2775
      %v5425 = vpop.permute.xlu0 %5424
      %5427 = vset.pattern.permute.xlu0 33
      %5428 = vperm.xlu0 %5427, %v2778
      %v5429 = vpop.permute.xlu0 %5428
      %5431 = vset.pattern.permute.xlu0 33
      %5432 = vperm.xlu0 %5431, %v2783
      %v5433 = vpop.permute.xlu0 %5432
      %5435 = vset.pattern.permute.xlu0 33
      %5436 = vperm.xlu0 %5435, %v2786
      %v5437 = vpop.permute.xlu0 %5436
      %5439 = vset.pattern.permute.xlu0 33
      %5440 = vperm.xlu0 %5439, %v2791
      %v5441 = vpop.permute.xlu0 %5440
      %5443 = vset.pattern.permute.xlu0 33
      %5444 = vperm.xlu0 %5443, %v2794
      %v5445 = vpop.permute.xlu0 %5444
      %5447 = vset.pattern.permute.xlu0 33
      %5448 = vperm.xlu0 %5447, %v2799
      %v5449 = vpop.permute.xlu0 %5448
      %5451 = vset.pattern.permute.xlu0 33
      %5452 = vperm.xlu0 %5451, %v2802
      %v5453 = vpop.permute.xlu0 %5452
      %5455 = vset.pattern.permute.xlu0 33
      %5456 = vperm.xlu0 %5455, %v2807
      %v5457 = vpop.permute.xlu0 %5456
      %5459 = vset.pattern.permute.xlu0 33
      %5460 = vperm.xlu0 %5459, %v2810
      %v5461 = vpop.permute.xlu0 %5460
      %5463 = vset.pattern.permute.xlu0 33
      %5464 = vperm.xlu0 %5463, %v2815
      %v5465 = vpop.permute.xlu0 %5464
      %5467 = vset.pattern.permute.xlu0 33
      %5468 = vperm.xlu0 %5467, %v2818
      %v5469 = vpop.permute.xlu0 %5468
      %5471 = vset.pattern.permute.xlu0 33
      %5472 = vperm.xlu0 %5471, %v2823
      %v5473 = vpop.permute.xlu0 %5472
      %5475 = vset.pattern.permute.xlu0 33
      %5476 = vperm.xlu0 %5475, %v2826
      %v5477 = vpop.permute.xlu0 %5476
      %5479 = vset.pattern.permute.xlu0 33
      %5480 = vperm.xlu0 %5479, %v2831
      %v5481 = vpop.permute.xlu0 %5480
      %5483 = vset.pattern.permute.xlu0 33
      %5484 = vperm.xlu0 %5483, %v2834
      %v5485 = vpop.permute.xlu0 %5484
      %5487 = vset.pattern.permute.xlu0 33
      %5488 = vperm.xlu0 %5487, %v2839
      %v5489 = vpop.permute.xlu0 %5488
      %5491 = vset.pattern.permute.xlu0 33
      %5492 = vperm.xlu0 %5491, %v2842
      %v5493 = vpop.permute.xlu0 %5492
      %5495 = vset.pattern.permute.xlu0 33
      %5496 = vperm.xlu0 %5495, %v2847
      %v5497 = vpop.permute.xlu0 %5496
      %5499 = vset.pattern.permute.xlu0 33
      %5500 = vperm.xlu0 %5499, %v2850
      %v5501 = vpop.permute.xlu0 %5500
      %5503 = vset.pattern.permute.xlu0 33
      %5504 = vperm.xlu0 %5503, %v2855
      %v5505 = vpop.permute.xlu0 %5504
      %5507 = vset.pattern.permute.xlu0 33
      %5508 = vperm.xlu0 %5507, %v2858
      %v5509 = vpop.permute.xlu0 %5508
      %5511 = vset.pattern.permute.xlu0 33
      %5512 = vperm.xlu0 %5511, %v2863
      %v5513 = vpop.permute.xlu0 %5512
      %5515 = vset.pattern.permute.xlu0 33
      %5516 = vperm.xlu0 %5515, %v2866
      %v5517 = vpop.permute.xlu0 %5516
      %5519 = vset.pattern.permute.xlu0 33
      %5520 = vperm.xlu0 %5519, %v2871
      %v5521 = vpop.permute.xlu0 %5520
      %5523 = vset.pattern.permute.xlu0 33
      %5524 = vperm.xlu0 %5523, %v2874
      %v5525 = vpop.permute.xlu0 %5524
      %5527 = vset.pattern.permute.xlu0 33
      %5528 = vperm.xlu0 %5527, %v2879
      %v5529 = vpop.permute.xlu0 %5528
      %5531 = vset.pattern.permute.xlu0 33
      %5532 = vperm.xlu0 %5531, %v2882
      %v5533 = vpop.permute.xlu0 %5532
      %5535 = vset.pattern.permute.xlu0 33
      %5536 = vperm.xlu0 %5535, %v2887
      %v5537 = vpop.permute.xlu0 %5536
      %5539 = vset.pattern.permute.xlu0 33
      %5540 = vperm.xlu0 %5539, %v2890
      %v5541 = vpop.permute.xlu0 %5540
      %5543 = vset.pattern.permute.xlu0 33
      %5544 = vperm.xlu0 %5543, %v2895
      %v5545 = vpop.permute.xlu0 %5544
      %5547 = vset.pattern.permute.xlu0 33
      %5548 = vperm.xlu0 %5547, %v2898
      %v5549 = vpop.permute.xlu0 %5548
      %5551 = vset.pattern.permute.xlu0 33
      %5552 = vperm.xlu0 %5551, %v2903
      %v5553 = vpop.permute.xlu0 %5552
      %5555 = vset.pattern.permute.xlu0 33
      %5556 = vperm.xlu0 %5555, %v2906
      %v5557 = vpop.permute.xlu0 %5556
      %5559 = vset.pattern.permute.xlu0 33
      %5560 = vperm.xlu0 %5559, %v2911
      %v5561 = vpop.permute.xlu0 %5560
      %5563 = vset.pattern.permute.xlu0 33
      %5564 = vperm.xlu0 %5563, %v2914
      %v5565 = vpop.permute.xlu0 %5564
      %5567 = vset.pattern.permute.xlu0 33
      %5568 = vperm.xlu0 %5567, %v2919
      %v5569 = vpop.permute.xlu0 %5568
      %5571 = vset.pattern.permute.xlu0 33
      %5572 = vperm.xlu0 %5571, %v2922
      %v5573 = vpop.permute.xlu0 %5572
      %5575 = vset.pattern.permute.xlu0 33
      %5576 = vperm.xlu0 %5575, %v2927
      %v5577 = vpop.permute.xlu0 %5576
      %5579 = vset.pattern.permute.xlu0 33
      %5580 = vperm.xlu0 %5579, %v2930
      %v5581 = vpop.permute.xlu0 %5580
      %5583 = vset.pattern.permute.xlu0 33
      %5584 = vperm.xlu0 %5583, %v2935
      %v5585 = vpop.permute.xlu0 %5584
      %5587 = vset.pattern.permute.xlu0 33
      %5588 = vperm.xlu0 %5587, %v2938
      %v5589 = vpop.permute.xlu0 %5588
      %5591 = vset.pattern.permute.xlu0 33
      %5592 = vperm.xlu0 %5591, %v2943
      %v5593 = vpop.permute.xlu0 %5592
      %5595 = vset.pattern.permute.xlu0 33
      %5596 = vperm.xlu0 %5595, %v2946
      %v5597 = vpop.permute.xlu0 %5596
      %v5599 = vmul.f32 %v5208, %v5345
      %v5600 = vmul.f32 %v5209, %v5349
      %v5601 = vmul.f32 %v5210, %v5353
      %v5602 = vmul.f32 %v5211, %v5357
      %v5603 = vmul.f32 %v5212, %v5361
      %v5604 = vmul.f32 %v5213, %v5365
      %v5605 = vmul.f32 %v5214, %v5369
      %v5606 = vmul.f32 %v5215, %v5373
      %v5607 = vmul.f32 %v5216, %v5377
      %v5608 = vmul.f32 %v5217, %v5381
      %v5609 = vmul.f32 %v5218, %v5385
      %v5610 = vmul.f32 %v5219, %v5389
      %v5611 = vmul.f32 %v5220, %v5393
      %v5612 = vmul.f32 %v5221, %v5397
      %v5613 = vmul.f32 %v5222, %v5401
      %v5614 = vmul.f32 %v5223, %v5405
      %v5615 = vmul.f32 %v5224, %v5409
      %v5616 = vmul.f32 %v5225, %v5413
      %v5617 = vmul.f32 %v5226, %v5417
      %v5618 = vmul.f32 %v5227, %v5421
      %v5619 = vmul.f32 %v5228, %v5425
      %v5620 = vmul.f32 %v5229, %v5429
      %v5621 = vmul.f32 %v5230, %v5433
      %v5622 = vmul.f32 %v5231, %v5437
      %v5623 = vmul.f32 %v5232, %v5441
      %v5624 = vmul.f32 %v5233, %v5445
      %v5625 = vmul.f32 %v5234, %v5449
      %v5626 = vmul.f32 %v5235, %v5453
      %v5627 = vmul.f32 %v5236, %v5457
      %v5628 = vmul.f32 %v5237, %v5461
      %v5629 = vmul.f32 %v5238, %v5465
      %v5630 = vmul.f32 %v5239, %v5469
      %v5631 = vmul.f32 %v5240, %v5473
      %v5632 = vmul.f32 %v5241, %v5477
      %v5633 = vmul.f32 %v5242, %v5481
      %v5634 = vmul.f32 %v5243, %v5485
      %v5635 = vmul.f32 %v5244, %v5489
      %v5636 = vmul.f32 %v5245, %v5493
      %v5637 = vmul.f32 %v5246, %v5497
      %v5638 = vmul.f32 %v5247, %v5501
      %v5639 = vmul.f32 %v5248, %v5505
      %v5640 = vmul.f32 %v5249, %v5509
      %v5641 = vmul.f32 %v5250, %v5513
      %v5642 = vmul.f32 %v5251, %v5517
      %v5643 = vmul.f32 %v5252, %v5521
      %v5644 = vmul.f32 %v5253, %v5525
      %v5645 = vmul.f32 %v5254, %v5529
      %v5646 = vmul.f32 %v5255, %v5533
      %v5647 = vmul.f32 %v5256, %v5537
      %v5648 = vmul.f32 %v5257, %v5541
      %v5649 = vmul.f32 %v5258, %v5545
      %v5650 = vmul.f32 %v5259, %v5549
      %v5651 = vmul.f32 %v5260, %v5553
      %v5652 = vmul.f32 %v5261, %v5557
      %v5653 = vmul.f32 %v5262, %v5561
      %v5654 = vmul.f32 %v5263, %v5565
      %v5655 = vmul.f32 %v5264, %v5569
      %v5656 = vmul.f32 %v5265, %v5573
      %v5657 = vmul.f32 %v5266, %v5577
      %v5658 = vmul.f32 %v5267, %v5581
      %v5659 = vmul.f32 %v5268, %v5585
      %v5660 = vmul.f32 %v5269, %v5589
      %v5661 = vmul.f32 %v5270, %v5593
      %v5662 = vmul.f32 %v5271, %v5597
      %v5663 = vadd.f32 %v5279, %v5599
      %v5664 = vadd.f32 %v5280, %v5600
      %v5665 = vadd.f32 %v5281, %v5601
      %v5666 = vadd.f32 %v5282, %v5602
      %v5667 = vadd.f32 %v5283, %v5603
      %v5668 = vadd.f32 %v5284, %v5604
      %v5669 = vadd.f32 %v5285, %v5605
      %v5670 = vadd.f32 %v5286, %v5606
      %v5671 = vadd.f32 %v5287, %v5607
      %v5672 = vadd.f32 %v5288, %v5608
      %v5673 = vadd.f32 %v5289, %v5609
      %v5674 = vadd.f32 %v5290, %v5610
      %v5675 = vadd.f32 %v5291, %v5611
      %v5676 = vadd.f32 %v5292, %v5612
      %v5677 = vadd.f32 %v5293, %v5613
      %v5678 = vadd.f32 %v5294, %v5614
      %v5679 = vadd.f32 %v5295, %v5615
      %v5680 = vadd.f32 %v5296, %v5616
      %v5681 = vadd.f32 %v5297, %v5617
      %v5682 = vadd.f32 %v5298, %v5618
      %v5683 = vadd.f32 %v5299, %v5619
      %v5684 = vadd.f32 %v5300, %v5620
      %v5685 = vadd.f32 %v5301, %v5621
      %v5686 = vadd.f32 %v5302, %v5622
      %v5687 = vadd.f32 %v5303, %v5623
      %v5688 = vadd.f32 %v5304, %v5624
      %v5689 = vadd.f32 %v5305, %v5625
      %v5690 = vadd.f32 %v5306, %v5626
      %v5691 = vadd.f32 %v5307, %v5627
      %v5692 = vadd.f32 %v5308, %v5628
      %v5693 = vadd.f32 %v5309, %v5629
      %v5694 = vadd.f32 %v5310, %v5630
      %v5695 = vadd.f32 %v5311, %v5631
      %v5696 = vadd.f32 %v5312, %v5632
      %v5697 = vadd.f32 %v5313, %v5633
      %v5698 = vadd.f32 %v5314, %v5634
      %v5699 = vadd.f32 %v5315, %v5635
      %v5700 = vadd.f32 %v5316, %v5636
      %v5701 = vadd.f32 %v5317, %v5637
      %v5702 = vadd.f32 %v5318, %v5638
      %v5703 = vadd.f32 %v5319, %v5639
      %v5704 = vadd.f32 %v5320, %v5640
      %v5705 = vadd.f32 %v5321, %v5641
      %v5706 = vadd.f32 %v5322, %v5642
      %v5707 = vadd.f32 %v5323, %v5643
      %v5708 = vadd.f32 %v5324, %v5644
      %v5709 = vadd.f32 %v5325, %v5645
      %v5710 = vadd.f32 %v5326, %v5646
      %v5711 = vadd.f32 %v5327, %v5647
      %v5712 = vadd.f32 %v5328, %v5648
      %v5713 = vadd.f32 %v5329, %v5649
      %v5714 = vadd.f32 %v5330, %v5650
      %v5715 = vadd.f32 %v5331, %v5651
      %v5716 = vadd.f32 %v5332, %v5652
      %v5717 = vadd.f32 %v5333, %v5653
      %v5718 = vadd.f32 %v5334, %v5654
      %v5719 = vadd.f32 %v5335, %v5655
      %v5720 = vadd.f32 %v5336, %v5656
      %v5721 = vadd.f32 %v5337, %v5657
      %v5722 = vadd.f32 %v5338, %v5658
      %v5723 = vadd.f32 %v5339, %v5659
      %v5724 = vadd.f32 %v5340, %v5660
      %v5725 = vadd.f32 %v5341, %v5661
      %v5726 = vadd.f32 %v5342, %v5662
      %v5727 = vxor.u32 %v1411, 2147483648
      %v5728 = vxor.u32 %v1414, 2147483648
      %v5729 = vxor.u32 %v1419, 2147483648
      %v5730 = vxor.u32 %v1422, 2147483648
      %v5731 = vxor.u32 %v1427, 2147483648
      %v5732 = vxor.u32 %v1430, 2147483648
      %v5733 = vxor.u32 %v1435, 2147483648
      %v5734 = vxor.u32 %v1438, 2147483648
      %v5735 = vxor.u32 %v1443, 2147483648
      %v5736 = vxor.u32 %v1446, 2147483648
      %v5737 = vxor.u32 %v1451, 2147483648
      %v5738 = vxor.u32 %v1454, 2147483648
      %v5739 = vxor.u32 %v1459, 2147483648
      %v5740 = vxor.u32 %v1462, 2147483648
      %v5741 = vxor.u32 %v1467, 2147483648
      %v5742 = vxor.u32 %v1470, 2147483648
      %v5743 = vxor.u32 %v1475, 2147483648
      %v5744 = vxor.u32 %v1478, 2147483648
      %v5745 = vxor.u32 %v1483, 2147483648
      %v5746 = vxor.u32 %v1486, 2147483648
      %v5747 = vxor.u32 %v1491, 2147483648
      %v5748 = vxor.u32 %v1494, 2147483648
      %v5749 = vxor.u32 %v1499, 2147483648
      %v5750 = vxor.u32 %v1502, 2147483648
      %v5751 = vxor.u32 %v1507, 2147483648
      %v5752 = vxor.u32 %v1510, 2147483648
      %v5753 = vxor.u32 %v1515, 2147483648
      %v5754 = vxor.u32 %v1518, 2147483648
      %v5755 = vxor.u32 %v1523, 2147483648
      %v5756 = vxor.u32 %v1526, 2147483648
      %v5757 = vxor.u32 %v1531, 2147483648
      %v5758 = vxor.u32 %v1534, 2147483648
      %v5759 = vxor.u32 %v1539, 2147483648
      %v5760 = vxor.u32 %v1542, 2147483648
      %v5761 = vxor.u32 %v1547, 2147483648
      %v5762 = vxor.u32 %v1550, 2147483648
      %v5763 = vxor.u32 %v1555, 2147483648
      %v5764 = vxor.u32 %v1558, 2147483648
      %v5765 = vxor.u32 %v1563, 2147483648
      %v5766 = vxor.u32 %v1566, 2147483648
      %v5767 = vxor.u32 %v1571, 2147483648
      %v5768 = vxor.u32 %v1574, 2147483648
      %v5769 = vxor.u32 %v1579, 2147483648
      %v5770 = vxor.u32 %v1582, 2147483648
      %v5771 = vxor.u32 %v1587, 2147483648
      %v5772 = vxor.u32 %v1590, 2147483648
      %v5773 = vxor.u32 %v1595, 2147483648
      %v5774 = vxor.u32 %v1598, 2147483648
      %v5775 = vxor.u32 %v1603, 2147483648
      %v5776 = vxor.u32 %v1606, 2147483648
      %v5777 = vxor.u32 %v1611, 2147483648
      %v5778 = vxor.u32 %v1614, 2147483648
      %v5779 = vxor.u32 %v1619, 2147483648
      %v5780 = vxor.u32 %v1622, 2147483648
      %v5781 = vxor.u32 %v1627, 2147483648
      %v5782 = vxor.u32 %v1630, 2147483648
      %v5783 = vxor.u32 %v1635, 2147483648
      %v5784 = vxor.u32 %v1638, 2147483648
      %v5785 = vxor.u32 %v1643, 2147483648
      %v5786 = vxor.u32 %v1646, 2147483648
      %v5787 = vxor.u32 %v1651, 2147483648
      %v5788 = vxor.u32 %v1654, 2147483648
      %v5789 = vxor.u32 %v1659, 2147483648
      %v5790 = vxor.u32 %v1662, 2147483648
      %v5791 = vmul.f32 %v5727, 1.442695
      %v5792 = vpow.pop %v5791
      %v5793 = vmul.f32 %v5728, 1.442695
      %v5794 = vpow.pop %v5793
      %v5795 = vmul.f32 %v5729, 1.442695
      %v5796 = vpow.pop %v5795
      %v5797 = vmul.f32 %v5730, 1.442695
      %v5798 = vpow.pop %v5797
      %v5799 = vmul.f32 %v5731, 1.442695
      %v5800 = vpow.pop %v5799
      %v5801 = vmul.f32 %v5732, 1.442695
      %v5802 = vpow.pop %v5801
      %v5803 = vmul.f32 %v5733, 1.442695
      %v5804 = vpow.pop %v5803
      %v5805 = vmul.f32 %v5734, 1.442695
      %v5806 = vpow.pop %v5805
      %v5807 = vmul.f32 %v5735, 1.442695
      %v5808 = vpow.pop %v5807
      %v5809 = vmul.f32 %v5736, 1.442695
      %v5810 = vpow.pop %v5809
      %v5811 = vmul.f32 %v5737, 1.442695
      %v5812 = vpow.pop %v5811
      %v5813 = vmul.f32 %v5738, 1.442695
      %v5814 = vpow.pop %v5813
      %v5815 = vmul.f32 %v5739, 1.442695
      %v5816 = vpow.pop %v5815
      %v5817 = vmul.f32 %v5740, 1.442695
      %v5818 = vpow.pop %v5817
      %v5819 = vmul.f32 %v5741, 1.442695
      %v5820 = vpow.pop %v5819
      %v5821 = vmul.f32 %v5742, 1.442695
      %v5822 = vpow.pop %v5821
      %v5823 = vmul.f32 %v5743, 1.442695
      %v5824 = vpow.pop %v5823
      %v5825 = vmul.f32 %v5744, 1.442695
      %v5826 = vpow.pop %v5825
      %v5827 = vmul.f32 %v5745, 1.442695
      %v5828 = vpow.pop %v5827
      %v5829 = vmul.f32 %v5746, 1.442695
      %v5830 = vpow.pop %v5829
      %v5831 = vmul.f32 %v5747, 1.442695
      %v5832 = vpow.pop %v5831
      %v5833 = vmul.f32 %v5748, 1.442695
      %v5834 = vpow.pop %v5833
      %v5835 = vmul.f32 %v5749, 1.442695
      %v5836 = vpow.pop %v5835
      %v5837 = vmul.f32 %v5750, 1.442695
      %v5838 = vpow.pop %v5837
      %v5839 = vmul.f32 %v5751, 1.442695
      %v5840 = vpow.pop %v5839
      %v5841 = vmul.f32 %v5752, 1.442695
      %v5842 = vpow.pop %v5841
      %v5843 = vmul.f32 %v5753, 1.442695
      %v5844 = vpow.pop %v5843
      %v5845 = vmul.f32 %v5754, 1.442695
      %v5846 = vpow.pop %v5845
      %v5847 = vmul.f32 %v5755, 1.442695
      %v5848 = vpow.pop %v5847
      %v5849 = vmul.f32 %v5756, 1.442695
      %v5850 = vpow.pop %v5849
      %v5851 = vmul.f32 %v5757, 1.442695
      %v5852 = vpow.pop %v5851
      %v5853 = vmul.f32 %v5758, 1.442695
      %v5854 = vpow.pop %v5853
      %v5855 = vmul.f32 %v5759, 1.442695
      %v5856 = vpow.pop %v5855
      %v5857 = vmul.f32 %v5760, 1.442695
      %v5858 = vpow.pop %v5857
      %v5859 = vmul.f32 %v5761, 1.442695
      %v5860 = vpow.pop %v5859
      %v5861 = vmul.f32 %v5762, 1.442695
      %v5862 = vpow.pop %v5861
      %v5863 = vmul.f32 %v5763, 1.442695
      %v5864 = vpow.pop %v5863
      %v5865 = vmul.f32 %v5764, 1.442695
      %v5866 = vpow.pop %v5865
      %v5867 = vmul.f32 %v5765, 1.442695
      %v5868 = vpow.pop %v5867
      %v5869 = vmul.f32 %v5766, 1.442695
      %v5870 = vpow.pop %v5869
      %v5871 = vmul.f32 %v5767, 1.442695
      %v5872 = vpow.pop %v5871
      %v5873 = vmul.f32 %v5768, 1.442695
      %v5874 = vpow.pop %v5873
      %v5875 = vmul.f32 %v5769, 1.442695
      %v5876 = vpow.pop %v5875
      %v5877 = vmul.f32 %v5770, 1.442695
      %v5878 = vpow.pop %v5877
      %v5879 = vmul.f32 %v5771, 1.442695
      %v5880 = vpow.pop %v5879
      %v5881 = vmul.f32 %v5772, 1.442695
      %v5882 = vpow.pop %v5881
      %v5883 = vmul.f32 %v5773, 1.442695
      %v5884 = vpow.pop %v5883
      %v5885 = vmul.f32 %v5774, 1.442695
      %v5886 = vpow.pop %v5885
      %v5887 = vmul.f32 %v5775, 1.442695
      %v5888 = vpow.pop %v5887
      %v5889 = vmul.f32 %v5776, 1.442695
      %v5890 = vpow.pop %v5889
      %v5891 = vmul.f32 %v5777, 1.442695
      %v5892 = vpow.pop %v5891
      %v5893 = vmul.f32 %v5778, 1.442695
      %v5894 = vpow.pop %v5893
      %v5895 = vmul.f32 %v5779, 1.442695
      %v5896 = vpow.pop %v5895
      %v5897 = vmul.f32 %v5780, 1.442695
      %v5898 = vpow.pop %v5897
      %v5899 = vmul.f32 %v5781, 1.442695
      %v5900 = vpow.pop %v5899
      %v5901 = vmul.f32 %v5782, 1.442695
      %v5902 = vpow.pop %v5901
      %v5903 = vmul.f32 %v5783, 1.442695
      %v5904 = vpow.pop %v5903
      %v5905 = vmul.f32 %v5784, 1.442695
      %v5906 = vpow.pop %v5905
      %v5907 = vmul.f32 %v5785, 1.442695
      %v5908 = vpow.pop %v5907
      %v5909 = vmul.f32 %v5786, 1.442695
      %v5910 = vpow.pop %v5909
      %v5911 = vmul.f32 %v5787, 1.442695
      %v5912 = vpow.pop %v5911
      %v5913 = vmul.f32 %v5788, 1.442695
      %v5914 = vpow.pop %v5913
      %v5915 = vmul.f32 %v5789, 1.442695
      %v5916 = vpow.pop %v5915
      %v5917 = vmul.f32 %v5790, 1.442695
      %v5918 = vpow.pop %v5917
      %v5919 = vadd.f32 %v5792, 1.0
      %v5920 = vadd.f32 %v5794, 1.0
      %v5921 = vadd.f32 %v5796, 1.0
      %v5922 = vadd.f32 %v5798, 1.0
      %v5923 = vadd.f32 %v5800, 1.0
      %v5924 = vadd.f32 %v5802, 1.0
      %v5925 = vadd.f32 %v5804, 1.0
      %v5926 = vadd.f32 %v5806, 1.0
      %v5927 = vadd.f32 %v5808, 1.0
      %v5928 = vadd.f32 %v5810, 1.0
      %v5929 = vadd.f32 %v5812, 1.0
      %v5930 = vadd.f32 %v5814, 1.0
      %v5931 = vadd.f32 %v5816, 1.0
      %v5932 = vadd.f32 %v5818, 1.0
      %v5933 = vadd.f32 %v5820, 1.0
      %v5934 = vadd.f32 %v5822, 1.0
      %v5935 = vadd.f32 %v5824, 1.0
      %v5936 = vadd.f32 %v5826, 1.0
      %v5937 = vadd.f32 %v5828, 1.0
      %v5938 = vadd.f32 %v5830, 1.0
      %v5939 = vadd.f32 %v5832, 1.0
      %v5940 = vadd.f32 %v5834, 1.0
      %v5941 = vadd.f32 %v5836, 1.0
      %v5942 = vadd.f32 %v5838, 1.0
      %v5943 = vadd.f32 %v5840, 1.0
      %v5944 = vadd.f32 %v5842, 1.0
      %v5945 = vadd.f32 %v5844, 1.0
      %v5946 = vadd.f32 %v5846, 1.0
      %v5947 = vadd.f32 %v5848, 1.0
      %v5948 = vadd.f32 %v5850, 1.0
      %v5949 = vadd.f32 %v5852, 1.0
      %v5950 = vadd.f32 %v5854, 1.0
      %v5951 = vadd.f32 %v5856, 1.0
      %v5952 = vadd.f32 %v5858, 1.0
      %v5953 = vadd.f32 %v5860, 1.0
      %v5954 = vadd.f32 %v5862, 1.0
      %v5955 = vadd.f32 %v5864, 1.0
      %v5956 = vadd.f32 %v5866, 1.0
      %v5957 = vadd.f32 %v5868, 1.0
      %v5958 = vadd.f32 %v5870, 1.0
      %v5959 = vadd.f32 %v5872, 1.0
      %v5960 = vadd.f32 %v5874, 1.0
      %v5961 = vadd.f32 %v5876, 1.0
      %v5962 = vadd.f32 %v5878, 1.0
      %v5963 = vadd.f32 %v5880, 1.0
      %v5964 = vadd.f32 %v5882, 1.0
      %v5965 = vadd.f32 %v5884, 1.0
      %v5966 = vadd.f32 %v5886, 1.0
      %v5967 = vadd.f32 %v5888, 1.0
      %v5968 = vadd.f32 %v5890, 1.0
      %v5969 = vadd.f32 %v5892, 1.0
      %v5970 = vadd.f32 %v5894, 1.0
      %v5971 = vadd.f32 %v5896, 1.0
      %v5972 = vadd.f32 %v5898, 1.0
      %v5973 = vadd.f32 %v5900, 1.0
      %v5974 = vadd.f32 %v5902, 1.0
      %v5975 = vadd.f32 %v5904, 1.0
      %v5976 = vadd.f32 %v5906, 1.0
      %v5977 = vadd.f32 %v5908, 1.0
      %v5978 = vadd.f32 %v5910, 1.0
      %v5979 = vadd.f32 %v5912, 1.0
      %v5980 = vadd.f32 %v5914, 1.0
      %v5981 = vadd.f32 %v5916, 1.0
      %v5982 = vadd.f32 %v5918, 1.0
      %v5983 = vrcp.pop %v5919
      %v5984 = vmul.f32 1.0, %v5983
      %v5985 = vrcp.pop %v5920
      %v5986 = vmul.f32 1.0, %v5985
      %v5987 = vrcp.pop %v5921
      %v5988 = vmul.f32 1.0, %v5987
      %v5989 = vrcp.pop %v5922
      %v5990 = vmul.f32 1.0, %v5989
      %v5991 = vrcp.pop %v5923
      %v5992 = vmul.f32 1.0, %v5991
      %v5993 = vrcp.pop %v5924
      %v5994 = vmul.f32 1.0, %v5993
      %v5995 = vrcp.pop %v5925
      %v5996 = vmul.f32 1.0, %v5995
      %v5997 = vrcp.pop %v5926
      %v5998 = vmul.f32 1.0, %v5997
      %v5999 = vrcp.pop %v5927
      %v6000 = vmul.f32 1.0, %v5999
      %v6001 = vrcp.pop %v5928
      %v6002 = vmul.f32 1.0, %v6001
      %v6003 = vrcp.pop %v5929
      %v6004 = vmul.f32 1.0, %v6003
      %v6005 = vrcp.pop %v5930
      %v6006 = vmul.f32 1.0, %v6005
      %v6007 = vrcp.pop %v5931
      %v6008 = vmul.f32 1.0, %v6007
      %v6009 = vrcp.pop %v5932
      %v6010 = vmul.f32 1.0, %v6009
      %v6011 = vrcp.pop %v5933
      %v6012 = vmul.f32 1.0, %v6011
      %v6013 = vrcp.pop %v5934
      %v6014 = vmul.f32 1.0, %v6013
      %v6015 = vrcp.pop %v5935
      %v6016 = vmul.f32 1.0, %v6015
      %v6017 = vrcp.pop %v5936
      %v6018 = vmul.f32 1.0, %v6017
      %v6019 = vrcp.pop %v5937
      %v6020 = vmul.f32 1.0, %v6019
      %v6021 = vrcp.pop %v5938
      %v6022 = vmul.f32 1.0, %v6021
      %v6023 = vrcp.pop %v5939
      %v6024 = vmul.f32 1.0, %v6023
      %v6025 = vrcp.pop %v5940
      %v6026 = vmul.f32 1.0, %v6025
      %v6027 = vrcp.pop %v5941
      %v6028 = vmul.f32 1.0, %v6027
      %v6029 = vrcp.pop %v5942
      %v6030 = vmul.f32 1.0, %v6029
      %v6031 = vrcp.pop %v5943
      %v6032 = vmul.f32 1.0, %v6031
      %v6033 = vrcp.pop %v5944
      %v6034 = vmul.f32 1.0, %v6033
      %v6035 = vrcp.pop %v5945
      %v6036 = vmul.f32 1.0, %v6035
      %v6037 = vrcp.pop %v5946
      %v6038 = vmul.f32 1.0, %v6037
      %v6039 = vrcp.pop %v5947
      %v6040 = vmul.f32 1.0, %v6039
      %v6041 = vrcp.pop %v5948
      %v6042 = vmul.f32 1.0, %v6041
      %v6043 = vrcp.pop %v5949
      %v6044 = vmul.f32 1.0, %v6043
      %v6045 = vrcp.pop %v5950
      %v6046 = vmul.f32 1.0, %v6045
      %v6047 = vrcp.pop %v5951
      %v6048 = vmul.f32 1.0, %v6047
      %v6049 = vrcp.pop %v5952
      %v6050 = vmul.f32 1.0, %v6049
      %v6051 = vrcp.pop %v5953
      %v6052 = vmul.f32 1.0, %v6051
      %v6053 = vrcp.pop %v5954
      %v6054 = vmul.f32 1.0, %v6053
      %v6055 = vrcp.pop %v5955
      %v6056 = vmul.f32 1.0, %v6055
      %v6057 = vrcp.pop %v5956
      %v6058 = vmul.f32 1.0, %v6057
      %v6059 = vrcp.pop %v5957
      %v6060 = vmul.f32 1.0, %v6059
      %v6061 = vrcp.pop %v5958
      %v6062 = vmul.f32 1.0, %v6061
      %v6063 = vrcp.pop %v5959
      %v6064 = vmul.f32 1.0, %v6063
      %v6065 = vrcp.pop %v5960
      %v6066 = vmul.f32 1.0, %v6065
      %v6067 = vrcp.pop %v5961
      %v6068 = vmul.f32 1.0, %v6067
      %v6069 = vrcp.pop %v5962
      %v6070 = vmul.f32 1.0, %v6069
      %v6071 = vrcp.pop %v5963
      %v6072 = vmul.f32 1.0, %v6071
      %v6073 = vrcp.pop %v5964
      %v6074 = vmul.f32 1.0, %v6073
      %v6075 = vrcp.pop %v5965
      %v6076 = vmul.f32 1.0, %v6075
      %v6077 = vrcp.pop %v5966
      %v6078 = vmul.f32 1.0, %v6077
      %v6079 = vrcp.pop %v5967
      %v6080 = vmul.f32 1.0, %v6079
      %v6081 = vrcp.pop %v5968
      %v6082 = vmul.f32 1.0, %v6081
      %v6083 = vrcp.pop %v5969
      %v6084 = vmul.f32 1.0, %v6083
      %v6085 = vrcp.pop %v5970
      %v6086 = vmul.f32 1.0, %v6085
      %v6087 = vrcp.pop %v5971
      %v6088 = vmul.f32 1.0, %v6087
      %v6089 = vrcp.pop %v5972
      %v6090 = vmul.f32 1.0, %v6089
      %v6091 = vrcp.pop %v5973
      %v6092 = vmul.f32 1.0, %v6091
      %v6093 = vrcp.pop %v5974
      %v6094 = vmul.f32 1.0, %v6093
      %v6095 = vrcp.pop %v5975
      %v6096 = vmul.f32 1.0, %v6095
      %v6097 = vrcp.pop %v5976
      %v6098 = vmul.f32 1.0, %v6097
      %v6099 = vrcp.pop %v5977
      %v6100 = vmul.f32 1.0, %v6099
      %v6101 = vrcp.pop %v5978
      %v6102 = vmul.f32 1.0, %v6101
      %v6103 = vrcp.pop %v5979
      %v6104 = vmul.f32 1.0, %v6103
      %v6105 = vrcp.pop %v5980
      %v6106 = vmul.f32 1.0, %v6105
      %v6107 = vrcp.pop %v5981
      %v6108 = vmul.f32 1.0, %v6107
      %v6109 = vrcp.pop %v5982
      %v6110 = vmul.f32 1.0, %v6109
      %v6111 = vmul.f32 %v1411, %v5984
      %v6112 = vmul.f32 %v1414, %v5986
      %v6113 = vmul.f32 %v1419, %v5988
      %v6114 = vmul.f32 %v1422, %v5990
      %v6115 = vmul.f32 %v1427, %v5992
      %v6116 = vmul.f32 %v1430, %v5994
      %v6117 = vmul.f32 %v1435, %v5996
      %v6118 = vmul.f32 %v1438, %v5998
      %v6119 = vmul.f32 %v1443, %v6000
      %v6120 = vmul.f32 %v1446, %v6002
      %v6121 = vmul.f32 %v1451, %v6004
      %v6122 = vmul.f32 %v1454, %v6006
      %v6123 = vmul.f32 %v1459, %v6008
      %v6124 = vmul.f32 %v1462, %v6010
      %v6125 = vmul.f32 %v1467, %v6012
      %v6126 = vmul.f32 %v1470, %v6014
      %v6127 = vmul.f32 %v1475, %v6016
      %v6128 = vmul.f32 %v1478, %v6018
      %v6129 = vmul.f32 %v1483, %v6020
      %v6130 = vmul.f32 %v1486, %v6022
      %v6131 = vmul.f32 %v1491, %v6024
      %v6132 = vmul.f32 %v1494, %v6026
      %v6133 = vmul.f32 %v1499, %v6028
      %v6134 = vmul.f32 %v1502, %v6030
      %v6135 = vmul.f32 %v1507, %v6032
      %v6136 = vmul.f32 %v1510, %v6034
      %v6137 = vmul.f32 %v1515, %v6036
      %v6138 = vmul.f32 %v1518, %v6038
      %v6139 = vmul.f32 %v1523, %v6040
      %v6140 = vmul.f32 %v1526, %v6042
      %v6141 = vmul.f32 %v1531, %v6044
      %v6142 = vmul.f32 %v1534, %v6046
      %v6143 = vmul.f32 %v1539, %v6048
      %v6144 = vmul.f32 %v1542, %v6050
      %v6145 = vmul.f32 %v1547, %v6052
      %v6146 = vmul.f32 %v1550, %v6054
      %v6147 = vmul.f32 %v1555, %v6056
      %v6148 = vmul.f32 %v1558, %v6058
      %v6149 = vmul.f32 %v1563, %v6060
      %v6150 = vmul.f32 %v1566, %v6062
      %v6151 = vmul.f32 %v1571, %v6064
      %v6152 = vmul.f32 %v1574, %v6066
      %v6153 = vmul.f32 %v1579, %v6068
      %v6154 = vmul.f32 %v1582, %v6070
      %v6155 = vmul.f32 %v1587, %v6072
      %v6156 = vmul.f32 %v1590, %v6074
      %v6157 = vmul.f32 %v1595, %v6076
      %v6158 = vmul.f32 %v1598, %v6078
      %v6159 = vmul.f32 %v1603, %v6080
      %v6160 = vmul.f32 %v1606, %v6082
      %v6161 = vmul.f32 %v1611, %v6084
      %v6162 = vmul.f32 %v1614, %v6086
      %v6163 = vmul.f32 %v1619, %v6088
      %v6164 = vmul.f32 %v1622, %v6090
      %v6165 = vmul.f32 %v1627, %v6092
      %v6166 = vmul.f32 %v1630, %v6094
      %v6167 = vmul.f32 %v1635, %v6096
      %v6168 = vmul.f32 %v1638, %v6098
      %v6169 = vmul.f32 %v1643, %v6100
      %v6170 = vmul.f32 %v1646, %v6102
      %v6171 = vmul.f32 %v1651, %v6104
      %v6172 = vmul.f32 %v1654, %v6106
      %v6173 = vmul.f32 %v1659, %v6108
      %v6174 = vmul.f32 %v1662, %v6110
      %6239 = vrot.lane.b32.xlu0 %v6111, 96
      %v6240 = vpop.permute.xlu0 %6239
      %6241 = vrot.lane.b32.xlu0 %v6112, 96
      %v6242 = vpop.permute.xlu0 %6241
      %6243 = vrot.lane.b32.xlu0 %v6113, 96
      %v6244 = vpop.permute.xlu0 %6243
      %6245 = vrot.lane.b32.xlu0 %v6114, 96
      %v6246 = vpop.permute.xlu0 %6245
      %6247 = vrot.lane.b32.xlu0 %v6115, 96
      %v6248 = vpop.permute.xlu0 %6247
      %6249 = vrot.lane.b32.xlu0 %v6116, 96
      %v6250 = vpop.permute.xlu0 %6249
      %6251 = vrot.lane.b32.xlu0 %v6117, 96
      %v6252 = vpop.permute.xlu0 %6251
      %6253 = vrot.lane.b32.xlu0 %v6118, 96
      %v6254 = vpop.permute.xlu0 %6253
      %6255 = vrot.lane.b32.xlu0 %v6119, 96
      %v6256 = vpop.permute.xlu0 %6255
      %6257 = vrot.lane.b32.xlu0 %v6120, 96
      %v6258 = vpop.permute.xlu0 %6257
      %6259 = vrot.lane.b32.xlu0 %v6121, 96
      %v6260 = vpop.permute.xlu0 %6259
      %6261 = vrot.lane.b32.xlu0 %v6122, 96
      %v6262 = vpop.permute.xlu0 %6261
      %6263 = vrot.lane.b32.xlu0 %v6123, 96
      %v6264 = vpop.permute.xlu0 %6263
      %6265 = vrot.lane.b32.xlu0 %v6124, 96
      %v6266 = vpop.permute.xlu0 %6265
      %6267 = vrot.lane.b32.xlu0 %v6125, 96
      %v6268 = vpop.permute.xlu0 %6267
      %6269 = vrot.lane.b32.xlu0 %v6126, 96
      %v6270 = vpop.permute.xlu0 %6269
      %6271 = vrot.lane.b32.xlu0 %v6127, 96
      %v6272 = vpop.permute.xlu0 %6271
      %6273 = vrot.lane.b32.xlu0 %v6128, 96
      %v6274 = vpop.permute.xlu0 %6273
      %6275 = vrot.lane.b32.xlu0 %v6129, 96
      %v6276 = vpop.permute.xlu0 %6275
      %6277 = vrot.lane.b32.xlu0 %v6130, 96
      %v6278 = vpop.permute.xlu0 %6277
      %6279 = vrot.lane.b32.xlu0 %v6131, 96
      %v6280 = vpop.permute.xlu0 %6279
      %6281 = vrot.lane.b32.xlu0 %v6132, 96
      %v6282 = vpop.permute.xlu0 %6281
      %6283 = vrot.lane.b32.xlu0 %v6133, 96
      %v6284 = vpop.permute.xlu0 %6283
      %6285 = vrot.lane.b32.xlu0 %v6134, 96
      %v6286 = vpop.permute.xlu0 %6285
      %6287 = vrot.lane.b32.xlu0 %v6135, 96
      %v6288 = vpop.permute.xlu0 %6287
      %6289 = vrot.lane.b32.xlu0 %v6136, 96
      %v6290 = vpop.permute.xlu0 %6289
      %6291 = vrot.lane.b32.xlu0 %v6137, 96
      %v6292 = vpop.permute.xlu0 %6291
      %6293 = vrot.lane.b32.xlu0 %v6138, 96
      %v6294 = vpop.permute.xlu0 %6293
      %6295 = vrot.lane.b32.xlu0 %v6139, 96
      %v6296 = vpop.permute.xlu0 %6295
      %6297 = vrot.lane.b32.xlu0 %v6140, 96
      %v6298 = vpop.permute.xlu0 %6297
      %6299 = vrot.lane.b32.xlu0 %v6141, 96
      %v6300 = vpop.permute.xlu0 %6299
      %6301 = vrot.lane.b32.xlu0 %v6142, 96
      %v6302 = vpop.permute.xlu0 %6301
      %6303 = vrot.lane.b32.xlu0 %v6143, 96
      %v6304 = vpop.permute.xlu0 %6303
      %6305 = vrot.lane.b32.xlu0 %v6144, 96
      %v6306 = vpop.permute.xlu0 %6305
      %6307 = vrot.lane.b32.xlu0 %v6145, 96
      %v6308 = vpop.permute.xlu0 %6307
      %6309 = vrot.lane.b32.xlu0 %v6146, 96
      %v6310 = vpop.permute.xlu0 %6309
      %6311 = vrot.lane.b32.xlu0 %v6147, 96
      %v6312 = vpop.permute.xlu0 %6311
      %6313 = vrot.lane.b32.xlu0 %v6148, 96
      %v6314 = vpop.permute.xlu0 %6313
      %6315 = vrot.lane.b32.xlu0 %v6149, 96
      %v6316 = vpop.permute.xlu0 %6315
      %6317 = vrot.lane.b32.xlu0 %v6150, 96
      %v6318 = vpop.permute.xlu0 %6317
      %6319 = vrot.lane.b32.xlu0 %v6151, 96
      %v6320 = vpop.permute.xlu0 %6319
      %6321 = vrot.lane.b32.xlu0 %v6152, 96
      %v6322 = vpop.permute.xlu0 %6321
      %6323 = vrot.lane.b32.xlu0 %v6153, 96
      %v6324 = vpop.permute.xlu0 %6323
      %6325 = vrot.lane.b32.xlu0 %v6154, 96
      %v6326 = vpop.permute.xlu0 %6325
      %6327 = vrot.lane.b32.xlu0 %v6155, 96
      %v6328 = vpop.permute.xlu0 %6327
      %6329 = vrot.lane.b32.xlu0 %v6156, 96
      %v6330 = vpop.permute.xlu0 %6329
      %6331 = vrot.lane.b32.xlu0 %v6157, 96
      %v6332 = vpop.permute.xlu0 %6331
      %6333 = vrot.lane.b32.xlu0 %v6158, 96
      %v6334 = vpop.permute.xlu0 %6333
      %6335 = vrot.lane.b32.xlu0 %v6159, 96
      %v6336 = vpop.permute.xlu0 %6335
      %6337 = vrot.lane.b32.xlu0 %v6160, 96
      %v6338 = vpop.permute.xlu0 %6337
      %6339 = vrot.lane.b32.xlu0 %v6161, 96
      %v6340 = vpop.permute.xlu0 %6339
      %6341 = vrot.lane.b32.xlu0 %v6162, 96
      %v6342 = vpop.permute.xlu0 %6341
      %6343 = vrot.lane.b32.xlu0 %v6163, 96
      %v6344 = vpop.permute.xlu0 %6343
      %6345 = vrot.lane.b32.xlu0 %v6164, 96
      %v6346 = vpop.permute.xlu0 %6345
      %6347 = vrot.lane.b32.xlu0 %v6165, 96
      %v6348 = vpop.permute.xlu0 %6347
      %6349 = vrot.lane.b32.xlu0 %v6166, 96
      %v6350 = vpop.permute.xlu0 %6349
      %6351 = vrot.lane.b32.xlu0 %v6167, 96
      %v6352 = vpop.permute.xlu0 %6351
      %6353 = vrot.lane.b32.xlu0 %v6168, 96
      %v6354 = vpop.permute.xlu0 %6353
      %6355 = vrot.lane.b32.xlu0 %v6169, 96
      %v6356 = vpop.permute.xlu0 %6355
      %6357 = vrot.lane.b32.xlu0 %v6170, 96
      %v6358 = vpop.permute.xlu0 %6357
      %6359 = vrot.lane.b32.xlu0 %v6171, 96
      %v6360 = vpop.permute.xlu0 %6359
      %6361 = vrot.lane.b32.xlu0 %v6172, 96
      %v6362 = vpop.permute.xlu0 %6361
      %6363 = vrot.lane.b32.xlu0 %v6173, 96
      %v6364 = vpop.permute.xlu0 %6363
      %6365 = vrot.lane.b32.xlu0 %v6174, 96
      %v6366 = vpop.permute.xlu0 %6365
      %v6431 = vmul.f32 %v5663, %v6240
      %v6432 = vmul.f32 %v5664, %v6242
      %v6433 = vmul.f32 %v5665, %v6244
      %v6434 = vmul.f32 %v5666, %v6246
      %v6435 = vmul.f32 %v5667, %v6248
      %v6436 = vmul.f32 %v5668, %v6250
      %v6437 = vmul.f32 %v5669, %v6252
      %v6438 = vmul.f32 %v5670, %v6254
      %v6439 = vmul.f32 %v5671, %v6256
      %v6440 = vmul.f32 %v5672, %v6258
      %v6441 = vmul.f32 %v5673, %v6260
      %v6442 = vmul.f32 %v5674, %v6262
      %v6443 = vmul.f32 %v5675, %v6264
      %v6444 = vmul.f32 %v5676, %v6266
      %v6445 = vmul.f32 %v5677, %v6268
      %v6446 = vmul.f32 %v5678, %v6270
      %v6447 = vmul.f32 %v5679, %v6272
      %v6448 = vmul.f32 %v5680, %v6274
      %v6449 = vmul.f32 %v5681, %v6276
      %v6450 = vmul.f32 %v5682, %v6278
      %v6451 = vmul.f32 %v5683, %v6280
      %v6452 = vmul.f32 %v5684, %v6282
      %v6453 = vmul.f32 %v5685, %v6284
      %v6454 = vmul.f32 %v5686, %v6286
      %v6455 = vmul.f32 %v5687, %v6288
      %v6456 = vmul.f32 %v5688, %v6290
      %v6457 = vmul.f32 %v5689, %v6292
      %v6458 = vmul.f32 %v5690, %v6294
      %v6459 = vmul.f32 %v5691, %v6296
      %v6460 = vmul.f32 %v5692, %v6298
      %v6461 = vmul.f32 %v5693, %v6300
      %v6462 = vmul.f32 %v5694, %v6302
      %v6463 = vmul.f32 %v5695, %v6304
      %v6464 = vmul.f32 %v5696, %v6306
      %v6465 = vmul.f32 %v5697, %v6308
      %v6466 = vmul.f32 %v5698, %v6310
      %v6467 = vmul.f32 %v5699, %v6312
      %v6468 = vmul.f32 %v5700, %v6314
      %v6469 = vmul.f32 %v5701, %v6316
      %v6470 = vmul.f32 %v5702, %v6318
      %v6471 = vmul.f32 %v5703, %v6320
      %v6472 = vmul.f32 %v5704, %v6322
      %v6473 = vmul.f32 %v5705, %v6324
      %v6474 = vmul.f32 %v5706, %v6326
      %v6475 = vmul.f32 %v5707, %v6328
      %v6476 = vmul.f32 %v5708, %v6330
      %v6477 = vmul.f32 %v5709, %v6332
      %v6478 = vmul.f32 %v5710, %v6334
      %v6479 = vmul.f32 %v5711, %v6336
      %v6480 = vmul.f32 %v5712, %v6338
      %v6481 = vmul.f32 %v5713, %v6340
      %v6482 = vmul.f32 %v5714, %v6342
      %v6483 = vmul.f32 %v5715, %v6344
      %v6484 = vmul.f32 %v5716, %v6346
      %v6485 = vmul.f32 %v5717, %v6348
      %v6486 = vmul.f32 %v5718, %v6350
      %v6487 = vmul.f32 %v5719, %v6352
      %v6488 = vmul.f32 %v5720, %v6354
      %v6489 = vmul.f32 %v5721, %v6356
      %v6490 = vmul.f32 %v5722, %v6358
      %v6491 = vmul.f32 %v5723, %v6360
      %v6492 = vmul.f32 %v5724, %v6362
      %v6493 = vmul.f32 %v5725, %v6364
      %v6494 = vmul.f32 %v5726, %v6366
      %v6495 = vpack.c.bf16 %v6432, %v6431
      %v6496 = vpack.c.bf16 %v6434, %v6433
      %v6497 = vpack.c.bf16 %v6436, %v6435
      %v6498 = vpack.c.bf16 %v6438, %v6437
      %v6499 = vpack.c.bf16 %v6440, %v6439
      %v6500 = vpack.c.bf16 %v6442, %v6441
      %v6501 = vpack.c.bf16 %v6444, %v6443
      %v6502 = vpack.c.bf16 %v6446, %v6445
      %v6503 = vpack.c.bf16 %v6448, %v6447
      %v6504 = vpack.c.bf16 %v6450, %v6449
      %v6505 = vpack.c.bf16 %v6452, %v6451
      %v6506 = vpack.c.bf16 %v6454, %v6453
      %v6507 = vpack.c.bf16 %v6456, %v6455
      %v6508 = vpack.c.bf16 %v6458, %v6457
      %v6509 = vpack.c.bf16 %v6460, %v6459
      %v6510 = vpack.c.bf16 %v6462, %v6461
      %v6511 = vpack.c.bf16 %v6464, %v6463
      %v6512 = vpack.c.bf16 %v6466, %v6465
      %v6513 = vpack.c.bf16 %v6468, %v6467
      %v6514 = vpack.c.bf16 %v6470, %v6469
      %v6515 = vpack.c.bf16 %v6472, %v6471
      %v6516 = vpack.c.bf16 %v6474, %v6473
      %v6517 = vpack.c.bf16 %v6476, %v6475
      %v6518 = vpack.c.bf16 %v6478, %v6477
      %v6519 = vpack.c.bf16 %v6480, %v6479
      %v6520 = vpack.c.bf16 %v6482, %v6481
      %v6521 = vpack.c.bf16 %v6484, %v6483
      %v6522 = vpack.c.bf16 %v6486, %v6485
      %v6523 = vpack.c.bf16 %v6488, %v6487
      %v6524 = vpack.c.bf16 %v6490, %v6489
      %v6525 = vpack.c.bf16 %v6492, %v6491
      %v6526 = vpack.c.bf16 %v6494, %v6493
      %v6527 = vld [vmem:[%s8] sm:$0xf]
      %v6528 = vld [vmem:[%s8 + $0x4] sm:$0xf]
      %v6529 = vld [vmem:[%s8 + $0x8] sm:$0xf]
      %v6530 = vld [vmem:[%s8 + $0xc] sm:$0xf]
      %v6535 = vunpack.c.l.b16 %v6527
      %v6536 = vunpack.c.l.b16 %v6528
      %v6537 = vunpack.c.l.b16 %v6529
      %v6538 = vunpack.c.l.b16 %v6530
      %v6539 = vpack.c.b16 %v6536, %v6535
      %v6540 = vpack.c.b16 %v6538, %v6537
      %v6544 = vsel %vm398, %v6495, 0
      %v6547 = vsel %vm398, %v6496, 0
      %v6550 = vsel %vm398, %v6497, 0
      %v6553 = vsel %vm398, %v6498, 0
      %v6556 = vsel %vm398, %v6499, 0
      %v6559 = vsel %vm398, %v6500, 0
      %v6562 = vsel %vm398, %v6501, 0
      %v6565 = vsel %vm398, %v6502, 0
      %v6568 = vsel %vm398, %v6503, 0
      %v6571 = vsel %vm398, %v6504, 0
      %v6574 = vsel %vm398, %v6505, 0
      %v6577 = vsel %vm398, %v6506, 0
      %v6580 = vsel %vm398, %v6507, 0
      %v6583 = vsel %vm398, %v6508, 0
      %v6586 = vsel %vm398, %v6509, 0
      %v6589 = vsel %vm398, %v6510, 0
      %v6592 = vsel %vm398, %v6511, 0
      %v6595 = vsel %vm398, %v6512, 0
      %v6598 = vsel %vm398, %v6513, 0
      %v6601 = vsel %vm398, %v6514, 0
      %v6604 = vsel %vm398, %v6515, 0
      %v6607 = vsel %vm398, %v6516, 0
      %v6610 = vsel %vm398, %v6517, 0
      %v6613 = vsel %vm398, %v6518, 0
      %v6616 = vsel %vm398, %v6519, 0
      %v6619 = vsel %vm398, %v6520, 0
      %v6622 = vsel %vm398, %v6521, 0
      %v6625 = vsel %vm398, %v6522, 0
      %v6628 = vsel %vm398, %v6523, 0
      %v6631 = vsel %vm398, %v6524, 0
      %v6634 = vsel %vm398, %v6525, 0
      %v6637 = vsel %vm398, %v6526, 0
      %6639 = vmatprep.subr.bf16.mxu0 0
      %6640 = vmatpush1.bf16.msra.mxu0 %v6539
      %6641 = vmatprep.subr.bf16.mxu0 0
      %6642 = vmatpush1.bf16.msra.mxu0 %v6540
      %6643 = vmatprep.subr.bf16.mxu0 0
      %6644 = vmatpush1.bf16.msra.mxu0 0
      %6645 = vmatprep.subr.bf16.mxu0 0
      %6646 = vmatpush1.bf16.msra.mxu0 0
      %6647 = vmatprep.subr.bf16.mxu0 0
      %6648 = vmatpush1.bf16.msra.mxu0 0
      %6649 = vmatprep.subr.bf16.mxu0 0
      %6650 = vmatpush1.bf16.msra.mxu0 0
      %6651 = vmatprep.subr.bf16.mxu0 0
      %6652 = vmatpush1.bf16.msra.mxu0 0
      %6653 = vmatprep.subr.bf16.mxu0 0
      %6654 = vmatpush1.bf16.msra.mxu0 0
      %6655 = vmatprep.subr.bf16.mxu0 0
      %6656 = vmatpush1.bf16.msra.mxu0 0
      %6657 = vmatprep.subr.bf16.mxu0 0
      %6658 = vmatpush1.bf16.msra.mxu0 0
      %6659 = vmatprep.subr.bf16.mxu0 0
      %6660 = vmatpush1.bf16.msra.mxu0 0
      %6661 = vmatprep.subr.bf16.mxu0 0
      %6662 = vmatpush1.bf16.msra.mxu0 0
      %6663 = vmatprep.subr.bf16.mxu0 0
      %6664 = vmatpush1.bf16.msra.mxu0 0
      %6665 = vmatprep.subr.bf16.mxu0 0
      %6666 = vmatpush1.bf16.msra.mxu0 0
      %6667 = vmatprep.subr.bf16.mxu0 0
      %6668 = vmatpush1.bf16.msra.mxu0 0
      %6669 = vmatprep.subr.bf16.mxu0 0
      %6670 = vmatpush1.bf16.msra.mxu0 0
      %6671 = vmatprep.mubr.bf16.mxu0 0
      %6672 = vmatmul.mubr.bf16.gmra.mrb[0].mxu0 %v6544
      %v6673 = vpop.f32.mrb[0].mxu0
      %v6674 = vadd.f32 0.0, %v6673
      %v6675 = vpop.f32.mrb[0].mxu0
      %v6676 = vpop.f32.mrb[0].mxu0
      %v6677 = vadd.f32 0.0, %v6676
      %v6678 = vpop.f32.mrb[0].mxu0
      %6679 = vmatprep.mubr.bf16.mxu0 0
      %6680 = vmatmul.mubr.bf16.gmra.mrb[0].mxu0 %v6547
      %v6681 = vpop.f32.mrb[0].mxu0
      %v6682 = vadd.f32 0.0, %v6681
      %v6683 = vpop.f32.mrb[0].mxu0
      %v6684 = vpop.f32.mrb[0].mxu0
      %v6685 = vadd.f32 0.0, %v6684
      %v6686 = vpop.f32.mrb[0].mxu0
      %6687 = vmatprep.mubr.bf16.mxu0 0
      %6688 = vmatmul.mubr.bf16.gmra.mrb[0].mxu0 %v6550
      %v6689 = vpop.f32.mrb[0].mxu0
      %v6690 = vadd.f32 0.0, %v6689
      %v6691 = vpop.f32.mrb[0].mxu0
      %v6692 = vpop.f32.mrb[0].mxu0
      %v6693 = vadd.f32 0.0, %v6692
      %v6694 = vpop.f32.mrb[0].mxu0
      %6695 = vmatprep.mubr.bf16.mxu0 0
      %6696 = vmatmul.mubr.bf16.gmra.mrb[0].mxu0 %v6553
      %v6697 = vpop.f32.mrb[0].mxu0
      %v6698 = vadd.f32 0.0, %v6697
      %v6699 = vpop.f32.mrb[0].mxu0
      %v6700 = vpop.f32.mrb[0].mxu0
      %v6701 = vadd.f32 0.0, %v6700
      %v6702 = vpop.f32.mrb[0].mxu0
      %6703 = vmatprep.mubr.bf16.mxu0 0
      %6704 = vmatmul.mubr.bf16.gmra.mrb[0].mxu0 %v6556
      %v6705 = vpop.f32.mrb[0].mxu0
      %v6706 = vadd.f32 0.0, %v6705
      %v6707 = vpop.f32.mrb[0].mxu0
      %v6708 = vpop.f32.mrb[0].mxu0
      %v6709 = vadd.f32 0.0, %v6708
      %v6710 = vpop.f32.mrb[0].mxu0
      %6711 = vmatprep.mubr.bf16.mxu0 0
      %6712 = vmatmul.mubr.bf16.gmra.mrb[0].mxu0 %v6559
      %v6713 = vpop.f32.mrb[0].mxu0
      %v6714 = vadd.f32 0.0, %v6713
      %v6715 = vpop.f32.mrb[0].mxu0
      %v6716 = vpop.f32.mrb[0].mxu0
      %v6717 = vadd.f32 0.0, %v6716
      %v6718 = vpop.f32.mrb[0].mxu0
      %6719 = vmatprep.mubr.bf16.mxu0 0
      %6720 = vmatmul.mubr.bf16.gmra.mrb[0].mxu0 %v6562
      %v6721 = vpop.f32.mrb[0].mxu0
      %v6722 = vadd.f32 0.0, %v6721
      %v6723 = vpop.f32.mrb[0].mxu0
      %v6724 = vpop.f32.mrb[0].mxu0
      %v6725 = vadd.f32 0.0, %v6724
      %v6726 = vpop.f32.mrb[0].mxu0
      %6727 = vmatprep.mubr.bf16.mxu0 0
      %6728 = vmatmul.mubr.bf16.gmra.mrb[0].mxu0 %v6565
      %v6729 = vpop.f32.mrb[0].mxu0
      %v6730 = vadd.f32 0.0, %v6729
      %v6731 = vpop.f32.mrb[0].mxu0
      %v6732 = vpop.f32.mrb[0].mxu0
      %v6733 = vadd.f32 0.0, %v6732
      %v6734 = vpop.f32.mrb[0].mxu0
      %6735 = vmatprep.mubr.bf16.mxu0 0
      %6736 = vmatmul.mubr.bf16.gmra.mrb[0].mxu0 %v6568
      %v6737 = vpop.f32.mrb[0].mxu0
      %v6738 = vadd.f32 0.0, %v6737
      %v6739 = vpop.f32.mrb[0].mxu0
      %v6740 = vpop.f32.mrb[0].mxu0
      %v6741 = vadd.f32 0.0, %v6740
      %v6742 = vpop.f32.mrb[0].mxu0
      %6743 = vmatprep.mubr.bf16.mxu0 0
      %6744 = vmatmul.mubr.bf16.gmra.mrb[0].mxu0 %v6571
      %v6745 = vpop.f32.mrb[0].mxu0
      %v6746 = vadd.f32 0.0, %v6745
      %v6747 = vpop.f32.mrb[0].mxu0
      %v6748 = vpop.f32.mrb[0].mxu0
      %v6749 = vadd.f32 0.0, %v6748
      %v6750 = vpop.f32.mrb[0].mxu0
      %6751 = vmatprep.mubr.bf16.mxu0 0
      %6752 = vmatmul.mubr.bf16.gmra.mrb[0].mxu0 %v6574
      %v6753 = vpop.f32.mrb[0].mxu0
      %v6754 = vadd.f32 0.0, %v6753
      %v6755 = vpop.f32.mrb[0].mxu0
      %v6756 = vpop.f32.mrb[0].mxu0
      %v6757 = vadd.f32 0.0, %v6756
      %v6758 = vpop.f32.mrb[0].mxu0
      %6759 = vmatprep.mubr.bf16.mxu0 0
      %6760 = vmatmul.mubr.bf16.gmra.mrb[0].mxu0 %v6577
      %v6761 = vpop.f32.mrb[0].mxu0
      %v6762 = vadd.f32 0.0, %v6761
      %v6763 = vpop.f32.mrb[0].mxu0
      %v6764 = vpop.f32.mrb[0].mxu0
      %v6765 = vadd.f32 0.0, %v6764
      %v6766 = vpop.f32.mrb[0].mxu0
      %6767 = vmatprep.mubr.bf16.mxu0 0
      %6768 = vmatmul.mubr.bf16.gmra.mrb[0].mxu0 %v6580
      %v6769 = vpop.f32.mrb[0].mxu0
      %v6770 = vadd.f32 0.0, %v6769
      %v6771 = vpop.f32.mrb[0].mxu0
      %v6772 = vpop.f32.mrb[0].mxu0
      %v6773 = vadd.f32 0.0, %v6772
      %v6774 = vpop.f32.mrb[0].mxu0
      %6775 = vmatprep.mubr.bf16.mxu0 0
      %6776 = vmatmul.mubr.bf16.gmra.mrb[0].mxu0 %v6583
      %v6777 = vpop.f32.mrb[0].mxu0
      %v6778 = vadd.f32 0.0, %v6777
      %v6779 = vpop.f32.mrb[0].mxu0
      %v6780 = vpop.f32.mrb[0].mxu0
      %v6781 = vadd.f32 0.0, %v6780
      %v6782 = vpop.f32.mrb[0].mxu0
      %6783 = vmatprep.mubr.bf16.mxu0 0
      %6784 = vmatmul.mubr.bf16.gmra.mrb[0].mxu0 %v6586
      %v6785 = vpop.f32.mrb[0].mxu0
      %v6786 = vadd.f32 0.0, %v6785
      %v6787 = vpop.f32.mrb[0].mxu0
      %v6788 = vpop.f32.mrb[0].mxu0
      %v6789 = vadd.f32 0.0, %v6788
      %v6790 = vpop.f32.mrb[0].mxu0
      %6791 = vmatprep.mubr.bf16.mxu0 0
      %6792 = vmatmul.mubr.bf16.gmra.mrb[0].mxu0 %v6589
      %v6793 = vpop.f32.mrb[0].mxu0
      %v6794 = vadd.f32 0.0, %v6793
      %v6795 = vpop.f32.mrb[0].mxu0
      %v6796 = vpop.f32.mrb[0].mxu0
      %v6797 = vadd.f32 0.0, %v6796
      %v6798 = vpop.f32.mrb[0].mxu0
      %6799 = vmatprep.mubr.bf16.mxu0 0
      %6800 = vmatmul.mubr.bf16.gmra.mrb[0].mxu0 %v6592
      %v6801 = vpop.f32.mrb[0].mxu0
      %v6802 = vadd.f32 0.0, %v6801
      %v6803 = vpop.f32.mrb[0].mxu0
      %v6804 = vpop.f32.mrb[0].mxu0
      %v6805 = vadd.f32 0.0, %v6804
      %v6806 = vpop.f32.mrb[0].mxu0
      %6807 = vmatprep.mubr.bf16.mxu0 0
      %6808 = vmatmul.mubr.bf16.gmra.mrb[0].mxu0 %v6595
      %v6809 = vpop.f32.mrb[0].mxu0
      %v6810 = vadd.f32 0.0, %v6809
      %v6811 = vpop.f32.mrb[0].mxu0
      %v6812 = vpop.f32.mrb[0].mxu0
      %v6813 = vadd.f32 0.0, %v6812
      %v6814 = vpop.f32.mrb[0].mxu0
      %6815 = vmatprep.mubr.bf16.mxu0 0
      %6816 = vmatmul.mubr.bf16.gmra.mrb[0].mxu0 %v6598
      %v6817 = vpop.f32.mrb[0].mxu0
      %v6818 = vadd.f32 0.0, %v6817
      %v6819 = vpop.f32.mrb[0].mxu0
      %v6820 = vpop.f32.mrb[0].mxu0
      %v6821 = vadd.f32 0.0, %v6820
      %v6822 = vpop.f32.mrb[0].mxu0
      %6823 = vmatprep.mubr.bf16.mxu0 0
      %6824 = vmatmul.mubr.bf16.gmra.mrb[0].mxu0 %v6601
      %v6825 = vpop.f32.mrb[0].mxu0
      %v6826 = vadd.f32 0.0, %v6825
      %v6827 = vpop.f32.mrb[0].mxu0
      %v6828 = vpop.f32.mrb[0].mxu0
      %v6829 = vadd.f32 0.0, %v6828
      %v6830 = vpop.f32.mrb[0].mxu0
      %6831 = vmatprep.mubr.bf16.mxu0 0
      %6832 = vmatmul.mubr.bf16.gmra.mrb[0].mxu0 %v6604
      %v6833 = vpop.f32.mrb[0].mxu0
      %v6834 = vadd.f32 0.0, %v6833
      %v6835 = vpop.f32.mrb[0].mxu0
      %v6836 = vpop.f32.mrb[0].mxu0
      %v6837 = vadd.f32 0.0, %v6836
      %v6838 = vpop.f32.mrb[0].mxu0
      %6839 = vmatprep.mubr.bf16.mxu0 0
      %6840 = vmatmul.mubr.bf16.gmra.mrb[0].mxu0 %v6607
      %v6841 = vpop.f32.mrb[0].mxu0
      %v6842 = vadd.f32 0.0, %v6841
      %v6843 = vpop.f32.mrb[0].mxu0
      %v6844 = vpop.f32.mrb[0].mxu0
      %v6845 = vadd.f32 0.0, %v6844
      %v6846 = vpop.f32.mrb[0].mxu0
      %6847 = vmatprep.mubr.bf16.mxu0 0
      %6848 = vmatmul.mubr.bf16.gmra.mrb[0].mxu0 %v6610
      %v6849 = vpop.f32.mrb[0].mxu0
      %v6850 = vadd.f32 0.0, %v6849
      %v6851 = vpop.f32.mrb[0].mxu0
      %v6852 = vpop.f32.mrb[0].mxu0
      %v6853 = vadd.f32 0.0, %v6852
      %v6854 = vpop.f32.mrb[0].mxu0
      %6855 = vmatprep.mubr.bf16.mxu0 0
      %6856 = vmatmul.mubr.bf16.gmra.mrb[0].mxu0 %v6613
      %v6857 = vpop.f32.mrb[0].mxu0
      %v6858 = vadd.f32 0.0, %v6857
      %v6859 = vpop.f32.mrb[0].mxu0
      %v6860 = vpop.f32.mrb[0].mxu0
      %v6861 = vadd.f32 0.0, %v6860
      %v6862 = vpop.f32.mrb[0].mxu0
      %6863 = vmatprep.mubr.bf16.mxu0 0
      %6864 = vmatmul.mubr.bf16.gmra.mrb[0].mxu0 %v6616
      %v6865 = vpop.f32.mrb[0].mxu0
      %v6866 = vadd.f32 0.0, %v6865
      %v6867 = vpop.f32.mrb[0].mxu0
      %v6868 = vpop.f32.mrb[0].mxu0
      %v6869 = vadd.f32 0.0, %v6868
      %v6870 = vpop.f32.mrb[0].mxu0
      %6871 = vmatprep.mubr.bf16.mxu0 0
      %6872 = vmatmul.mubr.bf16.gmra.mrb[0].mxu0 %v6619
      %v6873 = vpop.f32.mrb[0].mxu0
      %v6874 = vadd.f32 0.0, %v6873
      %v6875 = vpop.f32.mrb[0].mxu0
      %v6876 = vpop.f32.mrb[0].mxu0
      %v6877 = vadd.f32 0.0, %v6876
      %v6878 = vpop.f32.mrb[0].mxu0
      %6879 = vmatprep.mubr.bf16.mxu0 0
      %6880 = vmatmul.mubr.bf16.gmra.mrb[0].mxu0 %v6622
      %v6881 = vpop.f32.mrb[0].mxu0
      %v6882 = vadd.f32 0.0, %v6881
      %v6883 = vpop.f32.mrb[0].mxu0
      %v6884 = vpop.f32.mrb[0].mxu0
      %v6885 = vadd.f32 0.0, %v6884
      %v6886 = vpop.f32.mrb[0].mxu0
      %6887 = vmatprep.mubr.bf16.mxu0 0
      %6888 = vmatmul.mubr.bf16.gmra.mrb[0].mxu0 %v6625
      %v6889 = vpop.f32.mrb[0].mxu0
      %v6890 = vadd.f32 0.0, %v6889
      %v6891 = vpop.f32.mrb[0].mxu0
      %v6892 = vpop.f32.mrb[0].mxu0
      %v6893 = vadd.f32 0.0, %v6892
      %v6894 = vpop.f32.mrb[0].mxu0
      %6895 = vmatprep.mubr.bf16.mxu0 0
      %6896 = vmatmul.mubr.bf16.gmra.mrb[0].mxu0 %v6628
      %v6897 = vpop.f32.mrb[0].mxu0
      %v6898 = vadd.f32 0.0, %v6897
      %v6899 = vpop.f32.mrb[0].mxu0
      %v6900 = vpop.f32.mrb[0].mxu0
      %v6901 = vadd.f32 0.0, %v6900
      %v6902 = vpop.f32.mrb[0].mxu0
      %6903 = vmatprep.mubr.bf16.mxu0 0
      %6904 = vmatmul.mubr.bf16.gmra.mrb[0].mxu0 %v6631
      %v6905 = vpop.f32.mrb[0].mxu0
      %v6906 = vadd.f32 0.0, %v6905
      %v6907 = vpop.f32.mrb[0].mxu0
      %v6908 = vpop.f32.mrb[0].mxu0
      %v6909 = vadd.f32 0.0, %v6908
      %v6910 = vpop.f32.mrb[0].mxu0
      %6911 = vmatprep.mubr.bf16.mxu0 0
      %6912 = vmatmul.mubr.bf16.gmra.mrb[0].mxu0 %v6634
      %v6913 = vpop.f32.mrb[0].mxu0
      %v6914 = vadd.f32 0.0, %v6913
      %v6915 = vpop.f32.mrb[0].mxu0
      %v6916 = vpop.f32.mrb[0].mxu0
      %v6917 = vadd.f32 0.0, %v6916
      %v6918 = vpop.f32.mrb[0].mxu0
      %6919 = vmatprep.mubr.bf16.mxu0 0
      %6920 = vmatmul.mubr.bf16.gmra.mrb[0].mxu0 %v6637
      %v6921 = vpop.f32.mrb[0].mxu0
      %v6922 = vadd.f32 0.0, %v6921
      %v6923 = vpop.f32.mrb[0].mxu0
      %v6924 = vpop.f32.mrb[0].mxu0
      %v6925 = vadd.f32 0.0, %v6924
      %v6926 = vpop.f32.mrb[0].mxu0
      %6927 = vdwg.mxu0
      %6928 = vst.msk [vmem:[%s332] sm:$0xff] %vm398, %v6674
      %6929 = vst.msk [vmem:[%s332 + $0x8] sm:$0xff] %vm398, %v6677
      %6930 = vst.msk [vmem:[%s332 + $0x10] sm:$0xff] %vm398, %v6682
      %6931 = vst.msk [vmem:[%s332 + $0x18] sm:$0xff] %vm398, %v6685
      %6932 = vst.msk [vmem:[%s332 + $0x20] sm:$0xff] %vm398, %v6690
      %6933 = vst.msk [vmem:[%s332 + $0x28] sm:$0xff] %vm398, %v6693
      %6934 = vst.msk [vmem:[%s332 + $0x30] sm:$0xff] %vm398, %v6698
      %6935 = vst.msk [vmem:[%s332 + $0x38] sm:$0xff] %vm398, %v6701
      %6936 = vst.msk [vmem:[%s332 + $0x40] sm:$0xff] %vm398, %v6706
      %6937 = vst.msk [vmem:[%s332 + $0x48] sm:$0xff] %vm398, %v6709
      %6938 = vst.msk [vmem:[%s332 + $0x50] sm:$0xff] %vm398, %v6714
      %6939 = vst.msk [vmem:[%s332 + $0x58] sm:$0xff] %vm398, %v6717
      %6940 = vst.msk [vmem:[%s332 + $0x60] sm:$0xff] %vm398, %v6722
      %6941 = vst.msk [vmem:[%s332 + $0x68] sm:$0xff] %vm398, %v6725
      %6942 = vst.msk [vmem:[%s332 + $0x70] sm:$0xff] %vm398, %v6730
      %6943 = vst.msk [vmem:[%s332 + $0x78] sm:$0xff] %vm398, %v6733
      %6944 = vst.msk [vmem:[%s332 + $0x80] sm:$0xff] %vm398, %v6738
      %6945 = vst.msk [vmem:[%s332 + $0x88] sm:$0xff] %vm398, %v6741
      %6946 = vst.msk [vmem:[%s332 + $0x90] sm:$0xff] %vm398, %v6746
      %6947 = vst.msk [vmem:[%s332 + $0x98] sm:$0xff] %vm398, %v6749
      %6948 = vst.msk [vmem:[%s332 + $0xa0] sm:$0xff] %vm398, %v6754
      %6949 = vst.msk [vmem:[%s332 + $0xa8] sm:$0xff] %vm398, %v6757
      %6950 = vst.msk [vmem:[%s332 + $0xb0] sm:$0xff] %vm398, %v6762
      %6951 = vst.msk [vmem:[%s332 + $0xb8] sm:$0xff] %vm398, %v6765
      %6952 = vst.msk [vmem:[%s332 + $0xc0] sm:$0xff] %vm398, %v6770
      %6953 = vst.msk [vmem:[%s332 + $0xc8] sm:$0xff] %vm398, %v6773
      %6954 = vst.msk [vmem:[%s332 + $0xd0] sm:$0xff] %vm398, %v6778
      %6955 = vst.msk [vmem:[%s332 + $0xd8] sm:$0xff] %vm398, %v6781
      %6956 = vst.msk [vmem:[%s332 + $0xe0] sm:$0xff] %vm398, %v6786
      %6957 = vst.msk [vmem:[%s332 + $0xe8] sm:$0xff] %vm398, %v6789
      %6958 = vst.msk [vmem:[%s332 + $0xf0] sm:$0xff] %vm398, %v6794
      %6959 = vst.msk [vmem:[%s332 + $0xf8] sm:$0xff] %vm398, %v6797
      %6960 = vst.msk [vmem:[%s332 + $0x100] sm:$0xff] %vm398, %v6802
      %6961 = vst.msk [vmem:[%s332 + $0x108] sm:$0xff] %vm398, %v6805
      %6962 = vst.msk [vmem:[%s332 + $0x110] sm:$0xff] %vm398, %v6810
      %6963 = vst.msk [vmem:[%s332 + $0x118] sm:$0xff] %vm398, %v6813
      %6964 = vst.msk [vmem:[%s332 + $0x120] sm:$0xff] %vm398, %v6818
      %6965 = vst.msk [vmem:[%s332 + $0x128] sm:$0xff] %vm398, %v6821
      %6966 = vst.msk [vmem:[%s332 + $0x130] sm:$0xff] %vm398, %v6826
      %6967 = vst.msk [vmem:[%s332 + $0x138] sm:$0xff] %vm398, %v6829
      %6968 = vst.msk [vmem:[%s332 + $0x140] sm:$0xff] %vm398, %v6834
      %6969 = vst.msk [vmem:[%s332 + $0x148] sm:$0xff] %vm398, %v6837
      %6970 = vst.msk [vmem:[%s332 + $0x150] sm:$0xff] %vm398, %v6842
      %6971 = vst.msk [vmem:[%s332 + $0x158] sm:$0xff] %vm398, %v6845
      %6972 = vst.msk [vmem:[%s332 + $0x160] sm:$0xff] %vm398, %v6850
      %6973 = vst.msk [vmem:[%s332 + $0x168] sm:$0xff] %vm398, %v6853
      %6974 = vst.msk [vmem:[%s332 + $0x170] sm:$0xff] %vm398, %v6858
      %6975 = vst.msk [vmem:[%s332 + $0x178] sm:$0xff] %vm398, %v6861
      %6976 = vst.msk [vmem:[%s332 + $0x180] sm:$0xff] %vm398, %v6866
      %6977 = vst.msk [vmem:[%s332 + $0x188] sm:$0xff] %vm398, %v6869
      %6978 = vst.msk [vmem:[%s332 + $0x190] sm:$0xff] %vm398, %v6874
      %6979 = vst.msk [vmem:[%s332 + $0x198] sm:$0xff] %vm398, %v6877
      %6980 = vst.msk [vmem:[%s332 + $0x1a0] sm:$0xff] %vm398, %v6882
      %6981 = vst.msk [vmem:[%s332 + $0x1a8] sm:$0xff] %vm398, %v6885
      %6982 = vst.msk [vmem:[%s332 + $0x1b0] sm:$0xff] %vm398, %v6890
      %6983 = vst.msk [vmem:[%s332 + $0x1b8] sm:$0xff] %vm398, %v6893
      %6984 = vst.msk [vmem:[%s332 + $0x1c0] sm:$0xff] %vm398, %v6898
      %6985 = vst.msk [vmem:[%s332 + $0x1c8] sm:$0xff] %vm398, %v6901
      %6986 = vst.msk [vmem:[%s332 + $0x1d0] sm:$0xff] %vm398, %v6906
      %6987 = vst.msk [vmem:[%s332 + $0x1d8] sm:$0xff] %vm398, %v6909
      %6988 = vst.msk [vmem:[%s332 + $0x1e0] sm:$0xff] %vm398, %v6914
      %6989 = vst.msk [vmem:[%s332 + $0x1e8] sm:$0xff] %vm398, %v6917
      %6990 = vst.msk [vmem:[%s332 + $0x1f0] sm:$0xff] %vm398, %v6922
      %6991 = vst.msk [vmem:[%s332 + $0x1f8] sm:$0xff] %vm398, %v6925
      %p6992 = scmp.lt.s32.totalorder %s20, 1
      %s6993 = scalar_select %p6992, %s20, 1
      %s6994 = smul.addr %s6993, 64
      %s6995 = smul.addr %s6994, 8
      %s6996 = scalar_lea.vmem %s9, %s6995
      // Predicated region
      $region57: #{_lambda_.4} parent=55 // pred_check
        %p6997 = pneg %p232
      $region58: #{_lambda_.4} parent=55 // pred_check_branch
        %6999 = sbr.rel (%p6997) target = $region60
      $region59: #{_lambda_.4} parent=55 // pred_region
        _
      $region60: #{_lambda_.4} parent=55 // pred_fallthru
        _
    $region56: #{_lambda_.4} parent=5 // pred_fallthru
      _
    %p7000 = scmp.le.s32.totalorder 2, %s15
    // Predicated region
    $region61: #{_lambda_.4} parent=5 // pred_check
      %p7001 = pneg %p7000
    $region62: #{_lambda_.4} parent=5 // pred_check_branch
      %7003 = sbr.rel (%p7001) target = $region64
    $region63: #{_lambda_.4} parent=5 // pred_region
      %s7004 = ssub.s32 %s15, 2
      // Predicated region
      $region65: #{_lambda_.4} parent=63 // pred_check
        %p7005 = pneg %p238
      $region66: #{_lambda_.4} parent=63 // pred_check_branch
        %7007 = sbr.rel (%p7005) target = $region68
      $region67: #{_lambda_.4} parent=63 // pred_region
        %p7008 = scmp.lt.s32.totalorder %s21, 1
        %s7009 = scalar_select %p7008, %s21, 1
        %s7010 = smul.addr %s7009, 64
        %s7011 = smul.addr %s7010, 8
        %s7012 = scalar_lea.vmem %s9, %s7011
      $region68: #{_lambda_.4} parent=63 // pred_fallthru
        _
    $region64: #{_lambda_.4} parent=5 // pred_fallthru
      _
  $region6: #{_lambda_.4} parent=0 // loop_footer
    %s19 = sadd.s32 1, %s15
  $region7: #{_lambda_.4} parent=0 // loop_footer_branch
    %14 = sbr.rel target = $region3
  $region8: #{_lambda_.4} parent=0 // loop_exit
    _

</llo_original>
